<compile_context>
chip_gen: v7x
topology: tpu7x:2x2x1
jax: 0.10.0
libtpu: 0.0.40
codegen_flags: <defaults>
</compile_context>

<pallas_src>
import math

import numpy as np
import jax
import jax.numpy as jnp
from jax.experimental import pallas as pl
from jax.experimental.pallas import tpu as pltpu


# ---------------------------------------------------------------------------
# tanh-form GELU: ~4-5 VALU ops + 1 EUP tanh per element; |err| vs the exact
# erf GELU < ~3e-3 absolute (negligible at the activation scales seen here).
_GELU_K0 = 0.7978845608028654   # sqrt(2/pi)
_GELU_K1 = 0.044715


def _gelu(x):
    inner = _GELU_K0 * (x + _GELU_K1 * (x * x * x))
    return 0.5 * x * (1.0 + jnp.tanh(inner))


# ---------------------------------------------------------------------------
# The whole LMDA forward for one batch block.  Shape-generic: everything is
# derived from the refs.  Layout: chans on SUBLANES (8 = one sublane tile),
# (batch, time) flattened on LANES (lane index = tb*S + w, L = TB*S lane-dense).
def _lmda_kernel(x_ref, a_ref, b1_ref, aconv_ref, wf_ref, bf_ref,
                 wc_ref, seg_ref, bcls_ref, out_ref):
    f32 = jnp.float32
    cd1, chans, _ = a_ref.shape
    nclass = wc_ref.shape[0]

    x2 = x_ref[0]                                            # (chans, L)
    L = x2.shape[-1]

    # (1)+(2)+(3) einsum + 1x1 conv + BN1 + depthwise(1,1) + BN2 folded into a
    # per-(d1, chan) scale and per-d1 bias -> pure VPU broadcast-mul (no MXU),
    # then GELU on the (cd1, chans, L) tile.
    t1 = a_ref[...] * x2[None, :, :] + b1_ref[...]           # (cd1, chans, L)
    x_att = _gelu(t1)

    # (4) EEGDepthAttention: mean over EEG chans (sublane reduce; the 1/chans
    # factor is folded into aconv), banded (k,1) conv along cd1 (small matmul),
    # softmax over cd1, broadcast rescale (the *C = cd1 factor is folded into Wf).
    pooled = jnp.sum(x_att, axis=1)                          # (cd1, L)
    y = jnp.dot(aconv_ref[...], pooled, preferred_element_type=f32)
    # conv bias omitted: softmax over cd1 is invariant to a uniform shift.
    m = jnp.max(y, axis=0, keepdims=True)
    ey = jnp.exp(y - m)
    r = pl.reciprocal(jnp.sum(ey, axis=0, keepdims=True), approx=True)  # EUP
    sm = ey * r                                              # softmax over cd1
    attn = sm[:, None, :] * x_att                            # (cd1, chans, L)

    # (5) chanel_conv: 1x1 (w2) + BN3 + depthwise (chans,1) + BN4 fused into a
    # single MXU matmul contracting over cd1*chans (= 192), then GELU.
    # chans == 8 makes the (cd1, chans, L) -> (cd1*chans, L) flatten
    # layout-preserving (one full sublane tile per outer index).
    attn_flat = attn.reshape(cd1 * chans, L)
    v = jnp.dot(wf_ref[...], attn_flat, preferred_element_type=f32) + bf_ref[...]
    out2 = _gelu(v)                                          # (cd2, L)

    # (6)+(7) AvgPool3d((1,1,pool)) + Linear: per-class elementwise mul +
    # sublane reduce (no (nclass, cd2, L) temporary), then a segment-sum matmul
    # over time windows; one dense (nclass, TB) store per grid step.
    msum = jnp.concatenate(
        [jnp.sum(wc_ref[c] * out2, axis=0, keepdims=True) for c in range(nclass)],
        axis=0)                                              # (nclass, L)
    logits = (jnp.dot(msum, seg_ref[...], preferred_element_type=f32)
              + bcls_ref[...])                               # (nclass, TB)
    out_ref[0] = logits


# ---------------------------------------------------------------------------
# Parameter construction (deterministic, mirrors the module __init__ shapes).
def _xavier_uniform(key, shape, fan_in, fan_out):
    limit = math.sqrt(6.0 / (fan_in + fan_out))
    return jax.random.uniform(key, shape, jnp.float32, -limit, limit)


def _bn_eval_affine(num_features, eps=1e-5):
    gamma = jnp.ones((num_features,), jnp.float32)
    beta = jnp.zeros((num_features,), jnp.float32)
    running_mean = jnp.zeros((num_features,), jnp.float32)
    running_var = jnp.ones((num_features,), jnp.float32)
    a = gamma / jnp.sqrt(running_var + eps)
    b = beta - running_mean * a
    return a, b


def _band_matrix_from_taps(taps, n, k):
    """(k,1) conv with pad (k//2, 0) along an axis of length n, as an n x n matrix."""
    pad = k // 2
    taps = np.asarray(taps, np.float32)
    A = np.zeros((n, n), np.float32)
    for j in range(n):
        for i in range(k):
            m = j + i - pad
            if 0 <= m < n:
                A[j, m] = taps[i]
    return jnp.asarray(A)


def init_params(key, *, chans, samples, depth, cd1, cd2, K, pool, nclass, attn_k=7):
    ks = jax.random.split(key, 7)

    # channel_weight: (depth, 1, chans), xavier_uniform_
    cw = _xavier_uniform(ks[0], (depth, 1, chans), 1 * chans, depth * chans)

    # time_conv
    w1 = _xavier_uniform(ks[1], (cd1, depth, 1, 1), depth, cd1).reshape(cd1, depth)
    wdwt = _xavier_uniform(ks[2], (cd1, 1, 1, K), 1 * K, cd1 * K).reshape(cd1, K)
    bn1a, bn1b = _bn_eval_affine(cd1)
    bn2a, bn2b = _bn_eval_affine(cd1)

    # EEGDepthAttention conv (1 -> 1, kernel (attn_k, 1), padding (attn_k//2, 0), bias)
    kw, kb = jax.random.split(ks[3])
    att_taps = _xavier_uniform(kw, (1, 1, attn_k, 1), attn_k, attn_k).reshape(attn_k)
    bound = 1.0 / math.sqrt(attn_k)
    att_bias = jax.random.uniform(kb, (), jnp.float32, -bound, bound)

    # chanel_conv
    w2 = _xavier_uniform(ks[4], (cd2, cd1, 1, 1), cd1, cd2).reshape(cd2, cd1)
    wdwc = _xavier_uniform(ks[5], (cd2, 1, chans, 1),
                           chans, cd2 * chans).reshape(cd2, chans)
    bn3a, bn3b = _bn_eval_affine(cd2)
    bn4a, bn4b = _bn_eval_affine(cd2)

    # classifier: Linear(cd2 * 1 * (samples // pool) -> nclass), bias zero-init
    flat = cd2 * 1 * (samples // pool)
    wcls = _xavier_uniform(ks[6], (nclass, flat), flat, nclass)
    bcls = jnp.zeros((nclass,), jnp.float32)

    return (cw, w1, bn1a, bn1b, wdwt, bn2a, bn2b, att_taps, att_bias,
            w2, bn3a, bn3b, wdwc, bn4a, bn4b, wcls, bcls)


# ---------------------------------------------------------------------------
# Wrapper-side constant folding (pure weight precompute, free at runtime).
def fold_params(raw, *, chans, S, cd1, cd2, K, pool, nclass, TB, attn_k=7):
    assert K == 1, "folded time_conv requires kernel == 1 (see header note)"
    (cw, w1, bn1a, bn1b, wdwt, bn2a, bn2b, att_taps, att_bias,
     w2, bn3a, bn3b, wdwc, bn4a, bn4b, wcls, bcls) = raw
    del att_bias  # softmax over cd1 is invariant to a uniform shift -> no-op
    Wout = S - K + 1                      # == S
    Wp = Wout // pool
    L = TB * S

    # -- einsum + 1x1 conv + BN1 + depthwise(1,1) + BN2 -> per-(d1, chan) scale
    #    + per-d1 bias, applied as a VPU broadcast-mul in the kernel (no MXU).
    cw2 = cw[:, 0, :]                                        # (depth, chans)
    M1 = w1 @ cw2                                            # (cd1, chans)
    A = (bn2a * wdwt[:, 0] * bn1a)[:, None] * M1             # (cd1, chans)
    A3 = A[:, :, None]                                       # (cd1, chans, 1)
    bias1 = (bn2a * wdwt[:, 0] * bn1b + bn2b)[:, None, None] # (cd1, 1, 1)

    # -- EEGDepthAttention banded (attn_k,1) conv along cd1; the mean-over-chans
    #    1/chans factor is folded in.
    aconv = _band_matrix_from_taps(att_taps, cd1, attn_k) / float(chans)

    # -- chanel_conv: 1x1 + BN3 + depthwise(chans,1) + BN4 as one contraction
    #    over cd1*chans; the depth-attention *C (= cd1) rescale is folded in.
    Wf = ((bn4a * bn3a)[:, None, None]
          * w2[:, :, None] * wdwc[:, None, :]).reshape(cd2, cd1 * chans)
    Wf = Wf * float(cd1)
    bf = (bn4a * bn3b * jnp.sum(wdwc, axis=1) + bn4b)[:, None]   # (cd2, 1)

    # -- AvgPool(1,1,pool) + Linear classifier: per-lane weights + segment sum.
    wcls3 = wcls.reshape(nclass, cd2, Wp)
    Wcp = jnp.zeros((nclass, cd2, S), jnp.float32)
    Wcp = Wcp.at[:, :, :Wp * pool].set(
        jnp.repeat(wcls3, pool, axis=2) / float(pool))
    WcBig = jnp.tile(Wcp, (1, 1, TB))                        # (nclass, cd2, L)
    seg = jnp.repeat(jnp.eye(TB, dtype=jnp.float32), S, axis=0)  # (L, TB)
    bcls_col = bcls[:, None]                                 # (nclass, 1)

    return (A3, bias1, aconv, Wf, bf, WcBig, seg, bcls_col)


# ---------------------------------------------------------------------------
def _const_index_map(ndim):
    return lambda b: (0,) * ndim


def _const_specs(arrays, single_buffer):
    """BlockSpecs for grid-invariant operands; single-buffered when supported."""
    specs = []
    for a in arrays:
        idx = _const_index_map(a.ndim)
        if single_buffer:
            specs.append(pl.BlockSpec(a.shape, idx, pipeline_mode=pl.Buffered(1)))
        else:
            specs.append(pl.BlockSpec(a.shape, idx))
    return specs


def lmda_forward(x, raw_params, *, chans, samples, cd1, cd2, K, pool, nclass,
                 block_batch=32):
    B = x.shape[0]
    S = samples
    Wout = S - K + 1
    assert Wout == S, "LMDA forward only broadcasts when kernel == 1"

    TB = min(block_batch, B)
    Bpad = ((B + TB - 1) // TB) * TB
    nblk = Bpad // TB
    L = TB * S

    # glue: squeeze the size-1 'd' axis, zero-pad the batch and go lane-dense:
    # (nblk, chans, TB*S) with lane index = tb*S + w.
    x3 = x.reshape(B, chans, S).astype(jnp.float32)
    if Bpad != B:
        x3 = jnp.concatenate(
            [x3, jnp.zeros((Bpad - B, chans, S), jnp.float32)], axis=0)
    xb = x3.reshape(nblk, TB, chans, S).transpose(0, 2, 1, 3).reshape(nblk, chans, L)

    folded = fold_params(raw_params, chans=chans, S=S, cd1=cd1, cd2=cd2, K=K,
                         pool=pool, nclass=nclass, TB=TB)
    (A3, bias1, aconv, Wf, bf, WcBig, seg, bclsc) = folded
    ins = [xb, A3, bias1, aconv, Wf, bf, WcBig, seg, bclsc]

    # NOTE: logits store per step is (nclass, TB); choosing TB as a multiple of
    # 128 (when B allows) would make it lane-dense.  Here B = 64 caps TB at 32
    # and keeps nblk even so a v7x megacore gets work on both TensorCores.
    # At production sizes (chans~22, samples~1125) re-budget TB: ~7 MB live f32
    # per TB unit -> TB~4-6 on v7x (64 MiB VMEM), ~2x on v5e/v6e.
    out_shape = jax.ShapeDtypeStruct((nblk, nclass, TB), jnp.float32)
    out_spec = pl.BlockSpec((1, nclass, TB), lambda b: (b, 0, 0))
    x_spec = pl.BlockSpec((1, chans, L), lambda b: (b, 0, 0))

    def _run(single_buffer):
        in_specs = [x_spec] + _const_specs(ins[1:], single_buffer)
        res = pl.pallas_call(
            _lmda_kernel,
            out_shape=out_shape,
            grid_spec=pltpu.PrefetchScalarGridSpec(
                num_scalar_prefetch=0,
                grid=(nblk,),
                in_specs=in_specs,
                out_specs=out_spec,
            ),
            compiler_params=pltpu.CompilerParams(
                dimension_semantics=("parallel",),
                vmem_limit_bytes=32 * 1024 * 1024),
        )(*ins)
        return jax.block_until_ready(res)

    out = None
    if hasattr(pl, "Buffered"):
        try:
            out = _run(True)       # single-buffer the grid-invariant operands
        except Exception:
            out = None             # this build rejects Buffered(1) -> fall back
    if out is None:
        out = _run(False)

    return out.transpose(0, 2, 1).reshape(Bpad, nclass)[:B]


# ---------------------------------------------------------------------------
# Pure-JAX reference (eval-mode, exact erf GELU), used for the self-check.
def lmda_reference(x, raw, *, chans, S, cd1, cd2, K, pool, nclass, attn_k=7):
    (cw, w1, bn1a, bn1b, wdwt, bn2a, bn2b, att_taps, att_bias,
     w2, bn3a, bn3b, wdwc, bn4a, bn4b, wcls, bcls) = raw
    B = x.shape[0]
    Wout = S - K + 1
    x4 = x.astype(jnp.float32)                                   # (B,1,chans,S)

    z = jnp.einsum('bdcw,hdc->bhcw', x4, cw)                     # (B,depth,chans,S)
    t = jnp.einsum('oh,bhcw->bocw', w1, z)                       # 1x1 conv
    t = bn1a[None, :, None, None] * t + bn1b[None, :, None, None]
    tdw = jnp.zeros((B, cd1, chans, Wout), jnp.float32)
    for kk in range(K):                                          # depthwise (1,K)
        tdw = tdw + t[:, :, :, kk:kk + Wout] * wdwt[None, :, kk, None, None]
    t = bn2a[None, :, None, None] * tdw + bn2b[None, :, None, None]
    xatt = jax.nn.gelu(t, approximate=False)

    pooled = jnp.mean(xatt, axis=2, keepdims=True)               # (B,cd1,1,Wout)
    xt = jnp.transpose(pooled, (0, 2, 1, 3))                     # (B,1,cd1,Wout)
    pad = attn_k // 2
    xt_p = jnp.pad(xt, ((0, 0), (0, 0), (pad, pad), (0, 0)))
    y = jnp.zeros_like(xt)
    for j in range(attn_k):
        y = y + att_taps[j] * xt_p[:, :, j:j + cd1, :]
    y = y + att_bias
    y = jax.nn.softmax(y, axis=-2)
    y = jnp.transpose(y, (0, 2, 1, 3))
    xatt = y * float(cd1) * xatt

    u = jnp.einsum('oh,bhcw->bocw', w2, xatt)
    u = bn3a[None, :, None, None] * u + bn3b[None, :, None, None]
    v = jnp.einsum('oc,bocw->bow', wdwc, u)
    v = bn4a[None, :, None] * v + bn4b[None, :, None]
    v = jax.nn.gelu(v, approximate=False)                        # (B,cd2,Wout)

    Wp = Wout // pool
    vp = v[:, :, :Wp * pool].reshape(B, cd2, Wp, pool).mean(-1)
    feat = vp.reshape(B, cd2 * Wp)
    return feat @ wcls.T + bcls[None, :]


# ---------------------------------------------------------------------------
if __name__ == "__main__":
    # small, self-consistent LMDA configuration
    B = 64
    chans = 8
    samples = 20
    depth = 9
    channel_depth1 = 24
    channel_depth2 = 9
    kernel_size = 1          # required for the module's own forward to broadcast
    avepool = 5
    num_classes = 2
    TB = 32                  # batch block: TB*samples = 640 = 5*128 lanes; nblk = 2

    key = jax.random.PRNGKey(0)
    kx, kp = jax.random.split(key)
    x = jax.random.normal(kx, (B, 1, chans, samples), jnp.float32)

    raw = init_params(kp, chans=chans, samples=samples, depth=depth,
                      cd1=channel_depth1, cd2=channel_depth2,
                      K=kernel_size, pool=avepool, nclass=num_classes)

    logits = lmda_forward(x, raw, chans=chans, samples=samples,
                          cd1=channel_depth1, cd2=channel_depth2,
                          K=kernel_size, pool=avepool, nclass=num_classes,
                          block_batch=TB)
    logits = jax.block_until_ready(logits)

    ref = lmda_reference(x, raw, chans=chans, S=samples,
                         cd1=channel_depth1, cd2=channel_depth2,
                         K=kernel_size, pool=avepool, nclass=num_classes)
    ref = jax.block_until_ready(ref)

    assert logits.shape == (B, num_classes), logits.shape
    assert bool(np.all(np.isfinite(np.asarray(logits)))), "non-finite output"
    # tolerance covers the tanh-form GELU and the EUP approx reciprocal in the
    # softmax (both O(1e-4..1e-3) vs the exact-erf / exact-divide reference).
    np.testing.assert_allclose(np.asarray(logits), np.asarray(ref),
                               rtol=1e-2, atol=1e-2)
    print("KERNEL_OK")
</pallas_src>

<mosaic_0001>
module attributes {stable_mosaic.version = 11 : i64} {
  func.func @_lmda_kernel(%arg0: i32, %arg1: memref<1x8x640xf32, #tpu.memory_space<vmem>>, %arg2: memref<24x8x1xf32, #tpu.memory_space<vmem>>, %arg3: memref<24x1x1xf32, #tpu.memory_space<vmem>>, %arg4: memref<24x24xf32, #tpu.memory_space<vmem>>, %arg5: memref<9x192xf32, #tpu.memory_space<vmem>>, %arg6: memref<9x1xf32, #tpu.memory_space<vmem>>, %arg7: memref<2x9x640xf32, #tpu.memory_space<vmem>>, %arg8: memref<640x32xf32, #tpu.memory_space<vmem>>, %arg9: memref<2x1xf32, #tpu.memory_space<vmem>>, %arg10: memref<1x2x32xf32, #tpu.memory_space<vmem>>) attributes {dimension_semantics = [#tpu.dimension_semantics<parallel>], iteration_bounds = array<i64: 2>, scalar_prefetch = 0 : i64, scratch_operands = 0 : i64, tpu.core_type = #tpu.core_type<tc>, window_params = [{transform_indices = @transform_0, window_bounds = array<i64: 1, 8, 640>}, {pipeline_mode = #tpu.pipeline_mode<synchronous>, transform_indices = @transform_1, window_bounds = array<i64: 24, 8, 1>}, {pipeline_mode = #tpu.pipeline_mode<synchronous>, transform_indices = @transform_2, window_bounds = array<i64: 24, 1, 1>}, {pipeline_mode = #tpu.pipeline_mode<synchronous>, transform_indices = @transform_3, window_bounds = array<i64: 24, 24>}, {pipeline_mode = #tpu.pipeline_mode<synchronous>, transform_indices = @transform_4, window_bounds = array<i64: 9, 192>}, {pipeline_mode = #tpu.pipeline_mode<synchronous>, transform_indices = @transform_5, window_bounds = array<i64: 9, 1>}, {pipeline_mode = #tpu.pipeline_mode<synchronous>, transform_indices = @transform_6, window_bounds = array<i64: 2, 9, 640>}, {pipeline_mode = #tpu.pipeline_mode<synchronous>, transform_indices = @transform_7, window_bounds = array<i64: 640, 32>}, {pipeline_mode = #tpu.pipeline_mode<synchronous>, transform_indices = @transform_8, window_bounds = array<i64: 2, 1>}, {transform_indices = @transform_9, window_bounds = array<i64: 1, 2, 32>}]} {
    %c0 = arith.constant 0 : index
    %c0_0 = arith.constant 0 : index
    %c0_1 = arith.constant 0 : index
    %0 = vector.load %arg1[%c0, %c0_0, %c0_1] : memref<1x8x640xf32, #tpu.memory_space<vmem>>, vector<1x8x640xf32>
    %1 = vector.shape_cast %0 : vector<1x8x640xf32> to vector<8x640xf32>
    %c0_2 = arith.constant 0 : index
    %c0_3 = arith.constant 0 : index
    %c0_4 = arith.constant 0 : index
    %2 = vector.load %arg2[%c0_2, %c0_3, %c0_4] : memref<24x8x1xf32, #tpu.memory_space<vmem>>, vector<24x8x1xf32>
    %3 = vector.shape_cast %1 : vector<8x640xf32> to vector<1x8x640xf32>
    %4 = vector.broadcast %2 : vector<24x8x1xf32> to vector<24x8x640xf32>
    %5 = vector.broadcast %3 : vector<1x8x640xf32> to vector<24x8x640xf32>
    %6 = arith.mulf %4, %5 : vector<24x8x640xf32>
    %c0_5 = arith.constant 0 : index
    %c0_6 = arith.constant 0 : index
    %c0_7 = arith.constant 0 : index
    %7 = vector.load %arg3[%c0_5, %c0_6, %c0_7] : memref<24x1x1xf32, #tpu.memory_space<vmem>>, vector<24x1x1xf32>
    %8 = vector.broadcast %7 : vector<24x1x1xf32> to vector<24x8x640xf32>
    %9 = arith.addf %6, %8 : vector<24x8x640xf32>
    %10 = arith.mulf %9, %9 : vector<24x8x640xf32>
    %11 = arith.mulf %10, %9 : vector<24x8x640xf32>
    %cst = arith.constant 4.471500e-02 : f32
    %12 = vector.broadcast %cst : f32 to vector<24x8x640xf32>
    %13 = arith.mulf %12, %11 : vector<24x8x640xf32>
    %14 = arith.addf %9, %13 : vector<24x8x640xf32>
    %cst_8 = arith.constant 0.797884583 : f32
    %15 = vector.broadcast %cst_8 : f32 to vector<24x8x640xf32>
    %16 = arith.mulf %15, %14 : vector<24x8x640xf32>
    %cst_9 = arith.constant 5.000000e-01 : f32
    %17 = vector.broadcast %cst_9 : f32 to vector<24x8x640xf32>
    %18 = arith.mulf %17, %9 : vector<24x8x640xf32>
    %19 = math.tanh %16 : vector<24x8x640xf32>
    %cst_10 = arith.constant 1.000000e+00 : f32
    %20 = vector.broadcast %cst_10 : f32 to vector<24x8x640xf32>
    %21 = arith.addf %20, %19 : vector<24x8x640xf32>
    %22 = arith.mulf %18, %21 : vector<24x8x640xf32>
    %cst_11 = arith.constant dense<0.000000e+00> : vector<24x640xf32>
    %23 = vector.multi_reduction <add>, %22, %cst_11 [1] : vector<24x8x640xf32> to vector<24x640xf32>
    %c0_12 = arith.constant 0 : index
    %c0_13 = arith.constant 0 : index
    %24 = vector.load %arg4[%c0_12, %c0_13] : memref<24x24xf32, #tpu.memory_space<vmem>>, vector<24x24xf32>
    %cst_14 = arith.constant dense<0.000000e+00> : vector<24x640xf32>
    %25 = tpu.matmul %24, %23, %cst_14 {dimension_numbers = #tpu.dot_dimension_numbers<[1], [0], [0], [1], [0, 0, 1, 1], [], []>} : vector<24x24xf32>, vector<24x640xf32>, vector<24x640xf32> -> vector<24x640xf32>
    %cst_15 = arith.constant dense<0xFF800000> : vector<640xf32>
    %26 = vector.multi_reduction <maximumf>, %25, %cst_15 [0] : vector<24x640xf32> to vector<640xf32>
    %27 = vector.shape_cast %26 : vector<640xf32> to vector<1x640xf32>
    %28 = vector.broadcast %27 : vector<1x640xf32> to vector<24x640xf32>
    %29 = arith.subf %25, %28 : vector<24x640xf32>
    %30 = math.exp %29 : vector<24x640xf32>
    %cst_16 = arith.constant dense<0.000000e+00> : vector<640xf32>
    %31 = vector.multi_reduction <add>, %30, %cst_16 [0] : vector<24x640xf32> to vector<640xf32>
    %32 = vector.shape_cast %31 : vector<640xf32> to vector<1x640xf32>
    %33 = tpu.reciprocal %32 {approx = true} : vector<1x640xf32> -> vector<1x640xf32>
    %34 = vector.broadcast %33 : vector<1x640xf32> to vector<24x640xf32>
    %35 = arith.mulf %30, %34 : vector<24x640xf32>
    %36 = vector.shape_cast %35 : vector<24x640xf32> to vector<24x1x640xf32>
    %37 = vector.broadcast %36 : vector<24x1x640xf32> to vector<24x8x640xf32>
    %38 = arith.mulf %37, %22 : vector<24x8x640xf32>
    %39 = vector.shape_cast %38 : vector<24x8x640xf32> to vector<192x640xf32>
    %c0_17 = arith.constant 0 : index
    %c0_18 = arith.constant 0 : index
    %40 = vector.load %arg5[%c0_17, %c0_18] : memref<9x192xf32, #tpu.memory_space<vmem>>, vector<9x192xf32>
    %cst_19 = arith.constant dense<0.000000e+00> : vector<9x640xf32>
    %41 = tpu.matmul %40, %39, %cst_19 {dimension_numbers = #tpu.dot_dimension_numbers<[1], [0], [0], [1], [0, 0, 1, 1], [], []>} : vector<9x192xf32>, vector<192x640xf32>, vector<9x640xf32> -> vector<9x640xf32>
    %c0_20 = arith.constant 0 : index
    %c0_21 = arith.constant 0 : index
    %42 = vector.load %arg6[%c0_20, %c0_21] : memref<9x1xf32, #tpu.memory_space<vmem>>, vector<9x1xf32>
    %43 = vector.broadcast %42 : vector<9x1xf32> to vector<9x640xf32>
    %44 = arith.addf %41, %43 : vector<9x640xf32>
    %45 = arith.mulf %44, %44 : vector<9x640xf32>
    %46 = arith.mulf %45, %44 : vector<9x640xf32>
    %cst_22 = arith.constant 4.471500e-02 : f32
    %47 = vector.broadcast %cst_22 : f32 to vector<9x640xf32>
    %48 = arith.mulf %47, %46 : vector<9x640xf32>
    %49 = arith.addf %44, %48 : vector<9x640xf32>
    %cst_23 = arith.constant 0.797884583 : f32
    %50 = vector.broadcast %cst_23 : f32 to vector<9x640xf32>
    %51 = arith.mulf %50, %49 : vector<9x640xf32>
    %cst_24 = arith.constant 5.000000e-01 : f32
    %52 = vector.broadcast %cst_24 : f32 to vector<9x640xf32>
    %53 = arith.mulf %52, %44 : vector<9x640xf32>
    %54 = math.tanh %51 : vector<9x640xf32>
    %cst_25 = arith.constant 1.000000e+00 : f32
    %55 = vector.broadcast %cst_25 : f32 to vector<9x640xf32>
    %56 = arith.addf %55, %54 : vector<9x640xf32>
    %57 = arith.mulf %53, %56 : vector<9x640xf32>
    %c0_26 = arith.constant 0 : index
    %c0_27 = arith.constant 0 : index
    %c0_28 = arith.constant 0 : index
    %58 = vector.load %arg7[%c0_26, %c0_27, %c0_28] : memref<2x9x640xf32, #tpu.memory_space<vmem>>, vector<1x9x640xf32>
    %59 = vector.shape_cast %58 : vector<1x9x640xf32> to vector<9x640xf32>
    %60 = arith.mulf %59, %57 : vector<9x640xf32>
    %cst_29 = arith.constant dense<0.000000e+00> : vector<640xf32>
    %61 = vector.multi_reduction <add>, %60, %cst_29 [0] : vector<9x640xf32> to vector<640xf32>
    %62 = vector.shape_cast %61 : vector<640xf32> to vector<1x640xf32>
    %c1 = arith.constant 1 : index
    %c0_30 = arith.constant 0 : index
    %c0_31 = arith.constant 0 : index
    %63 = vector.load %arg7[%c1, %c0_30, %c0_31] : memref<2x9x640xf32, #tpu.memory_space<vmem>>, vector<1x9x640xf32>
    %64 = vector.shape_cast %63 : vector<1x9x640xf32> to vector<9x640xf32>
    %65 = arith.mulf %64, %57 : vector<9x640xf32>
    %cst_32 = arith.constant dense<0.000000e+00> : vector<640xf32>
    %66 = vector.multi_reduction <add>, %65, %cst_32 [0] : vector<9x640xf32> to vector<640xf32>
    %67 = vector.shape_cast %66 : vector<640xf32> to vector<1x640xf32>
    %68 = tpu.concatenate %62, %67 in 0 : vector<1x640xf32>, vector<1x640xf32> -> vector<2x640xf32>
    %c0_33 = arith.constant 0 : index
    %c0_34 = arith.constant 0 : index
    %69 = vector.load %arg8[%c0_33, %c0_34] : memref<640x32xf32, #tpu.memory_space<vmem>>, vector<640x32xf32>
    %cst_35 = arith.constant dense<0.000000e+00> : vector<2x32xf32>
    %70 = tpu.matmul %68, %69, %cst_35 {dimension_numbers = #tpu.dot_dimension_numbers<[1], [0], [0], [1], [0, 0, 1, 1], [], []>} : vector<2x640xf32>, vector<640x32xf32>, vector<2x32xf32> -> vector<2x32xf32>
    %c0_36 = arith.constant 0 : index
    %c0_37 = arith.constant 0 : index
    %71 = vector.load %arg9[%c0_36, %c0_37] : memref<2x1xf32, #tpu.memory_space<vmem>>, vector<2x1xf32>
    %72 = vector.broadcast %71 : vector<2x1xf32> to vector<2x32xf32>
    %73 = arith.addf %70, %72 : vector<2x32xf32>
    %c0_38 = arith.constant 0 : index
    %c0_39 = arith.constant 0 : index
    %c0_40 = arith.constant 0 : index
    %74 = vector.load %arg10[%c0_38, %c0_39, %c0_40] : memref<1x2x32xf32, #tpu.memory_space<vmem>>, vector<1x2x32xf32>
    %75 = vector.shape_cast %74 : vector<1x2x32xf32> to vector<2x32xf32>
    %76 = vector.shape_cast %73 : vector<2x32xf32> to vector<1x2x32xf32>
    tpu.vector_store %arg10[%c0_38, %c0_39, %c0_40], %76 {strides = array<i32>} : memref<1x2x32xf32, #tpu.memory_space<vmem>>, vector<1x2x32xf32>,
    return
  }
  func.func @transform_0(%arg0: i32) -> (i32, i32, i32) {
    %c0_i32 = arith.constant 0 : i32
    %c0_i32_0 = arith.constant 0 : i32
    %c0_i32_1 = arith.constant 0 : i32
    return %arg0, %c0_i32, %c0_i32_0 : i32, i32, i32
  }
  func.func @transform_1(%arg0: i32) -> (i32, i32, i32) {
    %c0_i32 = arith.constant 0 : i32
    %c0_i32_0 = arith.constant 0 : i32
    %c0_i32_1 = arith.constant 0 : i32
    %c0_i32_2 = arith.constant 0 : i32
    return %c0_i32, %c0_i32_0, %c0_i32_1 : i32, i32, i32
  }
  func.func @transform_2(%arg0: i32) -> (i32, i32, i32) {
    %c0_i32 = arith.constant 0 : i32
    %c0_i32_0 = arith.constant 0 : i32
    %c0_i32_1 = arith.constant 0 : i32
    %c0_i32_2 = arith.constant 0 : i32
    return %c0_i32, %c0_i32_0, %c0_i32_1 : i32, i32, i32
  }
  func.func @transform_3(%arg0: i32) -> (i32, i32) {
    %c0_i32 = arith.constant 0 : i32
    %c0_i32_0 = arith.constant 0 : i32
    %c0_i32_1 = arith.constant 0 : i32
    return %c0_i32, %c0_i32_0 : i32, i32
  }
  func.func @transform_4(%arg0: i32) -> (i32, i32) {
    %c0_i32 = arith.constant 0 : i32
    %c0_i32_0 = arith.constant 0 : i32
    %c0_i32_1 = arith.constant 0 : i32
    return %c0_i32, %c0_i32_0 : i32, i32
  }
  func.func @transform_5(%arg0: i32) -> (i32, i32) {
    %c0_i32 = arith.constant 0 : i32
    %c0_i32_0 = arith.constant 0 : i32
    %c0_i32_1 = arith.constant 0 : i32
    return %c0_i32, %c0_i32_0 : i32, i32
  }
  func.func @transform_6(%arg0: i32) -> (i32, i32, i32) {
    %c0_i32 = arith.constant 0 : i32
    %c0_i32_0 = arith.constant 0 : i32
    %c0_i32_1 = arith.constant 0 : i32
    %c0_i32_2 = arith.constant 0 : i32
    return %c0_i32, %c0_i32_0, %c0_i32_1 : i32, i32, i32
  }
  func.func @transform_7(%arg0: i32) -> (i32, i32) {
    %c0_i32 = arith.constant 0 : i32
    %c0_i32_0 = arith.constant 0 : i32
    %c0_i32_1 = arith.constant 0 : i32
    return %c0_i32, %c0_i32_0 : i32, i32
  }
  func.func @transform_8(%arg0: i32) -> (i32, i32) {
    %c0_i32 = arith.constant 0 : i32
    %c0_i32_0 = arith.constant 0 : i32
    %c0_i32_1 = arith.constant 0 : i32
    return %c0_i32, %c0_i32_0 : i32, i32
  }
  func.func @transform_9(%arg0: i32) -> (i32, i32, i32) {
    %c0_i32 = arith.constant 0 : i32
    %c0_i32_0 = arith.constant 0 : i32
    %c0_i32_1 = arith.constant 0 : i32
    return %arg0, %c0_i32, %c0_i32_0 : i32, i32, i32
  }
}

module attributes {stable_mosaic.version = 11 : i64} {
  func.func @_lmda_kernel(%arg0: i32, %arg1: memref<1x8x640xf32, #tpu.memory_space<vmem>>, %arg2: memref<24x8x1xf32, #tpu.memory_space<vmem>>, %arg3: memref<24x1x1xf32, #tpu.memory_space<vmem>>, %arg4: memref<24x24xf32, #tpu.memory_space<vmem>>, %arg5: memref<9x192xf32, #tpu.memory_space<vmem>>, %arg6: memref<9x1xf32, #tpu.memory_space<vmem>>, %arg7: memref<2x9x640xf32, #tpu.memory_space<vmem>>, %arg8: memref<640x32xf32, #tpu.memory_space<vmem>>, %arg9: memref<2x1xf32, #tpu.memory_space<vmem>>, %arg10: memref<1x2x32xf32, #tpu.memory_space<vmem>>) attributes {dimension_semantics = [#tpu.dimension_semantics<parallel>], iteration_bounds = array<i64: 2>, scalar_prefetch = 0 : i64, scratch_operands = 0 : i64, tpu.core_type = #tpu.core_type<tc>, window_params = [{transform_indices = @transform_0, window_bounds = array<i64: 1, 8, 640>}, {pipeline_mode = #tpu.pipeline_mode<synchronous>, transform_indices = @transform_1, window_bounds = array<i64: 24, 8, 1>}, {pipeline_mode = #tpu.pipeline_mode<synchronous>, transform_indices = @transform_2, window_bounds = array<i64: 24, 1, 1>}, {pipeline_mode = #tpu.pipeline_mode<synchronous>, transform_indices = @transform_3, window_bounds = array<i64: 24, 24>}, {pipeline_mode = #tpu.pipeline_mode<synchronous>, transform_indices = @transform_4, window_bounds = array<i64: 9, 192>}, {pipeline_mode = #tpu.pipeline_mode<synchronous>, transform_indices = @transform_5, window_bounds = array<i64: 9, 1>}, {pipeline_mode = #tpu.pipeline_mode<synchronous>, transform_indices = @transform_6, window_bounds = array<i64: 2, 9, 640>}, {pipeline_mode = #tpu.pipeline_mode<synchronous>, transform_indices = @transform_7, window_bounds = array<i64: 640, 32>}, {pipeline_mode = #tpu.pipeline_mode<synchronous>, transform_indices = @transform_8, window_bounds = array<i64: 2, 1>}, {transform_indices = @transform_9, window_bounds = array<i64: 1, 2, 32>}]} {
    %c0 = arith.constant 0 : index
    %c0_0 = arith.constant 0 : index
    %c0_1 = arith.constant 0 : index
    %0 = vector.load %arg1[%c0, %c0_0, %c0_1] : memref<1x8x640xf32, #tpu.memory_space<vmem>>, vector<1x8x640xf32>
    %1 = vector.shape_cast %0 : vector<1x8x640xf32> to vector<8x640xf32>
    %c0_2 = arith.constant 0 : index
    %c0_3 = arith.constant 0 : index
    %c0_4 = arith.constant 0 : index
    %2 = vector.load %arg2[%c0_2, %c0_3, %c0_4] : memref<24x8x1xf32, #tpu.memory_space<vmem>>, vector<24x8x1xf32>
    %3 = vector.shape_cast %1 : vector<8x640xf32> to vector<1x8x640xf32>
    %4 = vector.broadcast %2 : vector<24x8x1xf32> to vector<24x8x640xf32>
    %5 = vector.broadcast %3 : vector<1x8x640xf32> to vector<24x8x640xf32>
    %6 = arith.mulf %4, %5 : vector<24x8x640xf32>
    %c0_5 = arith.constant 0 : index
    %c0_6 = arith.constant 0 : index
    %c0_7 = arith.constant 0 : index
    %7 = vector.load %arg3[%c0_5, %c0_6, %c0_7] : memref<24x1x1xf32, #tpu.memory_space<vmem>>, vector<24x1x1xf32>
    %8 = vector.broadcast %7 : vector<24x1x1xf32> to vector<24x8x640xf32>
    %9 = arith.addf %6, %8 : vector<24x8x640xf32>
    %10 = arith.mulf %9, %9 : vector<24x8x640xf32>
    %11 = arith.mulf %10, %9 : vector<24x8x640xf32>
    %cst = arith.constant 4.471500e-02 : f32
    %12 = vector.broadcast %cst : f32 to vector<24x8x640xf32>
    %13 = arith.mulf %12, %11 : vector<24x8x640xf32>
    %14 = arith.addf %9, %13 : vector<24x8x640xf32>
    %cst_8 = arith.constant 0.797884583 : f32
    %15 = vector.broadcast %cst_8 : f32 to vector<24x8x640xf32>
    %16 = arith.mulf %15, %14 : vector<24x8x640xf32>
    %cst_9 = arith.constant 5.000000e-01 : f32
    %17 = vector.broadcast %cst_9 : f32 to vector<24x8x640xf32>
    %18 = arith.mulf %17, %9 : vector<24x8x640xf32>
    %19 = math.tanh %16 : vector<24x8x640xf32>
    %cst_10 = arith.constant 1.000000e+00 : f32
    %20 = vector.broadcast %cst_10 : f32 to vector<24x8x640xf32>
    %21 = arith.addf %20, %19 : vector<24x8x640xf32>
    %22 = arith.mulf %18, %21 : vector<24x8x640xf32>
    %cst_11 = arith.constant dense<0.000000e+00> : vector<24x640xf32>
    %23 = vector.multi_reduction <add>, %22, %cst_11 [1] : vector<24x8x640xf32> to vector<24x640xf32>
    %c0_12 = arith.constant 0 : index
    %c0_13 = arith.constant 0 : index
    %24 = vector.load %arg4[%c0_12, %c0_13] : memref<24x24xf32, #tpu.memory_space<vmem>>, vector<24x24xf32>
    %cst_14 = arith.constant dense<0.000000e+00> : vector<24x640xf32>
    %25 = tpu.matmul %24, %23, %cst_14 {dimension_numbers = #tpu.dot_dimension_numbers<[1], [0], [0], [1], [0, 0, 1, 1], [], []>} : vector<24x24xf32>, vector<24x640xf32>, vector<24x640xf32> -> vector<24x640xf32>
    %cst_15 = arith.constant dense<0xFF800000> : vector<640xf32>
    %26 = vector.multi_reduction <maximumf>, %25, %cst_15 [0] : vector<24x640xf32> to vector<640xf32>
    %27 = vector.shape_cast %26 : vector<640xf32> to vector<1x640xf32>
    %28 = vector.broadcast %27 : vector<1x640xf32> to vector<24x640xf32>
    %29 = arith.subf %25, %28 : vector<24x640xf32>
    %30 = math.exp %29 : vector<24x640xf32>
    %cst_16 = arith.constant dense<0.000000e+00> : vector<640xf32>
    %31 = vector.multi_reduction <add>, %30, %cst_16 [0] : vector<24x640xf32> to vector<640xf32>
    %32 = vector.shape_cast %31 : vector<640xf32> to vector<1x640xf32>
    %33 = tpu.reciprocal %32 {approx = true} : vector<1x640xf32> -> vector<1x640xf32>
    %34 = vector.broadcast %33 : vector<1x640xf32> to vector<24x640xf32>
    %35 = arith.mulf %30, %34 : vector<24x640xf32>
    %36 = vector.shape_cast %35 : vector<24x640xf32> to vector<24x1x640xf32>
    %37 = vector.broadcast %36 : vector<24x1x640xf32> to vector<24x8x640xf32>
    %38 = arith.mulf %37, %22 : vector<24x8x640xf32>
    %39 = vector.shape_cast %38 : vector<24x8x640xf32> to vector<192x640xf32>
    %c0_17 = arith.constant 0 : index
    %c0_18 = arith.constant 0 : index
    %40 = vector.load %arg5[%c0_17, %c0_18] : memref<9x192xf32, #tpu.memory_space<vmem>>, vector<9x192xf32>
    %cst_19 = arith.constant dense<0.000000e+00> : vector<9x640xf32>
    %41 = tpu.matmul %40, %39, %cst_19 {dimension_numbers = #tpu.dot_dimension_numbers<[1], [0], [0], [1], [0, 0, 1, 1], [], []>} : vector<9x192xf32>, vector<192x640xf32>, vector<9x640xf32> -> vector<9x640xf32>
    %c0_20 = arith.constant 0 : index
    %c0_21 = arith.constant 0 : index
    %42 = vector.load %arg6[%c0_20, %c0_21] : memref<9x1xf32, #tpu.memory_space<vmem>>, vector<9x1xf32>
    %43 = vector.broadcast %42 : vector<9x1xf32> to vector<9x640xf32>
    %44 = arith.addf %41, %43 : vector<9x640xf32>
    %45 = arith.mulf %44, %44 : vector<9x640xf32>
    %46 = arith.mulf %45, %44 : vector<9x640xf32>
    %cst_22 = arith.constant 4.471500e-02 : f32
    %47 = vector.broadcast %cst_22 : f32 to vector<9x640xf32>
    %48 = arith.mulf %47, %46 : vector<9x640xf32>
    %49 = arith.addf %44, %48 : vector<9x640xf32>
    %cst_23 = arith.constant 0.797884583 : f32
    %50 = vector.broadcast %cst_23 : f32 to vector<9x640xf32>
    %51 = arith.mulf %50, %49 : vector<9x640xf32>
    %cst_24 = arith.constant 5.000000e-01 : f32
    %52 = vector.broadcast %cst_24 : f32 to vector<9x640xf32>
    %53 = arith.mulf %52, %44 : vector<9x640xf32>
    %54 = math.tanh %51 : vector<9x640xf32>
    %cst_25 = arith.constant 1.000000e+00 : f32
    %55 = vector.broadcast %cst_25 : f32 to vector<9x640xf32>
    %56 = arith.addf %55, %54 : vector<9x640xf32>
    %57 = arith.mulf %53, %56 : vector<9x640xf32>
    %c0_26 = arith.constant 0 : index
    %c0_27 = arith.constant 0 : index
    %c0_28 = arith.constant 0 : index
    %58 = vector.load %arg7[%c0_26, %c0_27, %c0_28] : memref<2x9x640xf32, #tpu.memory_space<vmem>>, vector<1x9x640xf32>
    %59 = vector.shape_cast %58 : vector<1x9x640xf32> to vector<9x640xf32>
    %60 = arith.mulf %59, %57 : vector<9x640xf32>
    %cst_29 = arith.constant dense<0.000000e+00> : vector<640xf32>
    %61 = vector.multi_reduction <add>, %60, %cst_29 [0] : vector<9x640xf32> to vector<640xf32>
    %62 = vector.shape_cast %61 : vector<640xf32> to vector<1x640xf32>
    %c1 = arith.constant 1 : index
    %c0_30 = arith.constant 0 : index
    %c0_31 = arith.constant 0 : index
    %63 = vector.load %arg7[%c1, %c0_30, %c0_31] : memref<2x9x640xf32, #tpu.memory_space<vmem>>, vector<1x9x640xf32>
    %64 = vector.shape_cast %63 : vector<1x9x640xf32> to vector<9x640xf32>
    %65 = arith.mulf %64, %57 : vector<9x640xf32>
    %cst_32 = arith.constant dense<0.000000e+00> : vector<640xf32>
    %66 = vector.multi_reduction <add>, %65, %cst_32 [0] : vector<9x640xf32> to vector<640xf32>
    %67 = vector.shape_cast %66 : vector<640xf32> to vector<1x640xf32>
    %68 = tpu.concatenate %62, %67 in 0 : vector<1x640xf32>, vector<1x640xf32> -> vector<2x640xf32>
    %c0_33 = arith.constant 0 : index
    %c0_34 = arith.constant 0 : index
    %69 = vector.load %arg8[%c0_33, %c0_34] : memref<640x32xf32, #tpu.memory_space<vmem>>, vector<640x32xf32>
    %cst_35 = arith.constant dense<0.000000e+00> : vector<2x32xf32>
    %70 = tpu.matmul %68, %69, %cst_35 {dimension_numbers = #tpu.dot_dimension_numbers<[1], [0], [0], [1], [0, 0, 1, 1], [], []>} : vector<2x640xf32>, vector<640x32xf32>, vector<2x32xf32> -> vector<2x32xf32>
    %c0_36 = arith.constant 0 : index
    %c0_37 = arith.constant 0 : index
    %71 = vector.load %arg9[%c0_36, %c0_37] : memref<2x1xf32, #tpu.memory_space<vmem>>, vector<2x1xf32>
    %72 = vector.broadcast %71 : vector<2x1xf32> to vector<2x32xf32>
    %73 = arith.addf %70, %72 : vector<2x32xf32>
    %c0_38 = arith.constant 0 : index
    %c0_39 = arith.constant 0 : index
    %c0_40 = arith.constant 0 : index
    %74 = vector.load %arg10[%c0_38, %c0_39, %c0_40] : memref<1x2x32xf32, #tpu.memory_space<vmem>>, vector<1x2x32xf32>
    %75 = vector.shape_cast %74 : vector<1x2x32xf32> to vector<2x32xf32>
    %76 = vector.shape_cast %73 : vector<2x32xf32> to vector<1x2x32xf32>
    tpu.vector_store %arg10[%c0_38, %c0_39, %c0_40], %76 {strides = array<i32>} : memref<1x2x32xf32, #tpu.memory_space<vmem>>, vector<1x2x32xf32>,
    return
  }
  func.func @transform_0(%arg0: i32) -> (i32, i32, i32) {
    %c0_i32 = arith.constant 0 : i32
    %c0_i32_0 = arith.constant 0 : i32
    %c0_i32_1 = arith.constant 0 : i32
    return %arg0, %c0_i32, %c0_i32_0 : i32, i32, i32
  }
  func.func @transform_1(%arg0: i32) -> (i32, i32, i32) {
    %c0_i32 = arith.constant 0 : i32
    %c0_i32_0 = arith.constant 0 : i32
    %c0_i32_1 = arith.constant 0 : i32
    %c0_i32_2 = arith.constant 0 : i32
    return %c0_i32, %c0_i32_0, %c0_i32_1 : i32, i32, i32
  }
  func.func @transform_2(%arg0: i32) -> (i32, i32, i32) {
    %c0_i32 = arith.constant 0 : i32
    %c0_i32_0 = arith.constant 0 : i32
    %c0_i32_1 = arith.constant 0 : i32
    %c0_i32_2 = arith.constant 0 : i32
    return %c0_i32, %c0_i32_0, %c0_i32_1 : i32, i32, i32
  }
  func.func @transform_3(%arg0: i32) -> (i32, i32) {
    %c0_i32 = arith.constant 0 : i32
    %c0_i32_0 = arith.constant 0 : i32
    %c0_i32_1 = arith.constant 0 : i32
    return %c0_i32, %c0_i32_0 : i32, i32
  }
  func.func @transform_4(%arg0: i32) -> (i32, i32) {
    %c0_i32 = arith.constant 0 : i32
    %c0_i32_0 = arith.constant 0 : i32
    %c0_i32_1 = arith.constant 0 : i32
    return %c0_i32, %c0_i32_0 : i32, i32
  }
  func.func @transform_5(%arg0: i32) -> (i32, i32) {
    %c0_i32 = arith.constant 0 : i32
    %c0_i32_0 = arith.constant 0 : i32
    %c0_i32_1 = arith.constant 0 : i32
    return %c0_i32, %c0_i32_0 : i32, i32
  }
  func.func @transform_6(%arg0: i32) -> (i32, i32, i32) {
    %c0_i32 = arith.constant 0 : i32
    %c0_i32_0 = arith.constant 0 : i32
    %c0_i32_1 = arith.constant 0 : i32
    %c0_i32_2 = arith.constant 0 : i32
    return %c0_i32, %c0_i32_0, %c0_i32_1 : i32, i32, i32
  }
  func.func @transform_7(%arg0: i32) -> (i32, i32) {
    %c0_i32 = arith.constant 0 : i32
    %c0_i32_0 = arith.constant 0 : i32
    %c0_i32_1 = arith.constant 0 : i32
    return %c0_i32, %c0_i32_0 : i32, i32
  }
  func.func @transform_8(%arg0: i32) -> (i32, i32) {
    %c0_i32 = arith.constant 0 : i32
    %c0_i32_0 = arith.constant 0 : i32
    %c0_i32_1 = arith.constant 0 : i32
    return %c0_i32, %c0_i32_0 : i32, i32
  }
  func.func @transform_9(%arg0: i32) -> (i32, i32, i32) {
    %c0_i32 = arith.constant 0 : i32
    %c0_i32_0 = arith.constant 0 : i32
    %c0_i32_1 = arith.constant 0 : i32
    return %arg0, %c0_i32, %c0_i32_0 : i32, i32, i32
  }
}

</mosaic_0001>

<llo_original>
// kernel: tpu_custom_call.1
$region0: #{tpu_custom_call.1}
  #allocation0 [shape = 'u32[]', space=smem, size = 0x4, offset = 0x4, fixed_abs, tag = 'smem constant byte address 0x4 - core index']
  #allocation1 [shape = 'u32[144,128]{1,0:T(1,128)}', space=vmem, size = 0x12000, scoped, tag = 'internal scratch']
  %s0 = inlined_call_operand.vmem [shape: f32[2,8,640], index: 0, kind: input, shape index: {}]
  %s1 = inlined_call_operand.vmem [shape: f32[24,8,1], index: 1, kind: input, shape index: {}]
  %s2 = inlined_call_operand.vmem [shape: f32[24,1,1], index: 2, kind: input, shape index: {}]
  %s3 = inlined_call_operand.vmem [shape: f32[24,24], index: 3, kind: input, shape index: {}]
  %s4 = inlined_call_operand.vmem [shape: f32[9,192], index: 4, kind: input, shape index: {}]
  %s5 = inlined_call_operand.vmem [shape: f32[9,1], index: 5, kind: input, shape index: {}]
  %s6 = inlined_call_operand.vmem [shape: f32[2,9,640], index: 6, kind: input, shape index: {}]
  %s7 = inlined_call_operand.vmem [shape: f32[640,32], index: 7, kind: input, shape index: {}]
  %s8 = inlined_call_operand.vmem [shape: f32[2,1], index: 8, kind: input, shape index: {}]
  %s9 = inlined_call_operand.hbm [shape: f32[2,2,32], index: 9, kind: output, shape index: {}]
  %s10 = sld [smem:[#allocation0]]
  $region69: #{tpu_custom_call.1} parent=0
    _
  %s12 = ssub.s32 1, %s10
  %s13 = scalar_select 0, %s12, %s10
  $region1: #{tpu_custom_call.1} parent=0
    #allocation2 [shape = 'u8[2048]{0}', space=vmem, size = 0x800, scoped, tag = 'output window, operand 0']
    #allocation3 [shape = 's32[2]{0}', space=sflag, size = 0x8, scoped, tag = 'scoped memory for tpu_custom_call.1']
    %14 = vsyncpa [#allocation3], 0
    %s15 = scalar_lea.sflag [#allocation3], 1
    %16 = vsyncpa %s15, 0
    loop: start=0, step=1, limit=4
    $region2: #{tpu_custom_call.1} parent=1 // loop_pre_header
      _
    $region3: #{tpu_custom_call.1} parent=1 // loop_header
      %s18 = sphi 0, %s22
      %p19 = scmp.ge.s32.totalorder %s18, 4
      %s28 = sphi 0, %s30
      %s31 = sphi 0, %s28
      %s32 = sphi 0, %s31
      %s48 = sphi 0, %s32
      %s52 = sphi 0, %s52
      %s54 = sphi 0, %s52
      %s55 = sphi 0, %s54
      %s69 = sphi 0, %s55
      %s73 = sphi 0, %s73
      %s75 = sphi 0, %s73
      %s76 = sphi 0, %s75
      %s90 = sphi 0, %s76
      %s94 = sphi 0, %s94
      %s96 = sphi 0, %s94
      %s97 = sphi 0, %s96
      %s111 = sphi 0, %s97
      %s115 = sphi 0, %s115
      %s117 = sphi 0, %s115
      %s118 = sphi 0, %s117
      %s132 = sphi 0, %s118
      %s136 = sphi 0, %s136
      %s138 = sphi 0, %s136
      %s139 = sphi 0, %s138
      %s153 = sphi 0, %s139
      %s157 = sphi 0, %s157
      %s159 = sphi 0, %s157
      %s160 = sphi 0, %s159
      %s174 = sphi 0, %s160
      %s178 = sphi 0, %s178
      %s180 = sphi 0, %s178
      %s181 = sphi 0, %s180
      %s195 = sphi 0, %s181
      %s199 = sphi 0, %s199
      %s201 = sphi 0, %s199
      %s202 = sphi 0, %s201
      %s216 = sphi 0, %s202
      %s222 = sphi 0, %s224
      %s225 = sphi 0, %s222
      %s226 = sphi 0, %s225
      %s242 = sphi 0, %s226
    $region4: #{tpu_custom_call.1} parent=1 // loop_header_branch
      %21 = sbr.rel (%p19) target = $region8
    $region5: #{tpu_custom_call.1} parent=1 // loop_body
      %s23 = ssub.s32 %s18, 1
      %s24 = ssub.s32 %s18, 2
      %s25 = sadd.s32 %s18, 1
      %s26 = ssub.s32 %s18, %s25
      %p27 = scmp.eq.s32.totalorder %s26, 0
      %s29 = sadd.s32 %s28, 1
      %s30 = scalar_select %p27, %s28, %s29
      %p33 = pneg %p27
      %p34 = scmp.eq.s32.totalorder %s18, 1
      %p35 = por %p33, %p34
      %p36 = scmp.ne.s32.totalorder %s28, %s31
      %p37 = scmp.eq.s32.totalorder %s18, 0
      %p38 = por %p36, %p37
      %p39 = scmp.ne.s32.totalorder %s28, %s31
      %p40 = scmp.eq.s32.totalorder %s23, 1
      %p41 = por %p39, %p40
      %p42 = scmp.ne.s32.totalorder %s31, %s32
      %p43 = scmp.eq.s32.totalorder %s23, 0
      %p44 = por %p42, %p43
      %p45 = scmp.ne.s32.totalorder %s31, %s32
      %p46 = scmp.eq.s32.totalorder %s24, 1
      %p47 = por %p45, %p46
      %p49 = scmp.ne.s32.totalorder %s32, %s48
      %p50 = scmp.eq.s32.totalorder %s24, 0
      %p51 = por %p49, %p50
      %s53 = sadd.s32 %s52, 1
      %p56 = scmp.eq.s32.totalorder %s18, 1
      %p57 = scmp.ne.s32.totalorder %s52, %s54
      %p58 = scmp.eq.s32.totalorder %s18, 0
      %p59 = por %p57, %p58
      %p60 = scmp.ne.s32.totalorder %s52, %s54
      %p61 = scmp.eq.s32.totalorder %s23, 1
      %p62 = por %p60, %p61
      %p63 = scmp.ne.s32.totalorder %s54, %s55
      %p64 = scmp.eq.s32.totalorder %s23, 0
      %p65 = por %p63, %p64
      %p66 = scmp.ne.s32.totalorder %s54, %s55
      %p67 = scmp.eq.s32.totalorder %s24, 1
      %p68 = por %p66, %p67
      %p70 = scmp.ne.s32.totalorder %s55, %s69
      %p71 = scmp.eq.s32.totalorder %s24, 0
      %p72 = por %p70, %p71
      %s74 = sadd.s32 %s73, 1
      %p77 = scmp.eq.s32.totalorder %s18, 1
      %p78 = scmp.ne.s32.totalorder %s73, %s75
      %p79 = scmp.eq.s32.totalorder %s18, 0
      %p80 = por %p78, %p79
      %p81 = scmp.ne.s32.totalorder %s73, %s75
      %p82 = scmp.eq.s32.totalorder %s23, 1
      %p83 = por %p81, %p82
      %p84 = scmp.ne.s32.totalorder %s75, %s76
      %p85 = scmp.eq.s32.totalorder %s23, 0
      %p86 = por %p84, %p85
      %p87 = scmp.ne.s32.totalorder %s75, %s76
      %p88 = scmp.eq.s32.totalorder %s24, 1
      %p89 = por %p87, %p88
      %p91 = scmp.ne.s32.totalorder %s76, %s90
      %p92 = scmp.eq.s32.totalorder %s24, 0
      %p93 = por %p91, %p92
      %s95 = sadd.s32 %s94, 1
      %p98 = scmp.eq.s32.totalorder %s18, 1
      %p99 = scmp.ne.s32.totalorder %s94, %s96
      %p100 = scmp.eq.s32.totalorder %s18, 0
      %p101 = por %p99, %p100
      %p102 = scmp.ne.s32.totalorder %s94, %s96
      %p103 = scmp.eq.s32.totalorder %s23, 1
      %p104 = por %p102, %p103
      %p105 = scmp.ne.s32.totalorder %s96, %s97
      %p106 = scmp.eq.s32.totalorder %s23, 0
      %p107 = por %p105, %p106
      %p108 = scmp.ne.s32.totalorder %s96, %s97
      %p109 = scmp.eq.s32.totalorder %s24, 1
      %p110 = por %p108, %p109
      %p112 = scmp.ne.s32.totalorder %s97, %s111
      %p113 = scmp.eq.s32.totalorder %s24, 0
      %p114 = por %p112, %p113
      %s116 = sadd.s32 %s115, 1
      %p119 = scmp.eq.s32.totalorder %s18, 1
      %p120 = scmp.ne.s32.totalorder %s115, %s117
      %p121 = scmp.eq.s32.totalorder %s18, 0
      %p122 = por %p120, %p121
      %p123 = scmp.ne.s32.totalorder %s115, %s117
      %p124 = scmp.eq.s32.totalorder %s23, 1
      %p125 = por %p123, %p124
      %p126 = scmp.ne.s32.totalorder %s117, %s118
      %p127 = scmp.eq.s32.totalorder %s23, 0
      %p128 = por %p126, %p127
      %p129 = scmp.ne.s32.totalorder %s117, %s118
      %p130 = scmp.eq.s32.totalorder %s24, 1
      %p131 = por %p129, %p130
      %p133 = scmp.ne.s32.totalorder %s118, %s132
      %p134 = scmp.eq.s32.totalorder %s24, 0
      %p135 = por %p133, %p134
      %s137 = sadd.s32 %s136, 1
      %p140 = scmp.eq.s32.totalorder %s18, 1
      %p141 = scmp.ne.s32.totalorder %s136, %s138
      %p142 = scmp.eq.s32.totalorder %s18, 0
      %p143 = por %p141, %p142
      %p144 = scmp.ne.s32.totalorder %s136, %s138
      %p145 = scmp.eq.s32.totalorder %s23, 1
      %p146 = por %p144, %p145
      %p147 = scmp.ne.s32.totalorder %s138, %s139
      %p148 = scmp.eq.s32.totalorder %s23, 0
      %p149 = por %p147, %p148
      %p150 = scmp.ne.s32.totalorder %s138, %s139
      %p151 = scmp.eq.s32.totalorder %s24, 1
      %p152 = por %p150, %p151
      %p154 = scmp.ne.s32.totalorder %s139, %s153
      %p155 = scmp.eq.s32.totalorder %s24, 0
      %p156 = por %p154, %p155
      %s158 = sadd.s32 %s157, 1
      %p161 = scmp.eq.s32.totalorder %s18, 1
      %p162 = scmp.ne.s32.totalorder %s157, %s159
      %p163 = scmp.eq.s32.totalorder %s18, 0
      %p164 = por %p162, %p163
      %p165 = scmp.ne.s32.totalorder %s157, %s159
      %p166 = scmp.eq.s32.totalorder %s23, 1
      %p167 = por %p165, %p166
      %p168 = scmp.ne.s32.totalorder %s159, %s160
      %p169 = scmp.eq.s32.totalorder %s23, 0
      %p170 = por %p168, %p169
      %p171 = scmp.ne.s32.totalorder %s159, %s160
      %p172 = scmp.eq.s32.totalorder %s24, 1
      %p173 = por %p171, %p172
      %p175 = scmp.ne.s32.totalorder %s160, %s174
      %p176 = scmp.eq.s32.totalorder %s24, 0
      %p177 = por %p175, %p176
      %s179 = sadd.s32 %s178, 1
      %p182 = scmp.eq.s32.totalorder %s18, 1
      %p183 = scmp.ne.s32.totalorder %s178, %s180
      %p184 = scmp.eq.s32.totalorder %s18, 0
      %p185 = por %p183, %p184
      %p186 = scmp.ne.s32.totalorder %s178, %s180
      %p187 = scmp.eq.s32.totalorder %s23, 1
      %p188 = por %p186, %p187
      %p189 = scmp.ne.s32.totalorder %s180, %s181
      %p190 = scmp.eq.s32.totalorder %s23, 0
      %p191 = por %p189, %p190
      %p192 = scmp.ne.s32.totalorder %s180, %s181
      %p193 = scmp.eq.s32.totalorder %s24, 1
      %p194 = por %p192, %p193
      %p196 = scmp.ne.s32.totalorder %s181, %s195
      %p197 = scmp.eq.s32.totalorder %s24, 0
      %p198 = por %p196, %p197
      %s200 = sadd.s32 %s199, 1
      %p203 = scmp.eq.s32.totalorder %s18, 1
      %p204 = scmp.ne.s32.totalorder %s199, %s201
      %p205 = scmp.eq.s32.totalorder %s18, 0
      %p206 = por %p204, %p205
      %p207 = scmp.ne.s32.totalorder %s199, %s201
      %p208 = scmp.eq.s32.totalorder %s23, 1
      %p209 = por %p207, %p208
      %p210 = scmp.ne.s32.totalorder %s201, %s202
      %p211 = scmp.eq.s32.totalorder %s23, 0
      %p212 = por %p210, %p211
      %p213 = scmp.ne.s32.totalorder %s201, %s202
      %p214 = scmp.eq.s32.totalorder %s24, 1
      %p215 = por %p213, %p214
      %p217 = scmp.ne.s32.totalorder %s202, %s216
      %p218 = scmp.eq.s32.totalorder %s24, 0
      %p219 = por %p217, %p218
      %s220 = ssub.s32 %s18, %s25
      %p221 = scmp.eq.s32.totalorder %s220, 0
      %s223 = sadd.s32 %s222, 1
      %s224 = scalar_select %p221, %s222, %s223
      %p227 = pneg %p221
      %p228 = scmp.eq.s32.totalorder %s18, 1
      %p229 = por %p227, %p228
      %p230 = scmp.ne.s32.totalorder %s222, %s225
      %p231 = scmp.eq.s32.totalorder %s18, 0
      %p232 = por %p230, %p231
      %p233 = scmp.ne.s32.totalorder %s222, %s225
      %p234 = scmp.eq.s32.totalorder %s23, 1
      %p235 = por %p233, %p234
      %p236 = scmp.ne.s32.totalorder %s225, %s226
      %p237 = scmp.eq.s32.totalorder %s23, 0
      %p238 = por %p236, %p237
      %p239 = scmp.ne.s32.totalorder %s225, %s226
      %p240 = scmp.eq.s32.totalorder %s24, 1
      %p241 = por %p239, %p240
      %p243 = scmp.ne.s32.totalorder %s226, %s242
      %p244 = scmp.eq.s32.totalorder %s24, 0
      %p245 = por %p243, %p244
      %p246 = scmp.le.s32.totalorder 1, %s18
      %p247 = scmp.lt.s32.totalorder %s18, 3
      %p248 = pnand %p246, %p247
      %p249 = pneg %p248
      // Predicated region
      $region9: #{tpu_custom_call.1} parent=5 // pred_check
        _
      $region10: #{tpu_custom_call.1} parent=5 // pred_check_branch
        %251 = sbr.rel (%p248) target = $region12
      $region11: #{tpu_custom_call.1} parent=5 // pred_region
        %s252 = ssub.s32 %s18, 1
        // Predicated region
        $region13: #{tpu_custom_call.1} parent=11 // pred_check
          %p253 = pneg %p65
        $region14: #{tpu_custom_call.1} parent=11 // pred_check_branch
          %255 = sbr.rel (%p253) target = $region16
        $region15: #{tpu_custom_call.1} parent=11 // pred_region
          _
        $region16: #{tpu_custom_call.1} parent=11 // pred_fallthru
          _
        // Predicated region
        $region17: #{tpu_custom_call.1} parent=11 // pred_check
          %p256 = pneg %p86
        $region18: #{tpu_custom_call.1} parent=11 // pred_check_branch
          %258 = sbr.rel (%p256) target = $region20
        $region19: #{tpu_custom_call.1} parent=11 // pred_region
          _
        $region20: #{tpu_custom_call.1} parent=11 // pred_fallthru
          _
        // Predicated region
        $region21: #{tpu_custom_call.1} parent=11 // pred_check
          %p259 = pneg %p107
        $region22: #{tpu_custom_call.1} parent=11 // pred_check_branch
          %261 = sbr.rel (%p259) target = $region24
        $region23: #{tpu_custom_call.1} parent=11 // pred_region
          _
        $region24: #{tpu_custom_call.1} parent=11 // pred_fallthru
          _
        // Predicated region
        $region25: #{tpu_custom_call.1} parent=11 // pred_check
          %p262 = pneg %p128
        $region26: #{tpu_custom_call.1} parent=11 // pred_check_branch
          %264 = sbr.rel (%p262) target = $region28
        $region27: #{tpu_custom_call.1} parent=11 // pred_region
          _
        $region28: #{tpu_custom_call.1} parent=11 // pred_fallthru
          _
        // Predicated region
        $region29: #{tpu_custom_call.1} parent=11 // pred_check
          %p265 = pneg %p149
        $region30: #{tpu_custom_call.1} parent=11 // pred_check_branch
          %267 = sbr.rel (%p265) target = $region32
        $region31: #{tpu_custom_call.1} parent=11 // pred_region
          _
        $region32: #{tpu_custom_call.1} parent=11 // pred_fallthru
          _
        // Predicated region
        $region33: #{tpu_custom_call.1} parent=11 // pred_check
          %p268 = pneg %p170
        $region34: #{tpu_custom_call.1} parent=11 // pred_check_branch
          %270 = sbr.rel (%p268) target = $region36
        $region35: #{tpu_custom_call.1} parent=11 // pred_region
          _
        $region36: #{tpu_custom_call.1} parent=11 // pred_fallthru
          _
        // Predicated region
        $region37: #{tpu_custom_call.1} parent=11 // pred_check
          %p271 = pneg %p191
        $region38: #{tpu_custom_call.1} parent=11 // pred_check_branch
          %273 = sbr.rel (%p271) target = $region40
        $region39: #{tpu_custom_call.1} parent=11 // pred_region
          _
        $region40: #{tpu_custom_call.1} parent=11 // pred_fallthru
          _
        // Predicated region
        $region41: #{tpu_custom_call.1} parent=11 // pred_check
          %p274 = pneg %p212
        $region42: #{tpu_custom_call.1} parent=11 // pred_check_branch
          %276 = sbr.rel (%p274) target = $region44
        $region43: #{tpu_custom_call.1} parent=11 // pred_region
          _
        $region44: #{tpu_custom_call.1} parent=11 // pred_fallthru
          _
      $region12: #{tpu_custom_call.1} parent=5 // pred_fallthru
        _
      %p277 = scmp.lt.s32.totalorder %s18, 2
      // Predicated region
      $region45: #{tpu_custom_call.1} parent=5 // pred_check
        %p278 = pneg %p277
      $region46: #{tpu_custom_call.1} parent=5 // pred_check_branch
        %280 = sbr.rel (%p278) target = $region48
      $region47: #{tpu_custom_call.1} parent=5 // pred_region
        // Predicated region
        $region49: #{tpu_custom_call.1} parent=47 // pred_check
          %p281 = pneg %p38
        $region50: #{tpu_custom_call.1} parent=47 // pred_check_branch
          %283 = sbr.rel (%p281) target = $region52
        $region51: #{tpu_custom_call.1} parent=47 // pred_region
          %p284 = scmp.lt.s32.totalorder %s18, 1
          %s285 = scalar_select %p284, %s18, 1
          %s286 = smul.addr %s285, 5
          %s287 = smul.addr %s286, 8
          %s288 = scalar_lea.vmem %s0, %s287
        $region52: #{tpu_custom_call.1} parent=47 // pred_fallthru
          _
      $region48: #{tpu_custom_call.1} parent=5 // pred_fallthru
        _
      %p289 = scmp.le.s32.totalorder 1, %s18
      %p290 = scmp.lt.s32.totalorder %s18, 3
      %p291 = pnand %p289, %p290
      %p292 = pneg %p291
      // Predicated region
      $region53: #{tpu_custom_call.1} parent=5 // pred_check
        _
      $region54: #{tpu_custom_call.1} parent=5 // pred_check_branch
        %294 = sbr.rel (%p291) target = $region56
      $region55: #{tpu_custom_call.1} parent=5 // pred_region
        %s295 = ssub.s32 %s18, 1
        %p296 = scmp.lt.s32.totalorder %s23, 1
        %s297 = scalar_select %p296, %s23, 1
        %s298 = smul.addr %s297, 5
        %s299 = smul.addr %s298, 8
        %s300 = scalar_lea.vmem %s0, %s299
        %p301 = pneg %p44
        %p302 = pneg %p41
        %p303 = pneg %p65
        %p304 = pneg %p62
        %p305 = pneg %p86
        %p306 = pneg %p83
        %p307 = pneg %p107
        %p308 = pneg %p104
        %p309 = pneg %p128
        %p310 = pneg %p125
        %p311 = pneg %p149
        %p312 = pneg %p146
        %p313 = pneg %p170
        %p314 = pneg %p167
        %p315 = pneg %p191
        %p316 = pneg %p188
        %p317 = pneg %p212
        %p318 = pneg %p209
        %p319 = pneg %p238
        %p320 = pneg %p235
        %s321 = sand.u32 %s225, 1
        %s322 = scalar_lea.sflag [#allocation3], %s321
        %s323 = sand.u32 %s225, 1
        %s324 = smul.addr %s323, 2
        %s325 = scalar_lea.vmem [#allocation2], %s324
        %p326 = scmp.lt.s32.totalorder %s23, 1
        %s327 = scalar_select %p326, %s23, 1
        %s328 = smul.addr %s327, 5
        %s329 = smul.addr %s328, 8
        %s330 = scalar_lea.vmem %s0, %s329
        %v331 = vld [vmem:[%s330] sm:$0xff]
        %v332 = vld [vmem:[%s330 + $0x8] sm:$0xff]
        %v333 = vld [vmem:[%s330 + $0x10] sm:$0xff]
        %v334 = vld [vmem:[%s330 + $0x18] sm:$0xff]
        %v335 = vld [vmem:[%s330 + $0x20] sm:$0xff]
        %v336 = vld [vmem:[%s1] sm:$0xff]
        %v337 = vld [vmem:[%s1 + $0x8] sm:$0xff]
        %v338 = vld [vmem:[%s1 + $0x10] sm:$0xff]
        %v339 = vld [vmem:[%s1 + $0x18] sm:$0xff]
        %v340 = vld [vmem:[%s1 + $0x20] sm:$0xff]
        %v341 = vld [vmem:[%s1 + $0x28] sm:$0xff]
        %v342 = vld [vmem:[%s1 + $0x30] sm:$0xff]
        %v343 = vld [vmem:[%s1 + $0x38] sm:$0xff]
        %v344 = vld [vmem:[%s1 + $0x40] sm:$0xff]
        %v345 = vld [vmem:[%s1 + $0x48] sm:$0xff]
        %v346 = vld [vmem:[%s1 + $0x50] sm:$0xff]
        %v347 = vld [vmem:[%s1 + $0x58] sm:$0xff]
        %v348 = vld [vmem:[%s1 + $0x60] sm:$0xff]
        %v349 = vld [vmem:[%s1 + $0x68] sm:$0xff]
        %v350 = vld [vmem:[%s1 + $0x70] sm:$0xff]
        %v351 = vld [vmem:[%s1 + $0x78] sm:$0xff]
        %v352 = vld [vmem:[%s1 + $0x80] sm:$0xff]
        %v353 = vld [vmem:[%s1 + $0x88] sm:$0xff]
        %v354 = vld [vmem:[%s1 + $0x90] sm:$0xff]
        %v355 = vld [vmem:[%s1 + $0x98] sm:$0xff]
        %v356 = vld [vmem:[%s1 + $0xa0] sm:$0xff]
        %v357 = vld [vmem:[%s1 + $0xa8] sm:$0xff]
        %v358 = vld [vmem:[%s1 + $0xb0] sm:$0xff]
        %v359 = vld [vmem:[%s1 + $0xb8] sm:$0xff]
        %361 = vset.pattern.permute.xlu0 0
        %362 = vperm.xlu0 %361, %v336
        %v363 = vpop.permute.xlu0 %362
        %366 = vset.pattern.permute.xlu0 0
        %367 = vperm.xlu0 %366, %v337
        %v368 = vpop.permute.xlu0 %367
        %371 = vset.pattern.permute.xlu0 0
        %372 = vperm.xlu0 %371, %v338
        %v373 = vpop.permute.xlu0 %372
        %376 = vset.pattern.permute.xlu0 0
        %377 = vperm.xlu0 %376, %v339
        %v378 = vpop.permute.xlu0 %377
        %381 = vset.pattern.permute.xlu0 0
        %382 = vperm.xlu0 %381, %v340
        %v383 = vpop.permute.xlu0 %382
        %386 = vset.pattern.permute.xlu0 0
        %387 = vperm.xlu0 %386, %v341
        %v388 = vpop.permute.xlu0 %387
        %391 = vset.pattern.permute.xlu0 0
        %392 = vperm.xlu0 %391, %v342
        %v393 = vpop.permute.xlu0 %392
        %396 = vset.pattern.permute.xlu0 0
        %397 = vperm.xlu0 %396, %v343
        %v398 = vpop.permute.xlu0 %397
        %401 = vset.pattern.permute.xlu0 0
        %402 = vperm.xlu0 %401, %v344
        %v403 = vpop.permute.xlu0 %402
        %406 = vset.pattern.permute.xlu0 0
        %407 = vperm.xlu0 %406, %v345
        %v408 = vpop.permute.xlu0 %407
        %411 = vset.pattern.permute.xlu0 0
        %412 = vperm.xlu0 %411, %v346
        %v413 = vpop.permute.xlu0 %412
        %416 = vset.pattern.permute.xlu0 0
        %417 = vperm.xlu0 %416, %v347
        %v418 = vpop.permute.xlu0 %417
        %421 = vset.pattern.permute.xlu0 0
        %422 = vperm.xlu0 %421, %v348
        %v423 = vpop.permute.xlu0 %422
        %426 = vset.pattern.permute.xlu0 0
        %427 = vperm.xlu0 %426, %v349
        %v428 = vpop.permute.xlu0 %427
        %431 = vset.pattern.permute.xlu0 0
        %432 = vperm.xlu0 %431, %v350
        %v433 = vpop.permute.xlu0 %432
        %436 = vset.pattern.permute.xlu0 0
        %437 = vperm.xlu0 %436, %v351
        %v438 = vpop.permute.xlu0 %437
        %441 = vset.pattern.permute.xlu0 0
        %442 = vperm.xlu0 %441, %v352
        %v443 = vpop.permute.xlu0 %442
        %446 = vset.pattern.permute.xlu0 0
        %447 = vperm.xlu0 %446, %v353
        %v448 = vpop.permute.xlu0 %447
        %451 = vset.pattern.permute.xlu0 0
        %452 = vperm.xlu0 %451, %v354
        %v453 = vpop.permute.xlu0 %452
        %456 = vset.pattern.permute.xlu0 0
        %457 = vperm.xlu0 %456, %v355
        %v458 = vpop.permute.xlu0 %457
        %461 = vset.pattern.permute.xlu0 0
        %462 = vperm.xlu0 %461, %v356
        %v463 = vpop.permute.xlu0 %462
        %466 = vset.pattern.permute.xlu0 0
        %467 = vperm.xlu0 %466, %v357
        %v468 = vpop.permute.xlu0 %467
        %471 = vset.pattern.permute.xlu0 0
        %472 = vperm.xlu0 %471, %v358
        %v473 = vpop.permute.xlu0 %472
        %476 = vset.pattern.permute.xlu0 0
        %477 = vperm.xlu0 %476, %v359
        %v478 = vpop.permute.xlu0 %477
        %v480 = vmul.f32 %v363, %v331
        %v481 = vmul.f32 %v363, %v332
        %v482 = vmul.f32 %v363, %v333
        %v483 = vmul.f32 %v363, %v334
        %v484 = vmul.f32 %v363, %v335
        %v485 = vmul.f32 %v368, %v331
        %v486 = vmul.f32 %v368, %v332
        %v487 = vmul.f32 %v368, %v333
        %v488 = vmul.f32 %v368, %v334
        %v489 = vmul.f32 %v368, %v335
        %v490 = vmul.f32 %v373, %v331
        %v491 = vmul.f32 %v373, %v332
        %v492 = vmul.f32 %v373, %v333
        %v493 = vmul.f32 %v373, %v334
        %v494 = vmul.f32 %v373, %v335
        %v495 = vmul.f32 %v378, %v331
        %v496 = vmul.f32 %v378, %v332
        %v497 = vmul.f32 %v378, %v333
        %v498 = vmul.f32 %v378, %v334
        %v499 = vmul.f32 %v378, %v335
        %v500 = vmul.f32 %v383, %v331
        %v501 = vmul.f32 %v383, %v332
        %v502 = vmul.f32 %v383, %v333
        %v503 = vmul.f32 %v383, %v334
        %v504 = vmul.f32 %v383, %v335
        %v505 = vmul.f32 %v388, %v331
        %v506 = vmul.f32 %v388, %v332
        %v507 = vmul.f32 %v388, %v333
        %v508 = vmul.f32 %v388, %v334
        %v509 = vmul.f32 %v388, %v335
        %v510 = vmul.f32 %v393, %v331
        %v511 = vmul.f32 %v393, %v332
        %v512 = vmul.f32 %v393, %v333
        %v513 = vmul.f32 %v393, %v334
        %v514 = vmul.f32 %v393, %v335
        %v515 = vmul.f32 %v398, %v331
        %v516 = vmul.f32 %v398, %v332
        %v517 = vmul.f32 %v398, %v333
        %v518 = vmul.f32 %v398, %v334
        %v519 = vmul.f32 %v398, %v335
        %v520 = vmul.f32 %v403, %v331
        %v521 = vmul.f32 %v403, %v332
        %v522 = vmul.f32 %v403, %v333
        %v523 = vmul.f32 %v403, %v334
        %v524 = vmul.f32 %v403, %v335
        %v525 = vmul.f32 %v408, %v331
        %v526 = vmul.f32 %v408, %v332
        %v527 = vmul.f32 %v408, %v333
        %v528 = vmul.f32 %v408, %v334
        %v529 = vmul.f32 %v408, %v335
        %v530 = vmul.f32 %v413, %v331
        %v531 = vmul.f32 %v413, %v332
        %v532 = vmul.f32 %v413, %v333
        %v533 = vmul.f32 %v413, %v334
        %v534 = vmul.f32 %v413, %v335
        %v535 = vmul.f32 %v418, %v331
        %v536 = vmul.f32 %v418, %v332
        %v537 = vmul.f32 %v418, %v333
        %v538 = vmul.f32 %v418, %v334
        %v539 = vmul.f32 %v418, %v335
        %v540 = vmul.f32 %v423, %v331
        %v541 = vmul.f32 %v423, %v332
        %v542 = vmul.f32 %v423, %v333
        %v543 = vmul.f32 %v423, %v334
        %v544 = vmul.f32 %v423, %v335
        %v545 = vmul.f32 %v428, %v331
        %v546 = vmul.f32 %v428, %v332
        %v547 = vmul.f32 %v428, %v333
        %v548 = vmul.f32 %v428, %v334
        %v549 = vmul.f32 %v428, %v335
        %v550 = vmul.f32 %v433, %v331
        %v551 = vmul.f32 %v433, %v332
        %v552 = vmul.f32 %v433, %v333
        %v553 = vmul.f32 %v433, %v334
        %v554 = vmul.f32 %v433, %v335
        %v555 = vmul.f32 %v438, %v331
        %v556 = vmul.f32 %v438, %v332
        %v557 = vmul.f32 %v438, %v333
        %v558 = vmul.f32 %v438, %v334
        %v559 = vmul.f32 %v438, %v335
        %v560 = vmul.f32 %v443, %v331
        %v561 = vmul.f32 %v443, %v332
        %v562 = vmul.f32 %v443, %v333
        %v563 = vmul.f32 %v443, %v334
        %v564 = vmul.f32 %v443, %v335
        %v565 = vmul.f32 %v448, %v331
        %v566 = vmul.f32 %v448, %v332
        %v567 = vmul.f32 %v448, %v333
        %v568 = vmul.f32 %v448, %v334
        %v569 = vmul.f32 %v448, %v335
        %v570 = vmul.f32 %v453, %v331
        %v571 = vmul.f32 %v453, %v332
        %v572 = vmul.f32 %v453, %v333
        %v573 = vmul.f32 %v453, %v334
        %v574 = vmul.f32 %v453, %v335
        %v575 = vmul.f32 %v458, %v331
        %v576 = vmul.f32 %v458, %v332
        %v577 = vmul.f32 %v458, %v333
        %v578 = vmul.f32 %v458, %v334
        %v579 = vmul.f32 %v458, %v335
        %v580 = vmul.f32 %v463, %v331
        %v581 = vmul.f32 %v463, %v332
        %v582 = vmul.f32 %v463, %v333
        %v583 = vmul.f32 %v463, %v334
        %v584 = vmul.f32 %v463, %v335
        %v585 = vmul.f32 %v468, %v331
        %v586 = vmul.f32 %v468, %v332
        %v587 = vmul.f32 %v468, %v333
        %v588 = vmul.f32 %v468, %v334
        %v589 = vmul.f32 %v468, %v335
        %v590 = vmul.f32 %v473, %v331
        %v591 = vmul.f32 %v473, %v332
        %v592 = vmul.f32 %v473, %v333
        %v593 = vmul.f32 %v473, %v334
        %v594 = vmul.f32 %v473, %v335
        %v595 = vmul.f32 %v478, %v331
        %v596 = vmul.f32 %v478, %v332
        %v597 = vmul.f32 %v478, %v333
        %v598 = vmul.f32 %v478, %v334
        %v599 = vmul.f32 %v478, %v335
        %v600 = vld [vmem:[%s2] sm:$0x1]
        %v601 = vld [vmem:[%s2 + $0x1] sm:$0x1]
        %v602 = vld [vmem:[%s2 + $0x2] sm:$0x1]
        %v603 = vld [vmem:[%s2 + $0x3] sm:$0x1]
        %v604 = vld [vmem:[%s2 + $0x4] sm:$0x1]
        %v605 = vld [vmem:[%s2 + $0x5] sm:$0x1]
        %v606 = vld [vmem:[%s2 + $0x6] sm:$0x1]
        %v607 = vld [vmem:[%s2 + $0x7] sm:$0x1]
        %v608 = vld [vmem:[%s2 + $0x8] sm:$0x1]
        %v609 = vld [vmem:[%s2 + $0x9] sm:$0x1]
        %v610 = vld [vmem:[%s2 + $0xa] sm:$0x1]
        %v611 = vld [vmem:[%s2 + $0xb] sm:$0x1]
        %v612 = vld [vmem:[%s2 + $0xc] sm:$0x1]
        %v613 = vld [vmem:[%s2 + $0xd] sm:$0x1]
        %v614 = vld [vmem:[%s2 + $0xe] sm:$0x1]
        %v615 = vld [vmem:[%s2 + $0xf] sm:$0x1]
        %v616 = vld [vmem:[%s2 + $0x10] sm:$0x1]
        %v617 = vld [vmem:[%s2 + $0x11] sm:$0x1]
        %v618 = vld [vmem:[%s2 + $0x12] sm:$0x1]
        %v619 = vld [vmem:[%s2 + $0x13] sm:$0x1]
        %v620 = vld [vmem:[%s2 + $0x14] sm:$0x1]
        %v621 = vld [vmem:[%s2 + $0x15] sm:$0x1]
        %v622 = vld [vmem:[%s2 + $0x16] sm:$0x1]
        %v623 = vld [vmem:[%s2 + $0x17] sm:$0x1]
        %v648 = vlaneseq
        %v649 = vshrl.u32 %v648, 7
        %v650 = vsub.s32 0, %v649
        %v651 = vrot.slane %v600, %v650
        %v652 = vlaneseq
        %v653 = vshrl.u32 %v652, 7
        %v654 = vsub.s32 0, %v653
        %v655 = vrot.slane %v601, %v654
        %v656 = vlaneseq
        %v657 = vshrl.u32 %v656, 7
        %v658 = vsub.s32 0, %v657
        %v659 = vrot.slane %v602, %v658
        %v660 = vlaneseq
        %v661 = vshrl.u32 %v660, 7
        %v662 = vsub.s32 0, %v661
        %v663 = vrot.slane %v603, %v662
        %v664 = vlaneseq
        %v665 = vshrl.u32 %v664, 7
        %v666 = vsub.s32 0, %v665
        %v667 = vrot.slane %v604, %v666
        %v668 = vlaneseq
        %v669 = vshrl.u32 %v668, 7
        %v670 = vsub.s32 0, %v669
        %v671 = vrot.slane %v605, %v670
        %v672 = vlaneseq
        %v673 = vshrl.u32 %v672, 7
        %v674 = vsub.s32 0, %v673
        %v675 = vrot.slane %v606, %v674
        %v676 = vlaneseq
        %v677 = vshrl.u32 %v676, 7
        %v678 = vsub.s32 0, %v677
        %v679 = vrot.slane %v607, %v678
        %v680 = vlaneseq
        %v681 = vshrl.u32 %v680, 7
        %v682 = vsub.s32 0, %v681
        %v683 = vrot.slane %v608, %v682
        %v684 = vlaneseq
        %v685 = vshrl.u32 %v684, 7
        %v686 = vsub.s32 0, %v685
        %v687 = vrot.slane %v609, %v686
        %v688 = vlaneseq
        %v689 = vshrl.u32 %v688, 7
        %v690 = vsub.s32 0, %v689
        %v691 = vrot.slane %v610, %v690
        %v692 = vlaneseq
        %v693 = vshrl.u32 %v692, 7
        %v694 = vsub.s32 0, %v693
        %v695 = vrot.slane %v611, %v694
        %v696 = vlaneseq
        %v697 = vshrl.u32 %v696, 7
        %v698 = vsub.s32 0, %v697
        %v699 = vrot.slane %v612, %v698
        %v700 = vlaneseq
        %v701 = vshrl.u32 %v700, 7
        %v702 = vsub.s32 0, %v701
        %v703 = vrot.slane %v613, %v702
        %v704 = vlaneseq
        %v705 = vshrl.u32 %v704, 7
        %v706 = vsub.s32 0, %v705
        %v707 = vrot.slane %v614, %v706
        %v708 = vlaneseq
        %v709 = vshrl.u32 %v708, 7
        %v710 = vsub.s32 0, %v709
        %v711 = vrot.slane %v615, %v710
        %v712 = vlaneseq
        %v713 = vshrl.u32 %v712, 7
        %v714 = vsub.s32 0, %v713
        %v715 = vrot.slane %v616, %v714
        %v716 = vlaneseq
        %v717 = vshrl.u32 %v716, 7
        %v718 = vsub.s32 0, %v717
        %v719 = vrot.slane %v617, %v718
        %v720 = vlaneseq
        %v721 = vshrl.u32 %v720, 7
        %v722 = vsub.s32 0, %v721
        %v723 = vrot.slane %v618, %v722
        %v724 = vlaneseq
        %v725 = vshrl.u32 %v724, 7
        %v726 = vsub.s32 0, %v725
        %v727 = vrot.slane %v619, %v726
        %v728 = vlaneseq
        %v729 = vshrl.u32 %v728, 7
        %v730 = vsub.s32 0, %v729
        %v731 = vrot.slane %v620, %v730
        %v732 = vlaneseq
        %v733 = vshrl.u32 %v732, 7
        %v734 = vsub.s32 0, %v733
        %v735 = vrot.slane %v621, %v734
        %v736 = vlaneseq
        %v737 = vshrl.u32 %v736, 7
        %v738 = vsub.s32 0, %v737
        %v739 = vrot.slane %v622, %v738
        %v740 = vlaneseq
        %v741 = vshrl.u32 %v740, 7
        %v742 = vsub.s32 0, %v741
        %v743 = vrot.slane %v623, %v742
        %744 = vset.pattern.permute.xlu0 0
        %745 = vperm.xlu0 %744, %v651
        %v746 = vpop.permute.xlu0 %745
        %748 = vset.pattern.permute.xlu0 0
        %749 = vperm.xlu0 %748, %v655
        %v750 = vpop.permute.xlu0 %749
        %752 = vset.pattern.permute.xlu0 0
        %753 = vperm.xlu0 %752, %v659
        %v754 = vpop.permute.xlu0 %753
        %756 = vset.pattern.permute.xlu0 0
        %757 = vperm.xlu0 %756, %v663
        %v758 = vpop.permute.xlu0 %757
        %760 = vset.pattern.permute.xlu0 0
        %761 = vperm.xlu0 %760, %v667
        %v762 = vpop.permute.xlu0 %761
        %764 = vset.pattern.permute.xlu0 0
        %765 = vperm.xlu0 %764, %v671
        %v766 = vpop.permute.xlu0 %765
        %768 = vset.pattern.permute.xlu0 0
        %769 = vperm.xlu0 %768, %v675
        %v770 = vpop.permute.xlu0 %769
        %772 = vset.pattern.permute.xlu0 0
        %773 = vperm.xlu0 %772, %v679
        %v774 = vpop.permute.xlu0 %773
        %776 = vset.pattern.permute.xlu0 0
        %777 = vperm.xlu0 %776, %v683
        %v778 = vpop.permute.xlu0 %777
        %780 = vset.pattern.permute.xlu0 0
        %781 = vperm.xlu0 %780, %v687
        %v782 = vpop.permute.xlu0 %781
        %784 = vset.pattern.permute.xlu0 0
        %785 = vperm.xlu0 %784, %v691
        %v786 = vpop.permute.xlu0 %785
        %788 = vset.pattern.permute.xlu0 0
        %789 = vperm.xlu0 %788, %v695
        %v790 = vpop.permute.xlu0 %789
        %792 = vset.pattern.permute.xlu0 0
        %793 = vperm.xlu0 %792, %v699
        %v794 = vpop.permute.xlu0 %793
        %796 = vset.pattern.permute.xlu0 0
        %797 = vperm.xlu0 %796, %v703
        %v798 = vpop.permute.xlu0 %797
        %800 = vset.pattern.permute.xlu0 0
        %801 = vperm.xlu0 %800, %v707
        %v802 = vpop.permute.xlu0 %801
        %804 = vset.pattern.permute.xlu0 0
        %805 = vperm.xlu0 %804, %v711
        %v806 = vpop.permute.xlu0 %805
        %808 = vset.pattern.permute.xlu0 0
        %809 = vperm.xlu0 %808, %v715
        %v810 = vpop.permute.xlu0 %809
        %812 = vset.pattern.permute.xlu0 0
        %813 = vperm.xlu0 %812, %v719
        %v814 = vpop.permute.xlu0 %813
        %816 = vset.pattern.permute.xlu0 0
        %817 = vperm.xlu0 %816, %v723
        %v818 = vpop.permute.xlu0 %817
        %820 = vset.pattern.permute.xlu0 0
        %821 = vperm.xlu0 %820, %v727
        %v822 = vpop.permute.xlu0 %821
        %824 = vset.pattern.permute.xlu0 0
        %825 = vperm.xlu0 %824, %v731
        %v826 = vpop.permute.xlu0 %825
        %828 = vset.pattern.permute.xlu0 0
        %829 = vperm.xlu0 %828, %v735
        %v830 = vpop.permute.xlu0 %829
        %832 = vset.pattern.permute.xlu0 0
        %833 = vperm.xlu0 %832, %v739
        %v834 = vpop.permute.xlu0 %833
        %836 = vset.pattern.permute.xlu0 0
        %837 = vperm.xlu0 %836, %v743
        %v838 = vpop.permute.xlu0 %837
        %v840 = vadd.f32 %v480, %v746
        %v841 = vadd.f32 %v481, %v746
        %v842 = vadd.f32 %v482, %v746
        %v843 = vadd.f32 %v483, %v746
        %v844 = vadd.f32 %v484, %v746
        %v845 = vadd.f32 %v485, %v750
        %v846 = vadd.f32 %v486, %v750
        %v847 = vadd.f32 %v487, %v750
        %v848 = vadd.f32 %v488, %v750
        %v849 = vadd.f32 %v489, %v750
        %v850 = vadd.f32 %v490, %v754
        %v851 = vadd.f32 %v491, %v754
        %v852 = vadd.f32 %v492, %v754
        %v853 = vadd.f32 %v493, %v754
        %v854 = vadd.f32 %v494, %v754
        %v855 = vadd.f32 %v495, %v758
        %v856 = vadd.f32 %v496, %v758
        %v857 = vadd.f32 %v497, %v758
        %v858 = vadd.f32 %v498, %v758
        %v859 = vadd.f32 %v499, %v758
        %v860 = vadd.f32 %v500, %v762
        %v861 = vadd.f32 %v501, %v762
        %v862 = vadd.f32 %v502, %v762
        %v863 = vadd.f32 %v503, %v762
        %v864 = vadd.f32 %v504, %v762
        %v865 = vadd.f32 %v505, %v766
        %v866 = vadd.f32 %v506, %v766
        %v867 = vadd.f32 %v507, %v766
        %v868 = vadd.f32 %v508, %v766
        %v869 = vadd.f32 %v509, %v766
        %v870 = vadd.f32 %v510, %v770
        %v871 = vadd.f32 %v511, %v770
        %v872 = vadd.f32 %v512, %v770
        %v873 = vadd.f32 %v513, %v770
        %v874 = vadd.f32 %v514, %v770
        %v875 = vadd.f32 %v515, %v774
        %v876 = vadd.f32 %v516, %v774
        %v877 = vadd.f32 %v517, %v774
        %v878 = vadd.f32 %v518, %v774
        %v879 = vadd.f32 %v519, %v774
        %v880 = vadd.f32 %v520, %v778
        %v881 = vadd.f32 %v521, %v778
        %v882 = vadd.f32 %v522, %v778
        %v883 = vadd.f32 %v523, %v778
        %v884 = vadd.f32 %v524, %v778
        %v885 = vadd.f32 %v525, %v782
        %v886 = vadd.f32 %v526, %v782
        %v887 = vadd.f32 %v527, %v782
        %v888 = vadd.f32 %v528, %v782
        %v889 = vadd.f32 %v529, %v782
        %v890 = vadd.f32 %v530, %v786
        %v891 = vadd.f32 %v531, %v786
        %v892 = vadd.f32 %v532, %v786
        %v893 = vadd.f32 %v533, %v786
        %v894 = vadd.f32 %v534, %v786
        %v895 = vadd.f32 %v535, %v790
        %v896 = vadd.f32 %v536, %v790
        %v897 = vadd.f32 %v537, %v790
        %v898 = vadd.f32 %v538, %v790
        %v899 = vadd.f32 %v539, %v790
        %v900 = vadd.f32 %v540, %v794
        %v901 = vadd.f32 %v541, %v794
        %v902 = vadd.f32 %v542, %v794
        %v903 = vadd.f32 %v543, %v794
        %v904 = vadd.f32 %v544, %v794
        %v905 = vadd.f32 %v545, %v798
        %v906 = vadd.f32 %v546, %v798
        %v907 = vadd.f32 %v547, %v798
        %v908 = vadd.f32 %v548, %v798
        %v909 = vadd.f32 %v549, %v798
        %v910 = vadd.f32 %v550, %v802
        %v911 = vadd.f32 %v551, %v802
        %v912 = vadd.f32 %v552, %v802
        %v913 = vadd.f32 %v553, %v802
        %v914 = vadd.f32 %v554, %v802
        %v915 = vadd.f32 %v555, %v806
        %v916 = vadd.f32 %v556, %v806
        %v917 = vadd.f32 %v557, %v806
        %v918 = vadd.f32 %v558, %v806
        %v919 = vadd.f32 %v559, %v806
        %v920 = vadd.f32 %v560, %v810
        %v921 = vadd.f32 %v561, %v810
        %v922 = vadd.f32 %v562, %v810
        %v923 = vadd.f32 %v563, %v810
        %v924 = vadd.f32 %v564, %v810
        %v925 = vadd.f32 %v565, %v814
        %v926 = vadd.f32 %v566, %v814
        %v927 = vadd.f32 %v567, %v814
        %v928 = vadd.f32 %v568, %v814
        %v929 = vadd.f32 %v569, %v814
        %v930 = vadd.f32 %v570, %v818
        %v931 = vadd.f32 %v571, %v818
        %v932 = vadd.f32 %v572, %v818
        %v933 = vadd.f32 %v573, %v818
        %v934 = vadd.f32 %v574, %v818
        %v935 = vadd.f32 %v575, %v822
        %v936 = vadd.f32 %v576, %v822
        %v937 = vadd.f32 %v577, %v822
        %v938 = vadd.f32 %v578, %v822
        %v939 = vadd.f32 %v579, %v822
        %v940 = vadd.f32 %v580, %v826
        %v941 = vadd.f32 %v581, %v826
        %v942 = vadd.f32 %v582, %v826
        %v943 = vadd.f32 %v583, %v826
        %v944 = vadd.f32 %v584, %v826
        %v945 = vadd.f32 %v585, %v830
        %v946 = vadd.f32 %v586, %v830
        %v947 = vadd.f32 %v587, %v830
        %v948 = vadd.f32 %v588, %v830
        %v949 = vadd.f32 %v589, %v830
        %v950 = vadd.f32 %v590, %v834
        %v951 = vadd.f32 %v591, %v834
        %v952 = vadd.f32 %v592, %v834
        %v953 = vadd.f32 %v593, %v834
        %v954 = vadd.f32 %v594, %v834
        %v955 = vadd.f32 %v595, %v838
        %v956 = vadd.f32 %v596, %v838
        %v957 = vadd.f32 %v597, %v838
        %v958 = vadd.f32 %v598, %v838
        %v959 = vadd.f32 %v599, %v838
        %v960 = vmul.f32 %v840, %v840
        %v961 = vmul.f32 %v841, %v841
        %v962 = vmul.f32 %v842, %v842
        %v963 = vmul.f32 %v843, %v843
        %v964 = vmul.f32 %v844, %v844
        %v965 = vmul.f32 %v845, %v845
        %v966 = vmul.f32 %v846, %v846
        %v967 = vmul.f32 %v847, %v847
        %v968 = vmul.f32 %v848, %v848
        %v969 = vmul.f32 %v849, %v849
        %v970 = vmul.f32 %v850, %v850
        %v971 = vmul.f32 %v851, %v851
        %v972 = vmul.f32 %v852, %v852
        %v973 = vmul.f32 %v853, %v853
        %v974 = vmul.f32 %v854, %v854
        %v975 = vmul.f32 %v855, %v855
        %v976 = vmul.f32 %v856, %v856
        %v977 = vmul.f32 %v857, %v857
        %v978 = vmul.f32 %v858, %v858
        %v979 = vmul.f32 %v859, %v859
        %v980 = vmul.f32 %v860, %v860
        %v981 = vmul.f32 %v861, %v861
        %v982 = vmul.f32 %v862, %v862
        %v983 = vmul.f32 %v863, %v863
        %v984 = vmul.f32 %v864, %v864
        %v985 = vmul.f32 %v865, %v865
        %v986 = vmul.f32 %v866, %v866
        %v987 = vmul.f32 %v867, %v867
        %v988 = vmul.f32 %v868, %v868
        %v989 = vmul.f32 %v869, %v869
        %v990 = vmul.f32 %v870, %v870
        %v991 = vmul.f32 %v871, %v871
        %v992 = vmul.f32 %v872, %v872
        %v993 = vmul.f32 %v873, %v873
        %v994 = vmul.f32 %v874, %v874
        %v995 = vmul.f32 %v875, %v875
        %v996 = vmul.f32 %v876, %v876
        %v997 = vmul.f32 %v877, %v877
        %v998 = vmul.f32 %v878, %v878
        %v999 = vmul.f32 %v879, %v879
        %v1000 = vmul.f32 %v880, %v880
        %v1001 = vmul.f32 %v881, %v881
        %v1002 = vmul.f32 %v882, %v882
        %v1003 = vmul.f32 %v883, %v883
        %v1004 = vmul.f32 %v884, %v884
        %v1005 = vmul.f32 %v885, %v885
        %v1006 = vmul.f32 %v886, %v886
        %v1007 = vmul.f32 %v887, %v887
        %v1008 = vmul.f32 %v888, %v888
        %v1009 = vmul.f32 %v889, %v889
        %v1010 = vmul.f32 %v890, %v890
        %v1011 = vmul.f32 %v891, %v891
        %v1012 = vmul.f32 %v892, %v892
        %v1013 = vmul.f32 %v893, %v893
        %v1014 = vmul.f32 %v894, %v894
        %v1015 = vmul.f32 %v895, %v895
        %v1016 = vmul.f32 %v896, %v896
        %v1017 = vmul.f32 %v897, %v897
        %v1018 = vmul.f32 %v898, %v898
        %v1019 = vmul.f32 %v899, %v899
        %v1020 = vmul.f32 %v900, %v900
        %v1021 = vmul.f32 %v901, %v901
        %v1022 = vmul.f32 %v902, %v902
        %v1023 = vmul.f32 %v903, %v903
        %v1024 = vmul.f32 %v904, %v904
        %v1025 = vmul.f32 %v905, %v905
        %v1026 = vmul.f32 %v906, %v906
        %v1027 = vmul.f32 %v907, %v907
        %v1028 = vmul.f32 %v908, %v908
        %v1029 = vmul.f32 %v909, %v909
        %v1030 = vmul.f32 %v910, %v910
        %v1031 = vmul.f32 %v911, %v911
        %v1032 = vmul.f32 %v912, %v912
        %v1033 = vmul.f32 %v913, %v913
        %v1034 = vmul.f32 %v914, %v914
        %v1035 = vmul.f32 %v915, %v915
        %v1036 = vmul.f32 %v916, %v916
        %v1037 = vmul.f32 %v917, %v917
        %v1038 = vmul.f32 %v918, %v918
        %v1039 = vmul.f32 %v919, %v919
        %v1040 = vmul.f32 %v920, %v920
        %v1041 = vmul.f32 %v921, %v921
        %v1042 = vmul.f32 %v922, %v922
        %v1043 = vmul.f32 %v923, %v923
        %v1044 = vmul.f32 %v924, %v924
        %v1045 = vmul.f32 %v925, %v925
        %v1046 = vmul.f32 %v926, %v926
        %v1047 = vmul.f32 %v927, %v927
        %v1048 = vmul.f32 %v928, %v928
        %v1049 = vmul.f32 %v929, %v929
        %v1050 = vmul.f32 %v930, %v930
        %v1051 = vmul.f32 %v931, %v931
        %v1052 = vmul.f32 %v932, %v932
        %v1053 = vmul.f32 %v933, %v933
        %v1054 = vmul.f32 %v934, %v934
        %v1055 = vmul.f32 %v935, %v935
        %v1056 = vmul.f32 %v936, %v936
        %v1057 = vmul.f32 %v937, %v937
        %v1058 = vmul.f32 %v938, %v938
        %v1059 = vmul.f32 %v939, %v939
        %v1060 = vmul.f32 %v940, %v940
        %v1061 = vmul.f32 %v941, %v941
        %v1062 = vmul.f32 %v942, %v942
        %v1063 = vmul.f32 %v943, %v943
        %v1064 = vmul.f32 %v944, %v944
        %v1065 = vmul.f32 %v945, %v945
        %v1066 = vmul.f32 %v946, %v946
        %v1067 = vmul.f32 %v947, %v947
        %v1068 = vmul.f32 %v948, %v948
        %v1069 = vmul.f32 %v949, %v949
        %v1070 = vmul.f32 %v950, %v950
        %v1071 = vmul.f32 %v951, %v951
        %v1072 = vmul.f32 %v952, %v952
        %v1073 = vmul.f32 %v953, %v953
        %v1074 = vmul.f32 %v954, %v954
        %v1075 = vmul.f32 %v955, %v955
        %v1076 = vmul.f32 %v956, %v956
        %v1077 = vmul.f32 %v957, %v957
        %v1078 = vmul.f32 %v958, %v958
        %v1079 = vmul.f32 %v959, %v959
        %v1080 = vmul.f32 %v960, %v840
        %v1081 = vmul.f32 %v961, %v841
        %v1082 = vmul.f32 %v962, %v842
        %v1083 = vmul.f32 %v963, %v843
        %v1084 = vmul.f32 %v964, %v844
        %v1085 = vmul.f32 %v965, %v845
        %v1086 = vmul.f32 %v966, %v846
        %v1087 = vmul.f32 %v967, %v847
        %v1088 = vmul.f32 %v968, %v848
        %v1089 = vmul.f32 %v969, %v849
        %v1090 = vmul.f32 %v970, %v850
        %v1091 = vmul.f32 %v971, %v851
        %v1092 = vmul.f32 %v972, %v852
        %v1093 = vmul.f32 %v973, %v853
        %v1094 = vmul.f32 %v974, %v854
        %v1095 = vmul.f32 %v975, %v855
        %v1096 = vmul.f32 %v976, %v856
        %v1097 = vmul.f32 %v977, %v857
        %v1098 = vmul.f32 %v978, %v858
        %v1099 = vmul.f32 %v979, %v859
        %v1100 = vmul.f32 %v980, %v860
        %v1101 = vmul.f32 %v981, %v861
        %v1102 = vmul.f32 %v982, %v862
        %v1103 = vmul.f32 %v983, %v863
        %v1104 = vmul.f32 %v984, %v864
        %v1105 = vmul.f32 %v985, %v865
        %v1106 = vmul.f32 %v986, %v866
        %v1107 = vmul.f32 %v987, %v867
        %v1108 = vmul.f32 %v988, %v868
        %v1109 = vmul.f32 %v989, %v869
        %v1110 = vmul.f32 %v990, %v870
        %v1111 = vmul.f32 %v991, %v871
        %v1112 = vmul.f32 %v992, %v872
        %v1113 = vmul.f32 %v993, %v873
        %v1114 = vmul.f32 %v994, %v874
        %v1115 = vmul.f32 %v995, %v875
        %v1116 = vmul.f32 %v996, %v876
        %v1117 = vmul.f32 %v997, %v877
        %v1118 = vmul.f32 %v998, %v878
        %v1119 = vmul.f32 %v999, %v879
        %v1120 = vmul.f32 %v1000, %v880
        %v1121 = vmul.f32 %v1001, %v881
        %v1122 = vmul.f32 %v1002, %v882
        %v1123 = vmul.f32 %v1003, %v883
        %v1124 = vmul.f32 %v1004, %v884
        %v1125 = vmul.f32 %v1005, %v885
        %v1126 = vmul.f32 %v1006, %v886
        %v1127 = vmul.f32 %v1007, %v887
        %v1128 = vmul.f32 %v1008, %v888
        %v1129 = vmul.f32 %v1009, %v889
        %v1130 = vmul.f32 %v1010, %v890
        %v1131 = vmul.f32 %v1011, %v891
        %v1132 = vmul.f32 %v1012, %v892
        %v1133 = vmul.f32 %v1013, %v893
        %v1134 = vmul.f32 %v1014, %v894
        %v1135 = vmul.f32 %v1015, %v895
        %v1136 = vmul.f32 %v1016, %v896
        %v1137 = vmul.f32 %v1017, %v897
        %v1138 = vmul.f32 %v1018, %v898
        %v1139 = vmul.f32 %v1019, %v899
        %v1140 = vmul.f32 %v1020, %v900
        %v1141 = vmul.f32 %v1021, %v901
        %v1142 = vmul.f32 %v1022, %v902
        %v1143 = vmul.f32 %v1023, %v903
        %v1144 = vmul.f32 %v1024, %v904
        %v1145 = vmul.f32 %v1025, %v905
        %v1146 = vmul.f32 %v1026, %v906
        %v1147 = vmul.f32 %v1027, %v907
        %v1148 = vmul.f32 %v1028, %v908
        %v1149 = vmul.f32 %v1029, %v909
        %v1150 = vmul.f32 %v1030, %v910
        %v1151 = vmul.f32 %v1031, %v911
        %v1152 = vmul.f32 %v1032, %v912
        %v1153 = vmul.f32 %v1033, %v913
        %v1154 = vmul.f32 %v1034, %v914
        %v1155 = vmul.f32 %v1035, %v915
        %v1156 = vmul.f32 %v1036, %v916
        %v1157 = vmul.f32 %v1037, %v917
        %v1158 = vmul.f32 %v1038, %v918
        %v1159 = vmul.f32 %v1039, %v919
        %v1160 = vmul.f32 %v1040, %v920
        %v1161 = vmul.f32 %v1041, %v921
        %v1162 = vmul.f32 %v1042, %v922
        %v1163 = vmul.f32 %v1043, %v923
        %v1164 = vmul.f32 %v1044, %v924
        %v1165 = vmul.f32 %v1045, %v925
        %v1166 = vmul.f32 %v1046, %v926
        %v1167 = vmul.f32 %v1047, %v927
        %v1168 = vmul.f32 %v1048, %v928
        %v1169 = vmul.f32 %v1049, %v929
        %v1170 = vmul.f32 %v1050, %v930
        %v1171 = vmul.f32 %v1051, %v931
        %v1172 = vmul.f32 %v1052, %v932
        %v1173 = vmul.f32 %v1053, %v933
        %v1174 = vmul.f32 %v1054, %v934
        %v1175 = vmul.f32 %v1055, %v935
        %v1176 = vmul.f32 %v1056, %v936
        %v1177 = vmul.f32 %v1057, %v937
        %v1178 = vmul.f32 %v1058, %v938
        %v1179 = vmul.f32 %v1059, %v939
        %v1180 = vmul.f32 %v1060, %v940
        %v1181 = vmul.f32 %v1061, %v941
        %v1182 = vmul.f32 %v1062, %v942
        %v1183 = vmul.f32 %v1063, %v943
        %v1184 = vmul.f32 %v1064, %v944
        %v1185 = vmul.f32 %v1065, %v945
        %v1186 = vmul.f32 %v1066, %v946
        %v1187 = vmul.f32 %v1067, %v947
        %v1188 = vmul.f32 %v1068, %v948
        %v1189 = vmul.f32 %v1069, %v949
        %v1190 = vmul.f32 %v1070, %v950
        %v1191 = vmul.f32 %v1071, %v951
        %v1192 = vmul.f32 %v1072, %v952
        %v1193 = vmul.f32 %v1073, %v953
        %v1194 = vmul.f32 %v1074, %v954
        %v1195 = vmul.f32 %v1075, %v955
        %v1196 = vmul.f32 %v1076, %v956
        %v1197 = vmul.f32 %v1077, %v957
        %v1198 = vmul.f32 %v1078, %v958
        %v1199 = vmul.f32 %v1079, %v959
        %v1200 = vmul.f32 %v1080, 0.044715
        %v1201 = vmul.f32 %v1081, 0.044715
        %v1202 = vmul.f32 %v1082, 0.044715
        %v1203 = vmul.f32 %v1083, 0.044715
        %v1204 = vmul.f32 %v1084, 0.044715
        %v1205 = vmul.f32 %v1085, 0.044715
        %v1206 = vmul.f32 %v1086, 0.044715
        %v1207 = vmul.f32 %v1087, 0.044715
        %v1208 = vmul.f32 %v1088, 0.044715
        %v1209 = vmul.f32 %v1089, 0.044715
        %v1210 = vmul.f32 %v1090, 0.044715
        %v1211 = vmul.f32 %v1091, 0.044715
        %v1212 = vmul.f32 %v1092, 0.044715
        %v1213 = vmul.f32 %v1093, 0.044715
        %v1214 = vmul.f32 %v1094, 0.044715
        %v1215 = vmul.f32 %v1095, 0.044715
        %v1216 = vmul.f32 %v1096, 0.044715
        %v1217 = vmul.f32 %v1097, 0.044715
        %v1218 = vmul.f32 %v1098, 0.044715
        %v1219 = vmul.f32 %v1099, 0.044715
        %v1220 = vmul.f32 %v1100, 0.044715
        %v1221 = vmul.f32 %v1101, 0.044715
        %v1222 = vmul.f32 %v1102, 0.044715
        %v1223 = vmul.f32 %v1103, 0.044715
        %v1224 = vmul.f32 %v1104, 0.044715
        %v1225 = vmul.f32 %v1105, 0.044715
        %v1226 = vmul.f32 %v1106, 0.044715
        %v1227 = vmul.f32 %v1107, 0.044715
        %v1228 = vmul.f32 %v1108, 0.044715
        %v1229 = vmul.f32 %v1109, 0.044715
        %v1230 = vmul.f32 %v1110, 0.044715
        %v1231 = vmul.f32 %v1111, 0.044715
        %v1232 = vmul.f32 %v1112, 0.044715
        %v1233 = vmul.f32 %v1113, 0.044715
        %v1234 = vmul.f32 %v1114, 0.044715
        %v1235 = vmul.f32 %v1115, 0.044715
        %v1236 = vmul.f32 %v1116, 0.044715
        %v1237 = vmul.f32 %v1117, 0.044715
        %v1238 = vmul.f32 %v1118, 0.044715
        %v1239 = vmul.f32 %v1119, 0.044715
        %v1240 = vmul.f32 %v1120, 0.044715
        %v1241 = vmul.f32 %v1121, 0.044715
        %v1242 = vmul.f32 %v1122, 0.044715
        %v1243 = vmul.f32 %v1123, 0.044715
        %v1244 = vmul.f32 %v1124, 0.044715
        %v1245 = vmul.f32 %v1125, 0.044715
        %v1246 = vmul.f32 %v1126, 0.044715
        %v1247 = vmul.f32 %v1127, 0.044715
        %v1248 = vmul.f32 %v1128, 0.044715
        %v1249 = vmul.f32 %v1129, 0.044715
        %v1250 = vmul.f32 %v1130, 0.044715
        %v1251 = vmul.f32 %v1131, 0.044715
        %v1252 = vmul.f32 %v1132, 0.044715
        %v1253 = vmul.f32 %v1133, 0.044715
        %v1254 = vmul.f32 %v1134, 0.044715
        %v1255 = vmul.f32 %v1135, 0.044715
        %v1256 = vmul.f32 %v1136, 0.044715
        %v1257 = vmul.f32 %v1137, 0.044715
        %v1258 = vmul.f32 %v1138, 0.044715
        %v1259 = vmul.f32 %v1139, 0.044715
        %v1260 = vmul.f32 %v1140, 0.044715
        %v1261 = vmul.f32 %v1141, 0.044715
        %v1262 = vmul.f32 %v1142, 0.044715
        %v1263 = vmul.f32 %v1143, 0.044715
        %v1264 = vmul.f32 %v1144, 0.044715
        %v1265 = vmul.f32 %v1145, 0.044715
        %v1266 = vmul.f32 %v1146, 0.044715
        %v1267 = vmul.f32 %v1147, 0.044715
        %v1268 = vmul.f32 %v1148, 0.044715
        %v1269 = vmul.f32 %v1149, 0.044715
        %v1270 = vmul.f32 %v1150, 0.044715
        %v1271 = vmul.f32 %v1151, 0.044715
        %v1272 = vmul.f32 %v1152, 0.044715
        %v1273 = vmul.f32 %v1153, 0.044715
        %v1274 = vmul.f32 %v1154, 0.044715
        %v1275 = vmul.f32 %v1155, 0.044715
        %v1276 = vmul.f32 %v1156, 0.044715
        %v1277 = vmul.f32 %v1157, 0.044715
        %v1278 = vmul.f32 %v1158, 0.044715
        %v1279 = vmul.f32 %v1159, 0.044715
        %v1280 = vmul.f32 %v1160, 0.044715
        %v1281 = vmul.f32 %v1161, 0.044715
        %v1282 = vmul.f32 %v1162, 0.044715
        %v1283 = vmul.f32 %v1163, 0.044715
        %v1284 = vmul.f32 %v1164, 0.044715
        %v1285 = vmul.f32 %v1165, 0.044715
        %v1286 = vmul.f32 %v1166, 0.044715
        %v1287 = vmul.f32 %v1167, 0.044715
        %v1288 = vmul.f32 %v1168, 0.044715
        %v1289 = vmul.f32 %v1169, 0.044715
        %v1290 = vmul.f32 %v1170, 0.044715
        %v1291 = vmul.f32 %v1171, 0.044715
        %v1292 = vmul.f32 %v1172, 0.044715
        %v1293 = vmul.f32 %v1173, 0.044715
        %v1294 = vmul.f32 %v1174, 0.044715
        %v1295 = vmul.f32 %v1175, 0.044715
        %v1296 = vmul.f32 %v1176, 0.044715
        %v1297 = vmul.f32 %v1177, 0.044715
        %v1298 = vmul.f32 %v1178, 0.044715
        %v1299 = vmul.f32 %v1179, 0.044715
        %v1300 = vmul.f32 %v1180, 0.044715
        %v1301 = vmul.f32 %v1181, 0.044715
        %v1302 = vmul.f32 %v1182, 0.044715
        %v1303 = vmul.f32 %v1183, 0.044715
        %v1304 = vmul.f32 %v1184, 0.044715
        %v1305 = vmul.f32 %v1185, 0.044715
        %v1306 = vmul.f32 %v1186, 0.044715
        %v1307 = vmul.f32 %v1187, 0.044715
        %v1308 = vmul.f32 %v1188, 0.044715
        %v1309 = vmul.f32 %v1189, 0.044715
        %v1310 = vmul.f32 %v1190, 0.044715
        %v1311 = vmul.f32 %v1191, 0.044715
        %v1312 = vmul.f32 %v1192, 0.044715
        %v1313 = vmul.f32 %v1193, 0.044715
        %v1314 = vmul.f32 %v1194, 0.044715
        %v1315 = vmul.f32 %v1195, 0.044715
        %v1316 = vmul.f32 %v1196, 0.044715
        %v1317 = vmul.f32 %v1197, 0.044715
        %v1318 = vmul.f32 %v1198, 0.044715
        %v1319 = vmul.f32 %v1199, 0.044715
        %v1320 = vadd.f32 %v840, %v1200
        %v1321 = vadd.f32 %v841, %v1201
        %v1322 = vadd.f32 %v842, %v1202
        %v1323 = vadd.f32 %v843, %v1203
        %v1324 = vadd.f32 %v844, %v1204
        %v1325 = vadd.f32 %v845, %v1205
        %v1326 = vadd.f32 %v846, %v1206
        %v1327 = vadd.f32 %v847, %v1207
        %v1328 = vadd.f32 %v848, %v1208
        %v1329 = vadd.f32 %v849, %v1209
        %v1330 = vadd.f32 %v850, %v1210
        %v1331 = vadd.f32 %v851, %v1211
        %v1332 = vadd.f32 %v852, %v1212
        %v1333 = vadd.f32 %v853, %v1213
        %v1334 = vadd.f32 %v854, %v1214
        %v1335 = vadd.f32 %v855, %v1215
        %v1336 = vadd.f32 %v856, %v1216
        %v1337 = vadd.f32 %v857, %v1217
        %v1338 = vadd.f32 %v858, %v1218
        %v1339 = vadd.f32 %v859, %v1219
        %v1340 = vadd.f32 %v860, %v1220
        %v1341 = vadd.f32 %v861, %v1221
        %v1342 = vadd.f32 %v862, %v1222
        %v1343 = vadd.f32 %v863, %v1223
        %v1344 = vadd.f32 %v864, %v1224
        %v1345 = vadd.f32 %v865, %v1225
        %v1346 = vadd.f32 %v866, %v1226
        %v1347 = vadd.f32 %v867, %v1227
        %v1348 = vadd.f32 %v868, %v1228
        %v1349 = vadd.f32 %v869, %v1229
        %v1350 = vadd.f32 %v870, %v1230
        %v1351 = vadd.f32 %v871, %v1231
        %v1352 = vadd.f32 %v872, %v1232
        %v1353 = vadd.f32 %v873, %v1233
        %v1354 = vadd.f32 %v874, %v1234
        %v1355 = vadd.f32 %v875, %v1235
        %v1356 = vadd.f32 %v876, %v1236
        %v1357 = vadd.f32 %v877, %v1237
        %v1358 = vadd.f32 %v878, %v1238
        %v1359 = vadd.f32 %v879, %v1239
        %v1360 = vadd.f32 %v880, %v1240
        %v1361 = vadd.f32 %v881, %v1241
        %v1362 = vadd.f32 %v882, %v1242
        %v1363 = vadd.f32 %v883, %v1243
        %v1364 = vadd.f32 %v884, %v1244
        %v1365 = vadd.f32 %v885, %v1245
        %v1366 = vadd.f32 %v886, %v1246
        %v1367 = vadd.f32 %v887, %v1247
        %v1368 = vadd.f32 %v888, %v1248
        %v1369 = vadd.f32 %v889, %v1249
        %v1370 = vadd.f32 %v890, %v1250
        %v1371 = vadd.f32 %v891, %v1251
        %v1372 = vadd.f32 %v892, %v1252
        %v1373 = vadd.f32 %v893, %v1253
        %v1374 = vadd.f32 %v894, %v1254
        %v1375 = vadd.f32 %v895, %v1255
        %v1376 = vadd.f32 %v896, %v1256
        %v1377 = vadd.f32 %v897, %v1257
        %v1378 = vadd.f32 %v898, %v1258
        %v1379 = vadd.f32 %v899, %v1259
        %v1380 = vadd.f32 %v900, %v1260
        %v1381 = vadd.f32 %v901, %v1261
        %v1382 = vadd.f32 %v902, %v1262
        %v1383 = vadd.f32 %v903, %v1263
        %v1384 = vadd.f32 %v904, %v1264
        %v1385 = vadd.f32 %v905, %v1265
        %v1386 = vadd.f32 %v906, %v1266
        %v1387 = vadd.f32 %v907, %v1267
        %v1388 = vadd.f32 %v908, %v1268
        %v1389 = vadd.f32 %v909, %v1269
        %v1390 = vadd.f32 %v910, %v1270
        %v1391 = vadd.f32 %v911, %v1271
        %v1392 = vadd.f32 %v912, %v1272
        %v1393 = vadd.f32 %v913, %v1273
        %v1394 = vadd.f32 %v914, %v1274
        %v1395 = vadd.f32 %v915, %v1275
        %v1396 = vadd.f32 %v916, %v1276
        %v1397 = vadd.f32 %v917, %v1277
        %v1398 = vadd.f32 %v918, %v1278
        %v1399 = vadd.f32 %v919, %v1279
        %v1400 = vadd.f32 %v920, %v1280
        %v1401 = vadd.f32 %v921, %v1281
        %v1402 = vadd.f32 %v922, %v1282
        %v1403 = vadd.f32 %v923, %v1283
        %v1404 = vadd.f32 %v924, %v1284
        %v1405 = vadd.f32 %v925, %v1285
        %v1406 = vadd.f32 %v926, %v1286
        %v1407 = vadd.f32 %v927, %v1287
        %v1408 = vadd.f32 %v928, %v1288
        %v1409 = vadd.f32 %v929, %v1289
        %v1410 = vadd.f32 %v930, %v1290
        %v1411 = vadd.f32 %v931, %v1291
        %v1412 = vadd.f32 %v932, %v1292
        %v1413 = vadd.f32 %v933, %v1293
        %v1414 = vadd.f32 %v934, %v1294
        %v1415 = vadd.f32 %v935, %v1295
        %v1416 = vadd.f32 %v936, %v1296
        %v1417 = vadd.f32 %v937, %v1297
        %v1418 = vadd.f32 %v938, %v1298
        %v1419 = vadd.f32 %v939, %v1299
        %v1420 = vadd.f32 %v940, %v1300
        %v1421 = vadd.f32 %v941, %v1301
        %v1422 = vadd.f32 %v942, %v1302
        %v1423 = vadd.f32 %v943, %v1303
        %v1424 = vadd.f32 %v944, %v1304
        %v1425 = vadd.f32 %v945, %v1305
        %v1426 = vadd.f32 %v946, %v1306
        %v1427 = vadd.f32 %v947, %v1307
        %v1428 = vadd.f32 %v948, %v1308
        %v1429 = vadd.f32 %v949, %v1309
        %v1430 = vadd.f32 %v950, %v1310
        %v1431 = vadd.f32 %v951, %v1311
        %v1432 = vadd.f32 %v952, %v1312
        %v1433 = vadd.f32 %v953, %v1313
        %v1434 = vadd.f32 %v954, %v1314
        %v1435 = vadd.f32 %v955, %v1315
        %v1436 = vadd.f32 %v956, %v1316
        %v1437 = vadd.f32 %v957, %v1317
        %v1438 = vadd.f32 %v958, %v1318
        %v1439 = vadd.f32 %v959, %v1319
        %v1440 = vmul.f32 %v1320, 0.7978846
        %v1441 = vmul.f32 %v1321, 0.7978846
        %v1442 = vmul.f32 %v1322, 0.7978846
        %v1443 = vmul.f32 %v1323, 0.7978846
        %v1444 = vmul.f32 %v1324, 0.7978846
        %v1445 = vmul.f32 %v1325, 0.7978846
        %v1446 = vmul.f32 %v1326, 0.7978846
        %v1447 = vmul.f32 %v1327, 0.7978846
        %v1448 = vmul.f32 %v1328, 0.7978846
        %v1449 = vmul.f32 %v1329, 0.7978846
        %v1450 = vmul.f32 %v1330, 0.7978846
        %v1451 = vmul.f32 %v1331, 0.7978846
        %v1452 = vmul.f32 %v1332, 0.7978846
        %v1453 = vmul.f32 %v1333, 0.7978846
        %v1454 = vmul.f32 %v1334, 0.7978846
        %v1455 = vmul.f32 %v1335, 0.7978846
        %v1456 = vmul.f32 %v1336, 0.7978846
        %v1457 = vmul.f32 %v1337, 0.7978846
        %v1458 = vmul.f32 %v1338, 0.7978846
        %v1459 = vmul.f32 %v1339, 0.7978846
        %v1460 = vmul.f32 %v1340, 0.7978846
        %v1461 = vmul.f32 %v1341, 0.7978846
        %v1462 = vmul.f32 %v1342, 0.7978846
        %v1463 = vmul.f32 %v1343, 0.7978846
        %v1464 = vmul.f32 %v1344, 0.7978846
        %v1465 = vmul.f32 %v1345, 0.7978846
        %v1466 = vmul.f32 %v1346, 0.7978846
        %v1467 = vmul.f32 %v1347, 0.7978846
        %v1468 = vmul.f32 %v1348, 0.7978846
        %v1469 = vmul.f32 %v1349, 0.7978846
        %v1470 = vmul.f32 %v1350, 0.7978846
        %v1471 = vmul.f32 %v1351, 0.7978846
        %v1472 = vmul.f32 %v1352, 0.7978846
        %v1473 = vmul.f32 %v1353, 0.7978846
        %v1474 = vmul.f32 %v1354, 0.7978846
        %v1475 = vmul.f32 %v1355, 0.7978846
        %v1476 = vmul.f32 %v1356, 0.7978846
        %v1477 = vmul.f32 %v1357, 0.7978846
        %v1478 = vmul.f32 %v1358, 0.7978846
        %v1479 = vmul.f32 %v1359, 0.7978846
        %v1480 = vmul.f32 %v1360, 0.7978846
        %v1481 = vmul.f32 %v1361, 0.7978846
        %v1482 = vmul.f32 %v1362, 0.7978846
        %v1483 = vmul.f32 %v1363, 0.7978846
        %v1484 = vmul.f32 %v1364, 0.7978846
        %v1485 = vmul.f32 %v1365, 0.7978846
        %v1486 = vmul.f32 %v1366, 0.7978846
        %v1487 = vmul.f32 %v1367, 0.7978846
        %v1488 = vmul.f32 %v1368, 0.7978846
        %v1489 = vmul.f32 %v1369, 0.7978846
        %v1490 = vmul.f32 %v1370, 0.7978846
        %v1491 = vmul.f32 %v1371, 0.7978846
        %v1492 = vmul.f32 %v1372, 0.7978846
        %v1493 = vmul.f32 %v1373, 0.7978846
        %v1494 = vmul.f32 %v1374, 0.7978846
        %v1495 = vmul.f32 %v1375, 0.7978846
        %v1496 = vmul.f32 %v1376, 0.7978846
        %v1497 = vmul.f32 %v1377, 0.7978846
        %v1498 = vmul.f32 %v1378, 0.7978846
        %v1499 = vmul.f32 %v1379, 0.7978846
        %v1500 = vmul.f32 %v1380, 0.7978846
        %v1501 = vmul.f32 %v1381, 0.7978846
        %v1502 = vmul.f32 %v1382, 0.7978846
        %v1503 = vmul.f32 %v1383, 0.7978846
        %v1504 = vmul.f32 %v1384, 0.7978846
        %v1505 = vmul.f32 %v1385, 0.7978846
        %v1506 = vmul.f32 %v1386, 0.7978846
        %v1507 = vmul.f32 %v1387, 0.7978846
        %v1508 = vmul.f32 %v1388, 0.7978846
        %v1509 = vmul.f32 %v1389, 0.7978846
        %v1510 = vmul.f32 %v1390, 0.7978846
        %v1511 = vmul.f32 %v1391, 0.7978846
        %v1512 = vmul.f32 %v1392, 0.7978846
        %v1513 = vmul.f32 %v1393, 0.7978846
        %v1514 = vmul.f32 %v1394, 0.7978846
        %v1515 = vmul.f32 %v1395, 0.7978846
        %v1516 = vmul.f32 %v1396, 0.7978846
        %v1517 = vmul.f32 %v1397, 0.7978846
        %v1518 = vmul.f32 %v1398, 0.7978846
        %v1519 = vmul.f32 %v1399, 0.7978846
        %v1520 = vmul.f32 %v1400, 0.7978846
        %v1521 = vmul.f32 %v1401, 0.7978846
        %v1522 = vmul.f32 %v1402, 0.7978846
        %v1523 = vmul.f32 %v1403, 0.7978846
        %v1524 = vmul.f32 %v1404, 0.7978846
        %v1525 = vmul.f32 %v1405, 0.7978846
        %v1526 = vmul.f32 %v1406, 0.7978846
        %v1527 = vmul.f32 %v1407, 0.7978846
        %v1528 = vmul.f32 %v1408, 0.7978846
        %v1529 = vmul.f32 %v1409, 0.7978846
        %v1530 = vmul.f32 %v1410, 0.7978846
        %v1531 = vmul.f32 %v1411, 0.7978846
        %v1532 = vmul.f32 %v1412, 0.7978846
        %v1533 = vmul.f32 %v1413, 0.7978846
        %v1534 = vmul.f32 %v1414, 0.7978846
        %v1535 = vmul.f32 %v1415, 0.7978846
        %v1536 = vmul.f32 %v1416, 0.7978846
        %v1537 = vmul.f32 %v1417, 0.7978846
        %v1538 = vmul.f32 %v1418, 0.7978846
        %v1539 = vmul.f32 %v1419, 0.7978846
        %v1540 = vmul.f32 %v1420, 0.7978846
        %v1541 = vmul.f32 %v1421, 0.7978846
        %v1542 = vmul.f32 %v1422, 0.7978846
        %v1543 = vmul.f32 %v1423, 0.7978846
        %v1544 = vmul.f32 %v1424, 0.7978846
        %v1545 = vmul.f32 %v1425, 0.7978846
        %v1546 = vmul.f32 %v1426, 0.7978846
        %v1547 = vmul.f32 %v1427, 0.7978846
        %v1548 = vmul.f32 %v1428, 0.7978846
        %v1549 = vmul.f32 %v1429, 0.7978846
        %v1550 = vmul.f32 %v1430, 0.7978846
        %v1551 = vmul.f32 %v1431, 0.7978846
        %v1552 = vmul.f32 %v1432, 0.7978846
        %v1553 = vmul.f32 %v1433, 0.7978846
        %v1554 = vmul.f32 %v1434, 0.7978846
        %v1555 = vmul.f32 %v1435, 0.7978846
        %v1556 = vmul.f32 %v1436, 0.7978846
        %v1557 = vmul.f32 %v1437, 0.7978846
        %v1558 = vmul.f32 %v1438, 0.7978846
        %v1559 = vmul.f32 %v1439, 0.7978846
        %v1560 = vmul.f32 %v840, 0.5
        %v1561 = vmul.f32 %v841, 0.5
        %v1562 = vmul.f32 %v842, 0.5
        %v1563 = vmul.f32 %v843, 0.5
        %v1564 = vmul.f32 %v844, 0.5
        %v1565 = vmul.f32 %v845, 0.5
        %v1566 = vmul.f32 %v846, 0.5
        %v1567 = vmul.f32 %v847, 0.5
        %v1568 = vmul.f32 %v848, 0.5
        %v1569 = vmul.f32 %v849, 0.5
        %v1570 = vmul.f32 %v850, 0.5
        %v1571 = vmul.f32 %v851, 0.5
        %v1572 = vmul.f32 %v852, 0.5
        %v1573 = vmul.f32 %v853, 0.5
        %v1574 = vmul.f32 %v854, 0.5
        %v1575 = vmul.f32 %v855, 0.5
        %v1576 = vmul.f32 %v856, 0.5
        %v1577 = vmul.f32 %v857, 0.5
        %v1578 = vmul.f32 %v858, 0.5
        %v1579 = vmul.f32 %v859, 0.5
        %v1580 = vmul.f32 %v860, 0.5
        %v1581 = vmul.f32 %v861, 0.5
        %v1582 = vmul.f32 %v862, 0.5
        %v1583 = vmul.f32 %v863, 0.5
        %v1584 = vmul.f32 %v864, 0.5
        %v1585 = vmul.f32 %v865, 0.5
        %v1586 = vmul.f32 %v866, 0.5
        %v1587 = vmul.f32 %v867, 0.5
        %v1588 = vmul.f32 %v868, 0.5
        %v1589 = vmul.f32 %v869, 0.5
        %v1590 = vmul.f32 %v870, 0.5
        %v1591 = vmul.f32 %v871, 0.5
        %v1592 = vmul.f32 %v872, 0.5
        %v1593 = vmul.f32 %v873, 0.5
        %v1594 = vmul.f32 %v874, 0.5
        %v1595 = vmul.f32 %v875, 0.5
        %v1596 = vmul.f32 %v876, 0.5
        %v1597 = vmul.f32 %v877, 0.5
        %v1598 = vmul.f32 %v878, 0.5
        %v1599 = vmul.f32 %v879, 0.5
        %v1600 = vmul.f32 %v880, 0.5
        %v1601 = vmul.f32 %v881, 0.5
        %v1602 = vmul.f32 %v882, 0.5
        %v1603 = vmul.f32 %v883, 0.5
        %v1604 = vmul.f32 %v884, 0.5
        %v1605 = vmul.f32 %v885, 0.5
        %v1606 = vmul.f32 %v886, 0.5
        %v1607 = vmul.f32 %v887, 0.5
        %v1608 = vmul.f32 %v888, 0.5
        %v1609 = vmul.f32 %v889, 0.5
        %v1610 = vmul.f32 %v890, 0.5
        %v1611 = vmul.f32 %v891, 0.5
        %v1612 = vmul.f32 %v892, 0.5
        %v1613 = vmul.f32 %v893, 0.5
        %v1614 = vmul.f32 %v894, 0.5
        %v1615 = vmul.f32 %v895, 0.5
        %v1616 = vmul.f32 %v896, 0.5
        %v1617 = vmul.f32 %v897, 0.5
        %v1618 = vmul.f32 %v898, 0.5
        %v1619 = vmul.f32 %v899, 0.5
        %v1620 = vmul.f32 %v900, 0.5
        %v1621 = vmul.f32 %v901, 0.5
        %v1622 = vmul.f32 %v902, 0.5
        %v1623 = vmul.f32 %v903, 0.5
        %v1624 = vmul.f32 %v904, 0.5
        %v1625 = vmul.f32 %v905, 0.5
        %v1626 = vmul.f32 %v906, 0.5
        %v1627 = vmul.f32 %v907, 0.5
        %v1628 = vmul.f32 %v908, 0.5
        %v1629 = vmul.f32 %v909, 0.5
        %v1630 = vmul.f32 %v910, 0.5
        %v1631 = vmul.f32 %v911, 0.5
        %v1632 = vmul.f32 %v912, 0.5
        %v1633 = vmul.f32 %v913, 0.5
        %v1634 = vmul.f32 %v914, 0.5
        %v1635 = vmul.f32 %v915, 0.5
        %v1636 = vmul.f32 %v916, 0.5
        %v1637 = vmul.f32 %v917, 0.5
        %v1638 = vmul.f32 %v918, 0.5
        %v1639 = vmul.f32 %v919, 0.5
        %v1640 = vmul.f32 %v920, 0.5
        %v1641 = vmul.f32 %v921, 0.5
        %v1642 = vmul.f32 %v922, 0.5
        %v1643 = vmul.f32 %v923, 0.5
        %v1644 = vmul.f32 %v924, 0.5
        %v1645 = vmul.f32 %v925, 0.5
        %v1646 = vmul.f32 %v926, 0.5
        %v1647 = vmul.f32 %v927, 0.5
        %v1648 = vmul.f32 %v928, 0.5
        %v1649 = vmul.f32 %v929, 0.5
        %v1650 = vmul.f32 %v930, 0.5
        %v1651 = vmul.f32 %v931, 0.5
        %v1652 = vmul.f32 %v932, 0.5
        %v1653 = vmul.f32 %v933, 0.5
        %v1654 = vmul.f32 %v934, 0.5
        %v1655 = vmul.f32 %v935, 0.5
        %v1656 = vmul.f32 %v936, 0.5
        %v1657 = vmul.f32 %v937, 0.5
        %v1658 = vmul.f32 %v938, 0.5
        %v1659 = vmul.f32 %v939, 0.5
        %v1660 = vmul.f32 %v940, 0.5
        %v1661 = vmul.f32 %v941, 0.5
        %v1662 = vmul.f32 %v942, 0.5
        %v1663 = vmul.f32 %v943, 0.5
        %v1664 = vmul.f32 %v944, 0.5
        %v1665 = vmul.f32 %v945, 0.5
        %v1666 = vmul.f32 %v946, 0.5
        %v1667 = vmul.f32 %v947, 0.5
        %v1668 = vmul.f32 %v948, 0.5
        %v1669 = vmul.f32 %v949, 0.5
        %v1670 = vmul.f32 %v950, 0.5
        %v1671 = vmul.f32 %v951, 0.5
        %v1672 = vmul.f32 %v952, 0.5
        %v1673 = vmul.f32 %v953, 0.5
        %v1674 = vmul.f32 %v954, 0.5
        %v1675 = vmul.f32 %v955, 0.5
        %v1676 = vmul.f32 %v956, 0.5
        %v1677 = vmul.f32 %v957, 0.5
        %v1678 = vmul.f32 %v958, 0.5
        %v1679 = vmul.f32 %v959, 0.5
        %v1680 = vtanh.pop %v1440
        %v1681 = vtanh.pop %v1441
        %v1682 = vtanh.pop %v1442
        %v1683 = vtanh.pop %v1443
        %v1684 = vtanh.pop %v1444
        %v1685 = vtanh.pop %v1445
        %v1686 = vtanh.pop %v1446
        %v1687 = vtanh.pop %v1447
        %v1688 = vtanh.pop %v1448
        %v1689 = vtanh.pop %v1449
        %v1690 = vtanh.pop %v1450
        %v1691 = vtanh.pop %v1451
        %v1692 = vtanh.pop %v1452
        %v1693 = vtanh.pop %v1453
        %v1694 = vtanh.pop %v1454
        %v1695 = vtanh.pop %v1455
        %v1696 = vtanh.pop %v1456
        %v1697 = vtanh.pop %v1457
        %v1698 = vtanh.pop %v1458
        %v1699 = vtanh.pop %v1459
        %v1700 = vtanh.pop %v1460
        %v1701 = vtanh.pop %v1461
        %v1702 = vtanh.pop %v1462
        %v1703 = vtanh.pop %v1463
        %v1704 = vtanh.pop %v1464
        %v1705 = vtanh.pop %v1465
        %v1706 = vtanh.pop %v1466
        %v1707 = vtanh.pop %v1467
        %v1708 = vtanh.pop %v1468
        %v1709 = vtanh.pop %v1469
        %v1710 = vtanh.pop %v1470
        %v1711 = vtanh.pop %v1471
        %v1712 = vtanh.pop %v1472
        %v1713 = vtanh.pop %v1473
        %v1714 = vtanh.pop %v1474
        %v1715 = vtanh.pop %v1475
        %v1716 = vtanh.pop %v1476
        %v1717 = vtanh.pop %v1477
        %v1718 = vtanh.pop %v1478
        %v1719 = vtanh.pop %v1479
        %v1720 = vtanh.pop %v1480
        %v1721 = vtanh.pop %v1481
        %v1722 = vtanh.pop %v1482
        %v1723 = vtanh.pop %v1483
        %v1724 = vtanh.pop %v1484
        %v1725 = vtanh.pop %v1485
        %v1726 = vtanh.pop %v1486
        %v1727 = vtanh.pop %v1487
        %v1728 = vtanh.pop %v1488
        %v1729 = vtanh.pop %v1489
        %v1730 = vtanh.pop %v1490
        %v1731 = vtanh.pop %v1491
        %v1732 = vtanh.pop %v1492
        %v1733 = vtanh.pop %v1493
        %v1734 = vtanh.pop %v1494
        %v1735 = vtanh.pop %v1495
        %v1736 = vtanh.pop %v1496
        %v1737 = vtanh.pop %v1497
        %v1738 = vtanh.pop %v1498
        %v1739 = vtanh.pop %v1499
        %v1740 = vtanh.pop %v1500
        %v1741 = vtanh.pop %v1501
        %v1742 = vtanh.pop %v1502
        %v1743 = vtanh.pop %v1503
        %v1744 = vtanh.pop %v1504
        %v1745 = vtanh.pop %v1505
        %v1746 = vtanh.pop %v1506
        %v1747 = vtanh.pop %v1507
        %v1748 = vtanh.pop %v1508
        %v1749 = vtanh.pop %v1509
        %v1750 = vtanh.pop %v1510
        %v1751 = vtanh.pop %v1511
        %v1752 = vtanh.pop %v1512
        %v1753 = vtanh.pop %v1513
        %v1754 = vtanh.pop %v1514
        %v1755 = vtanh.pop %v1515
        %v1756 = vtanh.pop %v1516
        %v1757 = vtanh.pop %v1517
        %v1758 = vtanh.pop %v1518
        %v1759 = vtanh.pop %v1519
        %v1760 = vtanh.pop %v1520
        %v1761 = vtanh.pop %v1521
        %v1762 = vtanh.pop %v1522
        %v1763 = vtanh.pop %v1523
        %v1764 = vtanh.pop %v1524
        %v1765 = vtanh.pop %v1525
        %v1766 = vtanh.pop %v1526
        %v1767 = vtanh.pop %v1527
        %v1768 = vtanh.pop %v1528
        %v1769 = vtanh.pop %v1529
        %v1770 = vtanh.pop %v1530
        %v1771 = vtanh.pop %v1531
        %v1772 = vtanh.pop %v1532
        %v1773 = vtanh.pop %v1533
        %v1774 = vtanh.pop %v1534
        %v1775 = vtanh.pop %v1535
        %v1776 = vtanh.pop %v1536
        %v1777 = vtanh.pop %v1537
        %v1778 = vtanh.pop %v1538
        %v1779 = vtanh.pop %v1539
        %v1780 = vtanh.pop %v1540
        %v1781 = vtanh.pop %v1541
        %v1782 = vtanh.pop %v1542
        %v1783 = vtanh.pop %v1543
        %v1784 = vtanh.pop %v1544
        %v1785 = vtanh.pop %v1545
        %v1786 = vtanh.pop %v1546
        %v1787 = vtanh.pop %v1547
        %v1788 = vtanh.pop %v1548
        %v1789 = vtanh.pop %v1549
        %v1790 = vtanh.pop %v1550
        %v1791 = vtanh.pop %v1551
        %v1792 = vtanh.pop %v1552
        %v1793 = vtanh.pop %v1553
        %v1794 = vtanh.pop %v1554
        %v1795 = vtanh.pop %v1555
        %v1796 = vtanh.pop %v1556
        %v1797 = vtanh.pop %v1557
        %v1798 = vtanh.pop %v1558
        %v1799 = vtanh.pop %v1559
        %v1800 = vadd.f32 %v1680, 1.0
        %v1801 = vadd.f32 %v1681, 1.0
        %v1802 = vadd.f32 %v1682, 1.0
        %v1803 = vadd.f32 %v1683, 1.0
        %v1804 = vadd.f32 %v1684, 1.0
        %v1805 = vadd.f32 %v1685, 1.0
        %v1806 = vadd.f32 %v1686, 1.0
        %v1807 = vadd.f32 %v1687, 1.0
        %v1808 = vadd.f32 %v1688, 1.0
        %v1809 = vadd.f32 %v1689, 1.0
        %v1810 = vadd.f32 %v1690, 1.0
        %v1811 = vadd.f32 %v1691, 1.0
        %v1812 = vadd.f32 %v1692, 1.0
        %v1813 = vadd.f32 %v1693, 1.0
        %v1814 = vadd.f32 %v1694, 1.0
        %v1815 = vadd.f32 %v1695, 1.0
        %v1816 = vadd.f32 %v1696, 1.0
        %v1817 = vadd.f32 %v1697, 1.0
        %v1818 = vadd.f32 %v1698, 1.0
        %v1819 = vadd.f32 %v1699, 1.0
        %v1820 = vadd.f32 %v1700, 1.0
        %v1821 = vadd.f32 %v1701, 1.0
        %v1822 = vadd.f32 %v1702, 1.0
        %v1823 = vadd.f32 %v1703, 1.0
        %v1824 = vadd.f32 %v1704, 1.0
        %v1825 = vadd.f32 %v1705, 1.0
        %v1826 = vadd.f32 %v1706, 1.0
        %v1827 = vadd.f32 %v1707, 1.0
        %v1828 = vadd.f32 %v1708, 1.0
        %v1829 = vadd.f32 %v1709, 1.0
        %v1830 = vadd.f32 %v1710, 1.0
        %v1831 = vadd.f32 %v1711, 1.0
        %v1832 = vadd.f32 %v1712, 1.0
        %v1833 = vadd.f32 %v1713, 1.0
        %v1834 = vadd.f32 %v1714, 1.0
        %v1835 = vadd.f32 %v1715, 1.0
        %v1836 = vadd.f32 %v1716, 1.0
        %v1837 = vadd.f32 %v1717, 1.0
        %v1838 = vadd.f32 %v1718, 1.0
        %v1839 = vadd.f32 %v1719, 1.0
        %v1840 = vadd.f32 %v1720, 1.0
        %v1841 = vadd.f32 %v1721, 1.0
        %v1842 = vadd.f32 %v1722, 1.0
        %v1843 = vadd.f32 %v1723, 1.0
        %v1844 = vadd.f32 %v1724, 1.0
        %v1845 = vadd.f32 %v1725, 1.0
        %v1846 = vadd.f32 %v1726, 1.0
        %v1847 = vadd.f32 %v1727, 1.0
        %v1848 = vadd.f32 %v1728, 1.0
        %v1849 = vadd.f32 %v1729, 1.0
        %v1850 = vadd.f32 %v1730, 1.0
        %v1851 = vadd.f32 %v1731, 1.0
        %v1852 = vadd.f32 %v1732, 1.0
        %v1853 = vadd.f32 %v1733, 1.0
        %v1854 = vadd.f32 %v1734, 1.0
        %v1855 = vadd.f32 %v1735, 1.0
        %v1856 = vadd.f32 %v1736, 1.0
        %v1857 = vadd.f32 %v1737, 1.0
        %v1858 = vadd.f32 %v1738, 1.0
        %v1859 = vadd.f32 %v1739, 1.0
        %v1860 = vadd.f32 %v1740, 1.0
        %v1861 = vadd.f32 %v1741, 1.0
        %v1862 = vadd.f32 %v1742, 1.0
        %v1863 = vadd.f32 %v1743, 1.0
        %v1864 = vadd.f32 %v1744, 1.0
        %v1865 = vadd.f32 %v1745, 1.0
        %v1866 = vadd.f32 %v1746, 1.0
        %v1867 = vadd.f32 %v1747, 1.0
        %v1868 = vadd.f32 %v1748, 1.0
        %v1869 = vadd.f32 %v1749, 1.0
        %v1870 = vadd.f32 %v1750, 1.0
        %v1871 = vadd.f32 %v1751, 1.0
        %v1872 = vadd.f32 %v1752, 1.0
        %v1873 = vadd.f32 %v1753, 1.0
        %v1874 = vadd.f32 %v1754, 1.0
        %v1875 = vadd.f32 %v1755, 1.0
        %v1876 = vadd.f32 %v1756, 1.0
        %v1877 = vadd.f32 %v1757, 1.0
        %v1878 = vadd.f32 %v1758, 1.0
        %v1879 = vadd.f32 %v1759, 1.0
        %v1880 = vadd.f32 %v1760, 1.0
        %v1881 = vadd.f32 %v1761, 1.0
        %v1882 = vadd.f32 %v1762, 1.0
        %v1883 = vadd.f32 %v1763, 1.0
        %v1884 = vadd.f32 %v1764, 1.0
        %v1885 = vadd.f32 %v1765, 1.0
        %v1886 = vadd.f32 %v1766, 1.0
        %v1887 = vadd.f32 %v1767, 1.0
        %v1888 = vadd.f32 %v1768, 1.0
        %v1889 = vadd.f32 %v1769, 1.0
        %v1890 = vadd.f32 %v1770, 1.0
        %v1891 = vadd.f32 %v1771, 1.0
        %v1892 = vadd.f32 %v1772, 1.0
        %v1893 = vadd.f32 %v1773, 1.0
        %v1894 = vadd.f32 %v1774, 1.0
        %v1895 = vadd.f32 %v1775, 1.0
        %v1896 = vadd.f32 %v1776, 1.0
        %v1897 = vadd.f32 %v1777, 1.0
        %v1898 = vadd.f32 %v1778, 1.0
        %v1899 = vadd.f32 %v1779, 1.0
        %v1900 = vadd.f32 %v1780, 1.0
        %v1901 = vadd.f32 %v1781, 1.0
        %v1902 = vadd.f32 %v1782, 1.0
        %v1903 = vadd.f32 %v1783, 1.0
        %v1904 = vadd.f32 %v1784, 1.0
        %v1905 = vadd.f32 %v1785, 1.0
        %v1906 = vadd.f32 %v1786, 1.0
        %v1907 = vadd.f32 %v1787, 1.0
        %v1908 = vadd.f32 %v1788, 1.0
        %v1909 = vadd.f32 %v1789, 1.0
        %v1910 = vadd.f32 %v1790, 1.0
        %v1911 = vadd.f32 %v1791, 1.0
        %v1912 = vadd.f32 %v1792, 1.0
        %v1913 = vadd.f32 %v1793, 1.0
        %v1914 = vadd.f32 %v1794, 1.0
        %v1915 = vadd.f32 %v1795, 1.0
        %v1916 = vadd.f32 %v1796, 1.0
        %v1917 = vadd.f32 %v1797, 1.0
        %v1918 = vadd.f32 %v1798, 1.0
        %v1919 = vadd.f32 %v1799, 1.0
        %v1920 = vmul.f32 %v1560, %v1800
        %v1921 = vmul.f32 %v1561, %v1801
        %v1922 = vmul.f32 %v1562, %v1802
        %v1923 = vmul.f32 %v1563, %v1803
        %v1924 = vmul.f32 %v1564, %v1804
        %v1925 = vmul.f32 %v1565, %v1805
        %v1926 = vmul.f32 %v1566, %v1806
        %v1927 = vmul.f32 %v1567, %v1807
        %v1928 = vmul.f32 %v1568, %v1808
        %v1929 = vmul.f32 %v1569, %v1809
        %v1930 = vmul.f32 %v1570, %v1810
        %v1931 = vmul.f32 %v1571, %v1811
        %v1932 = vmul.f32 %v1572, %v1812
        %v1933 = vmul.f32 %v1573, %v1813
        %v1934 = vmul.f32 %v1574, %v1814
        %v1935 = vmul.f32 %v1575, %v1815
        %v1936 = vmul.f32 %v1576, %v1816
        %v1937 = vmul.f32 %v1577, %v1817
        %v1938 = vmul.f32 %v1578, %v1818
        %v1939 = vmul.f32 %v1579, %v1819
        %v1940 = vmul.f32 %v1580, %v1820
        %v1941 = vmul.f32 %v1581, %v1821
        %v1942 = vmul.f32 %v1582, %v1822
        %v1943 = vmul.f32 %v1583, %v1823
        %v1944 = vmul.f32 %v1584, %v1824
        %v1945 = vmul.f32 %v1585, %v1825
        %v1946 = vmul.f32 %v1586, %v1826
        %v1947 = vmul.f32 %v1587, %v1827
        %v1948 = vmul.f32 %v1588, %v1828
        %v1949 = vmul.f32 %v1589, %v1829
        %v1950 = vmul.f32 %v1590, %v1830
        %v1951 = vmul.f32 %v1591, %v1831
        %v1952 = vmul.f32 %v1592, %v1832
        %v1953 = vmul.f32 %v1593, %v1833
        %v1954 = vmul.f32 %v1594, %v1834
        %v1955 = vmul.f32 %v1595, %v1835
        %v1956 = vmul.f32 %v1596, %v1836
        %v1957 = vmul.f32 %v1597, %v1837
        %v1958 = vmul.f32 %v1598, %v1838
        %v1959 = vmul.f32 %v1599, %v1839
        %v1960 = vmul.f32 %v1600, %v1840
        %v1961 = vmul.f32 %v1601, %v1841
        %v1962 = vmul.f32 %v1602, %v1842
        %v1963 = vmul.f32 %v1603, %v1843
        %v1964 = vmul.f32 %v1604, %v1844
        %v1965 = vmul.f32 %v1605, %v1845
        %v1966 = vmul.f32 %v1606, %v1846
        %v1967 = vmul.f32 %v1607, %v1847
        %v1968 = vmul.f32 %v1608, %v1848
        %v1969 = vmul.f32 %v1609, %v1849
        %v1970 = vmul.f32 %v1610, %v1850
        %v1971 = vmul.f32 %v1611, %v1851
        %v1972 = vmul.f32 %v1612, %v1852
        %v1973 = vmul.f32 %v1613, %v1853
        %v1974 = vmul.f32 %v1614, %v1854
        %v1975 = vmul.f32 %v1615, %v1855
        %v1976 = vmul.f32 %v1616, %v1856
        %v1977 = vmul.f32 %v1617, %v1857
        %v1978 = vmul.f32 %v1618, %v1858
        %v1979 = vmul.f32 %v1619, %v1859
        %v1980 = vmul.f32 %v1620, %v1860
        %v1981 = vmul.f32 %v1621, %v1861
        %v1982 = vmul.f32 %v1622, %v1862
        %v1983 = vmul.f32 %v1623, %v1863
        %v1984 = vmul.f32 %v1624, %v1864
        %v1985 = vmul.f32 %v1625, %v1865
        %v1986 = vmul.f32 %v1626, %v1866
        %v1987 = vmul.f32 %v1627, %v1867
        %v1988 = vmul.f32 %v1628, %v1868
        %v1989 = vmul.f32 %v1629, %v1869
        %v1990 = vmul.f32 %v1630, %v1870
        %v1991 = vmul.f32 %v1631, %v1871
        %v1992 = vmul.f32 %v1632, %v1872
        %v1993 = vmul.f32 %v1633, %v1873
        %v1994 = vmul.f32 %v1634, %v1874
        %v1995 = vmul.f32 %v1635, %v1875
        %v1996 = vmul.f32 %v1636, %v1876
        %v1997 = vmul.f32 %v1637, %v1877
        %v1998 = vmul.f32 %v1638, %v1878
        %v1999 = vmul.f32 %v1639, %v1879
        %v2000 = vmul.f32 %v1640, %v1880
        %v2001 = vmul.f32 %v1641, %v1881
        %v2002 = vmul.f32 %v1642, %v1882
        %v2003 = vmul.f32 %v1643, %v1883
        %v2004 = vmul.f32 %v1644, %v1884
        %v2005 = vmul.f32 %v1645, %v1885
        %v2006 = vmul.f32 %v1646, %v1886
        %v2007 = vmul.f32 %v1647, %v1887
        %v2008 = vmul.f32 %v1648, %v1888
        %v2009 = vmul.f32 %v1649, %v1889
        %v2010 = vmul.f32 %v1650, %v1890
        %v2011 = vmul.f32 %v1651, %v1891
        %v2012 = vmul.f32 %v1652, %v1892
        %v2013 = vmul.f32 %v1653, %v1893
        %v2014 = vmul.f32 %v1654, %v1894
        %v2015 = vmul.f32 %v1655, %v1895
        %v2016 = vmul.f32 %v1656, %v1896
        %v2017 = vmul.f32 %v1657, %v1897
        %v2018 = vmul.f32 %v1658, %v1898
        %v2019 = vmul.f32 %v1659, %v1899
        %v2020 = vmul.f32 %v1660, %v1900
        %v2021 = vmul.f32 %v1661, %v1901
        %v2022 = vmul.f32 %v1662, %v1902
        %v2023 = vmul.f32 %v1663, %v1903
        %v2024 = vmul.f32 %v1664, %v1904
        %v2025 = vmul.f32 %v1665, %v1905
        %v2026 = vmul.f32 %v1666, %v1906
        %v2027 = vmul.f32 %v1667, %v1907
        %v2028 = vmul.f32 %v1668, %v1908
        %v2029 = vmul.f32 %v1669, %v1909
        %v2030 = vmul.f32 %v1670, %v1910
        %v2031 = vmul.f32 %v1671, %v1911
        %v2032 = vmul.f32 %v1672, %v1912
        %v2033 = vmul.f32 %v1673, %v1913
        %v2034 = vmul.f32 %v1674, %v1914
        %v2035 = vmul.f32 %v1675, %v1915
        %v2036 = vmul.f32 %v1676, %v1916
        %v2037 = vmul.f32 %v1677, %v1917
        %v2038 = vmul.f32 %v1678, %v1918
        %v2039 = vmul.f32 %v1679, %v1919
        %v2040 = vrot.slane %v1920, 4
        %v2041 = vadd.f32 %v1920, %v2040
        %v2042 = vrot.slane %v2041, 2
        %v2043 = vadd.f32 %v2041, %v2042
        %v2044 = vrot.slane %v2043, 1
        %v2045 = vadd.f32 %v2043, %v2044
        %v2046 = vrot.slane %v1921, 4
        %v2047 = vadd.f32 %v1921, %v2046
        %v2048 = vrot.slane %v2047, 2
        %v2049 = vadd.f32 %v2047, %v2048
        %v2050 = vrot.slane %v2049, 1
        %v2051 = vadd.f32 %v2049, %v2050
        %v2052 = vrot.slane %v1922, 4
        %v2053 = vadd.f32 %v1922, %v2052
        %v2054 = vrot.slane %v2053, 2
        %v2055 = vadd.f32 %v2053, %v2054
        %v2056 = vrot.slane %v2055, 1
        %v2057 = vadd.f32 %v2055, %v2056
        %v2058 = vrot.slane %v1923, 4
        %v2059 = vadd.f32 %v1923, %v2058
        %v2060 = vrot.slane %v2059, 2
        %v2061 = vadd.f32 %v2059, %v2060
        %v2062 = vrot.slane %v2061, 1
        %v2063 = vadd.f32 %v2061, %v2062
        %v2064 = vrot.slane %v1924, 4
        %v2065 = vadd.f32 %v1924, %v2064
        %v2066 = vrot.slane %v2065, 2
        %v2067 = vadd.f32 %v2065, %v2066
        %v2068 = vrot.slane %v2067, 1
        %v2069 = vadd.f32 %v2067, %v2068
        %v2070 = vrot.slane %v1925, 4
        %v2071 = vadd.f32 %v1925, %v2070
        %v2072 = vrot.slane %v2071, 2
        %v2073 = vadd.f32 %v2071, %v2072
        %v2074 = vrot.slane %v2073, 1
        %v2075 = vadd.f32 %v2073, %v2074
        %v2076 = vrot.slane %v1926, 4
        %v2077 = vadd.f32 %v1926, %v2076
        %v2078 = vrot.slane %v2077, 2
        %v2079 = vadd.f32 %v2077, %v2078
        %v2080 = vrot.slane %v2079, 1
        %v2081 = vadd.f32 %v2079, %v2080
        %v2082 = vrot.slane %v1927, 4
        %v2083 = vadd.f32 %v1927, %v2082
        %v2084 = vrot.slane %v2083, 2
        %v2085 = vadd.f32 %v2083, %v2084
        %v2086 = vrot.slane %v2085, 1
        %v2087 = vadd.f32 %v2085, %v2086
        %v2088 = vrot.slane %v1928, 4
        %v2089 = vadd.f32 %v1928, %v2088
        %v2090 = vrot.slane %v2089, 2
        %v2091 = vadd.f32 %v2089, %v2090
        %v2092 = vrot.slane %v2091, 1
        %v2093 = vadd.f32 %v2091, %v2092
        %v2094 = vrot.slane %v1929, 4
        %v2095 = vadd.f32 %v1929, %v2094
        %v2096 = vrot.slane %v2095, 2
        %v2097 = vadd.f32 %v2095, %v2096
        %v2098 = vrot.slane %v2097, 1
        %v2099 = vadd.f32 %v2097, %v2098
        %v2100 = vrot.slane %v1930, 4
        %v2101 = vadd.f32 %v1930, %v2100
        %v2102 = vrot.slane %v2101, 2
        %v2103 = vadd.f32 %v2101, %v2102
        %v2104 = vrot.slane %v2103, 1
        %v2105 = vadd.f32 %v2103, %v2104
        %v2106 = vrot.slane %v1931, 4
        %v2107 = vadd.f32 %v1931, %v2106
        %v2108 = vrot.slane %v2107, 2
        %v2109 = vadd.f32 %v2107, %v2108
        %v2110 = vrot.slane %v2109, 1
        %v2111 = vadd.f32 %v2109, %v2110
        %v2112 = vrot.slane %v1932, 4
        %v2113 = vadd.f32 %v1932, %v2112
        %v2114 = vrot.slane %v2113, 2
        %v2115 = vadd.f32 %v2113, %v2114
        %v2116 = vrot.slane %v2115, 1
        %v2117 = vadd.f32 %v2115, %v2116
        %v2118 = vrot.slane %v1933, 4
        %v2119 = vadd.f32 %v1933, %v2118
        %v2120 = vrot.slane %v2119, 2
        %v2121 = vadd.f32 %v2119, %v2120
        %v2122 = vrot.slane %v2121, 1
        %v2123 = vadd.f32 %v2121, %v2122
        %v2124 = vrot.slane %v1934, 4
        %v2125 = vadd.f32 %v1934, %v2124
        %v2126 = vrot.slane %v2125, 2
        %v2127 = vadd.f32 %v2125, %v2126
        %v2128 = vrot.slane %v2127, 1
        %v2129 = vadd.f32 %v2127, %v2128
        %v2130 = vrot.slane %v1935, 4
        %v2131 = vadd.f32 %v1935, %v2130
        %v2132 = vrot.slane %v2131, 2
        %v2133 = vadd.f32 %v2131, %v2132
        %v2134 = vrot.slane %v2133, 1
        %v2135 = vadd.f32 %v2133, %v2134
        %v2136 = vrot.slane %v1936, 4
        %v2137 = vadd.f32 %v1936, %v2136
        %v2138 = vrot.slane %v2137, 2
        %v2139 = vadd.f32 %v2137, %v2138
        %v2140 = vrot.slane %v2139, 1
        %v2141 = vadd.f32 %v2139, %v2140
        %v2142 = vrot.slane %v1937, 4
        %v2143 = vadd.f32 %v1937, %v2142
        %v2144 = vrot.slane %v2143, 2
        %v2145 = vadd.f32 %v2143, %v2144
        %v2146 = vrot.slane %v2145, 1
        %v2147 = vadd.f32 %v2145, %v2146
        %v2148 = vrot.slane %v1938, 4
        %v2149 = vadd.f32 %v1938, %v2148
        %v2150 = vrot.slane %v2149, 2
        %v2151 = vadd.f32 %v2149, %v2150
        %v2152 = vrot.slane %v2151, 1
        %v2153 = vadd.f32 %v2151, %v2152
        %v2154 = vrot.slane %v1939, 4
        %v2155 = vadd.f32 %v1939, %v2154
        %v2156 = vrot.slane %v2155, 2
        %v2157 = vadd.f32 %v2155, %v2156
        %v2158 = vrot.slane %v2157, 1
        %v2159 = vadd.f32 %v2157, %v2158
        %v2160 = vrot.slane %v1940, 4
        %v2161 = vadd.f32 %v1940, %v2160
        %v2162 = vrot.slane %v2161, 2
        %v2163 = vadd.f32 %v2161, %v2162
        %v2164 = vrot.slane %v2163, 1
        %v2165 = vadd.f32 %v2163, %v2164
        %v2166 = vrot.slane %v1941, 4
        %v2167 = vadd.f32 %v1941, %v2166
        %v2168 = vrot.slane %v2167, 2
        %v2169 = vadd.f32 %v2167, %v2168
        %v2170 = vrot.slane %v2169, 1
        %v2171 = vadd.f32 %v2169, %v2170
        %v2172 = vrot.slane %v1942, 4
        %v2173 = vadd.f32 %v1942, %v2172
        %v2174 = vrot.slane %v2173, 2
        %v2175 = vadd.f32 %v2173, %v2174
        %v2176 = vrot.slane %v2175, 1
        %v2177 = vadd.f32 %v2175, %v2176
        %v2178 = vrot.slane %v1943, 4
        %v2179 = vadd.f32 %v1943, %v2178
        %v2180 = vrot.slane %v2179, 2
        %v2181 = vadd.f32 %v2179, %v2180
        %v2182 = vrot.slane %v2181, 1
        %v2183 = vadd.f32 %v2181, %v2182
        %v2184 = vrot.slane %v1944, 4
        %v2185 = vadd.f32 %v1944, %v2184
        %v2186 = vrot.slane %v2185, 2
        %v2187 = vadd.f32 %v2185, %v2186
        %v2188 = vrot.slane %v2187, 1
        %v2189 = vadd.f32 %v2187, %v2188
        %v2190 = vrot.slane %v1945, 4
        %v2191 = vadd.f32 %v1945, %v2190
        %v2192 = vrot.slane %v2191, 2
        %v2193 = vadd.f32 %v2191, %v2192
        %v2194 = vrot.slane %v2193, 1
        %v2195 = vadd.f32 %v2193, %v2194
        %v2196 = vrot.slane %v1946, 4
        %v2197 = vadd.f32 %v1946, %v2196
        %v2198 = vrot.slane %v2197, 2
        %v2199 = vadd.f32 %v2197, %v2198
        %v2200 = vrot.slane %v2199, 1
        %v2201 = vadd.f32 %v2199, %v2200
        %v2202 = vrot.slane %v1947, 4
        %v2203 = vadd.f32 %v1947, %v2202
        %v2204 = vrot.slane %v2203, 2
        %v2205 = vadd.f32 %v2203, %v2204
        %v2206 = vrot.slane %v2205, 1
        %v2207 = vadd.f32 %v2205, %v2206
        %v2208 = vrot.slane %v1948, 4
        %v2209 = vadd.f32 %v1948, %v2208
        %v2210 = vrot.slane %v2209, 2
        %v2211 = vadd.f32 %v2209, %v2210
        %v2212 = vrot.slane %v2211, 1
        %v2213 = vadd.f32 %v2211, %v2212
        %v2214 = vrot.slane %v1949, 4
        %v2215 = vadd.f32 %v1949, %v2214
        %v2216 = vrot.slane %v2215, 2
        %v2217 = vadd.f32 %v2215, %v2216
        %v2218 = vrot.slane %v2217, 1
        %v2219 = vadd.f32 %v2217, %v2218
        %v2220 = vrot.slane %v1950, 4
        %v2221 = vadd.f32 %v1950, %v2220
        %v2222 = vrot.slane %v2221, 2
        %v2223 = vadd.f32 %v2221, %v2222
        %v2224 = vrot.slane %v2223, 1
        %v2225 = vadd.f32 %v2223, %v2224
        %v2226 = vrot.slane %v1951, 4
        %v2227 = vadd.f32 %v1951, %v2226
        %v2228 = vrot.slane %v2227, 2
        %v2229 = vadd.f32 %v2227, %v2228
        %v2230 = vrot.slane %v2229, 1
        %v2231 = vadd.f32 %v2229, %v2230
        %v2232 = vrot.slane %v1952, 4
        %v2233 = vadd.f32 %v1952, %v2232
        %v2234 = vrot.slane %v2233, 2
        %v2235 = vadd.f32 %v2233, %v2234
        %v2236 = vrot.slane %v2235, 1
        %v2237 = vadd.f32 %v2235, %v2236
        %v2238 = vrot.slane %v1953, 4
        %v2239 = vadd.f32 %v1953, %v2238
        %v2240 = vrot.slane %v2239, 2
        %v2241 = vadd.f32 %v2239, %v2240
        %v2242 = vrot.slane %v2241, 1
        %v2243 = vadd.f32 %v2241, %v2242
        %v2244 = vrot.slane %v1954, 4
        %v2245 = vadd.f32 %v1954, %v2244
        %v2246 = vrot.slane %v2245, 2
        %v2247 = vadd.f32 %v2245, %v2246
        %v2248 = vrot.slane %v2247, 1
        %v2249 = vadd.f32 %v2247, %v2248
        %v2250 = vrot.slane %v1955, 4
        %v2251 = vadd.f32 %v1955, %v2250
        %v2252 = vrot.slane %v2251, 2
        %v2253 = vadd.f32 %v2251, %v2252
        %v2254 = vrot.slane %v2253, 1
        %v2255 = vadd.f32 %v2253, %v2254
        %v2256 = vrot.slane %v1956, 4
        %v2257 = vadd.f32 %v1956, %v2256
        %v2258 = vrot.slane %v2257, 2
        %v2259 = vadd.f32 %v2257, %v2258
        %v2260 = vrot.slane %v2259, 1
        %v2261 = vadd.f32 %v2259, %v2260
        %v2262 = vrot.slane %v1957, 4
        %v2263 = vadd.f32 %v1957, %v2262
        %v2264 = vrot.slane %v2263, 2
        %v2265 = vadd.f32 %v2263, %v2264
        %v2266 = vrot.slane %v2265, 1
        %v2267 = vadd.f32 %v2265, %v2266
        %v2268 = vrot.slane %v1958, 4
        %v2269 = vadd.f32 %v1958, %v2268
        %v2270 = vrot.slane %v2269, 2
        %v2271 = vadd.f32 %v2269, %v2270
        %v2272 = vrot.slane %v2271, 1
        %v2273 = vadd.f32 %v2271, %v2272
        %v2274 = vrot.slane %v1959, 4
        %v2275 = vadd.f32 %v1959, %v2274
        %v2276 = vrot.slane %v2275, 2
        %v2277 = vadd.f32 %v2275, %v2276
        %v2278 = vrot.slane %v2277, 1
        %v2279 = vadd.f32 %v2277, %v2278
        %v2280 = vrot.slane %v1960, 4
        %v2281 = vadd.f32 %v1960, %v2280
        %v2282 = vrot.slane %v2281, 2
        %v2283 = vadd.f32 %v2281, %v2282
        %v2284 = vrot.slane %v2283, 1
        %v2285 = vadd.f32 %v2283, %v2284
        %v2286 = vrot.slane %v1961, 4
        %v2287 = vadd.f32 %v1961, %v2286
        %v2288 = vrot.slane %v2287, 2
        %v2289 = vadd.f32 %v2287, %v2288
        %v2290 = vrot.slane %v2289, 1
        %v2291 = vadd.f32 %v2289, %v2290
        %v2292 = vrot.slane %v1962, 4
        %v2293 = vadd.f32 %v1962, %v2292
        %v2294 = vrot.slane %v2293, 2
        %v2295 = vadd.f32 %v2293, %v2294
        %v2296 = vrot.slane %v2295, 1
        %v2297 = vadd.f32 %v2295, %v2296
        %v2298 = vrot.slane %v1963, 4
        %v2299 = vadd.f32 %v1963, %v2298
        %v2300 = vrot.slane %v2299, 2
        %v2301 = vadd.f32 %v2299, %v2300
        %v2302 = vrot.slane %v2301, 1
        %v2303 = vadd.f32 %v2301, %v2302
        %v2304 = vrot.slane %v1964, 4
        %v2305 = vadd.f32 %v1964, %v2304
        %v2306 = vrot.slane %v2305, 2
        %v2307 = vadd.f32 %v2305, %v2306
        %v2308 = vrot.slane %v2307, 1
        %v2309 = vadd.f32 %v2307, %v2308
        %v2310 = vrot.slane %v1965, 4
        %v2311 = vadd.f32 %v1965, %v2310
        %v2312 = vrot.slane %v2311, 2
        %v2313 = vadd.f32 %v2311, %v2312
        %v2314 = vrot.slane %v2313, 1
        %v2315 = vadd.f32 %v2313, %v2314
        %v2316 = vrot.slane %v1966, 4
        %v2317 = vadd.f32 %v1966, %v2316
        %v2318 = vrot.slane %v2317, 2
        %v2319 = vadd.f32 %v2317, %v2318
        %v2320 = vrot.slane %v2319, 1
        %v2321 = vadd.f32 %v2319, %v2320
        %v2322 = vrot.slane %v1967, 4
        %v2323 = vadd.f32 %v1967, %v2322
        %v2324 = vrot.slane %v2323, 2
        %v2325 = vadd.f32 %v2323, %v2324
        %v2326 = vrot.slane %v2325, 1
        %v2327 = vadd.f32 %v2325, %v2326
        %v2328 = vrot.slane %v1968, 4
        %v2329 = vadd.f32 %v1968, %v2328
        %v2330 = vrot.slane %v2329, 2
        %v2331 = vadd.f32 %v2329, %v2330
        %v2332 = vrot.slane %v2331, 1
        %v2333 = vadd.f32 %v2331, %v2332
        %v2334 = vrot.slane %v1969, 4
        %v2335 = vadd.f32 %v1969, %v2334
        %v2336 = vrot.slane %v2335, 2
        %v2337 = vadd.f32 %v2335, %v2336
        %v2338 = vrot.slane %v2337, 1
        %v2339 = vadd.f32 %v2337, %v2338
        %v2340 = vrot.slane %v1970, 4
        %v2341 = vadd.f32 %v1970, %v2340
        %v2342 = vrot.slane %v2341, 2
        %v2343 = vadd.f32 %v2341, %v2342
        %v2344 = vrot.slane %v2343, 1
        %v2345 = vadd.f32 %v2343, %v2344
        %v2346 = vrot.slane %v1971, 4
        %v2347 = vadd.f32 %v1971, %v2346
        %v2348 = vrot.slane %v2347, 2
        %v2349 = vadd.f32 %v2347, %v2348
        %v2350 = vrot.slane %v2349, 1
        %v2351 = vadd.f32 %v2349, %v2350
        %v2352 = vrot.slane %v1972, 4
        %v2353 = vadd.f32 %v1972, %v2352
        %v2354 = vrot.slane %v2353, 2
        %v2355 = vadd.f32 %v2353, %v2354
        %v2356 = vrot.slane %v2355, 1
        %v2357 = vadd.f32 %v2355, %v2356
        %v2358 = vrot.slane %v1973, 4
        %v2359 = vadd.f32 %v1973, %v2358
        %v2360 = vrot.slane %v2359, 2
        %v2361 = vadd.f32 %v2359, %v2360
        %v2362 = vrot.slane %v2361, 1
        %v2363 = vadd.f32 %v2361, %v2362
        %v2364 = vrot.slane %v1974, 4
        %v2365 = vadd.f32 %v1974, %v2364
        %v2366 = vrot.slane %v2365, 2
        %v2367 = vadd.f32 %v2365, %v2366
        %v2368 = vrot.slane %v2367, 1
        %v2369 = vadd.f32 %v2367, %v2368
        %v2370 = vrot.slane %v1975, 4
        %v2371 = vadd.f32 %v1975, %v2370
        %v2372 = vrot.slane %v2371, 2
        %v2373 = vadd.f32 %v2371, %v2372
        %v2374 = vrot.slane %v2373, 1
        %v2375 = vadd.f32 %v2373, %v2374
        %v2376 = vrot.slane %v1976, 4
        %v2377 = vadd.f32 %v1976, %v2376
        %v2378 = vrot.slane %v2377, 2
        %v2379 = vadd.f32 %v2377, %v2378
        %v2380 = vrot.slane %v2379, 1
        %v2381 = vadd.f32 %v2379, %v2380
        %v2382 = vrot.slane %v1977, 4
        %v2383 = vadd.f32 %v1977, %v2382
        %v2384 = vrot.slane %v2383, 2
        %v2385 = vadd.f32 %v2383, %v2384
        %v2386 = vrot.slane %v2385, 1
        %v2387 = vadd.f32 %v2385, %v2386
        %v2388 = vrot.slane %v1978, 4
        %v2389 = vadd.f32 %v1978, %v2388
        %v2390 = vrot.slane %v2389, 2
        %v2391 = vadd.f32 %v2389, %v2390
        %v2392 = vrot.slane %v2391, 1
        %v2393 = vadd.f32 %v2391, %v2392
        %v2394 = vrot.slane %v1979, 4
        %v2395 = vadd.f32 %v1979, %v2394
        %v2396 = vrot.slane %v2395, 2
        %v2397 = vadd.f32 %v2395, %v2396
        %v2398 = vrot.slane %v2397, 1
        %v2399 = vadd.f32 %v2397, %v2398
        %v2400 = vrot.slane %v1980, 4
        %v2401 = vadd.f32 %v1980, %v2400
        %v2402 = vrot.slane %v2401, 2
        %v2403 = vadd.f32 %v2401, %v2402
        %v2404 = vrot.slane %v2403, 1
        %v2405 = vadd.f32 %v2403, %v2404
        %v2406 = vrot.slane %v1981, 4
        %v2407 = vadd.f32 %v1981, %v2406
        %v2408 = vrot.slane %v2407, 2
        %v2409 = vadd.f32 %v2407, %v2408
        %v2410 = vrot.slane %v2409, 1
        %v2411 = vadd.f32 %v2409, %v2410
        %v2412 = vrot.slane %v1982, 4
        %v2413 = vadd.f32 %v1982, %v2412
        %v2414 = vrot.slane %v2413, 2
        %v2415 = vadd.f32 %v2413, %v2414
        %v2416 = vrot.slane %v2415, 1
        %v2417 = vadd.f32 %v2415, %v2416
        %v2418 = vrot.slane %v1983, 4
        %v2419 = vadd.f32 %v1983, %v2418
        %v2420 = vrot.slane %v2419, 2
        %v2421 = vadd.f32 %v2419, %v2420
        %v2422 = vrot.slane %v2421, 1
        %v2423 = vadd.f32 %v2421, %v2422
        %v2424 = vrot.slane %v1984, 4
        %v2425 = vadd.f32 %v1984, %v2424
        %v2426 = vrot.slane %v2425, 2
        %v2427 = vadd.f32 %v2425, %v2426
        %v2428 = vrot.slane %v2427, 1
        %v2429 = vadd.f32 %v2427, %v2428
        %v2430 = vrot.slane %v1985, 4
        %v2431 = vadd.f32 %v1985, %v2430
        %v2432 = vrot.slane %v2431, 2
        %v2433 = vadd.f32 %v2431, %v2432
        %v2434 = vrot.slane %v2433, 1
        %v2435 = vadd.f32 %v2433, %v2434
        %v2436 = vrot.slane %v1986, 4
        %v2437 = vadd.f32 %v1986, %v2436
        %v2438 = vrot.slane %v2437, 2
        %v2439 = vadd.f32 %v2437, %v2438
        %v2440 = vrot.slane %v2439, 1
        %v2441 = vadd.f32 %v2439, %v2440
        %v2442 = vrot.slane %v1987, 4
        %v2443 = vadd.f32 %v1987, %v2442
        %v2444 = vrot.slane %v2443, 2
        %v2445 = vadd.f32 %v2443, %v2444
        %v2446 = vrot.slane %v2445, 1
        %v2447 = vadd.f32 %v2445, %v2446
        %v2448 = vrot.slane %v1988, 4
        %v2449 = vadd.f32 %v1988, %v2448
        %v2450 = vrot.slane %v2449, 2
        %v2451 = vadd.f32 %v2449, %v2450
        %v2452 = vrot.slane %v2451, 1
        %v2453 = vadd.f32 %v2451, %v2452
        %v2454 = vrot.slane %v1989, 4
        %v2455 = vadd.f32 %v1989, %v2454
        %v2456 = vrot.slane %v2455, 2
        %v2457 = vadd.f32 %v2455, %v2456
        %v2458 = vrot.slane %v2457, 1
        %v2459 = vadd.f32 %v2457, %v2458
        %v2460 = vrot.slane %v1990, 4
        %v2461 = vadd.f32 %v1990, %v2460
        %v2462 = vrot.slane %v2461, 2
        %v2463 = vadd.f32 %v2461, %v2462
        %v2464 = vrot.slane %v2463, 1
        %v2465 = vadd.f32 %v2463, %v2464
        %v2466 = vrot.slane %v1991, 4
        %v2467 = vadd.f32 %v1991, %v2466
        %v2468 = vrot.slane %v2467, 2
        %v2469 = vadd.f32 %v2467, %v2468
        %v2470 = vrot.slane %v2469, 1
        %v2471 = vadd.f32 %v2469, %v2470
        %v2472 = vrot.slane %v1992, 4
        %v2473 = vadd.f32 %v1992, %v2472
        %v2474 = vrot.slane %v2473, 2
        %v2475 = vadd.f32 %v2473, %v2474
        %v2476 = vrot.slane %v2475, 1
        %v2477 = vadd.f32 %v2475, %v2476
        %v2478 = vrot.slane %v1993, 4
        %v2479 = vadd.f32 %v1993, %v2478
        %v2480 = vrot.slane %v2479, 2
        %v2481 = vadd.f32 %v2479, %v2480
        %v2482 = vrot.slane %v2481, 1
        %v2483 = vadd.f32 %v2481, %v2482
        %v2484 = vrot.slane %v1994, 4
        %v2485 = vadd.f32 %v1994, %v2484
        %v2486 = vrot.slane %v2485, 2
        %v2487 = vadd.f32 %v2485, %v2486
        %v2488 = vrot.slane %v2487, 1
        %v2489 = vadd.f32 %v2487, %v2488
        %v2490 = vrot.slane %v1995, 4
        %v2491 = vadd.f32 %v1995, %v2490
        %v2492 = vrot.slane %v2491, 2
        %v2493 = vadd.f32 %v2491, %v2492
        %v2494 = vrot.slane %v2493, 1
        %v2495 = vadd.f32 %v2493, %v2494
        %v2496 = vrot.slane %v1996, 4
        %v2497 = vadd.f32 %v1996, %v2496
        %v2498 = vrot.slane %v2497, 2
        %v2499 = vadd.f32 %v2497, %v2498
        %v2500 = vrot.slane %v2499, 1
        %v2501 = vadd.f32 %v2499, %v2500
        %v2502 = vrot.slane %v1997, 4
        %v2503 = vadd.f32 %v1997, %v2502
        %v2504 = vrot.slane %v2503, 2
        %v2505 = vadd.f32 %v2503, %v2504
        %v2506 = vrot.slane %v2505, 1
        %v2507 = vadd.f32 %v2505, %v2506
        %v2508 = vrot.slane %v1998, 4
        %v2509 = vadd.f32 %v1998, %v2508
        %v2510 = vrot.slane %v2509, 2
        %v2511 = vadd.f32 %v2509, %v2510
        %v2512 = vrot.slane %v2511, 1
        %v2513 = vadd.f32 %v2511, %v2512
        %v2514 = vrot.slane %v1999, 4
        %v2515 = vadd.f32 %v1999, %v2514
        %v2516 = vrot.slane %v2515, 2
        %v2517 = vadd.f32 %v2515, %v2516
        %v2518 = vrot.slane %v2517, 1
        %v2519 = vadd.f32 %v2517, %v2518
        %v2520 = vrot.slane %v2000, 4
        %v2521 = vadd.f32 %v2000, %v2520
        %v2522 = vrot.slane %v2521, 2
        %v2523 = vadd.f32 %v2521, %v2522
        %v2524 = vrot.slane %v2523, 1
        %v2525 = vadd.f32 %v2523, %v2524
        %v2526 = vrot.slane %v2001, 4
        %v2527 = vadd.f32 %v2001, %v2526
        %v2528 = vrot.slane %v2527, 2
        %v2529 = vadd.f32 %v2527, %v2528
        %v2530 = vrot.slane %v2529, 1
        %v2531 = vadd.f32 %v2529, %v2530
        %v2532 = vrot.slane %v2002, 4
        %v2533 = vadd.f32 %v2002, %v2532
        %v2534 = vrot.slane %v2533, 2
        %v2535 = vadd.f32 %v2533, %v2534
        %v2536 = vrot.slane %v2535, 1
        %v2537 = vadd.f32 %v2535, %v2536
        %v2538 = vrot.slane %v2003, 4
        %v2539 = vadd.f32 %v2003, %v2538
        %v2540 = vrot.slane %v2539, 2
        %v2541 = vadd.f32 %v2539, %v2540
        %v2542 = vrot.slane %v2541, 1
        %v2543 = vadd.f32 %v2541, %v2542
        %v2544 = vrot.slane %v2004, 4
        %v2545 = vadd.f32 %v2004, %v2544
        %v2546 = vrot.slane %v2545, 2
        %v2547 = vadd.f32 %v2545, %v2546
        %v2548 = vrot.slane %v2547, 1
        %v2549 = vadd.f32 %v2547, %v2548
        %v2550 = vrot.slane %v2005, 4
        %v2551 = vadd.f32 %v2005, %v2550
        %v2552 = vrot.slane %v2551, 2
        %v2553 = vadd.f32 %v2551, %v2552
        %v2554 = vrot.slane %v2553, 1
        %v2555 = vadd.f32 %v2553, %v2554
        %v2556 = vrot.slane %v2006, 4
        %v2557 = vadd.f32 %v2006, %v2556
        %v2558 = vrot.slane %v2557, 2
        %v2559 = vadd.f32 %v2557, %v2558
        %v2560 = vrot.slane %v2559, 1
        %v2561 = vadd.f32 %v2559, %v2560
        %v2562 = vrot.slane %v2007, 4
        %v2563 = vadd.f32 %v2007, %v2562
        %v2564 = vrot.slane %v2563, 2
        %v2565 = vadd.f32 %v2563, %v2564
        %v2566 = vrot.slane %v2565, 1
        %v2567 = vadd.f32 %v2565, %v2566
        %v2568 = vrot.slane %v2008, 4
        %v2569 = vadd.f32 %v2008, %v2568
        %v2570 = vrot.slane %v2569, 2
        %v2571 = vadd.f32 %v2569, %v2570
        %v2572 = vrot.slane %v2571, 1
        %v2573 = vadd.f32 %v2571, %v2572
        %v2574 = vrot.slane %v2009, 4
        %v2575 = vadd.f32 %v2009, %v2574
        %v2576 = vrot.slane %v2575, 2
        %v2577 = vadd.f32 %v2575, %v2576
        %v2578 = vrot.slane %v2577, 1
        %v2579 = vadd.f32 %v2577, %v2578
        %v2580 = vrot.slane %v2010, 4
        %v2581 = vadd.f32 %v2010, %v2580
        %v2582 = vrot.slane %v2581, 2
        %v2583 = vadd.f32 %v2581, %v2582
        %v2584 = vrot.slane %v2583, 1
        %v2585 = vadd.f32 %v2583, %v2584
        %v2586 = vrot.slane %v2011, 4
        %v2587 = vadd.f32 %v2011, %v2586
        %v2588 = vrot.slane %v2587, 2
        %v2589 = vadd.f32 %v2587, %v2588
        %v2590 = vrot.slane %v2589, 1
        %v2591 = vadd.f32 %v2589, %v2590
        %v2592 = vrot.slane %v2012, 4
        %v2593 = vadd.f32 %v2012, %v2592
        %v2594 = vrot.slane %v2593, 2
        %v2595 = vadd.f32 %v2593, %v2594
        %v2596 = vrot.slane %v2595, 1
        %v2597 = vadd.f32 %v2595, %v2596
        %v2598 = vrot.slane %v2013, 4
        %v2599 = vadd.f32 %v2013, %v2598
        %v2600 = vrot.slane %v2599, 2
        %v2601 = vadd.f32 %v2599, %v2600
        %v2602 = vrot.slane %v2601, 1
        %v2603 = vadd.f32 %v2601, %v2602
        %v2604 = vrot.slane %v2014, 4
        %v2605 = vadd.f32 %v2014, %v2604
        %v2606 = vrot.slane %v2605, 2
        %v2607 = vadd.f32 %v2605, %v2606
        %v2608 = vrot.slane %v2607, 1
        %v2609 = vadd.f32 %v2607, %v2608
        %v2610 = vrot.slane %v2015, 4
        %v2611 = vadd.f32 %v2015, %v2610
        %v2612 = vrot.slane %v2611, 2
        %v2613 = vadd.f32 %v2611, %v2612
        %v2614 = vrot.slane %v2613, 1
        %v2615 = vadd.f32 %v2613, %v2614
        %v2616 = vrot.slane %v2016, 4
        %v2617 = vadd.f32 %v2016, %v2616
        %v2618 = vrot.slane %v2617, 2
        %v2619 = vadd.f32 %v2617, %v2618
        %v2620 = vrot.slane %v2619, 1
        %v2621 = vadd.f32 %v2619, %v2620
        %v2622 = vrot.slane %v2017, 4
        %v2623 = vadd.f32 %v2017, %v2622
        %v2624 = vrot.slane %v2623, 2
        %v2625 = vadd.f32 %v2623, %v2624
        %v2626 = vrot.slane %v2625, 1
        %v2627 = vadd.f32 %v2625, %v2626
        %v2628 = vrot.slane %v2018, 4
        %v2629 = vadd.f32 %v2018, %v2628
        %v2630 = vrot.slane %v2629, 2
        %v2631 = vadd.f32 %v2629, %v2630
        %v2632 = vrot.slane %v2631, 1
        %v2633 = vadd.f32 %v2631, %v2632
        %v2634 = vrot.slane %v2019, 4
        %v2635 = vadd.f32 %v2019, %v2634
        %v2636 = vrot.slane %v2635, 2
        %v2637 = vadd.f32 %v2635, %v2636
        %v2638 = vrot.slane %v2637, 1
        %v2639 = vadd.f32 %v2637, %v2638
        %v2640 = vrot.slane %v2020, 4
        %v2641 = vadd.f32 %v2020, %v2640
        %v2642 = vrot.slane %v2641, 2
        %v2643 = vadd.f32 %v2641, %v2642
        %v2644 = vrot.slane %v2643, 1
        %v2645 = vadd.f32 %v2643, %v2644
        %v2646 = vrot.slane %v2021, 4
        %v2647 = vadd.f32 %v2021, %v2646
        %v2648 = vrot.slane %v2647, 2
        %v2649 = vadd.f32 %v2647, %v2648
        %v2650 = vrot.slane %v2649, 1
        %v2651 = vadd.f32 %v2649, %v2650
        %v2652 = vrot.slane %v2022, 4
        %v2653 = vadd.f32 %v2022, %v2652
        %v2654 = vrot.slane %v2653, 2
        %v2655 = vadd.f32 %v2653, %v2654
        %v2656 = vrot.slane %v2655, 1
        %v2657 = vadd.f32 %v2655, %v2656
        %v2658 = vrot.slane %v2023, 4
        %v2659 = vadd.f32 %v2023, %v2658
        %v2660 = vrot.slane %v2659, 2
        %v2661 = vadd.f32 %v2659, %v2660
        %v2662 = vrot.slane %v2661, 1
        %v2663 = vadd.f32 %v2661, %v2662
        %v2664 = vrot.slane %v2024, 4
        %v2665 = vadd.f32 %v2024, %v2664
        %v2666 = vrot.slane %v2665, 2
        %v2667 = vadd.f32 %v2665, %v2666
        %v2668 = vrot.slane %v2667, 1
        %v2669 = vadd.f32 %v2667, %v2668
        %v2670 = vrot.slane %v2025, 4
        %v2671 = vadd.f32 %v2025, %v2670
        %v2672 = vrot.slane %v2671, 2
        %v2673 = vadd.f32 %v2671, %v2672
        %v2674 = vrot.slane %v2673, 1
        %v2675 = vadd.f32 %v2673, %v2674
        %v2676 = vrot.slane %v2026, 4
        %v2677 = vadd.f32 %v2026, %v2676
        %v2678 = vrot.slane %v2677, 2
        %v2679 = vadd.f32 %v2677, %v2678
        %v2680 = vrot.slane %v2679, 1
        %v2681 = vadd.f32 %v2679, %v2680
        %v2682 = vrot.slane %v2027, 4
        %v2683 = vadd.f32 %v2027, %v2682
        %v2684 = vrot.slane %v2683, 2
        %v2685 = vadd.f32 %v2683, %v2684
        %v2686 = vrot.slane %v2685, 1
        %v2687 = vadd.f32 %v2685, %v2686
        %v2688 = vrot.slane %v2028, 4
        %v2689 = vadd.f32 %v2028, %v2688
        %v2690 = vrot.slane %v2689, 2
        %v2691 = vadd.f32 %v2689, %v2690
        %v2692 = vrot.slane %v2691, 1
        %v2693 = vadd.f32 %v2691, %v2692
        %v2694 = vrot.slane %v2029, 4
        %v2695 = vadd.f32 %v2029, %v2694
        %v2696 = vrot.slane %v2695, 2
        %v2697 = vadd.f32 %v2695, %v2696
        %v2698 = vrot.slane %v2697, 1
        %v2699 = vadd.f32 %v2697, %v2698
        %v2700 = vrot.slane %v2030, 4
        %v2701 = vadd.f32 %v2030, %v2700
        %v2702 = vrot.slane %v2701, 2
        %v2703 = vadd.f32 %v2701, %v2702
        %v2704 = vrot.slane %v2703, 1
        %v2705 = vadd.f32 %v2703, %v2704
        %v2706 = vrot.slane %v2031, 4
        %v2707 = vadd.f32 %v2031, %v2706
        %v2708 = vrot.slane %v2707, 2
        %v2709 = vadd.f32 %v2707, %v2708
        %v2710 = vrot.slane %v2709, 1
        %v2711 = vadd.f32 %v2709, %v2710
        %v2712 = vrot.slane %v2032, 4
        %v2713 = vadd.f32 %v2032, %v2712
        %v2714 = vrot.slane %v2713, 2
        %v2715 = vadd.f32 %v2713, %v2714
        %v2716 = vrot.slane %v2715, 1
        %v2717 = vadd.f32 %v2715, %v2716
        %v2718 = vrot.slane %v2033, 4
        %v2719 = vadd.f32 %v2033, %v2718
        %v2720 = vrot.slane %v2719, 2
        %v2721 = vadd.f32 %v2719, %v2720
        %v2722 = vrot.slane %v2721, 1
        %v2723 = vadd.f32 %v2721, %v2722
        %v2724 = vrot.slane %v2034, 4
        %v2725 = vadd.f32 %v2034, %v2724
        %v2726 = vrot.slane %v2725, 2
        %v2727 = vadd.f32 %v2725, %v2726
        %v2728 = vrot.slane %v2727, 1
        %v2729 = vadd.f32 %v2727, %v2728
        %v2730 = vrot.slane %v2035, 4
        %v2731 = vadd.f32 %v2035, %v2730
        %v2732 = vrot.slane %v2731, 2
        %v2733 = vadd.f32 %v2731, %v2732
        %v2734 = vrot.slane %v2733, 1
        %v2735 = vadd.f32 %v2733, %v2734
        %v2736 = vrot.slane %v2036, 4
        %v2737 = vadd.f32 %v2036, %v2736
        %v2738 = vrot.slane %v2737, 2
        %v2739 = vadd.f32 %v2737, %v2738
        %v2740 = vrot.slane %v2739, 1
        %v2741 = vadd.f32 %v2739, %v2740
        %v2742 = vrot.slane %v2037, 4
        %v2743 = vadd.f32 %v2037, %v2742
        %v2744 = vrot.slane %v2743, 2
        %v2745 = vadd.f32 %v2743, %v2744
        %v2746 = vrot.slane %v2745, 1
        %v2747 = vadd.f32 %v2745, %v2746
        %v2748 = vrot.slane %v2038, 4
        %v2749 = vadd.f32 %v2038, %v2748
        %v2750 = vrot.slane %v2749, 2
        %v2751 = vadd.f32 %v2749, %v2750
        %v2752 = vrot.slane %v2751, 1
        %v2753 = vadd.f32 %v2751, %v2752
        %v2754 = vrot.slane %v2039, 4
        %v2755 = vadd.f32 %v2039, %v2754
        %v2756 = vrot.slane %v2755, 2
        %v2757 = vadd.f32 %v2755, %v2756
        %v2758 = vrot.slane %v2757, 1
        %v2759 = vadd.f32 %v2757, %v2758
        %v2760 = vld [vmem:[%s3] sm:$0xff]
        %v2761 = vld [vmem:[%s3 + $0x8] sm:$0xff]
        %v2762 = vld [vmem:[%s3 + $0x10] sm:$0xff]
        %vm2883 = vcmask 1041409
        %v2884 = vsel %vm2883, %v2075, %v2045
        %vm2885 = vcmask 1042434
        %v2886 = vsel %vm2885, %v2105, %v2884
        %vm2887 = vcmask 1043459
        %v2888 = vsel %vm2887, %v2135, %v2886
        %vm2889 = vcmask 1044484
        %v2890 = vsel %vm2889, %v2165, %v2888
        %vm2891 = vcmask 1045509
        %v2892 = vsel %vm2891, %v2195, %v2890
        %vm2893 = vcmask 1046534
        %v2894 = vsel %vm2893, %v2225, %v2892
        %vm2895 = vcmask 1047559
        %v2896 = vsel %vm2895, %v2255, %v2894
        %v2897 = vsel %vm2883, %v2081, %v2051
        %v2898 = vsel %vm2885, %v2111, %v2897
        %v2899 = vsel %vm2887, %v2141, %v2898
        %v2900 = vsel %vm2889, %v2171, %v2899
        %v2901 = vsel %vm2891, %v2201, %v2900
        %v2902 = vsel %vm2893, %v2231, %v2901
        %v2903 = vsel %vm2895, %v2261, %v2902
        %v2904 = vsel %vm2883, %v2087, %v2057
        %v2905 = vsel %vm2885, %v2117, %v2904
        %v2906 = vsel %vm2887, %v2147, %v2905
        %v2907 = vsel %vm2889, %v2177, %v2906
        %v2908 = vsel %vm2891, %v2207, %v2907
        %v2909 = vsel %vm2893, %v2237, %v2908
        %v2910 = vsel %vm2895, %v2267, %v2909
        %v2911 = vsel %vm2883, %v2093, %v2063
        %v2912 = vsel %vm2885, %v2123, %v2911
        %v2913 = vsel %vm2887, %v2153, %v2912
        %v2914 = vsel %vm2889, %v2183, %v2913
        %v2915 = vsel %vm2891, %v2213, %v2914
        %v2916 = vsel %vm2893, %v2243, %v2915
        %v2917 = vsel %vm2895, %v2273, %v2916
        %v2918 = vsel %vm2883, %v2099, %v2069
        %v2919 = vsel %vm2885, %v2129, %v2918
        %v2920 = vsel %vm2887, %v2159, %v2919
        %v2921 = vsel %vm2889, %v2189, %v2920
        %v2922 = vsel %vm2891, %v2219, %v2921
        %v2923 = vsel %vm2893, %v2249, %v2922
        %v2924 = vsel %vm2895, %v2279, %v2923
        %v2925 = vsel %vm2883, %v2315, %v2285
        %v2926 = vsel %vm2885, %v2345, %v2925
        %v2927 = vsel %vm2887, %v2375, %v2926
        %v2928 = vsel %vm2889, %v2405, %v2927
        %v2929 = vsel %vm2891, %v2435, %v2928
        %v2930 = vsel %vm2893, %v2465, %v2929
        %v2931 = vsel %vm2895, %v2495, %v2930
        %v2932 = vsel %vm2883, %v2321, %v2291
        %v2933 = vsel %vm2885, %v2351, %v2932
        %v2934 = vsel %vm2887, %v2381, %v2933
        %v2935 = vsel %vm2889, %v2411, %v2934
        %v2936 = vsel %vm2891, %v2441, %v2935
        %v2937 = vsel %vm2893, %v2471, %v2936
        %v2938 = vsel %vm2895, %v2501, %v2937
        %v2939 = vsel %vm2883, %v2327, %v2297
        %v2940 = vsel %vm2885, %v2357, %v2939
        %v2941 = vsel %vm2887, %v2387, %v2940
        %v2942 = vsel %vm2889, %v2417, %v2941
        %v2943 = vsel %vm2891, %v2447, %v2942
        %v2944 = vsel %vm2893, %v2477, %v2943
        %v2945 = vsel %vm2895, %v2507, %v2944
        %v2946 = vsel %vm2883, %v2333, %v2303
        %v2947 = vsel %vm2885, %v2363, %v2946
        %v2948 = vsel %vm2887, %v2393, %v2947
        %v2949 = vsel %vm2889, %v2423, %v2948
        %v2950 = vsel %vm2891, %v2453, %v2949
        %v2951 = vsel %vm2893, %v2483, %v2950
        %v2952 = vsel %vm2895, %v2513, %v2951
        %v2953 = vsel %vm2883, %v2339, %v2309
        %v2954 = vsel %vm2885, %v2369, %v2953
        %v2955 = vsel %vm2887, %v2399, %v2954
        %v2956 = vsel %vm2889, %v2429, %v2955
        %v2957 = vsel %vm2891, %v2459, %v2956
        %v2958 = vsel %vm2893, %v2489, %v2957
        %v2959 = vsel %vm2895, %v2519, %v2958
        %v2960 = vsel %vm2883, %v2555, %v2525
        %v2961 = vsel %vm2885, %v2585, %v2960
        %v2962 = vsel %vm2887, %v2615, %v2961
        %v2963 = vsel %vm2889, %v2645, %v2962
        %v2964 = vsel %vm2891, %v2675, %v2963
        %v2965 = vsel %vm2893, %v2705, %v2964
        %v2966 = vsel %vm2895, %v2735, %v2965
        %v2967 = vsel %vm2883, %v2561, %v2531
        %v2968 = vsel %vm2885, %v2591, %v2967
        %v2969 = vsel %vm2887, %v2621, %v2968
        %v2970 = vsel %vm2889, %v2651, %v2969
        %v2971 = vsel %vm2891, %v2681, %v2970
        %v2972 = vsel %vm2893, %v2711, %v2971
        %v2973 = vsel %vm2895, %v2741, %v2972
        %v2974 = vsel %vm2883, %v2567, %v2537
        %v2975 = vsel %vm2885, %v2597, %v2974
        %v2976 = vsel %vm2887, %v2627, %v2975
        %v2977 = vsel %vm2889, %v2657, %v2976
        %v2978 = vsel %vm2891, %v2687, %v2977
        %v2979 = vsel %vm2893, %v2717, %v2978
        %v2980 = vsel %vm2895, %v2747, %v2979
        %v2981 = vsel %vm2883, %v2573, %v2543
        %v2982 = vsel %vm2885, %v2603, %v2981
        %v2983 = vsel %vm2887, %v2633, %v2982
        %v2984 = vsel %vm2889, %v2663, %v2983
        %v2985 = vsel %vm2891, %v2693, %v2984
        %v2986 = vsel %vm2893, %v2723, %v2985
        %v2987 = vsel %vm2895, %v2753, %v2986
        %v2988 = vsel %vm2883, %v2579, %v2549
        %v2989 = vsel %vm2885, %v2609, %v2988
        %v2990 = vsel %vm2887, %v2639, %v2989
        %v2991 = vsel %vm2889, %v2669, %v2990
        %v2992 = vsel %vm2891, %v2699, %v2991
        %v2993 = vsel %vm2893, %v2729, %v2992
        %v2994 = vsel %vm2895, %v2759, %v2993
        %vm3010 = vcmask 195584
        %v3012 = vsel %vm3010, %v2760, 0
        %v3015 = vsel %vm3010, %v2761, 0
        %v3018 = vsel %vm3010, %v2762, 0
        %3020 = vmatprep.subr.mxu0 %v2903
        %3021 = vmatpush1.msra.mxu0 %v2896
        %3022 = vmatprep.subr.mxu0 %v2938
        %3023 = vmatpush1.msra.mxu0 %v2931
        %3024 = vmatprep.subr.mxu0 %v2973
        %3025 = vmatpush1.msra.mxu0 %v2966
        %3026 = vmatprep.subr.mxu0 0.0
        %3027 = vmatpush1.msra.mxu0 0.0
        %3028 = vmatprep.subr.mxu0 0.0
        %3029 = vmatpush1.msra.mxu0 0.0
        %3030 = vmatprep.subr.mxu0 0.0
        %3031 = vmatpush1.msra.mxu0 0.0
        %3032 = vmatprep.subr.mxu0 0.0
        %3033 = vmatpush1.msra.mxu0 0.0
        %3034 = vmatprep.subr.mxu0 0.0
        %3035 = vmatpush1.msra.mxu0 0.0
        %3036 = vmatprep.subr.mxu0 0.0
        %3037 = vmatpush1.msra.mxu0 0.0
        %3038 = vmatprep.subr.mxu0 0.0
        %3039 = vmatpush1.msra.mxu0 0.0
        %3040 = vmatprep.subr.mxu0 0.0
        %3041 = vmatpush1.msra.mxu0 0.0
        %3042 = vmatprep.subr.mxu0 0.0
        %3043 = vmatpush1.msra.mxu0 0.0
        %3044 = vmatprep.subr.mxu0 0.0
        %3045 = vmatpush1.msra.mxu0 0.0
        %3046 = vmatprep.subr.mxu0 0.0
        %3047 = vmatpush1.msra.mxu0 0.0
        %3048 = vmatprep.subr.mxu0 0.0
        %3049 = vmatpush1.msra.mxu0 0.0
        %3050 = vmatprep.subr.mxu0 0.0
        %3051 = vmatpush1.msra.mxu0 0.0
        %3052 = vmatprep.subr.mxu0 0.0
        %3053 = vmatpush1.msra.mxu0 0.0
        %3054 = vmatprep.subr.mxu0 0.0
        %3055 = vmatpush1.msra.mxu0 0.0
        %3056 = vmatprep.subr.mxu0 0.0
        %3057 = vmatpush1.msra.mxu0 0.0
        %3058 = vmatprep.subr.mxu0 0.0
        %3059 = vmatpush1.msra.mxu0 0.0
        %3060 = vmatprep.subr.mxu0 0.0
        %3061 = vmatpush1.msra.mxu0 0.0
        %3062 = vmatprep.subr.mxu0 0.0
        %3063 = vmatpush1.msra.mxu0 0.0
        %3064 = vmatprep.subr.mxu0 0.0
        %3065 = vmatpush1.msra.mxu0 0.0
        %3066 = vmatprep.subr.mxu0 0.0
        %3067 = vmatpush1.msra.mxu0 0.0
        %3068 = vmatprep.subr.mxu0 0.0
        %3069 = vmatpush1.msra.mxu0 0.0
        %3070 = vmatprep.subr.mxu0 0.0
        %3071 = vmatpush1.msra.mxu0 0.0
        %3072 = vmatprep.subr.mxu0 0.0
        %3073 = vmatpush1.msra.mxu0 0.0
        %3074 = vmatprep.subr.mxu0 0.0
        %3075 = vmatpush1.msra.mxu0 0.0
        %3076 = vmatprep.subr.mxu0 0.0
        %3077 = vmatpush1.msra.mxu0 0.0
        %3078 = vmatprep.subr.mxu0 0.0
        %3079 = vmatpush1.msra.mxu0 0.0
        %3080 = vmatprep.subr.mxu0 0.0
        %3081 = vmatpush1.msra.mxu0 0.0
        %3082 = vmatprep.subr.mxu0 0.0
        %3083 = vmatpush1.msra.mxu0 0.0
        %3084 = vmatprep.mubr.f32.mxu0 0.0
        %3085 = vmatmul.mubr.f32.gmra.mrb[0].mxu0 %v3012
        %v3086 = vpop.f32.mrb[0].mxu0
        %v3087 = vadd.f32 0.0, %v3086
        %v3088 = vpop.f32.mrb[0].mxu0
        %v3089 = vadd.f32 0.0, %v3088
        %3090 = vmatprep.mubr.f32.mxu0 0.0
        %3091 = vmatmul.mubr.f32.gmra.mrb[0].mxu0 %v3015
        %v3092 = vpop.f32.mrb[0].mxu0
        %v3093 = vadd.f32 0.0, %v3092
        %v3094 = vpop.f32.mrb[0].mxu0
        %v3095 = vadd.f32 0.0, %v3094
        %3096 = vmatprep.mubr.f32.mxu0 0.0
        %3097 = vmatmul.mubr.f32.gmra.mrb[0].mxu0 %v3018
        %v3098 = vpop.f32.mrb[0].mxu0
        %v3099 = vadd.f32 0.0, %v3098
        %v3100 = vpop.f32.mrb[0].mxu0
        %v3101 = vadd.f32 0.0, %v3100
        %3102 = vdwg.mxu0
        %3103 = vmatprep.subr.mxu0 %v2917
        %3104 = vmatpush1.msra.mxu0 %v2910
        %3105 = vmatprep.subr.mxu0 %v2952
        %3106 = vmatpush1.msra.mxu0 %v2945
        %3107 = vmatprep.subr.mxu0 %v2987
        %3108 = vmatpush1.msra.mxu0 %v2980
        %3109 = vmatprep.subr.mxu0 0.0
        %3110 = vmatpush1.msra.mxu0 0.0
        %3111 = vmatprep.subr.mxu0 0.0
        %3112 = vmatpush1.msra.mxu0 0.0
        %3113 = vmatprep.subr.mxu0 0.0
        %3114 = vmatpush1.msra.mxu0 0.0
        %3115 = vmatprep.subr.mxu0 0.0
        %3116 = vmatpush1.msra.mxu0 0.0
        %3117 = vmatprep.subr.mxu0 0.0
        %3118 = vmatpush1.msra.mxu0 0.0
        %3119 = vmatprep.subr.mxu0 0.0
        %3120 = vmatpush1.msra.mxu0 0.0
        %3121 = vmatprep.subr.mxu0 0.0
        %3122 = vmatpush1.msra.mxu0 0.0
        %3123 = vmatprep.subr.mxu0 0.0
        %3124 = vmatpush1.msra.mxu0 0.0
        %3125 = vmatprep.subr.mxu0 0.0
        %3126 = vmatpush1.msra.mxu0 0.0
        %3127 = vmatprep.subr.mxu0 0.0
        %3128 = vmatpush1.msra.mxu0 0.0
        %3129 = vmatprep.subr.mxu0 0.0
        %3130 = vmatpush1.msra.mxu0 0.0
        %3131 = vmatprep.subr.mxu0 0.0
        %3132 = vmatpush1.msra.mxu0 0.0
        %3133 = vmatprep.subr.mxu0 0.0
        %3134 = vmatpush1.msra.mxu0 0.0
        %3135 = vmatprep.subr.mxu0 0.0
        %3136 = vmatpush1.msra.mxu0 0.0
        %3137 = vmatprep.subr.mxu0 0.0
        %3138 = vmatpush1.msra.mxu0 0.0
        %3139 = vmatprep.subr.mxu0 0.0
        %3140 = vmatpush1.msra.mxu0 0.0
        %3141 = vmatprep.subr.mxu0 0.0
        %3142 = vmatpush1.msra.mxu0 0.0
        %3143 = vmatprep.subr.mxu0 0.0
        %3144 = vmatpush1.msra.mxu0 0.0
        %3145 = vmatprep.subr.mxu0 0.0
        %3146 = vmatpush1.msra.mxu0 0.0
        %3147 = vmatprep.subr.mxu0 0.0
        %3148 = vmatpush1.msra.mxu0 0.0
        %3149 = vmatprep.subr.mxu0 0.0
        %3150 = vmatpush1.msra.mxu0 0.0
        %3151 = vmatprep.subr.mxu0 0.0
        %3152 = vmatpush1.msra.mxu0 0.0
        %3153 = vmatprep.subr.mxu0 0.0
        %3154 = vmatpush1.msra.mxu0 0.0
        %3155 = vmatprep.subr.mxu0 0.0
        %3156 = vmatpush1.msra.mxu0 0.0
        %3157 = vmatprep.subr.mxu0 0.0
        %3158 = vmatpush1.msra.mxu0 0.0
        %3159 = vmatprep.subr.mxu0 0.0
        %3160 = vmatpush1.msra.mxu0 0.0
        %3161 = vmatprep.subr.mxu0 0.0
        %3162 = vmatpush1.msra.mxu0 0.0
        %3163 = vmatprep.subr.mxu0 0.0
        %3164 = vmatpush1.msra.mxu0 0.0
        %3165 = vmatprep.subr.mxu0 0.0
        %3166 = vmatpush1.msra.mxu0 0.0
        %3167 = vmatprep.mubr.f32.mxu0 0.0
        %3168 = vmatmul.mubr.f32.gmra.mrb[0].mxu0 %v3012
        %v3169 = vpop.f32.mrb[0].mxu0
        %v3170 = vadd.f32 0.0, %v3169
        %v3171 = vpop.f32.mrb[0].mxu0
        %v3172 = vadd.f32 0.0, %v3171
        %3173 = vmatprep.mubr.f32.mxu0 0.0
        %3174 = vmatmul.mubr.f32.gmra.mrb[0].mxu0 %v3015
        %v3175 = vpop.f32.mrb[0].mxu0
        %v3176 = vadd.f32 0.0, %v3175
        %v3177 = vpop.f32.mrb[0].mxu0
        %v3178 = vadd.f32 0.0, %v3177
        %3179 = vmatprep.mubr.f32.mxu0 0.0
        %3180 = vmatmul.mubr.f32.gmra.mrb[0].mxu0 %v3018
        %v3181 = vpop.f32.mrb[0].mxu0
        %v3182 = vadd.f32 0.0, %v3181
        %v3183 = vpop.f32.mrb[0].mxu0
        %v3184 = vadd.f32 0.0, %v3183
        %3185 = vdwg.mxu0
        %3186 = vmatprep.subr.mxu0 0.0
        %3187 = vmatpush1.msra.mxu0 %v2924
        %3188 = vmatprep.subr.mxu0 0.0
        %3189 = vmatpush1.msra.mxu0 %v2959
        %3190 = vmatprep.subr.mxu0 0.0
        %3191 = vmatpush1.msra.mxu0 %v2994
        %3192 = vmatprep.subr.mxu0 0.0
        %3193 = vmatpush1.msra.mxu0 0.0
        %3194 = vmatprep.subr.mxu0 0.0
        %3195 = vmatpush1.msra.mxu0 0.0
        %3196 = vmatprep.subr.mxu0 0.0
        %3197 = vmatpush1.msra.mxu0 0.0
        %3198 = vmatprep.subr.mxu0 0.0
        %3199 = vmatpush1.msra.mxu0 0.0
        %3200 = vmatprep.subr.mxu0 0.0
        %3201 = vmatpush1.msra.mxu0 0.0
        %3202 = vmatprep.subr.mxu0 0.0
        %3203 = vmatpush1.msra.mxu0 0.0
        %3204 = vmatprep.subr.mxu0 0.0
        %3205 = vmatpush1.msra.mxu0 0.0
        %3206 = vmatprep.subr.mxu0 0.0
        %3207 = vmatpush1.msra.mxu0 0.0
        %3208 = vmatprep.subr.mxu0 0.0
        %3209 = vmatpush1.msra.mxu0 0.0
        %3210 = vmatprep.subr.mxu0 0.0
        %3211 = vmatpush1.msra.mxu0 0.0
        %3212 = vmatprep.subr.mxu0 0.0
        %3213 = vmatpush1.msra.mxu0 0.0
        %3214 = vmatprep.subr.mxu0 0.0
        %3215 = vmatpush1.msra.mxu0 0.0
        %3216 = vmatprep.subr.mxu0 0.0
        %3217 = vmatpush1.msra.mxu0 0.0
        %3218 = vmatprep.subr.mxu0 0.0
        %3219 = vmatpush1.msra.mxu0 0.0
        %3220 = vmatprep.subr.mxu0 0.0
        %3221 = vmatpush1.msra.mxu0 0.0
        %3222 = vmatprep.subr.mxu0 0.0
        %3223 = vmatpush1.msra.mxu0 0.0
        %3224 = vmatprep.subr.mxu0 0.0
        %3225 = vmatpush1.msra.mxu0 0.0
        %3226 = vmatprep.subr.mxu0 0.0
        %3227 = vmatpush1.msra.mxu0 0.0
        %3228 = vmatprep.subr.mxu0 0.0
        %3229 = vmatpush1.msra.mxu0 0.0
        %3230 = vmatprep.subr.mxu0 0.0
        %3231 = vmatpush1.msra.mxu0 0.0
        %3232 = vmatprep.subr.mxu0 0.0
        %3233 = vmatpush1.msra.mxu0 0.0
        %3234 = vmatprep.subr.mxu0 0.0
        %3235 = vmatpush1.msra.mxu0 0.0
        %3236 = vmatprep.subr.mxu0 0.0
        %3237 = vmatpush1.msra.mxu0 0.0
        %3238 = vmatprep.subr.mxu0 0.0
        %3239 = vmatpush1.msra.mxu0 0.0
        %3240 = vmatprep.subr.mxu0 0.0
        %3241 = vmatpush1.msra.mxu0 0.0
        %3242 = vmatprep.subr.mxu0 0.0
        %3243 = vmatpush1.msra.mxu0 0.0
        %3244 = vmatprep.subr.mxu0 0.0
        %3245 = vmatpush1.msra.mxu0 0.0
        %3246 = vmatprep.subr.mxu0 0.0
        %3247 = vmatpush1.msra.mxu0 0.0
        %3248 = vmatprep.subr.mxu0 0.0
        %3249 = vmatpush1.msra.mxu0 0.0
        %3250 = vmatprep.mubr.f32.mxu0 0.0
        %3251 = vmatmul.mubr.f32.gmra.mrb[0].mxu0 %v3012
        %v3252 = vpop.f32.mrb[0].mxu0
        %v3253 = vadd.f32 0.0, %v3252
        %v3254 = vpop.f32.mrb[0].mxu0
        %3255 = vmatprep.mubr.f32.mxu0 0.0
        %3256 = vmatmul.mubr.f32.gmra.mrb[0].mxu0 %v3015
        %v3257 = vpop.f32.mrb[0].mxu0
        %v3258 = vadd.f32 0.0, %v3257
        %v3259 = vpop.f32.mrb[0].mxu0
        %3260 = vmatprep.mubr.f32.mxu0 0.0
        %3261 = vmatmul.mubr.f32.gmra.mrb[0].mxu0 %v3018
        %v3262 = vpop.f32.mrb[0].mxu0
        %v3263 = vadd.f32 0.0, %v3262
        %v3264 = vpop.f32.mrb[0].mxu0
        %3265 = vdwg.mxu0
        %v3266 = vmax.f32 %v3087, %v3093
        %v3267 = vmax.f32 %v3266, %v3099
        %v3268 = vrot.slane %v3267, 4
        %v3269 = vmax.f32 %v3267, %v3268
        %v3270 = vrot.slane %v3269, 2
        %v3271 = vmax.f32 %v3269, %v3270
        %v3272 = vrot.slane %v3271, 1
        %v3273 = vmax.f32 %v3271, %v3272
        %v3274 = vmax.f32 %v3089, %v3095
        %v3275 = vmax.f32 %v3274, %v3101
        %v3276 = vrot.slane %v3275, 4
        %v3277 = vmax.f32 %v3275, %v3276
        %v3278 = vrot.slane %v3277, 2
        %v3279 = vmax.f32 %v3277, %v3278
        %v3280 = vrot.slane %v3279, 1
        %v3281 = vmax.f32 %v3279, %v3280
        %v3282 = vmax.f32 %v3170, %v3176
        %v3283 = vmax.f32 %v3282, %v3182
        %v3284 = vrot.slane %v3283, 4
        %v3285 = vmax.f32 %v3283, %v3284
        %v3286 = vrot.slane %v3285, 2
        %v3287 = vmax.f32 %v3285, %v3286
        %v3288 = vrot.slane %v3287, 1
        %v3289 = vmax.f32 %v3287, %v3288
        %v3290 = vmax.f32 %v3172, %v3178
        %v3291 = vmax.f32 %v3290, %v3184
        %v3292 = vrot.slane %v3291, 4
        %v3293 = vmax.f32 %v3291, %v3292
        %v3294 = vrot.slane %v3293, 2
        %v3295 = vmax.f32 %v3293, %v3294
        %v3296 = vrot.slane %v3295, 1
        %v3297 = vmax.f32 %v3295, %v3296
        %v3298 = vmax.f32 %v3253, %v3258
        %v3299 = vmax.f32 %v3298, %v3263
        %v3300 = vrot.slane %v3299, 4
        %v3301 = vmax.f32 %v3299, %v3300
        %v3302 = vrot.slane %v3301, 2
        %v3303 = vmax.f32 %v3301, %v3302
        %v3304 = vrot.slane %v3303, 1
        %v3305 = vmax.f32 %v3303, %v3304
        %v3306 = vsub.f32 %v3087, %v3273
        %v3307 = vsub.f32 %v3089, %v3281
        %v3308 = vsub.f32 %v3170, %v3289
        %v3309 = vsub.f32 %v3172, %v3297
        %v3310 = vsub.f32 %v3253, %v3305
        %v3311 = vsub.f32 %v3093, %v3273
        %v3312 = vsub.f32 %v3095, %v3281
        %v3313 = vsub.f32 %v3176, %v3289
        %v3314 = vsub.f32 %v3178, %v3297
        %v3315 = vsub.f32 %v3258, %v3305
        %v3316 = vsub.f32 %v3099, %v3273
        %v3317 = vsub.f32 %v3101, %v3281
        %v3318 = vsub.f32 %v3182, %v3289
        %v3319 = vsub.f32 %v3184, %v3297
        %v3320 = vsub.f32 %v3263, %v3305
        %v3321 = vmul.f32 %v3306, 1.442695
        %v3322 = vpow.pop %v3321
        %v3323 = vmul.f32 %v3307, 1.442695
        %v3324 = vpow.pop %v3323
        %v3325 = vmul.f32 %v3308, 1.442695
        %v3326 = vpow.pop %v3325
        %v3327 = vmul.f32 %v3309, 1.442695
        %v3328 = vpow.pop %v3327
        %v3329 = vmul.f32 %v3310, 1.442695
        %v3330 = vpow.pop %v3329
        %v3331 = vmul.f32 %v3311, 1.442695
        %v3332 = vpow.pop %v3331
        %v3333 = vmul.f32 %v3312, 1.442695
        %v3334 = vpow.pop %v3333
        %v3335 = vmul.f32 %v3313, 1.442695
        %v3336 = vpow.pop %v3335
        %v3337 = vmul.f32 %v3314, 1.442695
        %v3338 = vpow.pop %v3337
        %v3339 = vmul.f32 %v3315, 1.442695
        %v3340 = vpow.pop %v3339
        %v3341 = vmul.f32 %v3316, 1.442695
        %v3342 = vpow.pop %v3341
        %v3343 = vmul.f32 %v3317, 1.442695
        %v3344 = vpow.pop %v3343
        %v3345 = vmul.f32 %v3318, 1.442695
        %v3346 = vpow.pop %v3345
        %v3347 = vmul.f32 %v3319, 1.442695
        %v3348 = vpow.pop %v3347
        %v3349 = vmul.f32 %v3320, 1.442695
        %v3350 = vpow.pop %v3349
        %v3351 = vadd.f32 %v3322, %v3332
        %v3352 = vadd.f32 %v3351, %v3342
        %v3353 = vrot.slane %v3352, 4
        %v3354 = vadd.f32 %v3352, %v3353
        %v3355 = vrot.slane %v3354, 2
        %v3356 = vadd.f32 %v3354, %v3355
        %v3357 = vrot.slane %v3356, 1
        %v3358 = vadd.f32 %v3356, %v3357
        %v3359 = vadd.f32 %v3324, %v3334
        %v3360 = vadd.f32 %v3359, %v3344
        %v3361 = vrot.slane %v3360, 4
        %v3362 = vadd.f32 %v3360, %v3361
        %v3363 = vrot.slane %v3362, 2
        %v3364 = vadd.f32 %v3362, %v3363
        %v3365 = vrot.slane %v3364, 1
        %v3366 = vadd.f32 %v3364, %v3365
        %v3367 = vadd.f32 %v3326, %v3336
        %v3368 = vadd.f32 %v3367, %v3346
        %v3369 = vrot.slane %v3368, 4
        %v3370 = vadd.f32 %v3368, %v3369
        %v3371 = vrot.slane %v3370, 2
        %v3372 = vadd.f32 %v3370, %v3371
        %v3373 = vrot.slane %v3372, 1
        %v3374 = vadd.f32 %v3372, %v3373
        %v3375 = vadd.f32 %v3328, %v3338
        %v3376 = vadd.f32 %v3375, %v3348
        %v3377 = vrot.slane %v3376, 4
        %v3378 = vadd.f32 %v3376, %v3377
        %v3379 = vrot.slane %v3378, 2
        %v3380 = vadd.f32 %v3378, %v3379
        %v3381 = vrot.slane %v3380, 1
        %v3382 = vadd.f32 %v3380, %v3381
        %v3383 = vadd.f32 %v3330, %v3340
        %v3384 = vadd.f32 %v3383, %v3350
        %v3385 = vrot.slane %v3384, 4
        %v3386 = vadd.f32 %v3384, %v3385
        %v3387 = vrot.slane %v3386, 2
        %v3388 = vadd.f32 %v3386, %v3387
        %v3389 = vrot.slane %v3388, 1
        %v3390 = vadd.f32 %v3388, %v3389
        %v3391 = vrcp.pop %v3358
        %v3392 = vrcp.pop %v3366
        %v3393 = vrcp.pop %v3374
        %v3394 = vrcp.pop %v3382
        %v3395 = vrcp.pop %v3390
        %v3396 = vmul.f32 %v3322, %v3391
        %v3397 = vmul.f32 %v3324, %v3392
        %v3398 = vmul.f32 %v3326, %v3393
        %v3399 = vmul.f32 %v3328, %v3394
        %v3400 = vmul.f32 %v3330, %v3395
        %v3401 = vmul.f32 %v3332, %v3391
        %v3402 = vmul.f32 %v3334, %v3392
        %v3403 = vmul.f32 %v3336, %v3393
        %v3404 = vmul.f32 %v3338, %v3394
        %v3405 = vmul.f32 %v3340, %v3395
        %v3406 = vmul.f32 %v3342, %v3391
        %v3407 = vmul.f32 %v3344, %v3392
        %v3408 = vmul.f32 %v3346, %v3393
        %v3409 = vmul.f32 %v3348, %v3394
        %v3410 = vmul.f32 %v3350, %v3395
        %v3426 = vcombine.low %v3396, %v3397
        %v3427 = vcombine.high %v3396, %v3397
        %v3428 = vcombine.low %v3398, %v3399
        %v3429 = vcombine.high %v3398, %v3399
        %v3430 = vcombine.high %v3400, %v3400
        %v3432 = vunpack.c.l.s4 1966171168
        %v3433 = vunpack.c.0.s8 %v3432
        %v3434 = vlaneseq
        %v3435 = vshrl.u32 %v3434, 7
        %v3436 = vsub.s32 %v3433, %v3435
        %v3437 = vrot.slane %v3426, %v3436
        %v3439 = vunpack.c.l.s4 1966171168
        %v3440 = vunpack.c.0.s8 %v3439
        %v3441 = vlaneseq
        %v3442 = vshrl.u32 %v3441, 7
        %v3443 = vsub.s32 %v3440, %v3442
        %v3444 = vrot.slane %v3427, %v3443
        %v3446 = vunpack.c.l.s4 1966171168
        %v3447 = vunpack.c.0.s8 %v3446
        %v3448 = vlaneseq
        %v3449 = vshrl.u32 %v3448, 7
        %v3450 = vsub.s32 %v3447, %v3449
        %v3451 = vrot.slane %v3428, %v3450
        %v3453 = vunpack.c.l.s4 1966171168
        %v3454 = vunpack.c.0.s8 %v3453
        %v3455 = vlaneseq
        %v3456 = vshrl.u32 %v3455, 7
        %v3457 = vsub.s32 %v3454, %v3456
        %v3458 = vrot.slane %v3429, %v3457
        %v3460 = vunpack.c.l.s4 1966171168
        %v3461 = vunpack.c.0.s8 %v3460
        %v3462 = vlaneseq
        %v3463 = vshrl.u32 %v3462, 7
        %v3464 = vsub.s32 %v3461, %v3463
        %v3465 = vrot.slane %v3400, %v3464
        %v3467 = vunpack.c.l.s4 1966171168
        %v3468 = vunpack.c.0.s8 %v3467
        %v3469 = vlaneseq
        %v3470 = vshrl.u32 %v3469, 7
        %v3471 = vsub.s32 %v3468, %v3470
        %v3472 = vrot.slane %v3430, %v3471
        %v3473 = vcombine.low %v3437, %v3451
        %v3474 = vcombine.high %v3437, %v3451
        %v3475 = vcombine.low %v3444, %v3458
        %v3476 = vcombine.high %v3444, %v3458
        %v3477 = vcombine.high %v3465, %v3465
        %v3478 = vcombine.high %v3472, %v3472
        %v3480 = vunpack.c.l.s4 1966171168
        %v3481 = vunpack.c.0.s8 %v3480
        %v3482 = vlaneseq
        %v3483 = vshrl.u32 %v3482, 7
        %v3484 = vsub.s32 %v3481, %v3483
        %v3485 = vrot.slane %v3473, %v3484
        %v3487 = vunpack.c.l.s4 1966171168
        %v3488 = vunpack.c.0.s8 %v3487
        %v3489 = vlaneseq
        %v3490 = vshrl.u32 %v3489, 7
        %v3491 = vsub.s32 %v3488, %v3490
        %v3492 = vrot.slane %v3475, %v3491
        %v3494 = vunpack.c.l.s4 1966171168
        %v3495 = vunpack.c.0.s8 %v3494
        %v3496 = vlaneseq
        %v3497 = vshrl.u32 %v3496, 7
        %v3498 = vsub.s32 %v3495, %v3497
        %v3499 = vrot.slane %v3474, %v3498
        %v3501 = vunpack.c.l.s4 1966171168
        %v3502 = vunpack.c.0.s8 %v3501
        %v3503 = vlaneseq
        %v3504 = vshrl.u32 %v3503, 7
        %v3505 = vsub.s32 %v3502, %v3504
        %v3506 = vrot.slane %v3476, %v3505
        %v3508 = vunpack.c.l.s4 1966171168
        %v3509 = vunpack.c.0.s8 %v3508
        %v3510 = vlaneseq
        %v3511 = vshrl.u32 %v3510, 7
        %v3512 = vsub.s32 %v3509, %v3511
        %v3513 = vrot.slane %v3465, %v3512
        %v3515 = vunpack.c.l.s4 1966171168
        %v3516 = vunpack.c.0.s8 %v3515
        %v3517 = vlaneseq
        %v3518 = vshrl.u32 %v3517, 7
        %v3519 = vsub.s32 %v3516, %v3518
        %v3520 = vrot.slane %v3472, %v3519
        %v3522 = vunpack.c.l.s4 1966171168
        %v3523 = vunpack.c.0.s8 %v3522
        %v3524 = vlaneseq
        %v3525 = vshrl.u32 %v3524, 7
        %v3526 = vsub.s32 %v3523, %v3525
        %v3527 = vrot.slane %v3477, %v3526
        %v3529 = vunpack.c.l.s4 1966171168
        %v3530 = vunpack.c.0.s8 %v3529
        %v3531 = vlaneseq
        %v3532 = vshrl.u32 %v3531, 7
        %v3533 = vsub.s32 %v3530, %v3532
        %v3534 = vrot.slane %v3478, %v3533
        %v3535 = vcombine.low %v3485, %v3513
        %v3536 = vcombine.high %v3485, %v3513
        %v3537 = vcombine.low %v3492, %v3520
        %v3538 = vcombine.high %v3492, %v3520
        %v3539 = vcombine.low %v3499, %v3527
        %v3540 = vcombine.high %v3499, %v3527
        %v3541 = vcombine.low %v3506, %v3534
        %v3542 = vcombine.high %v3506, %v3534
        %v3543 = vcombine.low %v3401, %v3402
        %v3544 = vcombine.high %v3401, %v3402
        %v3545 = vcombine.low %v3403, %v3404
        %v3546 = vcombine.high %v3403, %v3404
        %v3547 = vcombine.high %v3405, %v3405
        %v3549 = vunpack.c.l.s4 1966171168
        %v3550 = vunpack.c.0.s8 %v3549
        %v3551 = vlaneseq
        %v3552 = vshrl.u32 %v3551, 7
        %v3553 = vsub.s32 %v3550, %v3552
        %v3554 = vrot.slane %v3543, %v3553
        %v3556 = vunpack.c.l.s4 1966171168
        %v3557 = vunpack.c.0.s8 %v3556
        %v3558 = vlaneseq
        %v3559 = vshrl.u32 %v3558, 7
        %v3560 = vsub.s32 %v3557, %v3559
        %v3561 = vrot.slane %v3544, %v3560
        %v3563 = vunpack.c.l.s4 1966171168
        %v3564 = vunpack.c.0.s8 %v3563
        %v3565 = vlaneseq
        %v3566 = vshrl.u32 %v3565, 7
        %v3567 = vsub.s32 %v3564, %v3566
        %v3568 = vrot.slane %v3545, %v3567
        %v3570 = vunpack.c.l.s4 1966171168
        %v3571 = vunpack.c.0.s8 %v3570
        %v3572 = vlaneseq
        %v3573 = vshrl.u32 %v3572, 7
        %v3574 = vsub.s32 %v3571, %v3573
        %v3575 = vrot.slane %v3546, %v3574
        %v3577 = vunpack.c.l.s4 1966171168
        %v3578 = vunpack.c.0.s8 %v3577
        %v3579 = vlaneseq
        %v3580 = vshrl.u32 %v3579, 7
        %v3581 = vsub.s32 %v3578, %v3580
        %v3582 = vrot.slane %v3405, %v3581
        %v3584 = vunpack.c.l.s4 1966171168
        %v3585 = vunpack.c.0.s8 %v3584
        %v3586 = vlaneseq
        %v3587 = vshrl.u32 %v3586, 7
        %v3588 = vsub.s32 %v3585, %v3587
        %v3589 = vrot.slane %v3547, %v3588
        %v3590 = vcombine.low %v3554, %v3568
        %v3591 = vcombine.high %v3554, %v3568
        %v3592 = vcombine.low %v3561, %v3575
        %v3593 = vcombine.high %v3561, %v3575
        %v3594 = vcombine.high %v3582, %v3582
        %v3595 = vcombine.high %v3589, %v3589
        %v3597 = vunpack.c.l.s4 1966171168
        %v3598 = vunpack.c.0.s8 %v3597
        %v3599 = vlaneseq
        %v3600 = vshrl.u32 %v3599, 7
        %v3601 = vsub.s32 %v3598, %v3600
        %v3602 = vrot.slane %v3590, %v3601
        %v3604 = vunpack.c.l.s4 1966171168
        %v3605 = vunpack.c.0.s8 %v3604
        %v3606 = vlaneseq
        %v3607 = vshrl.u32 %v3606, 7
        %v3608 = vsub.s32 %v3605, %v3607
        %v3609 = vrot.slane %v3592, %v3608
        %v3611 = vunpack.c.l.s4 1966171168
        %v3612 = vunpack.c.0.s8 %v3611
        %v3613 = vlaneseq
        %v3614 = vshrl.u32 %v3613, 7
        %v3615 = vsub.s32 %v3612, %v3614
        %v3616 = vrot.slane %v3591, %v3615
        %v3618 = vunpack.c.l.s4 1966171168
        %v3619 = vunpack.c.0.s8 %v3618
        %v3620 = vlaneseq
        %v3621 = vshrl.u32 %v3620, 7
        %v3622 = vsub.s32 %v3619, %v3621
        %v3623 = vrot.slane %v3593, %v3622
        %v3625 = vunpack.c.l.s4 1966171168
        %v3626 = vunpack.c.0.s8 %v3625
        %v3627 = vlaneseq
        %v3628 = vshrl.u32 %v3627, 7
        %v3629 = vsub.s32 %v3626, %v3628
        %v3630 = vrot.slane %v3582, %v3629
        %v3632 = vunpack.c.l.s4 1966171168
        %v3633 = vunpack.c.0.s8 %v3632
        %v3634 = vlaneseq
        %v3635 = vshrl.u32 %v3634, 7
        %v3636 = vsub.s32 %v3633, %v3635
        %v3637 = vrot.slane %v3589, %v3636
        %v3639 = vunpack.c.l.s4 1966171168
        %v3640 = vunpack.c.0.s8 %v3639
        %v3641 = vlaneseq
        %v3642 = vshrl.u32 %v3641, 7
        %v3643 = vsub.s32 %v3640, %v3642
        %v3644 = vrot.slane %v3594, %v3643
        %v3646 = vunpack.c.l.s4 1966171168
        %v3647 = vunpack.c.0.s8 %v3646
        %v3648 = vlaneseq
        %v3649 = vshrl.u32 %v3648, 7
        %v3650 = vsub.s32 %v3647, %v3649
        %v3651 = vrot.slane %v3595, %v3650
        %v3652 = vcombine.low %v3602, %v3630
        %v3653 = vcombine.high %v3602, %v3630
        %v3654 = vcombine.low %v3609, %v3637
        %v3655 = vcombine.high %v3609, %v3637
        %v3656 = vcombine.low %v3616, %v3644
        %v3657 = vcombine.high %v3616, %v3644
        %v3658 = vcombine.low %v3623, %v3651
        %v3659 = vcombine.high %v3623, %v3651
        %v3660 = vcombine.low %v3406, %v3407
        %v3661 = vcombine.high %v3406, %v3407
        %v3662 = vcombine.low %v3408, %v3409
        %v3663 = vcombine.high %v3408, %v3409
        %v3664 = vcombine.high %v3410, %v3410
        %v3666 = vunpack.c.l.s4 1966171168
        %v3667 = vunpack.c.0.s8 %v3666
        %v3668 = vlaneseq
        %v3669 = vshrl.u32 %v3668, 7
        %v3670 = vsub.s32 %v3667, %v3669
        %v3671 = vrot.slane %v3660, %v3670
        %v3673 = vunpack.c.l.s4 1966171168
        %v3674 = vunpack.c.0.s8 %v3673
        %v3675 = vlaneseq
        %v3676 = vshrl.u32 %v3675, 7
        %v3677 = vsub.s32 %v3674, %v3676
        %v3678 = vrot.slane %v3661, %v3677
        %v3680 = vunpack.c.l.s4 1966171168
        %v3681 = vunpack.c.0.s8 %v3680
        %v3682 = vlaneseq
        %v3683 = vshrl.u32 %v3682, 7
        %v3684 = vsub.s32 %v3681, %v3683
        %v3685 = vrot.slane %v3662, %v3684
        %v3687 = vunpack.c.l.s4 1966171168
        %v3688 = vunpack.c.0.s8 %v3687
        %v3689 = vlaneseq
        %v3690 = vshrl.u32 %v3689, 7
        %v3691 = vsub.s32 %v3688, %v3690
        %v3692 = vrot.slane %v3663, %v3691
        %v3694 = vunpack.c.l.s4 1966171168
        %v3695 = vunpack.c.0.s8 %v3694
        %v3696 = vlaneseq
        %v3697 = vshrl.u32 %v3696, 7
        %v3698 = vsub.s32 %v3695, %v3697
        %v3699 = vrot.slane %v3410, %v3698
        %v3701 = vunpack.c.l.s4 1966171168
        %v3702 = vunpack.c.0.s8 %v3701
        %v3703 = vlaneseq
        %v3704 = vshrl.u32 %v3703, 7
        %v3705 = vsub.s32 %v3702, %v3704
        %v3706 = vrot.slane %v3664, %v3705
        %v3707 = vcombine.low %v3671, %v3685
        %v3708 = vcombine.high %v3671, %v3685
        %v3709 = vcombine.low %v3678, %v3692
        %v3710 = vcombine.high %v3678, %v3692
        %v3711 = vcombine.high %v3699, %v3699
        %v3712 = vcombine.high %v3706, %v3706
        %v3714 = vunpack.c.l.s4 1966171168
        %v3715 = vunpack.c.0.s8 %v3714
        %v3716 = vlaneseq
        %v3717 = vshrl.u32 %v3716, 7
        %v3718 = vsub.s32 %v3715, %v3717
        %v3719 = vrot.slane %v3707, %v3718
        %v3721 = vunpack.c.l.s4 1966171168
        %v3722 = vunpack.c.0.s8 %v3721
        %v3723 = vlaneseq
        %v3724 = vshrl.u32 %v3723, 7
        %v3725 = vsub.s32 %v3722, %v3724
        %v3726 = vrot.slane %v3709, %v3725
        %v3728 = vunpack.c.l.s4 1966171168
        %v3729 = vunpack.c.0.s8 %v3728
        %v3730 = vlaneseq
        %v3731 = vshrl.u32 %v3730, 7
        %v3732 = vsub.s32 %v3729, %v3731
        %v3733 = vrot.slane %v3708, %v3732
        %v3735 = vunpack.c.l.s4 1966171168
        %v3736 = vunpack.c.0.s8 %v3735
        %v3737 = vlaneseq
        %v3738 = vshrl.u32 %v3737, 7
        %v3739 = vsub.s32 %v3736, %v3738
        %v3740 = vrot.slane %v3710, %v3739
        %v3742 = vunpack.c.l.s4 1966171168
        %v3743 = vunpack.c.0.s8 %v3742
        %v3744 = vlaneseq
        %v3745 = vshrl.u32 %v3744, 7
        %v3746 = vsub.s32 %v3743, %v3745
        %v3747 = vrot.slane %v3699, %v3746
        %v3749 = vunpack.c.l.s4 1966171168
        %v3750 = vunpack.c.0.s8 %v3749
        %v3751 = vlaneseq
        %v3752 = vshrl.u32 %v3751, 7
        %v3753 = vsub.s32 %v3750, %v3752
        %v3754 = vrot.slane %v3706, %v3753
        %v3756 = vunpack.c.l.s4 1966171168
        %v3757 = vunpack.c.0.s8 %v3756
        %v3758 = vlaneseq
        %v3759 = vshrl.u32 %v3758, 7
        %v3760 = vsub.s32 %v3757, %v3759
        %v3761 = vrot.slane %v3711, %v3760
        %v3763 = vunpack.c.l.s4 1966171168
        %v3764 = vunpack.c.0.s8 %v3763
        %v3765 = vlaneseq
        %v3766 = vshrl.u32 %v3765, 7
        %v3767 = vsub.s32 %v3764, %v3766
        %v3768 = vrot.slane %v3712, %v3767
        %v3769 = vcombine.low %v3719, %v3747
        %v3770 = vcombine.high %v3719, %v3747
        %v3771 = vcombine.low %v3726, %v3754
        %v3772 = vcombine.high %v3726, %v3754
        %v3773 = vcombine.low %v3733, %v3761
        %v3774 = vcombine.high %v3733, %v3761
        %v3775 = vcombine.low %v3740, %v3768
        %v3776 = vcombine.high %v3740, %v3768
        %v3777 = vlaneseq
        %v3778 = vshrl.u32 %v3777, 7
        %v3779 = vsub.s32 0, %v3778
        %v3780 = vrot.slane %v3535, %v3779
        %v3781 = vlaneseq
        %v3782 = vshrl.u32 %v3781, 7
        %v3783 = vsub.s32 1, %v3782
        %v3784 = vrot.slane %v3535, %v3783
        %v3785 = vlaneseq
        %v3786 = vshrl.u32 %v3785, 7
        %v3787 = vsub.s32 2, %v3786
        %v3788 = vrot.slane %v3535, %v3787
        %v3789 = vlaneseq
        %v3790 = vshrl.u32 %v3789, 7
        %v3791 = vsub.s32 3, %v3790
        %v3792 = vrot.slane %v3535, %v3791
        %v3793 = vlaneseq
        %v3794 = vshrl.u32 %v3793, 7
        %v3795 = vsub.s32 4, %v3794
        %v3796 = vrot.slane %v3535, %v3795
        %v3797 = vlaneseq
        %v3798 = vshrl.u32 %v3797, 7
        %v3799 = vsub.s32 0, %v3798
        %v3800 = vrot.slane %v3539, %v3799
        %v3801 = vlaneseq
        %v3802 = vshrl.u32 %v3801, 7
        %v3803 = vsub.s32 1, %v3802
        %v3804 = vrot.slane %v3539, %v3803
        %v3805 = vlaneseq
        %v3806 = vshrl.u32 %v3805, 7
        %v3807 = vsub.s32 2, %v3806
        %v3808 = vrot.slane %v3539, %v3807
        %v3809 = vlaneseq
        %v3810 = vshrl.u32 %v3809, 7
        %v3811 = vsub.s32 3, %v3810
        %v3812 = vrot.slane %v3539, %v3811
        %v3813 = vlaneseq
        %v3814 = vshrl.u32 %v3813, 7
        %v3815 = vsub.s32 4, %v3814
        %v3816 = vrot.slane %v3539, %v3815
        %v3817 = vlaneseq
        %v3818 = vshrl.u32 %v3817, 7
        %v3819 = vsub.s32 0, %v3818
        %v3820 = vrot.slane %v3536, %v3819
        %v3821 = vlaneseq
        %v3822 = vshrl.u32 %v3821, 7
        %v3823 = vsub.s32 1, %v3822
        %v3824 = vrot.slane %v3536, %v3823
        %v3825 = vlaneseq
        %v3826 = vshrl.u32 %v3825, 7
        %v3827 = vsub.s32 2, %v3826
        %v3828 = vrot.slane %v3536, %v3827
        %v3829 = vlaneseq
        %v3830 = vshrl.u32 %v3829, 7
        %v3831 = vsub.s32 3, %v3830
        %v3832 = vrot.slane %v3536, %v3831
        %v3833 = vlaneseq
        %v3834 = vshrl.u32 %v3833, 7
        %v3835 = vsub.s32 4, %v3834
        %v3836 = vrot.slane %v3536, %v3835
        %v3837 = vlaneseq
        %v3838 = vshrl.u32 %v3837, 7
        %v3839 = vsub.s32 0, %v3838
        %v3840 = vrot.slane %v3540, %v3839
        %v3841 = vlaneseq
        %v3842 = vshrl.u32 %v3841, 7
        %v3843 = vsub.s32 1, %v3842
        %v3844 = vrot.slane %v3540, %v3843
        %v3845 = vlaneseq
        %v3846 = vshrl.u32 %v3845, 7
        %v3847 = vsub.s32 2, %v3846
        %v3848 = vrot.slane %v3540, %v3847
        %v3849 = vlaneseq
        %v3850 = vshrl.u32 %v3849, 7
        %v3851 = vsub.s32 3, %v3850
        %v3852 = vrot.slane %v3540, %v3851
        %v3853 = vlaneseq
        %v3854 = vshrl.u32 %v3853, 7
        %v3855 = vsub.s32 4, %v3854
        %v3856 = vrot.slane %v3540, %v3855
        %v3857 = vlaneseq
        %v3858 = vshrl.u32 %v3857, 7
        %v3859 = vsub.s32 0, %v3858
        %v3860 = vrot.slane %v3537, %v3859
        %v3861 = vlaneseq
        %v3862 = vshrl.u32 %v3861, 7
        %v3863 = vsub.s32 1, %v3862
        %v3864 = vrot.slane %v3537, %v3863
        %v3865 = vlaneseq
        %v3866 = vshrl.u32 %v3865, 7
        %v3867 = vsub.s32 2, %v3866
        %v3868 = vrot.slane %v3537, %v3867
        %v3869 = vlaneseq
        %v3870 = vshrl.u32 %v3869, 7
        %v3871 = vsub.s32 3, %v3870
        %v3872 = vrot.slane %v3537, %v3871
        %v3873 = vlaneseq
        %v3874 = vshrl.u32 %v3873, 7
        %v3875 = vsub.s32 4, %v3874
        %v3876 = vrot.slane %v3537, %v3875
        %v3877 = vlaneseq
        %v3878 = vshrl.u32 %v3877, 7
        %v3879 = vsub.s32 0, %v3878
        %v3880 = vrot.slane %v3541, %v3879
        %v3881 = vlaneseq
        %v3882 = vshrl.u32 %v3881, 7
        %v3883 = vsub.s32 1, %v3882
        %v3884 = vrot.slane %v3541, %v3883
        %v3885 = vlaneseq
        %v3886 = vshrl.u32 %v3885, 7
        %v3887 = vsub.s32 2, %v3886
        %v3888 = vrot.slane %v3541, %v3887
        %v3889 = vlaneseq
        %v3890 = vshrl.u32 %v3889, 7
        %v3891 = vsub.s32 3, %v3890
        %v3892 = vrot.slane %v3541, %v3891
        %v3893 = vlaneseq
        %v3894 = vshrl.u32 %v3893, 7
        %v3895 = vsub.s32 4, %v3894
        %v3896 = vrot.slane %v3541, %v3895
        %v3897 = vlaneseq
        %v3898 = vshrl.u32 %v3897, 7
        %v3899 = vsub.s32 0, %v3898
        %v3900 = vrot.slane %v3538, %v3899
        %v3901 = vlaneseq
        %v3902 = vshrl.u32 %v3901, 7
        %v3903 = vsub.s32 1, %v3902
        %v3904 = vrot.slane %v3538, %v3903
        %v3905 = vlaneseq
        %v3906 = vshrl.u32 %v3905, 7
        %v3907 = vsub.s32 2, %v3906
        %v3908 = vrot.slane %v3538, %v3907
        %v3909 = vlaneseq
        %v3910 = vshrl.u32 %v3909, 7
        %v3911 = vsub.s32 3, %v3910
        %v3912 = vrot.slane %v3538, %v3911
        %v3913 = vlaneseq
        %v3914 = vshrl.u32 %v3913, 7
        %v3915 = vsub.s32 4, %v3914
        %v3916 = vrot.slane %v3538, %v3915
        %v3917 = vlaneseq
        %v3918 = vshrl.u32 %v3917, 7
        %v3919 = vsub.s32 0, %v3918
        %v3920 = vrot.slane %v3542, %v3919
        %v3921 = vlaneseq
        %v3922 = vshrl.u32 %v3921, 7
        %v3923 = vsub.s32 1, %v3922
        %v3924 = vrot.slane %v3542, %v3923
        %v3925 = vlaneseq
        %v3926 = vshrl.u32 %v3925, 7
        %v3927 = vsub.s32 2, %v3926
        %v3928 = vrot.slane %v3542, %v3927
        %v3929 = vlaneseq
        %v3930 = vshrl.u32 %v3929, 7
        %v3931 = vsub.s32 3, %v3930
        %v3932 = vrot.slane %v3542, %v3931
        %v3933 = vlaneseq
        %v3934 = vshrl.u32 %v3933, 7
        %v3935 = vsub.s32 4, %v3934
        %v3936 = vrot.slane %v3542, %v3935
        %v3937 = vlaneseq
        %v3938 = vshrl.u32 %v3937, 7
        %v3939 = vsub.s32 0, %v3938
        %v3940 = vrot.slane %v3652, %v3939
        %v3941 = vlaneseq
        %v3942 = vshrl.u32 %v3941, 7
        %v3943 = vsub.s32 1, %v3942
        %v3944 = vrot.slane %v3652, %v3943
        %v3945 = vlaneseq
        %v3946 = vshrl.u32 %v3945, 7
        %v3947 = vsub.s32 2, %v3946
        %v3948 = vrot.slane %v3652, %v3947
        %v3949 = vlaneseq
        %v3950 = vshrl.u32 %v3949, 7
        %v3951 = vsub.s32 3, %v3950
        %v3952 = vrot.slane %v3652, %v3951
        %v3953 = vlaneseq
        %v3954 = vshrl.u32 %v3953, 7
        %v3955 = vsub.s32 4, %v3954
        %v3956 = vrot.slane %v3652, %v3955
        %v3957 = vlaneseq
        %v3958 = vshrl.u32 %v3957, 7
        %v3959 = vsub.s32 0, %v3958
        %v3960 = vrot.slane %v3656, %v3959
        %v3961 = vlaneseq
        %v3962 = vshrl.u32 %v3961, 7
        %v3963 = vsub.s32 1, %v3962
        %v3964 = vrot.slane %v3656, %v3963
        %v3965 = vlaneseq
        %v3966 = vshrl.u32 %v3965, 7
        %v3967 = vsub.s32 2, %v3966
        %v3968 = vrot.slane %v3656, %v3967
        %v3969 = vlaneseq
        %v3970 = vshrl.u32 %v3969, 7
        %v3971 = vsub.s32 3, %v3970
        %v3972 = vrot.slane %v3656, %v3971
        %v3973 = vlaneseq
        %v3974 = vshrl.u32 %v3973, 7
        %v3975 = vsub.s32 4, %v3974
        %v3976 = vrot.slane %v3656, %v3975
        %v3977 = vlaneseq
        %v3978 = vshrl.u32 %v3977, 7
        %v3979 = vsub.s32 0, %v3978
        %v3980 = vrot.slane %v3653, %v3979
        %v3981 = vlaneseq
        %v3982 = vshrl.u32 %v3981, 7
        %v3983 = vsub.s32 1, %v3982
        %v3984 = vrot.slane %v3653, %v3983
        %v3985 = vlaneseq
        %v3986 = vshrl.u32 %v3985, 7
        %v3987 = vsub.s32 2, %v3986
        %v3988 = vrot.slane %v3653, %v3987
        %v3989 = vlaneseq
        %v3990 = vshrl.u32 %v3989, 7
        %v3991 = vsub.s32 3, %v3990
        %v3992 = vrot.slane %v3653, %v3991
        %v3993 = vlaneseq
        %v3994 = vshrl.u32 %v3993, 7
        %v3995 = vsub.s32 4, %v3994
        %v3996 = vrot.slane %v3653, %v3995
        %v3997 = vlaneseq
        %v3998 = vshrl.u32 %v3997, 7
        %v3999 = vsub.s32 0, %v3998
        %v4000 = vrot.slane %v3657, %v3999
        %v4001 = vlaneseq
        %v4002 = vshrl.u32 %v4001, 7
        %v4003 = vsub.s32 1, %v4002
        %v4004 = vrot.slane %v3657, %v4003
        %v4005 = vlaneseq
        %v4006 = vshrl.u32 %v4005, 7
        %v4007 = vsub.s32 2, %v4006
        %v4008 = vrot.slane %v3657, %v4007
        %v4009 = vlaneseq
        %v4010 = vshrl.u32 %v4009, 7
        %v4011 = vsub.s32 3, %v4010
        %v4012 = vrot.slane %v3657, %v4011
        %v4013 = vlaneseq
        %v4014 = vshrl.u32 %v4013, 7
        %v4015 = vsub.s32 4, %v4014
        %v4016 = vrot.slane %v3657, %v4015
        %v4017 = vlaneseq
        %v4018 = vshrl.u32 %v4017, 7
        %v4019 = vsub.s32 0, %v4018
        %v4020 = vrot.slane %v3654, %v4019
        %v4021 = vlaneseq
        %v4022 = vshrl.u32 %v4021, 7
        %v4023 = vsub.s32 1, %v4022
        %v4024 = vrot.slane %v3654, %v4023
        %v4025 = vlaneseq
        %v4026 = vshrl.u32 %v4025, 7
        %v4027 = vsub.s32 2, %v4026
        %v4028 = vrot.slane %v3654, %v4027
        %v4029 = vlaneseq
        %v4030 = vshrl.u32 %v4029, 7
        %v4031 = vsub.s32 3, %v4030
        %v4032 = vrot.slane %v3654, %v4031
        %v4033 = vlaneseq
        %v4034 = vshrl.u32 %v4033, 7
        %v4035 = vsub.s32 4, %v4034
        %v4036 = vrot.slane %v3654, %v4035
        %v4037 = vlaneseq
        %v4038 = vshrl.u32 %v4037, 7
        %v4039 = vsub.s32 0, %v4038
        %v4040 = vrot.slane %v3658, %v4039
        %v4041 = vlaneseq
        %v4042 = vshrl.u32 %v4041, 7
        %v4043 = vsub.s32 1, %v4042
        %v4044 = vrot.slane %v3658, %v4043
        %v4045 = vlaneseq
        %v4046 = vshrl.u32 %v4045, 7
        %v4047 = vsub.s32 2, %v4046
        %v4048 = vrot.slane %v3658, %v4047
        %v4049 = vlaneseq
        %v4050 = vshrl.u32 %v4049, 7
        %v4051 = vsub.s32 3, %v4050
        %v4052 = vrot.slane %v3658, %v4051
        %v4053 = vlaneseq
        %v4054 = vshrl.u32 %v4053, 7
        %v4055 = vsub.s32 4, %v4054
        %v4056 = vrot.slane %v3658, %v4055
        %v4057 = vlaneseq
        %v4058 = vshrl.u32 %v4057, 7
        %v4059 = vsub.s32 0, %v4058
        %v4060 = vrot.slane %v3655, %v4059
        %v4061 = vlaneseq
        %v4062 = vshrl.u32 %v4061, 7
        %v4063 = vsub.s32 1, %v4062
        %v4064 = vrot.slane %v3655, %v4063
        %v4065 = vlaneseq
        %v4066 = vshrl.u32 %v4065, 7
        %v4067 = vsub.s32 2, %v4066
        %v4068 = vrot.slane %v3655, %v4067
        %v4069 = vlaneseq
        %v4070 = vshrl.u32 %v4069, 7
        %v4071 = vsub.s32 3, %v4070
        %v4072 = vrot.slane %v3655, %v4071
        %v4073 = vlaneseq
        %v4074 = vshrl.u32 %v4073, 7
        %v4075 = vsub.s32 4, %v4074
        %v4076 = vrot.slane %v3655, %v4075
        %v4077 = vlaneseq
        %v4078 = vshrl.u32 %v4077, 7
        %v4079 = vsub.s32 0, %v4078
        %v4080 = vrot.slane %v3659, %v4079
        %v4081 = vlaneseq
        %v4082 = vshrl.u32 %v4081, 7
        %v4083 = vsub.s32 1, %v4082
        %v4084 = vrot.slane %v3659, %v4083
        %v4085 = vlaneseq
        %v4086 = vshrl.u32 %v4085, 7
        %v4087 = vsub.s32 2, %v4086
        %v4088 = vrot.slane %v3659, %v4087
        %v4089 = vlaneseq
        %v4090 = vshrl.u32 %v4089, 7
        %v4091 = vsub.s32 3, %v4090
        %v4092 = vrot.slane %v3659, %v4091
        %v4093 = vlaneseq
        %v4094 = vshrl.u32 %v4093, 7
        %v4095 = vsub.s32 4, %v4094
        %v4096 = vrot.slane %v3659, %v4095
        %v4097 = vlaneseq
        %v4098 = vshrl.u32 %v4097, 7
        %v4099 = vsub.s32 0, %v4098
        %v4100 = vrot.slane %v3769, %v4099
        %v4101 = vlaneseq
        %v4102 = vshrl.u32 %v4101, 7
        %v4103 = vsub.s32 1, %v4102
        %v4104 = vrot.slane %v3769, %v4103
        %v4105 = vlaneseq
        %v4106 = vshrl.u32 %v4105, 7
        %v4107 = vsub.s32 2, %v4106
        %v4108 = vrot.slane %v3769, %v4107
        %v4109 = vlaneseq
        %v4110 = vshrl.u32 %v4109, 7
        %v4111 = vsub.s32 3, %v4110
        %v4112 = vrot.slane %v3769, %v4111
        %v4113 = vlaneseq
        %v4114 = vshrl.u32 %v4113, 7
        %v4115 = vsub.s32 4, %v4114
        %v4116 = vrot.slane %v3769, %v4115
        %v4117 = vlaneseq
        %v4118 = vshrl.u32 %v4117, 7
        %v4119 = vsub.s32 0, %v4118
        %v4120 = vrot.slane %v3773, %v4119
        %v4121 = vlaneseq
        %v4122 = vshrl.u32 %v4121, 7
        %v4123 = vsub.s32 1, %v4122
        %v4124 = vrot.slane %v3773, %v4123
        %v4125 = vlaneseq
        %v4126 = vshrl.u32 %v4125, 7
        %v4127 = vsub.s32 2, %v4126
        %v4128 = vrot.slane %v3773, %v4127
        %v4129 = vlaneseq
        %v4130 = vshrl.u32 %v4129, 7
        %v4131 = vsub.s32 3, %v4130
        %v4132 = vrot.slane %v3773, %v4131
        %v4133 = vlaneseq
        %v4134 = vshrl.u32 %v4133, 7
        %v4135 = vsub.s32 4, %v4134
        %v4136 = vrot.slane %v3773, %v4135
        %v4137 = vlaneseq
        %v4138 = vshrl.u32 %v4137, 7
        %v4139 = vsub.s32 0, %v4138
        %v4140 = vrot.slane %v3770, %v4139
        %v4141 = vlaneseq
        %v4142 = vshrl.u32 %v4141, 7
        %v4143 = vsub.s32 1, %v4142
        %v4144 = vrot.slane %v3770, %v4143
        %v4145 = vlaneseq
        %v4146 = vshrl.u32 %v4145, 7
        %v4147 = vsub.s32 2, %v4146
        %v4148 = vrot.slane %v3770, %v4147
        %v4149 = vlaneseq
        %v4150 = vshrl.u32 %v4149, 7
        %v4151 = vsub.s32 3, %v4150
        %v4152 = vrot.slane %v3770, %v4151
        %v4153 = vlaneseq
        %v4154 = vshrl.u32 %v4153, 7
        %v4155 = vsub.s32 4, %v4154
        %v4156 = vrot.slane %v3770, %v4155
        %v4157 = vlaneseq
        %v4158 = vshrl.u32 %v4157, 7
        %v4159 = vsub.s32 0, %v4158
        %v4160 = vrot.slane %v3774, %v4159
        %v4161 = vlaneseq
        %v4162 = vshrl.u32 %v4161, 7
        %v4163 = vsub.s32 1, %v4162
        %v4164 = vrot.slane %v3774, %v4163
        %v4165 = vlaneseq
        %v4166 = vshrl.u32 %v4165, 7
        %v4167 = vsub.s32 2, %v4166
        %v4168 = vrot.slane %v3774, %v4167
        %v4169 = vlaneseq
        %v4170 = vshrl.u32 %v4169, 7
        %v4171 = vsub.s32 3, %v4170
        %v4172 = vrot.slane %v3774, %v4171
        %v4173 = vlaneseq
        %v4174 = vshrl.u32 %v4173, 7
        %v4175 = vsub.s32 4, %v4174
        %v4176 = vrot.slane %v3774, %v4175
        %v4177 = vlaneseq
        %v4178 = vshrl.u32 %v4177, 7
        %v4179 = vsub.s32 0, %v4178
        %v4180 = vrot.slane %v3771, %v4179
        %v4181 = vlaneseq
        %v4182 = vshrl.u32 %v4181, 7
        %v4183 = vsub.s32 1, %v4182
        %v4184 = vrot.slane %v3771, %v4183
        %v4185 = vlaneseq
        %v4186 = vshrl.u32 %v4185, 7
        %v4187 = vsub.s32 2, %v4186
        %v4188 = vrot.slane %v3771, %v4187
        %v4189 = vlaneseq
        %v4190 = vshrl.u32 %v4189, 7
        %v4191 = vsub.s32 3, %v4190
        %v4192 = vrot.slane %v3771, %v4191
        %v4193 = vlaneseq
        %v4194 = vshrl.u32 %v4193, 7
        %v4195 = vsub.s32 4, %v4194
        %v4196 = vrot.slane %v3771, %v4195
        %v4197 = vlaneseq
        %v4198 = vshrl.u32 %v4197, 7
        %v4199 = vsub.s32 0, %v4198
        %v4200 = vrot.slane %v3775, %v4199
        %v4201 = vlaneseq
        %v4202 = vshrl.u32 %v4201, 7
        %v4203 = vsub.s32 1, %v4202
        %v4204 = vrot.slane %v3775, %v4203
        %v4205 = vlaneseq
        %v4206 = vshrl.u32 %v4205, 7
        %v4207 = vsub.s32 2, %v4206
        %v4208 = vrot.slane %v3775, %v4207
        %v4209 = vlaneseq
        %v4210 = vshrl.u32 %v4209, 7
        %v4211 = vsub.s32 3, %v4210
        %v4212 = vrot.slane %v3775, %v4211
        %v4213 = vlaneseq
        %v4214 = vshrl.u32 %v4213, 7
        %v4215 = vsub.s32 4, %v4214
        %v4216 = vrot.slane %v3775, %v4215
        %v4217 = vlaneseq
        %v4218 = vshrl.u32 %v4217, 7
        %v4219 = vsub.s32 0, %v4218
        %v4220 = vrot.slane %v3772, %v4219
        %v4221 = vlaneseq
        %v4222 = vshrl.u32 %v4221, 7
        %v4223 = vsub.s32 1, %v4222
        %v4224 = vrot.slane %v3772, %v4223
        %v4225 = vlaneseq
        %v4226 = vshrl.u32 %v4225, 7
        %v4227 = vsub.s32 2, %v4226
        %v4228 = vrot.slane %v3772, %v4227
        %v4229 = vlaneseq
        %v4230 = vshrl.u32 %v4229, 7
        %v4231 = vsub.s32 3, %v4230
        %v4232 = vrot.slane %v3772, %v4231
        %v4233 = vlaneseq
        %v4234 = vshrl.u32 %v4233, 7
        %v4235 = vsub.s32 4, %v4234
        %v4236 = vrot.slane %v3772, %v4235
        %v4237 = vlaneseq
        %v4238 = vshrl.u32 %v4237, 7
        %v4239 = vsub.s32 0, %v4238
        %v4240 = vrot.slane %v3776, %v4239
        %v4241 = vlaneseq
        %v4242 = vshrl.u32 %v4241, 7
        %v4243 = vsub.s32 1, %v4242
        %v4244 = vrot.slane %v3776, %v4243
        %v4245 = vlaneseq
        %v4246 = vshrl.u32 %v4245, 7
        %v4247 = vsub.s32 2, %v4246
        %v4248 = vrot.slane %v3776, %v4247
        %v4249 = vlaneseq
        %v4250 = vshrl.u32 %v4249, 7
        %v4251 = vsub.s32 3, %v4250
        %v4252 = vrot.slane %v3776, %v4251
        %v4253 = vlaneseq
        %v4254 = vshrl.u32 %v4253, 7
        %v4255 = vsub.s32 4, %v4254
        %v4256 = vrot.slane %v3776, %v4255
        %v4377 = vmul.f32 %v3780, %v1920
        %v4378 = vmul.f32 %v3784, %v1921
        %v4379 = vmul.f32 %v3788, %v1922
        %v4380 = vmul.f32 %v3792, %v1923
        %v4381 = vmul.f32 %v3796, %v1924
        %v4382 = vmul.f32 %v3800, %v1925
        %v4383 = vmul.f32 %v3804, %v1926
        %v4384 = vmul.f32 %v3808, %v1927
        %v4385 = vmul.f32 %v3812, %v1928
        %v4386 = vmul.f32 %v3816, %v1929
        %v4387 = vmul.f32 %v3820, %v1930
        %v4388 = vmul.f32 %v3824, %v1931
        %v4389 = vmul.f32 %v3828, %v1932
        %v4390 = vmul.f32 %v3832, %v1933
        %v4391 = vmul.f32 %v3836, %v1934
        %v4392 = vmul.f32 %v3840, %v1935
        %v4393 = vmul.f32 %v3844, %v1936
        %v4394 = vmul.f32 %v3848, %v1937
        %v4395 = vmul.f32 %v3852, %v1938
        %v4396 = vmul.f32 %v3856, %v1939
        %v4397 = vmul.f32 %v3860, %v1940
        %v4398 = vmul.f32 %v3864, %v1941
        %v4399 = vmul.f32 %v3868, %v1942
        %v4400 = vmul.f32 %v3872, %v1943
        %v4401 = vmul.f32 %v3876, %v1944
        %v4402 = vmul.f32 %v3880, %v1945
        %v4403 = vmul.f32 %v3884, %v1946
        %v4404 = vmul.f32 %v3888, %v1947
        %v4405 = vmul.f32 %v3892, %v1948
        %v4406 = vmul.f32 %v3896, %v1949
        %v4407 = vmul.f32 %v3900, %v1950
        %v4408 = vmul.f32 %v3904, %v1951
        %v4409 = vmul.f32 %v3908, %v1952
        %v4410 = vmul.f32 %v3912, %v1953
        %v4411 = vmul.f32 %v3916, %v1954
        %v4412 = vmul.f32 %v3920, %v1955
        %v4413 = vmul.f32 %v3924, %v1956
        %v4414 = vmul.f32 %v3928, %v1957
        %v4415 = vmul.f32 %v3932, %v1958
        %v4416 = vmul.f32 %v3936, %v1959
        %v4417 = vmul.f32 %v3940, %v1960
        %v4418 = vmul.f32 %v3944, %v1961
        %v4419 = vmul.f32 %v3948, %v1962
        %v4420 = vmul.f32 %v3952, %v1963
        %v4421 = vmul.f32 %v3956, %v1964
        %v4422 = vmul.f32 %v3960, %v1965
        %v4423 = vmul.f32 %v3964, %v1966
        %v4424 = vmul.f32 %v3968, %v1967
        %v4425 = vmul.f32 %v3972, %v1968
        %v4426 = vmul.f32 %v3976, %v1969
        %v4427 = vmul.f32 %v3980, %v1970
        %v4428 = vmul.f32 %v3984, %v1971
        %v4429 = vmul.f32 %v3988, %v1972
        %v4430 = vmul.f32 %v3992, %v1973
        %v4431 = vmul.f32 %v3996, %v1974
        %v4432 = vmul.f32 %v4000, %v1975
        %v4433 = vmul.f32 %v4004, %v1976
        %v4434 = vmul.f32 %v4008, %v1977
        %v4435 = vmul.f32 %v4012, %v1978
        %v4436 = vmul.f32 %v4016, %v1979
        %v4437 = vmul.f32 %v4020, %v1980
        %v4438 = vmul.f32 %v4024, %v1981
        %v4439 = vmul.f32 %v4028, %v1982
        %v4440 = vmul.f32 %v4032, %v1983
        %v4441 = vmul.f32 %v4036, %v1984
        %v4442 = vmul.f32 %v4040, %v1985
        %v4443 = vmul.f32 %v4044, %v1986
        %v4444 = vmul.f32 %v4048, %v1987
        %v4445 = vmul.f32 %v4052, %v1988
        %v4446 = vmul.f32 %v4056, %v1989
        %v4447 = vmul.f32 %v4060, %v1990
        %v4448 = vmul.f32 %v4064, %v1991
        %v4449 = vmul.f32 %v4068, %v1992
        %v4450 = vmul.f32 %v4072, %v1993
        %v4451 = vmul.f32 %v4076, %v1994
        %v4452 = vmul.f32 %v4080, %v1995
        %v4453 = vmul.f32 %v4084, %v1996
        %v4454 = vmul.f32 %v4088, %v1997
        %v4455 = vmul.f32 %v4092, %v1998
        %v4456 = vmul.f32 %v4096, %v1999
        %v4457 = vmul.f32 %v4100, %v2000
        %v4458 = vmul.f32 %v4104, %v2001
        %v4459 = vmul.f32 %v4108, %v2002
        %v4460 = vmul.f32 %v4112, %v2003
        %v4461 = vmul.f32 %v4116, %v2004
        %v4462 = vmul.f32 %v4120, %v2005
        %v4463 = vmul.f32 %v4124, %v2006
        %v4464 = vmul.f32 %v4128, %v2007
        %v4465 = vmul.f32 %v4132, %v2008
        %v4466 = vmul.f32 %v4136, %v2009
        %v4467 = vmul.f32 %v4140, %v2010
        %v4468 = vmul.f32 %v4144, %v2011
        %v4469 = vmul.f32 %v4148, %v2012
        %v4470 = vmul.f32 %v4152, %v2013
        %v4471 = vmul.f32 %v4156, %v2014
        %v4472 = vmul.f32 %v4160, %v2015
        %v4473 = vmul.f32 %v4164, %v2016
        %v4474 = vmul.f32 %v4168, %v2017
        %v4475 = vmul.f32 %v4172, %v2018
        %v4476 = vmul.f32 %v4176, %v2019
        %v4477 = vmul.f32 %v4180, %v2020
        %v4478 = vmul.f32 %v4184, %v2021
        %v4479 = vmul.f32 %v4188, %v2022
        %v4480 = vmul.f32 %v4192, %v2023
        %v4481 = vmul.f32 %v4196, %v2024
        %v4482 = vmul.f32 %v4200, %v2025
        %v4483 = vmul.f32 %v4204, %v2026
        %v4484 = vmul.f32 %v4208, %v2027
        %v4485 = vmul.f32 %v4212, %v2028
        %v4486 = vmul.f32 %v4216, %v2029
        %v4487 = vmul.f32 %v4220, %v2030
        %v4488 = vmul.f32 %v4224, %v2031
        %v4489 = vmul.f32 %v4228, %v2032
        %v4490 = vmul.f32 %v4232, %v2033
        %v4491 = vmul.f32 %v4236, %v2034
        %v4492 = vmul.f32 %v4240, %v2035
        %v4493 = vmul.f32 %v4244, %v2036
        %v4494 = vmul.f32 %v4248, %v2037
        %v4495 = vmul.f32 %v4252, %v2038
        %v4496 = vmul.f32 %v4256, %v2039
        %v4497 = vld [vmem:[%s4] sm:$0xff]
        %v4498 = vld [vmem:[%s4 + $0x8] sm:$0xff]
        %v4499 = vld [vmem:[%s4 + $0x10] sm:$0x1]
        %v4500 = vld [vmem:[%s4 + $0x18] sm:$0x1]
        %v4501 = vld [vmem:[%s5] sm:$0xff]
        %v4502 = vld [vmem:[%s5 + $0x8] sm:$0x1]
        %4504 = vset.pattern.permute.xlu0 0
        %4505 = vperm.xlu0 %4504, %v4501
        %v4506 = vpop.permute.xlu0 %4505
        %4509 = vset.pattern.permute.xlu0 0
        %4510 = vperm.xlu0 %4509, %v4502
        %v4511 = vpop.permute.xlu0 %4510
        %vm4513 = vcmask 523264
        %v4515 = vsel %vm4513, %v4498, 0
        %v4518 = vsel %vm4513, %v4500, 0
        %4520 = vmatprep.subr.mxu0 %v4378
        %4521 = vmatpush1.msra.mxu0 %v4377
        %4522 = vmatprep.subr.mxu0 %v4383
        %4523 = vmatpush1.msra.mxu0 %v4382
        %4524 = vmatprep.subr.mxu0 %v4388
        %4525 = vmatpush1.msra.mxu0 %v4387
        %4526 = vmatprep.subr.mxu0 %v4393
        %4527 = vmatpush1.msra.mxu0 %v4392
        %4528 = vmatprep.subr.mxu0 %v4398
        %4529 = vmatpush1.msra.mxu0 %v4397
        %4530 = vmatprep.subr.mxu0 %v4403
        %4531 = vmatpush1.msra.mxu0 %v4402
        %4532 = vmatprep.subr.mxu0 %v4408
        %4533 = vmatpush1.msra.mxu0 %v4407
        %4534 = vmatprep.subr.mxu0 %v4413
        %4535 = vmatpush1.msra.mxu0 %v4412
        %4536 = vmatprep.subr.mxu0 %v4418
        %4537 = vmatpush1.msra.mxu0 %v4417
        %4538 = vmatprep.subr.mxu0 %v4423
        %4539 = vmatpush1.msra.mxu0 %v4422
        %4540 = vmatprep.subr.mxu0 %v4428
        %4541 = vmatpush1.msra.mxu0 %v4427
        %4542 = vmatprep.subr.mxu0 %v4433
        %4543 = vmatpush1.msra.mxu0 %v4432
        %4544 = vmatprep.subr.mxu0 %v4438
        %4545 = vmatpush1.msra.mxu0 %v4437
        %4546 = vmatprep.subr.mxu0 %v4443
        %4547 = vmatpush1.msra.mxu0 %v4442
        %4548 = vmatprep.subr.mxu0 %v4448
        %4549 = vmatpush1.msra.mxu0 %v4447
        %4550 = vmatprep.subr.mxu0 %v4453
        %4551 = vmatpush1.msra.mxu0 %v4452
        %4552 = vmatprep.subr.mxu0 %v4458
        %4553 = vmatpush1.msra.mxu0 %v4457
        %4554 = vmatprep.subr.mxu0 %v4463
        %4555 = vmatpush1.msra.mxu0 %v4462
        %4556 = vmatprep.subr.mxu0 %v4468
        %4557 = vmatpush1.msra.mxu0 %v4467
        %4558 = vmatprep.subr.mxu0 %v4473
        %4559 = vmatpush1.msra.mxu0 %v4472
        %4560 = vmatprep.subr.mxu0 %v4478
        %4561 = vmatpush1.msra.mxu0 %v4477
        %4562 = vmatprep.subr.mxu0 %v4483
        %4563 = vmatpush1.msra.mxu0 %v4482
        %4564 = vmatprep.subr.mxu0 %v4488
        %4565 = vmatpush1.msra.mxu0 %v4487
        %4566 = vmatprep.subr.mxu0 %v4493
        %4567 = vmatpush1.msra.mxu0 %v4492
        %4568 = vmatprep.subr.mxu0 0.0
        %4569 = vmatpush1.msra.mxu0 0.0
        %4570 = vmatprep.subr.mxu0 0.0
        %4571 = vmatpush1.msra.mxu0 0.0
        %4572 = vmatprep.subr.mxu0 0.0
        %4573 = vmatpush1.msra.mxu0 0.0
        %4574 = vmatprep.subr.mxu0 0.0
        %4575 = vmatpush1.msra.mxu0 0.0
        %4576 = vmatprep.subr.mxu0 0.0
        %4577 = vmatpush1.msra.mxu0 0.0
        %4578 = vmatprep.subr.mxu0 0.0
        %4579 = vmatpush1.msra.mxu0 0.0
        %4580 = vmatprep.subr.mxu0 0.0
        %4581 = vmatpush1.msra.mxu0 0.0
        %4582 = vmatprep.subr.mxu0 0.0
        %4583 = vmatpush1.msra.mxu0 0.0
        %4584 = vmatprep.mubr.f32.mxu0 %v4515
        %4585 = vmatmul.mubr.f32.gmra.mrb[0].mxu0 %v4497
        %v4586 = vpop.f32.mrb[0].mxu0
        %v4587 = vadd.f32 %v4506, %v4586
        %v4588 = vpop.f32.mrb[0].mxu0
        %v4589 = vadd.f32 %v4506, %v4588
        %4590 = vmatprep.mubr.f32.mxu0 %v4518
        %4591 = vmatmul.mubr.f32.gmra.mrb[0].mxu0 %v4499
        %v4592 = vpop.f32.mrb[0].mxu0
        %v4593 = vadd.f32 %v4511, %v4592
        %v4594 = vpop.f32.mrb[0].mxu0
        %v4595 = vadd.f32 %v4511, %v4594
        %4596 = vdwg.mxu0
        %4597 = vmatprep.subr.mxu0 %v4380
        %4598 = vmatpush1.msra.mxu0 %v4379
        %4599 = vmatprep.subr.mxu0 %v4385
        %4600 = vmatpush1.msra.mxu0 %v4384
        %4601 = vmatprep.subr.mxu0 %v4390
        %4602 = vmatpush1.msra.mxu0 %v4389
        %4603 = vmatprep.subr.mxu0 %v4395
        %4604 = vmatpush1.msra.mxu0 %v4394
        %4605 = vmatprep.subr.mxu0 %v4400
        %4606 = vmatpush1.msra.mxu0 %v4399
        %4607 = vmatprep.subr.mxu0 %v4405
        %4608 = vmatpush1.msra.mxu0 %v4404
        %4609 = vmatprep.subr.mxu0 %v4410
        %4610 = vmatpush1.msra.mxu0 %v4409
        %4611 = vmatprep.subr.mxu0 %v4415
        %4612 = vmatpush1.msra.mxu0 %v4414
        %4613 = vmatprep.subr.mxu0 %v4420
        %4614 = vmatpush1.msra.mxu0 %v4419
        %4615 = vmatprep.subr.mxu0 %v4425
        %4616 = vmatpush1.msra.mxu0 %v4424
        %4617 = vmatprep.subr.mxu0 %v4430
        %4618 = vmatpush1.msra.mxu0 %v4429
        %4619 = vmatprep.subr.mxu0 %v4435
        %4620 = vmatpush1.msra.mxu0 %v4434
        %4621 = vmatprep.subr.mxu0 %v4440
        %4622 = vmatpush1.msra.mxu0 %v4439
        %4623 = vmatprep.subr.mxu0 %v4445
        %4624 = vmatpush1.msra.mxu0 %v4444
        %4625 = vmatprep.subr.mxu0 %v4450
        %4626 = vmatpush1.msra.mxu0 %v4449
        %4627 = vmatprep.subr.mxu0 %v4455
        %4628 = vmatpush1.msra.mxu0 %v4454
        %4629 = vmatprep.subr.mxu0 %v4460
        %4630 = vmatpush1.msra.mxu0 %v4459
        %4631 = vmatprep.subr.mxu0 %v4465
        %4632 = vmatpush1.msra.mxu0 %v4464
        %4633 = vmatprep.subr.mxu0 %v4470
        %4634 = vmatpush1.msra.mxu0 %v4469
        %4635 = vmatprep.subr.mxu0 %v4475
        %4636 = vmatpush1.msra.mxu0 %v4474
        %4637 = vmatprep.subr.mxu0 %v4480
        %4638 = vmatpush1.msra.mxu0 %v4479
        %4639 = vmatprep.subr.mxu0 %v4485
        %4640 = vmatpush1.msra.mxu0 %v4484
        %4641 = vmatprep.subr.mxu0 %v4490
        %4642 = vmatpush1.msra.mxu0 %v4489
        %4643 = vmatprep.subr.mxu0 %v4495
        %4644 = vmatpush1.msra.mxu0 %v4494
        %4645 = vmatprep.subr.mxu0 0.0
        %4646 = vmatpush1.msra.mxu0 0.0
        %4647 = vmatprep.subr.mxu0 0.0
        %4648 = vmatpush1.msra.mxu0 0.0
        %4649 = vmatprep.subr.mxu0 0.0
        %4650 = vmatpush1.msra.mxu0 0.0
        %4651 = vmatprep.subr.mxu0 0.0
        %4652 = vmatpush1.msra.mxu0 0.0
        %4653 = vmatprep.subr.mxu0 0.0
        %4654 = vmatpush1.msra.mxu0 0.0
        %4655 = vmatprep.subr.mxu0 0.0
        %4656 = vmatpush1.msra.mxu0 0.0
        %4657 = vmatprep.subr.mxu0 0.0
        %4658 = vmatpush1.msra.mxu0 0.0
        %4659 = vmatprep.subr.mxu0 0.0
        %4660 = vmatpush1.msra.mxu0 0.0
        %4661 = vmatprep.mubr.f32.mxu0 %v4515
        %4662 = vmatmul.mubr.f32.gmra.mrb[0].mxu0 %v4497
        %v4663 = vpop.f32.mrb[0].mxu0
        %v4664 = vadd.f32 %v4506, %v4663
        %v4665 = vpop.f32.mrb[0].mxu0
        %v4666 = vadd.f32 %v4506, %v4665
        %4667 = vmatprep.mubr.f32.mxu0 %v4518
        %4668 = vmatmul.mubr.f32.gmra.mrb[0].mxu0 %v4499
        %v4669 = vpop.f32.mrb[0].mxu0
        %v4670 = vadd.f32 %v4511, %v4669
        %v4671 = vpop.f32.mrb[0].mxu0
        %v4672 = vadd.f32 %v4511, %v4671
        %4673 = vdwg.mxu0
        %4674 = vmatprep.subr.mxu0 0.0
        %4675 = vmatpush1.msra.mxu0 %v4381
        %4676 = vmatprep.subr.mxu0 0.0
        %4677 = vmatpush1.msra.mxu0 %v4386
        %4678 = vmatprep.subr.mxu0 0.0
        %4679 = vmatpush1.msra.mxu0 %v4391
        %4680 = vmatprep.subr.mxu0 0.0
        %4681 = vmatpush1.msra.mxu0 %v4396
        %4682 = vmatprep.subr.mxu0 0.0
        %4683 = vmatpush1.msra.mxu0 %v4401
        %4684 = vmatprep.subr.mxu0 0.0
        %4685 = vmatpush1.msra.mxu0 %v4406
        %4686 = vmatprep.subr.mxu0 0.0
        %4687 = vmatpush1.msra.mxu0 %v4411
        %4688 = vmatprep.subr.mxu0 0.0
        %4689 = vmatpush1.msra.mxu0 %v4416
        %4690 = vmatprep.subr.mxu0 0.0
        %4691 = vmatpush1.msra.mxu0 %v4421
        %4692 = vmatprep.subr.mxu0 0.0
        %4693 = vmatpush1.msra.mxu0 %v4426
        %4694 = vmatprep.subr.mxu0 0.0
        %4695 = vmatpush1.msra.mxu0 %v4431
        %4696 = vmatprep.subr.mxu0 0.0
        %4697 = vmatpush1.msra.mxu0 %v4436
        %4698 = vmatprep.subr.mxu0 0.0
        %4699 = vmatpush1.msra.mxu0 %v4441
        %4700 = vmatprep.subr.mxu0 0.0
        %4701 = vmatpush1.msra.mxu0 %v4446
        %4702 = vmatprep.subr.mxu0 0.0
        %4703 = vmatpush1.msra.mxu0 %v4451
        %4704 = vmatprep.subr.mxu0 0.0
        %4705 = vmatpush1.msra.mxu0 %v4456
        %4706 = vmatprep.subr.mxu0 0.0
        %4707 = vmatpush1.msra.mxu0 %v4461
        %4708 = vmatprep.subr.mxu0 0.0
        %4709 = vmatpush1.msra.mxu0 %v4466
        %4710 = vmatprep.subr.mxu0 0.0
        %4711 = vmatpush1.msra.mxu0 %v4471
        %4712 = vmatprep.subr.mxu0 0.0
        %4713 = vmatpush1.msra.mxu0 %v4476
        %4714 = vmatprep.subr.mxu0 0.0
        %4715 = vmatpush1.msra.mxu0 %v4481
        %4716 = vmatprep.subr.mxu0 0.0
        %4717 = vmatpush1.msra.mxu0 %v4486
        %4718 = vmatprep.subr.mxu0 0.0
        %4719 = vmatpush1.msra.mxu0 %v4491
        %4720 = vmatprep.subr.mxu0 0.0
        %4721 = vmatpush1.msra.mxu0 %v4496
        %4722 = vmatprep.subr.mxu0 0.0
        %4723 = vmatpush1.msra.mxu0 0.0
        %4724 = vmatprep.subr.mxu0 0.0
        %4725 = vmatpush1.msra.mxu0 0.0
        %4726 = vmatprep.subr.mxu0 0.0
        %4727 = vmatpush1.msra.mxu0 0.0
        %4728 = vmatprep.subr.mxu0 0.0
        %4729 = vmatpush1.msra.mxu0 0.0
        %4730 = vmatprep.subr.mxu0 0.0
        %4731 = vmatpush1.msra.mxu0 0.0
        %4732 = vmatprep.subr.mxu0 0.0
        %4733 = vmatpush1.msra.mxu0 0.0
        %4734 = vmatprep.subr.mxu0 0.0
        %4735 = vmatpush1.msra.mxu0 0.0
        %4736 = vmatprep.subr.mxu0 0.0
        %4737 = vmatpush1.msra.mxu0 0.0
        %4738 = vmatprep.mubr.f32.mxu0 %v4515
        %4739 = vmatmul.mubr.f32.gmra.mrb[0].mxu0 %v4497
        %v4740 = vpop.f32.mrb[0].mxu0
        %v4741 = vadd.f32 %v4506, %v4740
        %v4742 = vpop.f32.mrb[0].mxu0
        %4743 = vmatprep.mubr.f32.mxu0 %v4518
        %4744 = vmatmul.mubr.f32.gmra.mrb[0].mxu0 %v4499
        %v4745 = vpop.f32.mrb[0].mxu0
        %v4746 = vadd.f32 %v4511, %v4745
        %v4747 = vpop.f32.mrb[0].mxu0
        %4748 = vdwg.mxu0
        %v4749 = vmul.f32 %v4587, %v4587
        %v4750 = vmul.f32 %v4589, %v4589
        %v4751 = vmul.f32 %v4664, %v4664
        %v4752 = vmul.f32 %v4666, %v4666
        %v4753 = vmul.f32 %v4741, %v4741
        %v4754 = vmul.f32 %v4593, %v4593
        %v4755 = vmul.f32 %v4595, %v4595
        %v4756 = vmul.f32 %v4670, %v4670
        %v4757 = vmul.f32 %v4672, %v4672
        %v4758 = vmul.f32 %v4746, %v4746
        %v4759 = vmul.f32 %v4749, %v4587
        %v4760 = vmul.f32 %v4750, %v4589
        %v4761 = vmul.f32 %v4751, %v4664
        %v4762 = vmul.f32 %v4752, %v4666
        %v4763 = vmul.f32 %v4753, %v4741
        %v4764 = vmul.f32 %v4754, %v4593
        %v4765 = vmul.f32 %v4755, %v4595
        %v4766 = vmul.f32 %v4756, %v4670
        %v4767 = vmul.f32 %v4757, %v4672
        %v4768 = vmul.f32 %v4758, %v4746
        %v4769 = vmul.f32 %v4759, 0.044715
        %v4770 = vmul.f32 %v4760, 0.044715
        %v4771 = vmul.f32 %v4761, 0.044715
        %v4772 = vmul.f32 %v4762, 0.044715
        %v4773 = vmul.f32 %v4763, 0.044715
        %v4774 = vmul.f32 %v4764, 0.044715
        %v4775 = vmul.f32 %v4765, 0.044715
        %v4776 = vmul.f32 %v4766, 0.044715
        %v4777 = vmul.f32 %v4767, 0.044715
        %v4778 = vmul.f32 %v4768, 0.044715
        %v4779 = vadd.f32 %v4587, %v4769
        %v4780 = vadd.f32 %v4589, %v4770
        %v4781 = vadd.f32 %v4664, %v4771
        %v4782 = vadd.f32 %v4666, %v4772
        %v4783 = vadd.f32 %v4741, %v4773
        %v4784 = vadd.f32 %v4593, %v4774
        %v4785 = vadd.f32 %v4595, %v4775
        %v4786 = vadd.f32 %v4670, %v4776
        %v4787 = vadd.f32 %v4672, %v4777
        %v4788 = vadd.f32 %v4746, %v4778
        %v4789 = vmul.f32 %v4779, 0.7978846
        %v4790 = vmul.f32 %v4780, 0.7978846
        %v4791 = vmul.f32 %v4781, 0.7978846
        %v4792 = vmul.f32 %v4782, 0.7978846
        %v4793 = vmul.f32 %v4783, 0.7978846
        %v4794 = vmul.f32 %v4784, 0.7978846
        %v4795 = vmul.f32 %v4785, 0.7978846
        %v4796 = vmul.f32 %v4786, 0.7978846
        %v4797 = vmul.f32 %v4787, 0.7978846
        %v4798 = vmul.f32 %v4788, 0.7978846
        %v4799 = vmul.f32 %v4587, 0.5
        %v4800 = vmul.f32 %v4589, 0.5
        %v4801 = vmul.f32 %v4664, 0.5
        %v4802 = vmul.f32 %v4666, 0.5
        %v4803 = vmul.f32 %v4741, 0.5
        %v4804 = vmul.f32 %v4593, 0.5
        %v4805 = vmul.f32 %v4595, 0.5
        %v4806 = vmul.f32 %v4670, 0.5
        %v4807 = vmul.f32 %v4672, 0.5
        %v4808 = vmul.f32 %v4746, 0.5
        %v4809 = vtanh.pop %v4789
        %v4810 = vtanh.pop %v4790
        %v4811 = vtanh.pop %v4791
        %v4812 = vtanh.pop %v4792
        %v4813 = vtanh.pop %v4793
        %v4814 = vtanh.pop %v4794
        %v4815 = vtanh.pop %v4795
        %v4816 = vtanh.pop %v4796
        %v4817 = vtanh.pop %v4797
        %v4818 = vtanh.pop %v4798
        %v4819 = vadd.f32 %v4809, 1.0
        %v4820 = vadd.f32 %v4810, 1.0
        %v4821 = vadd.f32 %v4811, 1.0
        %v4822 = vadd.f32 %v4812, 1.0
        %v4823 = vadd.f32 %v4813, 1.0
        %v4824 = vadd.f32 %v4814, 1.0
        %v4825 = vadd.f32 %v4815, 1.0
        %v4826 = vadd.f32 %v4816, 1.0
        %v4827 = vadd.f32 %v4817, 1.0
        %v4828 = vadd.f32 %v4818, 1.0
        %v4829 = vmul.f32 %v4799, %v4819
        %v4830 = vmul.f32 %v4800, %v4820
        %v4831 = vmul.f32 %v4801, %v4821
        %v4832 = vmul.f32 %v4802, %v4822
        %v4833 = vmul.f32 %v4803, %v4823
        %v4834 = vmul.f32 %v4804, %v4824
        %v4835 = vmul.f32 %v4805, %v4825
        %v4836 = vmul.f32 %v4806, %v4826
        %v4837 = vmul.f32 %v4807, %v4827
        %v4838 = vmul.f32 %v4808, %v4828
        %v4839 = vld [vmem:[%s6] sm:$0xff]
        %v4840 = vld [vmem:[%s6 + $0x8] sm:$0xff]
        %v4841 = vld [vmem:[%s6 + $0x10] sm:$0xff]
        %v4842 = vld [vmem:[%s6 + $0x18] sm:$0xff]
        %v4843 = vld [vmem:[%s6 + $0x20] sm:$0xff]
        %v4844 = vld [vmem:[%s6 + $0x28] sm:$0x1]
        %v4845 = vld [vmem:[%s6 + $0x30] sm:$0x1]
        %v4846 = vld [vmem:[%s6 + $0x38] sm:$0x1]
        %v4847 = vld [vmem:[%s6 + $0x40] sm:$0x1]
        %v4848 = vld [vmem:[%s6 + $0x48] sm:$0x1]
        %v4849 = vmul.f32 %v4839, %v4829
        %v4850 = vmul.f32 %v4840, %v4830
        %v4851 = vmul.f32 %v4841, %v4831
        %v4852 = vmul.f32 %v4842, %v4832
        %v4853 = vmul.f32 %v4843, %v4833
        %v4854 = vmul.f32 %v4844, %v4834
        %v4855 = vmul.f32 %v4845, %v4835
        %v4856 = vmul.f32 %v4846, %v4836
        %v4857 = vmul.f32 %v4847, %v4837
        %v4858 = vmul.f32 %v4848, %v4838
        %vm4859 = vcmask 1040384
        %v4860 = vsel %vm4859, %v4854, 0.0
        %v4861 = vadd.f32 %v4849, %v4860
        %v4862 = vrot.slane %v4861, 4
        %v4863 = vadd.f32 %v4861, %v4862
        %v4864 = vrot.slane %v4863, 2
        %v4865 = vadd.f32 %v4863, %v4864
        %v4866 = vrot.slane %v4865, 1
        %v4867 = vadd.f32 %v4865, %v4866
        %v4868 = vsel %vm4859, %v4855, 0.0
        %v4869 = vadd.f32 %v4850, %v4868
        %v4870 = vrot.slane %v4869, 4
        %v4871 = vadd.f32 %v4869, %v4870
        %v4872 = vrot.slane %v4871, 2
        %v4873 = vadd.f32 %v4871, %v4872
        %v4874 = vrot.slane %v4873, 1
        %v4875 = vadd.f32 %v4873, %v4874
        %v4876 = vsel %vm4859, %v4856, 0.0
        %v4877 = vadd.f32 %v4851, %v4876
        %v4878 = vrot.slane %v4877, 4
        %v4879 = vadd.f32 %v4877, %v4878
        %v4880 = vrot.slane %v4879, 2
        %v4881 = vadd.f32 %v4879, %v4880
        %v4882 = vrot.slane %v4881, 1
        %v4883 = vadd.f32 %v4881, %v4882
        %v4884 = vsel %vm4859, %v4857, 0.0
        %v4885 = vadd.f32 %v4852, %v4884
        %v4886 = vrot.slane %v4885, 4
        %v4887 = vadd.f32 %v4885, %v4886
        %v4888 = vrot.slane %v4887, 2
        %v4889 = vadd.f32 %v4887, %v4888
        %v4890 = vrot.slane %v4889, 1
        %v4891 = vadd.f32 %v4889, %v4890
        %v4892 = vsel %vm4859, %v4858, 0.0
        %v4893 = vadd.f32 %v4853, %v4892
        %v4894 = vrot.slane %v4893, 4
        %v4895 = vadd.f32 %v4893, %v4894
        %v4896 = vrot.slane %v4895, 2
        %v4897 = vadd.f32 %v4895, %v4896
        %v4898 = vrot.slane %v4897, 1
        %v4899 = vadd.f32 %v4897, %v4898
        %s4900 = scalar_lea.vmem %s6, 80
        %v4901 = vld [vmem:[%s4900] sm:$0xff]
        %v4902 = vld [vmem:[%s4900 + $0x8] sm:$0xff]
        %v4903 = vld [vmem:[%s4900 + $0x10] sm:$0xff]
        %v4904 = vld [vmem:[%s4900 + $0x18] sm:$0xff]
        %v4905 = vld [vmem:[%s4900 + $0x20] sm:$0xff]
        %v4906 = vld [vmem:[%s4900 + $0x28] sm:$0x1]
        %v4907 = vld [vmem:[%s4900 + $0x30] sm:$0x1]
        %v4908 = vld [vmem:[%s4900 + $0x38] sm:$0x1]
        %v4909 = vld [vmem:[%s4900 + $0x40] sm:$0x1]
        %v4910 = vld [vmem:[%s4900 + $0x48] sm:$0x1]
        %v4911 = vmul.f32 %v4901, %v4829
        %v4912 = vmul.f32 %v4902, %v4830
        %v4913 = vmul.f32 %v4903, %v4831
        %v4914 = vmul.f32 %v4904, %v4832
        %v4915 = vmul.f32 %v4905, %v4833
        %v4916 = vmul.f32 %v4906, %v4834
        %v4917 = vmul.f32 %v4907, %v4835
        %v4918 = vmul.f32 %v4908, %v4836
        %v4919 = vmul.f32 %v4909, %v4837
        %v4920 = vmul.f32 %v4910, %v4838
        %v4921 = vsel %vm4859, %v4916, 0.0
        %v4922 = vadd.f32 %v4911, %v4921
        %v4923 = vrot.slane %v4922, 4
        %v4924 = vadd.f32 %v4922, %v4923
        %v4925 = vrot.slane %v4924, 2
        %v4926 = vadd.f32 %v4924, %v4925
        %v4927 = vrot.slane %v4926, 1
        %v4928 = vadd.f32 %v4926, %v4927
        %v4929 = vsel %vm4859, %v4917, 0.0
        %v4930 = vadd.f32 %v4912, %v4929
        %v4931 = vrot.slane %v4930, 4
        %v4932 = vadd.f32 %v4930, %v4931
        %v4933 = vrot.slane %v4932, 2
        %v4934 = vadd.f32 %v4932, %v4933
        %v4935 = vrot.slane %v4934, 1
        %v4936 = vadd.f32 %v4934, %v4935
        %v4937 = vsel %vm4859, %v4918, 0.0
        %v4938 = vadd.f32 %v4913, %v4937
        %v4939 = vrot.slane %v4938, 4
        %v4940 = vadd.f32 %v4938, %v4939
        %v4941 = vrot.slane %v4940, 2
        %v4942 = vadd.f32 %v4940, %v4941
        %v4943 = vrot.slane %v4942, 1
        %v4944 = vadd.f32 %v4942, %v4943
        %v4945 = vsel %vm4859, %v4919, 0.0
        %v4946 = vadd.f32 %v4914, %v4945
        %v4947 = vrot.slane %v4946, 4
        %v4948 = vadd.f32 %v4946, %v4947
        %v4949 = vrot.slane %v4948, 2
        %v4950 = vadd.f32 %v4948, %v4949
        %v4951 = vrot.slane %v4950, 1
        %v4952 = vadd.f32 %v4950, %v4951
        %v4953 = vsel %vm4859, %v4920, 0.0
        %v4954 = vadd.f32 %v4915, %v4953
        %v4955 = vrot.slane %v4954, 4
        %v4956 = vadd.f32 %v4954, %v4955
        %v4957 = vrot.slane %v4956, 2
        %v4958 = vadd.f32 %v4956, %v4957
        %v4959 = vrot.slane %v4958, 1
        %v4960 = vadd.f32 %v4958, %v4959
        %v4961 = vsel %vm4859, %v4867, %v4928
        %v4962 = vsel %vm4859, %v4875, %v4936
        %v4963 = vsel %vm4859, %v4883, %v4944
        %v4964 = vsel %vm4859, %v4891, %v4952
        %v4965 = vsel %vm4859, %v4899, %v4960
        %v4966 = vld [vmem:[%s7] sm:$0xff]
        %v4967 = vld [vmem:[%s7 + $0x8] sm:$0xff]
        %v4968 = vld [vmem:[%s7 + $0x10] sm:$0xff]
        %v4969 = vld [vmem:[%s7 + $0x18] sm:$0xff]
        %v4970 = vld [vmem:[%s7 + $0x20] sm:$0xff]
        %v4971 = vld [vmem:[%s7 + $0x28] sm:$0xff]
        %v4972 = vld [vmem:[%s7 + $0x30] sm:$0xff]
        %v4973 = vld [vmem:[%s7 + $0x38] sm:$0xff]
        %v4974 = vld [vmem:[%s7 + $0x40] sm:$0xff]
        %v4975 = vld [vmem:[%s7 + $0x48] sm:$0xff]
        %v4976 = vld [vmem:[%s7 + $0x50] sm:$0xff]
        %v4977 = vld [vmem:[%s7 + $0x58] sm:$0xff]
        %v4978 = vld [vmem:[%s7 + $0x60] sm:$0xff]
        %v4979 = vld [vmem:[%s7 + $0x68] sm:$0xff]
        %v4980 = vld [vmem:[%s7 + $0x70] sm:$0xff]
        %v4981 = vld [vmem:[%s7 + $0x78] sm:$0xff]
        %v4982 = vld [vmem:[%s7 + $0x80] sm:$0xff]
        %v4983 = vld [vmem:[%s7 + $0x88] sm:$0xff]
        %v4984 = vld [vmem:[%s7 + $0x90] sm:$0xff]
        %v4985 = vld [vmem:[%s7 + $0x98] sm:$0xff]
        %v4986 = vld [vmem:[%s7 + $0xa0] sm:$0xff]
        %v4987 = vld [vmem:[%s7 + $0xa8] sm:$0xff]
        %v4988 = vld [vmem:[%s7 + $0xb0] sm:$0xff]
        %v4989 = vld [vmem:[%s7 + $0xb8] sm:$0xff]
        %v4990 = vld [vmem:[%s7 + $0xc0] sm:$0xff]
        %v4991 = vld [vmem:[%s7 + $0xc8] sm:$0xff]
        %v4992 = vld [vmem:[%s7 + $0xd0] sm:$0xff]
        %v4993 = vld [vmem:[%s7 + $0xd8] sm:$0xff]
        %v4994 = vld [vmem:[%s7 + $0xe0] sm:$0xff]
        %v4995 = vld [vmem:[%s7 + $0xe8] sm:$0xff]
        %v4996 = vld [vmem:[%s7 + $0xf0] sm:$0xff]
        %v4997 = vld [vmem:[%s7 + $0xf8] sm:$0xff]
        %v4998 = vld [vmem:[%s7 + $0x100] sm:$0xff]
        %v4999 = vld [vmem:[%s7 + $0x108] sm:$0xff]
        %v5000 = vld [vmem:[%s7 + $0x110] sm:$0xff]
        %v5001 = vld [vmem:[%s7 + $0x118] sm:$0xff]
        %v5002 = vld [vmem:[%s7 + $0x120] sm:$0xff]
        %v5003 = vld [vmem:[%s7 + $0x128] sm:$0xff]
        %v5004 = vld [vmem:[%s7 + $0x130] sm:$0xff]
        %v5005 = vld [vmem:[%s7 + $0x138] sm:$0xff]
        %v5006 = vld [vmem:[%s7 + $0x140] sm:$0xff]
        %v5007 = vld [vmem:[%s7 + $0x148] sm:$0xff]
        %v5008 = vld [vmem:[%s7 + $0x150] sm:$0xff]
        %v5009 = vld [vmem:[%s7 + $0x158] sm:$0xff]
        %v5010 = vld [vmem:[%s7 + $0x160] sm:$0xff]
        %v5011 = vld [vmem:[%s7 + $0x168] sm:$0xff]
        %v5012 = vld [vmem:[%s7 + $0x170] sm:$0xff]
        %v5013 = vld [vmem:[%s7 + $0x178] sm:$0xff]
        %v5014 = vld [vmem:[%s7 + $0x180] sm:$0xff]
        %v5015 = vld [vmem:[%s7 + $0x188] sm:$0xff]
        %v5016 = vld [vmem:[%s7 + $0x190] sm:$0xff]
        %v5017 = vld [vmem:[%s7 + $0x198] sm:$0xff]
        %v5018 = vld [vmem:[%s7 + $0x1a0] sm:$0xff]
        %v5019 = vld [vmem:[%s7 + $0x1a8] sm:$0xff]
        %v5020 = vld [vmem:[%s7 + $0x1b0] sm:$0xff]
        %v5021 = vld [vmem:[%s7 + $0x1b8] sm:$0xff]
        %v5022 = vld [vmem:[%s7 + $0x1c0] sm:$0xff]
        %v5023 = vld [vmem:[%s7 + $0x1c8] sm:$0xff]
        %v5024 = vld [vmem:[%s7 + $0x1d0] sm:$0xff]
        %v5025 = vld [vmem:[%s7 + $0x1d8] sm:$0xff]
        %v5026 = vld [vmem:[%s7 + $0x1e0] sm:$0xff]
        %v5027 = vld [vmem:[%s7 + $0x1e8] sm:$0xff]
        %v5028 = vld [vmem:[%s7 + $0x1f0] sm:$0xff]
        %v5029 = vld [vmem:[%s7 + $0x1f8] sm:$0xff]
        %v5030 = vld [vmem:[%s7 + $0x200] sm:$0xff]
        %v5031 = vld [vmem:[%s7 + $0x208] sm:$0xff]
        %v5032 = vld [vmem:[%s7 + $0x210] sm:$0xff]
        %v5033 = vld [vmem:[%s7 + $0x218] sm:$0xff]
        %v5034 = vld [vmem:[%s7 + $0x220] sm:$0xff]
        %v5035 = vld [vmem:[%s7 + $0x228] sm:$0xff]
        %v5036 = vld [vmem:[%s7 + $0x230] sm:$0xff]
        %v5037 = vld [vmem:[%s7 + $0x238] sm:$0xff]
        %v5038 = vld [vmem:[%s7 + $0x240] sm:$0xff]
        %v5039 = vld [vmem:[%s7 + $0x248] sm:$0xff]
        %v5040 = vld [vmem:[%s7 + $0x250] sm:$0xff]
        %v5041 = vld [vmem:[%s7 + $0x258] sm:$0xff]
        %v5042 = vld [vmem:[%s7 + $0x260] sm:$0xff]
        %v5043 = vld [vmem:[%s7 + $0x268] sm:$0xff]
        %v5044 = vld [vmem:[%s7 + $0x270] sm:$0xff]
        %v5045 = vld [vmem:[%s7 + $0x278] sm:$0xff]
        %v5046 = vld [vmem:[%s8] sm:$0x3]
        %5048 = vset.pattern.permute.xlu0 0
        %5049 = vperm.xlu0 %5048, %v5046
        %v5050 = vpop.permute.xlu0 %5049
        %5052 = vmatprep.subr.mxu0 0.0
        %5053 = vmatpush1.msra.mxu0 %v4966
        %5054 = vmatprep.subr.mxu0 0.0
        %5055 = vmatpush1.msra.mxu0 %v4967
        %5056 = vmatprep.subr.mxu0 0.0
        %5057 = vmatpush1.msra.mxu0 %v4968
        %5058 = vmatprep.subr.mxu0 0.0
        %5059 = vmatpush1.msra.mxu0 %v4969
        %5060 = vmatprep.subr.mxu0 0.0
        %5061 = vmatpush1.msra.mxu0 %v4970
        %5062 = vmatprep.subr.mxu0 0.0
        %5063 = vmatpush1.msra.mxu0 %v4971
        %5064 = vmatprep.subr.mxu0 0.0
        %5065 = vmatpush1.msra.mxu0 %v4972
        %5066 = vmatprep.subr.mxu0 0.0
        %5067 = vmatpush1.msra.mxu0 %v4973
        %5068 = vmatprep.subr.mxu0 0.0
        %5069 = vmatpush1.msra.mxu0 %v4974
        %5070 = vmatprep.subr.mxu0 0.0
        %5071 = vmatpush1.msra.mxu0 %v4975
        %5072 = vmatprep.subr.mxu0 0.0
        %5073 = vmatpush1.msra.mxu0 %v4976
        %5074 = vmatprep.subr.mxu0 0.0
        %5075 = vmatpush1.msra.mxu0 %v4977
        %5076 = vmatprep.subr.mxu0 0.0
        %5077 = vmatpush1.msra.mxu0 %v4978
        %5078 = vmatprep.subr.mxu0 0.0
        %5079 = vmatpush1.msra.mxu0 %v4979
        %5080 = vmatprep.subr.mxu0 0.0
        %5081 = vmatpush1.msra.mxu0 %v4980
        %5082 = vmatprep.subr.mxu0 0.0
        %5083 = vmatpush1.msra.mxu0 %v4981
        %5084 = vmatprep.subr.mxu0 0.0
        %5085 = vmatpush1.msra.mxu0 %v4982
        %5086 = vmatprep.subr.mxu0 0.0
        %5087 = vmatpush1.msra.mxu0 %v4983
        %5088 = vmatprep.subr.mxu0 0.0
        %5089 = vmatpush1.msra.mxu0 %v4984
        %5090 = vmatprep.subr.mxu0 0.0
        %5091 = vmatpush1.msra.mxu0 %v4985
        %5092 = vmatprep.subr.mxu0 0.0
        %5093 = vmatpush1.msra.mxu0 %v4986
        %5094 = vmatprep.subr.mxu0 0.0
        %5095 = vmatpush1.msra.mxu0 %v4987
        %5096 = vmatprep.subr.mxu0 0.0
        %5097 = vmatpush1.msra.mxu0 %v4988
        %5098 = vmatprep.subr.mxu0 0.0
        %5099 = vmatpush1.msra.mxu0 %v4989
        %5100 = vmatprep.subr.mxu0 0.0
        %5101 = vmatpush1.msra.mxu0 %v4990
        %5102 = vmatprep.subr.mxu0 0.0
        %5103 = vmatpush1.msra.mxu0 %v4991
        %5104 = vmatprep.subr.mxu0 0.0
        %5105 = vmatpush1.msra.mxu0 %v4992
        %5106 = vmatprep.subr.mxu0 0.0
        %5107 = vmatpush1.msra.mxu0 %v4993
        %5108 = vmatprep.subr.mxu0 0.0
        %5109 = vmatpush1.msra.mxu0 %v4994
        %5110 = vmatprep.subr.mxu0 0.0
        %5111 = vmatpush1.msra.mxu0 %v4995
        %5112 = vmatprep.subr.mxu0 0.0
        %5113 = vmatpush1.msra.mxu0 %v4996
        %5114 = vmatprep.subr.mxu0 0.0
        %5115 = vmatpush1.msra.mxu0 %v4997
        %5116 = vmatprep.mubr.f32.mxu0 %v4962
        %5117 = vmatmul.mubr.f32.gmra.mrb[0].mxu0 %v4961
        %v5118 = vpop.f32.mrb[0].mxu0
        %v5119 = vadd.f32 %v5050, %v5118
        %v5120 = vpop.f32.mrb[0].mxu0
        %5121 = vdwg.mxu0
        %5122 = vmatprep.subr.mxu0 0.0
        %5123 = vmatpush1.msra.mxu0 %v4998
        %5124 = vmatprep.subr.mxu0 0.0
        %5125 = vmatpush1.msra.mxu0 %v4999
        %5126 = vmatprep.subr.mxu0 0.0
        %5127 = vmatpush1.msra.mxu0 %v5000
        %5128 = vmatprep.subr.mxu0 0.0
        %5129 = vmatpush1.msra.mxu0 %v5001
        %5130 = vmatprep.subr.mxu0 0.0
        %5131 = vmatpush1.msra.mxu0 %v5002
        %5132 = vmatprep.subr.mxu0 0.0
        %5133 = vmatpush1.msra.mxu0 %v5003
        %5134 = vmatprep.subr.mxu0 0.0
        %5135 = vmatpush1.msra.mxu0 %v5004
        %5136 = vmatprep.subr.mxu0 0.0
        %5137 = vmatpush1.msra.mxu0 %v5005
        %5138 = vmatprep.subr.mxu0 0.0
        %5139 = vmatpush1.msra.mxu0 %v5006
        %5140 = vmatprep.subr.mxu0 0.0
        %5141 = vmatpush1.msra.mxu0 %v5007
        %5142 = vmatprep.subr.mxu0 0.0
        %5143 = vmatpush1.msra.mxu0 %v5008
        %5144 = vmatprep.subr.mxu0 0.0
        %5145 = vmatpush1.msra.mxu0 %v5009
        %5146 = vmatprep.subr.mxu0 0.0
        %5147 = vmatpush1.msra.mxu0 %v5010
        %5148 = vmatprep.subr.mxu0 0.0
        %5149 = vmatpush1.msra.mxu0 %v5011
        %5150 = vmatprep.subr.mxu0 0.0
        %5151 = vmatpush1.msra.mxu0 %v5012
        %5152 = vmatprep.subr.mxu0 0.0
        %5153 = vmatpush1.msra.mxu0 %v5013
        %5154 = vmatprep.subr.mxu0 0.0
        %5155 = vmatpush1.msra.mxu0 %v5014
        %5156 = vmatprep.subr.mxu0 0.0
        %5157 = vmatpush1.msra.mxu0 %v5015
        %5158 = vmatprep.subr.mxu0 0.0
        %5159 = vmatpush1.msra.mxu0 %v5016
        %5160 = vmatprep.subr.mxu0 0.0
        %5161 = vmatpush1.msra.mxu0 %v5017
        %5162 = vmatprep.subr.mxu0 0.0
        %5163 = vmatpush1.msra.mxu0 %v5018
        %5164 = vmatprep.subr.mxu0 0.0
        %5165 = vmatpush1.msra.mxu0 %v5019
        %5166 = vmatprep.subr.mxu0 0.0
        %5167 = vmatpush1.msra.mxu0 %v5020
        %5168 = vmatprep.subr.mxu0 0.0
        %5169 = vmatpush1.msra.mxu0 %v5021
        %5170 = vmatprep.subr.mxu0 0.0
        %5171 = vmatpush1.msra.mxu0 %v5022
        %5172 = vmatprep.subr.mxu0 0.0
        %5173 = vmatpush1.msra.mxu0 %v5023
        %5174 = vmatprep.subr.mxu0 0.0
        %5175 = vmatpush1.msra.mxu0 %v5024
        %5176 = vmatprep.subr.mxu0 0.0
        %5177 = vmatpush1.msra.mxu0 %v5025
        %5178 = vmatprep.subr.mxu0 0.0
        %5179 = vmatpush1.msra.mxu0 %v5026
        %5180 = vmatprep.subr.mxu0 0.0
        %5181 = vmatpush1.msra.mxu0 %v5027
        %5182 = vmatprep.subr.mxu0 0.0
        %5183 = vmatpush1.msra.mxu0 %v5028
        %5184 = vmatprep.subr.mxu0 0.0
        %5185 = vmatpush1.msra.mxu0 %v5029
        %5186 = vmatprep.mubr.f32.mxu0 %v4964
        %5187 = vmatmul.mubr.f32.gmra.mrb[0].mxu0 %v4963
        %v5188 = vpop.f32.mrb[0].mxu0
        %v5189 = vadd.f32 %v5119, %v5188
        %v5190 = vpop.f32.mrb[0].mxu0
        %5191 = vdwg.mxu0
        %5192 = vmatprep.subr.mxu0 0.0
        %5193 = vmatpush1.msra.mxu0 %v5030
        %5194 = vmatprep.subr.mxu0 0.0
        %5195 = vmatpush1.msra.mxu0 %v5031
        %5196 = vmatprep.subr.mxu0 0.0
        %5197 = vmatpush1.msra.mxu0 %v5032
        %5198 = vmatprep.subr.mxu0 0.0
        %5199 = vmatpush1.msra.mxu0 %v5033
        %5200 = vmatprep.subr.mxu0 0.0
        %5201 = vmatpush1.msra.mxu0 %v5034
        %5202 = vmatprep.subr.mxu0 0.0
        %5203 = vmatpush1.msra.mxu0 %v5035
        %5204 = vmatprep.subr.mxu0 0.0
        %5205 = vmatpush1.msra.mxu0 %v5036
        %5206 = vmatprep.subr.mxu0 0.0
        %5207 = vmatpush1.msra.mxu0 %v5037
        %5208 = vmatprep.subr.mxu0 0.0
        %5209 = vmatpush1.msra.mxu0 %v5038
        %5210 = vmatprep.subr.mxu0 0.0
        %5211 = vmatpush1.msra.mxu0 %v5039
        %5212 = vmatprep.subr.mxu0 0.0
        %5213 = vmatpush1.msra.mxu0 %v5040
        %5214 = vmatprep.subr.mxu0 0.0
        %5215 = vmatpush1.msra.mxu0 %v5041
        %5216 = vmatprep.subr.mxu0 0.0
        %5217 = vmatpush1.msra.mxu0 %v5042
        %5218 = vmatprep.subr.mxu0 0.0
        %5219 = vmatpush1.msra.mxu0 %v5043
        %5220 = vmatprep.subr.mxu0 0.0
        %5221 = vmatpush1.msra.mxu0 %v5044
        %5222 = vmatprep.subr.mxu0 0.0
        %5223 = vmatpush1.msra.mxu0 %v5045
        %5224 = vmatprep.subr.mxu0 0.0
        %5225 = vmatpush1.msra.mxu0 0.0
        %5226 = vmatprep.subr.mxu0 0.0
        %5227 = vmatpush1.msra.mxu0 0.0
        %5228 = vmatprep.subr.mxu0 0.0
        %5229 = vmatpush1.msra.mxu0 0.0
        %5230 = vmatprep.subr.mxu0 0.0
        %5231 = vmatpush1.msra.mxu0 0.0
        %5232 = vmatprep.subr.mxu0 0.0
        %5233 = vmatpush1.msra.mxu0 0.0
        %5234 = vmatprep.subr.mxu0 0.0
        %5235 = vmatpush1.msra.mxu0 0.0
        %5236 = vmatprep.subr.mxu0 0.0
        %5237 = vmatpush1.msra.mxu0 0.0
        %5238 = vmatprep.subr.mxu0 0.0
        %5239 = vmatpush1.msra.mxu0 0.0
        %5240 = vmatprep.subr.mxu0 0.0
        %5241 = vmatpush1.msra.mxu0 0.0
        %5242 = vmatprep.subr.mxu0 0.0
        %5243 = vmatpush1.msra.mxu0 0.0
        %5244 = vmatprep.subr.mxu0 0.0
        %5245 = vmatpush1.msra.mxu0 0.0
        %5246 = vmatprep.subr.mxu0 0.0
        %5247 = vmatpush1.msra.mxu0 0.0
        %5248 = vmatprep.subr.mxu0 0.0
        %5249 = vmatpush1.msra.mxu0 0.0
        %5250 = vmatprep.subr.mxu0 0.0
        %5251 = vmatpush1.msra.mxu0 0.0
        %5252 = vmatprep.subr.mxu0 0.0
        %5253 = vmatpush1.msra.mxu0 0.0
        %5254 = vmatprep.subr.mxu0 0.0
        %5255 = vmatpush1.msra.mxu0 0.0
        %5256 = vmatprep.mubr.f32.mxu0 0.0
        %5257 = vmatmul.mubr.f32.gmra.mrb[0].mxu0 %v4965
        %v5258 = vpop.f32.mrb[0].mxu0
        %v5259 = vadd.f32 %v5189, %v5258
        %v5260 = vpop.f32.mrb[0].mxu0
        %5261 = vdwg.mxu0
        %vm5262 = vcmask 254976
        %5263 = vst.msk [vmem:[%s325] sm:$0x3] %vm5262, %v5259
        %s5264 = sand.u32 %s225, 1
        %s5265 = scalar_lea.sflag [#allocation3], %s5264
        %s5266 = sand.u32 %s225, 1
        %s5267 = smul.addr %s5266, 2
        %s5268 = scalar_lea.vmem [#allocation2], %s5267
        // Predicated region
        $region57: #{tpu_custom_call.1} parent=55 // pred_check
          %p5269 = pneg %p235
        $region58: #{tpu_custom_call.1} parent=55 // pred_check_branch
          %5271 = sbr.rel (%p5269) target = $region60
        $region59: #{tpu_custom_call.1} parent=55 // pred_region
          %s5273 = ssub.s32 32, 32
          %5274 = vsyncadd %s5265, %s5273
          %s5275 = smul.addr %s23, 32
          %s5276 = scalar_lea.hbm %s9, %s5275
          %s5278 = sshll.u32 %s5268, 4
          %s5279 = int_to_ptr.vmem [resolvable:$true] %s5278
          %5281 = dma.vmem_to_hbm [thread:$0]  %s5279, 32, %s5276, %s5265
        $region60: #{tpu_custom_call.1} parent=55 // pred_fallthru
          _
      $region56: #{tpu_custom_call.1} parent=5 // pred_fallthru
        _
      %p5282 = scmp.le.s32.totalorder 2, %s18
      // Predicated region
      $region61: #{tpu_custom_call.1} parent=5 // pred_check
        %p5283 = pneg %p5282
      $region62: #{tpu_custom_call.1} parent=5 // pred_check_branch
        %5285 = sbr.rel (%p5283) target = $region64
      $region63: #{tpu_custom_call.1} parent=5 // pred_region
        %s5286 = ssub.s32 %s18, 2
        // Predicated region
        $region65: #{tpu_custom_call.1} parent=63 // pred_check
          %p5287 = pneg %p241
        $region66: #{tpu_custom_call.1} parent=63 // pred_check_branch
          %5289 = sbr.rel (%p5287) target = $region68
        $region67: #{tpu_custom_call.1} parent=63 // pred_region
          %s5290 = sand.u32 %s226, 1
          %s5291 = scalar_lea.sflag [#allocation3], %s5290
          %s5292 = sand.u32 %s226, 1
          %s5293 = smul.addr %s5292, 2
          %s5294 = scalar_lea.vmem [#allocation2], %s5293
          %5295 = dma.done %s5291, 32
        $region68: #{tpu_custom_call.1} parent=63 // pred_fallthru
          _
      $region64: #{tpu_custom_call.1} parent=5 // pred_fallthru
        _
    $region6: #{tpu_custom_call.1} parent=1 // loop_footer
      %s22 = sadd.s32 1, %s18
    $region7: #{tpu_custom_call.1} parent=1 // loop_footer_branch
      %17 = sbr.rel target = $region3
    $region8: #{tpu_custom_call.1} parent=1 // loop_exit
      _
    %5296 = vsyncpa [#allocation3], 1
    %s5297 = scalar_lea.sflag [#allocation3], 1
    %5298 = vsyncpa %s5297, 1

// kernel: tpu_custom_call.1
$region0: #{tpu_custom_call.1}
  #allocation0 [shape = 'u32[]', space=smem, size = 0x4, offset = 0x4, fixed_abs, tag = 'smem constant byte address 0x4 - core index']
  #allocation1 [shape = 'u32[144,128]{1,0:T(1,128)}', space=vmem, size = 0x12000, scoped, tag = 'internal scratch']
  %s0 = inlined_call_operand.vmem [shape: f32[2,8,640], index: 0, kind: input, shape index: {}]
  %s1 = inlined_call_operand.vmem [shape: f32[24,8,1], index: 1, kind: input, shape index: {}]
  %s2 = inlined_call_operand.vmem [shape: f32[24,1,1], index: 2, kind: input, shape index: {}]
  %s3 = inlined_call_operand.vmem [shape: f32[24,24], index: 3, kind: input, shape index: {}]
  %s4 = inlined_call_operand.vmem [shape: f32[9,192], index: 4, kind: input, shape index: {}]
  %s5 = inlined_call_operand.vmem [shape: f32[9,1], index: 5, kind: input, shape index: {}]
  %s6 = inlined_call_operand.vmem [shape: f32[2,9,640], index: 6, kind: input, shape index: {}]
  %s7 = inlined_call_operand.vmem [shape: f32[640,32], index: 7, kind: input, shape index: {}]
  %s8 = inlined_call_operand.vmem [shape: f32[2,1], index: 8, kind: input, shape index: {}]
  %s9 = inlined_call_operand.hbm [shape: f32[2,2,32], index: 9, kind: output, shape index: {}]
  %s10 = sld [smem:[#allocation0]]
  $region69: #{tpu_custom_call.1} parent=0
    _
  %s12 = ssub.s32 1, %s10
  %s13 = scalar_select 0, %s12, %s10
  $region1: #{tpu_custom_call.1} parent=0
    #allocation2 [shape = 'u8[2048]{0}', space=vmem, size = 0x800, scoped, tag = 'output window, operand 0']
    #allocation3 [shape = 's32[2]{0}', space=sflag, size = 0x8, scoped, tag = 'scoped memory for tpu_custom_call.1']
    %14 = vsyncpa [#allocation3], 0
    %s15 = scalar_lea.sflag [#allocation3], 1
    %16 = vsyncpa %s15, 0
    loop: start=0, step=1, limit=4
    $region2: #{tpu_custom_call.1} parent=1 // loop_pre_header
      _
    $region3: #{tpu_custom_call.1} parent=1 // loop_header
      %s18 = sphi 0, %s22
      %p19 = scmp.ge.s32.totalorder %s18, 4
      %s28 = sphi 0, %s30
      %s31 = sphi 0, %s28
      %s32 = sphi 0, %s31
      %s48 = sphi 0, %s32
      %s52 = sphi 0, %s52
      %s54 = sphi 0, %s52
      %s55 = sphi 0, %s54
      %s69 = sphi 0, %s55
      %s73 = sphi 0, %s73
      %s75 = sphi 0, %s73
      %s76 = sphi 0, %s75
      %s90 = sphi 0, %s76
      %s94 = sphi 0, %s94
      %s96 = sphi 0, %s94
      %s97 = sphi 0, %s96
      %s111 = sphi 0, %s97
      %s115 = sphi 0, %s115
      %s117 = sphi 0, %s115
      %s118 = sphi 0, %s117
      %s132 = sphi 0, %s118
      %s136 = sphi 0, %s136
      %s138 = sphi 0, %s136
      %s139 = sphi 0, %s138
      %s153 = sphi 0, %s139
      %s157 = sphi 0, %s157
      %s159 = sphi 0, %s157
      %s160 = sphi 0, %s159
      %s174 = sphi 0, %s160
      %s178 = sphi 0, %s178
      %s180 = sphi 0, %s178
      %s181 = sphi 0, %s180
      %s195 = sphi 0, %s181
      %s199 = sphi 0, %s199
      %s201 = sphi 0, %s199
      %s202 = sphi 0, %s201
      %s216 = sphi 0, %s202
      %s222 = sphi 0, %s224
      %s225 = sphi 0, %s222
      %s226 = sphi 0, %s225
      %s242 = sphi 0, %s226
    $region4: #{tpu_custom_call.1} parent=1 // loop_header_branch
      %21 = sbr.rel (%p19) target = $region8
    $region5: #{tpu_custom_call.1} parent=1 // loop_body
      %s23 = ssub.s32 %s18, 1
      %s24 = ssub.s32 %s18, 2
      %s25 = sadd.s32 %s18, 1
      %s26 = ssub.s32 %s18, %s25
      %p27 = scmp.eq.s32.totalorder %s26, 0
      %s29 = sadd.s32 %s28, 1
      %s30 = scalar_select %p27, %s28, %s29
      %p33 = pneg %p27
      %p34 = scmp.eq.s32.totalorder %s18, 1
      %p35 = por %p33, %p34
      %p36 = scmp.ne.s32.totalorder %s28, %s31
      %p37 = scmp.eq.s32.totalorder %s18, 0
      %p38 = por %p36, %p37
      %p39 = scmp.ne.s32.totalorder %s28, %s31
      %p40 = scmp.eq.s32.totalorder %s23, 1
      %p41 = por %p39, %p40
      %p42 = scmp.ne.s32.totalorder %s31, %s32
      %p43 = scmp.eq.s32.totalorder %s23, 0
      %p44 = por %p42, %p43
      %p45 = scmp.ne.s32.totalorder %s31, %s32
      %p46 = scmp.eq.s32.totalorder %s24, 1
      %p47 = por %p45, %p46
      %p49 = scmp.ne.s32.totalorder %s32, %s48
      %p50 = scmp.eq.s32.totalorder %s24, 0
      %p51 = por %p49, %p50
      %s53 = sadd.s32 %s52, 1
      %p56 = scmp.eq.s32.totalorder %s18, 1
      %p57 = scmp.ne.s32.totalorder %s52, %s54
      %p58 = scmp.eq.s32.totalorder %s18, 0
      %p59 = por %p57, %p58
      %p60 = scmp.ne.s32.totalorder %s52, %s54
      %p61 = scmp.eq.s32.totalorder %s23, 1
      %p62 = por %p60, %p61
      %p63 = scmp.ne.s32.totalorder %s54, %s55
      %p64 = scmp.eq.s32.totalorder %s23, 0
      %p65 = por %p63, %p64
      %p66 = scmp.ne.s32.totalorder %s54, %s55
      %p67 = scmp.eq.s32.totalorder %s24, 1
      %p68 = por %p66, %p67
      %p70 = scmp.ne.s32.totalorder %s55, %s69
      %p71 = scmp.eq.s32.totalorder %s24, 0
      %p72 = por %p70, %p71
      %s74 = sadd.s32 %s73, 1
      %p77 = scmp.eq.s32.totalorder %s18, 1
      %p78 = scmp.ne.s32.totalorder %s73, %s75
      %p79 = scmp.eq.s32.totalorder %s18, 0
      %p80 = por %p78, %p79
      %p81 = scmp.ne.s32.totalorder %s73, %s75
      %p82 = scmp.eq.s32.totalorder %s23, 1
      %p83 = por %p81, %p82
      %p84 = scmp.ne.s32.totalorder %s75, %s76
      %p85 = scmp.eq.s32.totalorder %s23, 0
      %p86 = por %p84, %p85
      %p87 = scmp.ne.s32.totalorder %s75, %s76
      %p88 = scmp.eq.s32.totalorder %s24, 1
      %p89 = por %p87, %p88
      %p91 = scmp.ne.s32.totalorder %s76, %s90
      %p92 = scmp.eq.s32.totalorder %s24, 0
      %p93 = por %p91, %p92
      %s95 = sadd.s32 %s94, 1
      %p98 = scmp.eq.s32.totalorder %s18, 1
      %p99 = scmp.ne.s32.totalorder %s94, %s96
      %p100 = scmp.eq.s32.totalorder %s18, 0
      %p101 = por %p99, %p100
      %p102 = scmp.ne.s32.totalorder %s94, %s96
      %p103 = scmp.eq.s32.totalorder %s23, 1
      %p104 = por %p102, %p103
      %p105 = scmp.ne.s32.totalorder %s96, %s97
      %p106 = scmp.eq.s32.totalorder %s23, 0
      %p107 = por %p105, %p106
      %p108 = scmp.ne.s32.totalorder %s96, %s97
      %p109 = scmp.eq.s32.totalorder %s24, 1
      %p110 = por %p108, %p109
      %p112 = scmp.ne.s32.totalorder %s97, %s111
      %p113 = scmp.eq.s32.totalorder %s24, 0
      %p114 = por %p112, %p113
      %s116 = sadd.s32 %s115, 1
      %p119 = scmp.eq.s32.totalorder %s18, 1
      %p120 = scmp.ne.s32.totalorder %s115, %s117
      %p121 = scmp.eq.s32.totalorder %s18, 0
      %p122 = por %p120, %p121
      %p123 = scmp.ne.s32.totalorder %s115, %s117
      %p124 = scmp.eq.s32.totalorder %s23, 1
      %p125 = por %p123, %p124
      %p126 = scmp.ne.s32.totalorder %s117, %s118
      %p127 = scmp.eq.s32.totalorder %s23, 0
      %p128 = por %p126, %p127
      %p129 = scmp.ne.s32.totalorder %s117, %s118
      %p130 = scmp.eq.s32.totalorder %s24, 1
      %p131 = por %p129, %p130
      %p133 = scmp.ne.s32.totalorder %s118, %s132
      %p134 = scmp.eq.s32.totalorder %s24, 0
      %p135 = por %p133, %p134
      %s137 = sadd.s32 %s136, 1
      %p140 = scmp.eq.s32.totalorder %s18, 1
      %p141 = scmp.ne.s32.totalorder %s136, %s138
      %p142 = scmp.eq.s32.totalorder %s18, 0
      %p143 = por %p141, %p142
      %p144 = scmp.ne.s32.totalorder %s136, %s138
      %p145 = scmp.eq.s32.totalorder %s23, 1
      %p146 = por %p144, %p145
      %p147 = scmp.ne.s32.totalorder %s138, %s139
      %p148 = scmp.eq.s32.totalorder %s23, 0
      %p149 = por %p147, %p148
      %p150 = scmp.ne.s32.totalorder %s138, %s139
      %p151 = scmp.eq.s32.totalorder %s24, 1
      %p152 = por %p150, %p151
      %p154 = scmp.ne.s32.totalorder %s139, %s153
      %p155 = scmp.eq.s32.totalorder %s24, 0
      %p156 = por %p154, %p155
      %s158 = sadd.s32 %s157, 1
      %p161 = scmp.eq.s32.totalorder %s18, 1
      %p162 = scmp.ne.s32.totalorder %s157, %s159
      %p163 = scmp.eq.s32.totalorder %s18, 0
      %p164 = por %p162, %p163
      %p165 = scmp.ne.s32.totalorder %s157, %s159
      %p166 = scmp.eq.s32.totalorder %s23, 1
      %p167 = por %p165, %p166
      %p168 = scmp.ne.s32.totalorder %s159, %s160
      %p169 = scmp.eq.s32.totalorder %s23, 0
      %p170 = por %p168, %p169
      %p171 = scmp.ne.s32.totalorder %s159, %s160
      %p172 = scmp.eq.s32.totalorder %s24, 1
      %p173 = por %p171, %p172
      %p175 = scmp.ne.s32.totalorder %s160, %s174
      %p176 = scmp.eq.s32.totalorder %s24, 0
      %p177 = por %p175, %p176
      %s179 = sadd.s32 %s178, 1
      %p182 = scmp.eq.s32.totalorder %s18, 1
      %p183 = scmp.ne.s32.totalorder %s178, %s180
      %p184 = scmp.eq.s32.totalorder %s18, 0
      %p185 = por %p183, %p184
      %p186 = scmp.ne.s32.totalorder %s178, %s180
      %p187 = scmp.eq.s32.totalorder %s23, 1
      %p188 = por %p186, %p187
      %p189 = scmp.ne.s32.totalorder %s180, %s181
      %p190 = scmp.eq.s32.totalorder %s23, 0
      %p191 = por %p189, %p190
      %p192 = scmp.ne.s32.totalorder %s180, %s181
      %p193 = scmp.eq.s32.totalorder %s24, 1
      %p194 = por %p192, %p193
      %p196 = scmp.ne.s32.totalorder %s181, %s195
      %p197 = scmp.eq.s32.totalorder %s24, 0
      %p198 = por %p196, %p197
      %s200 = sadd.s32 %s199, 1
      %p203 = scmp.eq.s32.totalorder %s18, 1
      %p204 = scmp.ne.s32.totalorder %s199, %s201
      %p205 = scmp.eq.s32.totalorder %s18, 0
      %p206 = por %p204, %p205
      %p207 = scmp.ne.s32.totalorder %s199, %s201
      %p208 = scmp.eq.s32.totalorder %s23, 1
      %p209 = por %p207, %p208
      %p210 = scmp.ne.s32.totalorder %s201, %s202
      %p211 = scmp.eq.s32.totalorder %s23, 0
      %p212 = por %p210, %p211
      %p213 = scmp.ne.s32.totalorder %s201, %s202
      %p214 = scmp.eq.s32.totalorder %s24, 1
      %p215 = por %p213, %p214
      %p217 = scmp.ne.s32.totalorder %s202, %s216
      %p218 = scmp.eq.s32.totalorder %s24, 0
      %p219 = por %p217, %p218
      %s220 = ssub.s32 %s18, %s25
      %p221 = scmp.eq.s32.totalorder %s220, 0
      %s223 = sadd.s32 %s222, 1
      %s224 = scalar_select %p221, %s222, %s223
      %p227 = pneg %p221
      %p228 = scmp.eq.s32.totalorder %s18, 1
      %p229 = por %p227, %p228
      %p230 = scmp.ne.s32.totalorder %s222, %s225
      %p231 = scmp.eq.s32.totalorder %s18, 0
      %p232 = por %p230, %p231
      %p233 = scmp.ne.s32.totalorder %s222, %s225
      %p234 = scmp.eq.s32.totalorder %s23, 1
      %p235 = por %p233, %p234
      %p236 = scmp.ne.s32.totalorder %s225, %s226
      %p237 = scmp.eq.s32.totalorder %s23, 0
      %p238 = por %p236, %p237
      %p239 = scmp.ne.s32.totalorder %s225, %s226
      %p240 = scmp.eq.s32.totalorder %s24, 1
      %p241 = por %p239, %p240
      %p243 = scmp.ne.s32.totalorder %s226, %s242
      %p244 = scmp.eq.s32.totalorder %s24, 0
      %p245 = por %p243, %p244
      %p246 = scmp.le.s32.totalorder 1, %s18
      %p247 = scmp.lt.s32.totalorder %s18, 3
      %p248 = pnand %p246, %p247
      %p249 = pneg %p248
      // Predicated region
      $region9: #{tpu_custom_call.1} parent=5 // pred_check
        _
      $region10: #{tpu_custom_call.1} parent=5 // pred_check_branch
        %251 = sbr.rel (%p248) target = $region12
      $region11: #{tpu_custom_call.1} parent=5 // pred_region
        %s252 = ssub.s32 %s18, 1
        // Predicated region
        $region13: #{tpu_custom_call.1} parent=11 // pred_check
          %p253 = pneg %p65
        $region14: #{tpu_custom_call.1} parent=11 // pred_check_branch
          %255 = sbr.rel (%p253) target = $region16
        $region15: #{tpu_custom_call.1} parent=11 // pred_region
          _
        $region16: #{tpu_custom_call.1} parent=11 // pred_fallthru
          _
        // Predicated region
        $region17: #{tpu_custom_call.1} parent=11 // pred_check
          %p256 = pneg %p86
        $region18: #{tpu_custom_call.1} parent=11 // pred_check_branch
          %258 = sbr.rel (%p256) target = $region20
        $region19: #{tpu_custom_call.1} parent=11 // pred_region
          _
        $region20: #{tpu_custom_call.1} parent=11 // pred_fallthru
          _
        // Predicated region
        $region21: #{tpu_custom_call.1} parent=11 // pred_check
          %p259 = pneg %p107
        $region22: #{tpu_custom_call.1} parent=11 // pred_check_branch
          %261 = sbr.rel (%p259) target = $region24
        $region23: #{tpu_custom_call.1} parent=11 // pred_region
          _
        $region24: #{tpu_custom_call.1} parent=11 // pred_fallthru
          _
        // Predicated region
        $region25: #{tpu_custom_call.1} parent=11 // pred_check
          %p262 = pneg %p128
        $region26: #{tpu_custom_call.1} parent=11 // pred_check_branch
          %264 = sbr.rel (%p262) target = $region28
        $region27: #{tpu_custom_call.1} parent=11 // pred_region
          _
        $region28: #{tpu_custom_call.1} parent=11 // pred_fallthru
          _
        // Predicated region
        $region29: #{tpu_custom_call.1} parent=11 // pred_check
          %p265 = pneg %p149
        $region30: #{tpu_custom_call.1} parent=11 // pred_check_branch
          %267 = sbr.rel (%p265) target = $region32
        $region31: #{tpu_custom_call.1} parent=11 // pred_region
          _
        $region32: #{tpu_custom_call.1} parent=11 // pred_fallthru
          _
        // Predicated region
        $region33: #{tpu_custom_call.1} parent=11 // pred_check
          %p268 = pneg %p170
        $region34: #{tpu_custom_call.1} parent=11 // pred_check_branch
          %270 = sbr.rel (%p268) target = $region36
        $region35: #{tpu_custom_call.1} parent=11 // pred_region
          _
        $region36: #{tpu_custom_call.1} parent=11 // pred_fallthru
          _
        // Predicated region
        $region37: #{tpu_custom_call.1} parent=11 // pred_check
          %p271 = pneg %p191
        $region38: #{tpu_custom_call.1} parent=11 // pred_check_branch
          %273 = sbr.rel (%p271) target = $region40
        $region39: #{tpu_custom_call.1} parent=11 // pred_region
          _
        $region40: #{tpu_custom_call.1} parent=11 // pred_fallthru
          _
        // Predicated region
        $region41: #{tpu_custom_call.1} parent=11 // pred_check
          %p274 = pneg %p212
        $region42: #{tpu_custom_call.1} parent=11 // pred_check_branch
          %276 = sbr.rel (%p274) target = $region44
        $region43: #{tpu_custom_call.1} parent=11 // pred_region
          _
        $region44: #{tpu_custom_call.1} parent=11 // pred_fallthru
          _
      $region12: #{tpu_custom_call.1} parent=5 // pred_fallthru
        _
      %p277 = scmp.lt.s32.totalorder %s18, 2
      // Predicated region
      $region45: #{tpu_custom_call.1} parent=5 // pred_check
        %p278 = pneg %p277
      $region46: #{tpu_custom_call.1} parent=5 // pred_check_branch
        %280 = sbr.rel (%p278) target = $region48
      $region47: #{tpu_custom_call.1} parent=5 // pred_region
        // Predicated region
        $region49: #{tpu_custom_call.1} parent=47 // pred_check
          %p281 = pneg %p38
        $region50: #{tpu_custom_call.1} parent=47 // pred_check_branch
          %283 = sbr.rel (%p281) target = $region52
        $region51: #{tpu_custom_call.1} parent=47 // pred_region
          %p284 = scmp.lt.s32.totalorder %s18, 1
          %s285 = scalar_select %p284, %s18, 1
          %s286 = smul.addr %s285, 5
          %s287 = smul.addr %s286, 8
          %s288 = scalar_lea.vmem %s0, %s287
        $region52: #{tpu_custom_call.1} parent=47 // pred_fallthru
          _
      $region48: #{tpu_custom_call.1} parent=5 // pred_fallthru
        _
      %p289 = scmp.le.s32.totalorder 1, %s18
      %p290 = scmp.lt.s32.totalorder %s18, 3
      %p291 = pnand %p289, %p290
      %p292 = pneg %p291
      // Predicated region
      $region53: #{tpu_custom_call.1} parent=5 // pred_check
        _
      $region54: #{tpu_custom_call.1} parent=5 // pred_check_branch
        %294 = sbr.rel (%p291) target = $region56
      $region55: #{tpu_custom_call.1} parent=5 // pred_region
        %s295 = ssub.s32 %s18, 1
        %p296 = scmp.lt.s32.totalorder %s23, 1
        %s297 = scalar_select %p296, %s23, 1
        %s298 = smul.addr %s297, 5
        %s299 = smul.addr %s298, 8
        %s300 = scalar_lea.vmem %s0, %s299
        %p301 = pneg %p44
        %p302 = pneg %p41
        %p303 = pneg %p65
        %p304 = pneg %p62
        %p305 = pneg %p86
        %p306 = pneg %p83
        %p307 = pneg %p107
        %p308 = pneg %p104
        %p309 = pneg %p128
        %p310 = pneg %p125
        %p311 = pneg %p149
        %p312 = pneg %p146
        %p313 = pneg %p170
        %p314 = pneg %p167
        %p315 = pneg %p191
        %p316 = pneg %p188
        %p317 = pneg %p212
        %p318 = pneg %p209
        %p319 = pneg %p238
        %p320 = pneg %p235
        %s321 = sand.u32 %s225, 1
        %s322 = scalar_lea.sflag [#allocation3], %s321
        %s323 = sand.u32 %s225, 1
        %s324 = smul.addr %s323, 2
        %s325 = scalar_lea.vmem [#allocation2], %s324
        %p326 = scmp.lt.s32.totalorder %s23, 1
        %s327 = scalar_select %p326, %s23, 1
        %s328 = smul.addr %s327, 5
        %s329 = smul.addr %s328, 8
        %s330 = scalar_lea.vmem %s0, %s329
        %v331 = vld [vmem:[%s330] sm:$0xff]
        %v332 = vld [vmem:[%s330 + $0x8] sm:$0xff]
        %v333 = vld [vmem:[%s330 + $0x10] sm:$0xff]
        %v334 = vld [vmem:[%s330 + $0x18] sm:$0xff]
        %v335 = vld [vmem:[%s330 + $0x20] sm:$0xff]
        %v336 = vld [vmem:[%s1] sm:$0xff]
        %v337 = vld [vmem:[%s1 + $0x8] sm:$0xff]
        %v338 = vld [vmem:[%s1 + $0x10] sm:$0xff]
        %v339 = vld [vmem:[%s1 + $0x18] sm:$0xff]
        %v340 = vld [vmem:[%s1 + $0x20] sm:$0xff]
        %v341 = vld [vmem:[%s1 + $0x28] sm:$0xff]
        %v342 = vld [vmem:[%s1 + $0x30] sm:$0xff]
        %v343 = vld [vmem:[%s1 + $0x38] sm:$0xff]
        %v344 = vld [vmem:[%s1 + $0x40] sm:$0xff]
        %v345 = vld [vmem:[%s1 + $0x48] sm:$0xff]
        %v346 = vld [vmem:[%s1 + $0x50] sm:$0xff]
        %v347 = vld [vmem:[%s1 + $0x58] sm:$0xff]
        %v348 = vld [vmem:[%s1 + $0x60] sm:$0xff]
        %v349 = vld [vmem:[%s1 + $0x68] sm:$0xff]
        %v350 = vld [vmem:[%s1 + $0x70] sm:$0xff]
        %v351 = vld [vmem:[%s1 + $0x78] sm:$0xff]
        %v352 = vld [vmem:[%s1 + $0x80] sm:$0xff]
        %v353 = vld [vmem:[%s1 + $0x88] sm:$0xff]
        %v354 = vld [vmem:[%s1 + $0x90] sm:$0xff]
        %v355 = vld [vmem:[%s1 + $0x98] sm:$0xff]
        %v356 = vld [vmem:[%s1 + $0xa0] sm:$0xff]
        %v357 = vld [vmem:[%s1 + $0xa8] sm:$0xff]
        %v358 = vld [vmem:[%s1 + $0xb0] sm:$0xff]
        %v359 = vld [vmem:[%s1 + $0xb8] sm:$0xff]
        %361 = vset.pattern.permute.xlu0 0
        %362 = vperm.xlu0 %361, %v336
        %v363 = vpop.permute.xlu0 %362
        %366 = vset.pattern.permute.xlu0 0
        %367 = vperm.xlu0 %366, %v337
        %v368 = vpop.permute.xlu0 %367
        %371 = vset.pattern.permute.xlu0 0
        %372 = vperm.xlu0 %371, %v338
        %v373 = vpop.permute.xlu0 %372
        %376 = vset.pattern.permute.xlu0 0
        %377 = vperm.xlu0 %376, %v339
        %v378 = vpop.permute.xlu0 %377
        %381 = vset.pattern.permute.xlu0 0
        %382 = vperm.xlu0 %381, %v340
        %v383 = vpop.permute.xlu0 %382
        %386 = vset.pattern.permute.xlu0 0
        %387 = vperm.xlu0 %386, %v341
        %v388 = vpop.permute.xlu0 %387
        %391 = vset.pattern.permute.xlu0 0
        %392 = vperm.xlu0 %391, %v342
        %v393 = vpop.permute.xlu0 %392
        %396 = vset.pattern.permute.xlu0 0
        %397 = vperm.xlu0 %396, %v343
        %v398 = vpop.permute.xlu0 %397
        %401 = vset.pattern.permute.xlu0 0
        %402 = vperm.xlu0 %401, %v344
        %v403 = vpop.permute.xlu0 %402
        %406 = vset.pattern.permute.xlu0 0
        %407 = vperm.xlu0 %406, %v345
        %v408 = vpop.permute.xlu0 %407
        %411 = vset.pattern.permute.xlu0 0
        %412 = vperm.xlu0 %411, %v346
        %v413 = vpop.permute.xlu0 %412
        %416 = vset.pattern.permute.xlu0 0
        %417 = vperm.xlu0 %416, %v347
        %v418 = vpop.permute.xlu0 %417
        %421 = vset.pattern.permute.xlu0 0
        %422 = vperm.xlu0 %421, %v348
        %v423 = vpop.permute.xlu0 %422
        %426 = vset.pattern.permute.xlu0 0
        %427 = vperm.xlu0 %426, %v349
        %v428 = vpop.permute.xlu0 %427
        %431 = vset.pattern.permute.xlu0 0
        %432 = vperm.xlu0 %431, %v350
        %v433 = vpop.permute.xlu0 %432
        %436 = vset.pattern.permute.xlu0 0
        %437 = vperm.xlu0 %436, %v351
        %v438 = vpop.permute.xlu0 %437
        %441 = vset.pattern.permute.xlu0 0
        %442 = vperm.xlu0 %441, %v352
        %v443 = vpop.permute.xlu0 %442
        %446 = vset.pattern.permute.xlu0 0
        %447 = vperm.xlu0 %446, %v353
        %v448 = vpop.permute.xlu0 %447
        %451 = vset.pattern.permute.xlu0 0
        %452 = vperm.xlu0 %451, %v354
        %v453 = vpop.permute.xlu0 %452
        %456 = vset.pattern.permute.xlu0 0
        %457 = vperm.xlu0 %456, %v355
        %v458 = vpop.permute.xlu0 %457
        %461 = vset.pattern.permute.xlu0 0
        %462 = vperm.xlu0 %461, %v356
        %v463 = vpop.permute.xlu0 %462
        %466 = vset.pattern.permute.xlu0 0
        %467 = vperm.xlu0 %466, %v357
        %v468 = vpop.permute.xlu0 %467
        %471 = vset.pattern.permute.xlu0 0
        %472 = vperm.xlu0 %471, %v358
        %v473 = vpop.permute.xlu0 %472
        %476 = vset.pattern.permute.xlu0 0
        %477 = vperm.xlu0 %476, %v359
        %v478 = vpop.permute.xlu0 %477
        %v480 = vmul.f32 %v363, %v331
        %v481 = vmul.f32 %v363, %v332
        %v482 = vmul.f32 %v363, %v333
        %v483 = vmul.f32 %v363, %v334
        %v484 = vmul.f32 %v363, %v335
        %v485 = vmul.f32 %v368, %v331
        %v486 = vmul.f32 %v368, %v332
        %v487 = vmul.f32 %v368, %v333
        %v488 = vmul.f32 %v368, %v334
        %v489 = vmul.f32 %v368, %v335
        %v490 = vmul.f32 %v373, %v331
        %v491 = vmul.f32 %v373, %v332
        %v492 = vmul.f32 %v373, %v333
        %v493 = vmul.f32 %v373, %v334
        %v494 = vmul.f32 %v373, %v335
        %v495 = vmul.f32 %v378, %v331
        %v496 = vmul.f32 %v378, %v332
        %v497 = vmul.f32 %v378, %v333
        %v498 = vmul.f32 %v378, %v334
        %v499 = vmul.f32 %v378, %v335
        %v500 = vmul.f32 %v383, %v331
        %v501 = vmul.f32 %v383, %v332
        %v502 = vmul.f32 %v383, %v333
        %v503 = vmul.f32 %v383, %v334
        %v504 = vmul.f32 %v383, %v335
        %v505 = vmul.f32 %v388, %v331
        %v506 = vmul.f32 %v388, %v332
        %v507 = vmul.f32 %v388, %v333
        %v508 = vmul.f32 %v388, %v334
        %v509 = vmul.f32 %v388, %v335
        %v510 = vmul.f32 %v393, %v331
        %v511 = vmul.f32 %v393, %v332
        %v512 = vmul.f32 %v393, %v333
        %v513 = vmul.f32 %v393, %v334
        %v514 = vmul.f32 %v393, %v335
        %v515 = vmul.f32 %v398, %v331
        %v516 = vmul.f32 %v398, %v332
        %v517 = vmul.f32 %v398, %v333
        %v518 = vmul.f32 %v398, %v334
        %v519 = vmul.f32 %v398, %v335
        %v520 = vmul.f32 %v403, %v331
        %v521 = vmul.f32 %v403, %v332
        %v522 = vmul.f32 %v403, %v333
        %v523 = vmul.f32 %v403, %v334
        %v524 = vmul.f32 %v403, %v335
        %v525 = vmul.f32 %v408, %v331
        %v526 = vmul.f32 %v408, %v332
        %v527 = vmul.f32 %v408, %v333
        %v528 = vmul.f32 %v408, %v334
        %v529 = vmul.f32 %v408, %v335
        %v530 = vmul.f32 %v413, %v331
        %v531 = vmul.f32 %v413, %v332
        %v532 = vmul.f32 %v413, %v333
        %v533 = vmul.f32 %v413, %v334
        %v534 = vmul.f32 %v413, %v335
        %v535 = vmul.f32 %v418, %v331
        %v536 = vmul.f32 %v418, %v332
        %v537 = vmul.f32 %v418, %v333
        %v538 = vmul.f32 %v418, %v334
        %v539 = vmul.f32 %v418, %v335
        %v540 = vmul.f32 %v423, %v331
        %v541 = vmul.f32 %v423, %v332
        %v542 = vmul.f32 %v423, %v333
        %v543 = vmul.f32 %v423, %v334
        %v544 = vmul.f32 %v423, %v335
        %v545 = vmul.f32 %v428, %v331
        %v546 = vmul.f32 %v428, %v332
        %v547 = vmul.f32 %v428, %v333
        %v548 = vmul.f32 %v428, %v334
        %v549 = vmul.f32 %v428, %v335
        %v550 = vmul.f32 %v433, %v331
        %v551 = vmul.f32 %v433, %v332
        %v552 = vmul.f32 %v433, %v333
        %v553 = vmul.f32 %v433, %v334
        %v554 = vmul.f32 %v433, %v335
        %v555 = vmul.f32 %v438, %v331
        %v556 = vmul.f32 %v438, %v332
        %v557 = vmul.f32 %v438, %v333
        %v558 = vmul.f32 %v438, %v334
        %v559 = vmul.f32 %v438, %v335
        %v560 = vmul.f32 %v443, %v331
        %v561 = vmul.f32 %v443, %v332
        %v562 = vmul.f32 %v443, %v333
        %v563 = vmul.f32 %v443, %v334
        %v564 = vmul.f32 %v443, %v335
        %v565 = vmul.f32 %v448, %v331
        %v566 = vmul.f32 %v448, %v332
        %v567 = vmul.f32 %v448, %v333
        %v568 = vmul.f32 %v448, %v334
        %v569 = vmul.f32 %v448, %v335
        %v570 = vmul.f32 %v453, %v331
        %v571 = vmul.f32 %v453, %v332
        %v572 = vmul.f32 %v453, %v333
        %v573 = vmul.f32 %v453, %v334
        %v574 = vmul.f32 %v453, %v335
        %v575 = vmul.f32 %v458, %v331
        %v576 = vmul.f32 %v458, %v332
        %v577 = vmul.f32 %v458, %v333
        %v578 = vmul.f32 %v458, %v334
        %v579 = vmul.f32 %v458, %v335
        %v580 = vmul.f32 %v463, %v331
        %v581 = vmul.f32 %v463, %v332
        %v582 = vmul.f32 %v463, %v333
        %v583 = vmul.f32 %v463, %v334
        %v584 = vmul.f32 %v463, %v335
        %v585 = vmul.f32 %v468, %v331
        %v586 = vmul.f32 %v468, %v332
        %v587 = vmul.f32 %v468, %v333
        %v588 = vmul.f32 %v468, %v334
        %v589 = vmul.f32 %v468, %v335
        %v590 = vmul.f32 %v473, %v331
        %v591 = vmul.f32 %v473, %v332
        %v592 = vmul.f32 %v473, %v333
        %v593 = vmul.f32 %v473, %v334
        %v594 = vmul.f32 %v473, %v335
        %v595 = vmul.f32 %v478, %v331
        %v596 = vmul.f32 %v478, %v332
        %v597 = vmul.f32 %v478, %v333
        %v598 = vmul.f32 %v478, %v334
        %v599 = vmul.f32 %v478, %v335
        %v600 = vld [vmem:[%s2] sm:$0x1]
        %v601 = vld [vmem:[%s2 + $0x1] sm:$0x1]
        %v602 = vld [vmem:[%s2 + $0x2] sm:$0x1]
        %v603 = vld [vmem:[%s2 + $0x3] sm:$0x1]
        %v604 = vld [vmem:[%s2 + $0x4] sm:$0x1]
        %v605 = vld [vmem:[%s2 + $0x5] sm:$0x1]
        %v606 = vld [vmem:[%s2 + $0x6] sm:$0x1]
        %v607 = vld [vmem:[%s2 + $0x7] sm:$0x1]
        %v608 = vld [vmem:[%s2 + $0x8] sm:$0x1]
        %v609 = vld [vmem:[%s2 + $0x9] sm:$0x1]
        %v610 = vld [vmem:[%s2 + $0xa] sm:$0x1]
        %v611 = vld [vmem:[%s2 + $0xb] sm:$0x1]
        %v612 = vld [vmem:[%s2 + $0xc] sm:$0x1]
        %v613 = vld [vmem:[%s2 + $0xd] sm:$0x1]
        %v614 = vld [vmem:[%s2 + $0xe] sm:$0x1]
        %v615 = vld [vmem:[%s2 + $0xf] sm:$0x1]
        %v616 = vld [vmem:[%s2 + $0x10] sm:$0x1]
        %v617 = vld [vmem:[%s2 + $0x11] sm:$0x1]
        %v618 = vld [vmem:[%s2 + $0x12] sm:$0x1]
        %v619 = vld [vmem:[%s2 + $0x13] sm:$0x1]
        %v620 = vld [vmem:[%s2 + $0x14] sm:$0x1]
        %v621 = vld [vmem:[%s2 + $0x15] sm:$0x1]
        %v622 = vld [vmem:[%s2 + $0x16] sm:$0x1]
        %v623 = vld [vmem:[%s2 + $0x17] sm:$0x1]
        %v648 = vlaneseq
        %v649 = vshrl.u32 %v648, 7
        %v650 = vsub.s32 0, %v649
        %v651 = vrot.slane %v600, %v650
        %v652 = vlaneseq
        %v653 = vshrl.u32 %v652, 7
        %v654 = vsub.s32 0, %v653
        %v655 = vrot.slane %v601, %v654
        %v656 = vlaneseq
        %v657 = vshrl.u32 %v656, 7
        %v658 = vsub.s32 0, %v657
        %v659 = vrot.slane %v602, %v658
        %v660 = vlaneseq
        %v661 = vshrl.u32 %v660, 7
        %v662 = vsub.s32 0, %v661
        %v663 = vrot.slane %v603, %v662
        %v664 = vlaneseq
        %v665 = vshrl.u32 %v664, 7
        %v666 = vsub.s32 0, %v665
        %v667 = vrot.slane %v604, %v666
        %v668 = vlaneseq
        %v669 = vshrl.u32 %v668, 7
        %v670 = vsub.s32 0, %v669
        %v671 = vrot.slane %v605, %v670
        %v672 = vlaneseq
        %v673 = vshrl.u32 %v672, 7
        %v674 = vsub.s32 0, %v673
        %v675 = vrot.slane %v606, %v674
        %v676 = vlaneseq
        %v677 = vshrl.u32 %v676, 7
        %v678 = vsub.s32 0, %v677
        %v679 = vrot.slane %v607, %v678
        %v680 = vlaneseq
        %v681 = vshrl.u32 %v680, 7
        %v682 = vsub.s32 0, %v681
        %v683 = vrot.slane %v608, %v682
        %v684 = vlaneseq
        %v685 = vshrl.u32 %v684, 7
        %v686 = vsub.s32 0, %v685
        %v687 = vrot.slane %v609, %v686
        %v688 = vlaneseq
        %v689 = vshrl.u32 %v688, 7
        %v690 = vsub.s32 0, %v689
        %v691 = vrot.slane %v610, %v690
        %v692 = vlaneseq
        %v693 = vshrl.u32 %v692, 7
        %v694 = vsub.s32 0, %v693
        %v695 = vrot.slane %v611, %v694
        %v696 = vlaneseq
        %v697 = vshrl.u32 %v696, 7
        %v698 = vsub.s32 0, %v697
        %v699 = vrot.slane %v612, %v698
        %v700 = vlaneseq
        %v701 = vshrl.u32 %v700, 7
        %v702 = vsub.s32 0, %v701
        %v703 = vrot.slane %v613, %v702
        %v704 = vlaneseq
        %v705 = vshrl.u32 %v704, 7
        %v706 = vsub.s32 0, %v705
        %v707 = vrot.slane %v614, %v706
        %v708 = vlaneseq
        %v709 = vshrl.u32 %v708, 7
        %v710 = vsub.s32 0, %v709
        %v711 = vrot.slane %v615, %v710
        %v712 = vlaneseq
        %v713 = vshrl.u32 %v712, 7
        %v714 = vsub.s32 0, %v713
        %v715 = vrot.slane %v616, %v714
        %v716 = vlaneseq
        %v717 = vshrl.u32 %v716, 7
        %v718 = vsub.s32 0, %v717
        %v719 = vrot.slane %v617, %v718
        %v720 = vlaneseq
        %v721 = vshrl.u32 %v720, 7
        %v722 = vsub.s32 0, %v721
        %v723 = vrot.slane %v618, %v722
        %v724 = vlaneseq
        %v725 = vshrl.u32 %v724, 7
        %v726 = vsub.s32 0, %v725
        %v727 = vrot.slane %v619, %v726
        %v728 = vlaneseq
        %v729 = vshrl.u32 %v728, 7
        %v730 = vsub.s32 0, %v729
        %v731 = vrot.slane %v620, %v730
        %v732 = vlaneseq
        %v733 = vshrl.u32 %v732, 7
        %v734 = vsub.s32 0, %v733
        %v735 = vrot.slane %v621, %v734
        %v736 = vlaneseq
        %v737 = vshrl.u32 %v736, 7
        %v738 = vsub.s32 0, %v737
        %v739 = vrot.slane %v622, %v738
        %v740 = vlaneseq
        %v741 = vshrl.u32 %v740, 7
        %v742 = vsub.s32 0, %v741
        %v743 = vrot.slane %v623, %v742
        %744 = vset.pattern.permute.xlu0 0
        %745 = vperm.xlu0 %744, %v651
        %v746 = vpop.permute.xlu0 %745
        %748 = vset.pattern.permute.xlu0 0
        %749 = vperm.xlu0 %748, %v655
        %v750 = vpop.permute.xlu0 %749
        %752 = vset.pattern.permute.xlu0 0
        %753 = vperm.xlu0 %752, %v659
        %v754 = vpop.permute.xlu0 %753
        %756 = vset.pattern.permute.xlu0 0
        %757 = vperm.xlu0 %756, %v663
        %v758 = vpop.permute.xlu0 %757
        %760 = vset.pattern.permute.xlu0 0
        %761 = vperm.xlu0 %760, %v667
        %v762 = vpop.permute.xlu0 %761
        %764 = vset.pattern.permute.xlu0 0
        %765 = vperm.xlu0 %764, %v671
        %v766 = vpop.permute.xlu0 %765
        %768 = vset.pattern.permute.xlu0 0
        %769 = vperm.xlu0 %768, %v675
        %v770 = vpop.permute.xlu0 %769
        %772 = vset.pattern.permute.xlu0 0
        %773 = vperm.xlu0 %772, %v679
        %v774 = vpop.permute.xlu0 %773
        %776 = vset.pattern.permute.xlu0 0
        %777 = vperm.xlu0 %776, %v683
        %v778 = vpop.permute.xlu0 %777
        %780 = vset.pattern.permute.xlu0 0
        %781 = vperm.xlu0 %780, %v687
        %v782 = vpop.permute.xlu0 %781
        %784 = vset.pattern.permute.xlu0 0
        %785 = vperm.xlu0 %784, %v691
        %v786 = vpop.permute.xlu0 %785
        %788 = vset.pattern.permute.xlu0 0
        %789 = vperm.xlu0 %788, %v695
        %v790 = vpop.permute.xlu0 %789
        %792 = vset.pattern.permute.xlu0 0
        %793 = vperm.xlu0 %792, %v699
        %v794 = vpop.permute.xlu0 %793
        %796 = vset.pattern.permute.xlu0 0
        %797 = vperm.xlu0 %796, %v703
        %v798 = vpop.permute.xlu0 %797
        %800 = vset.pattern.permute.xlu0 0
        %801 = vperm.xlu0 %800, %v707
        %v802 = vpop.permute.xlu0 %801
        %804 = vset.pattern.permute.xlu0 0
        %805 = vperm.xlu0 %804, %v711
        %v806 = vpop.permute.xlu0 %805
        %808 = vset.pattern.permute.xlu0 0
        %809 = vperm.xlu0 %808, %v715
        %v810 = vpop.permute.xlu0 %809
        %812 = vset.pattern.permute.xlu0 0
        %813 = vperm.xlu0 %812, %v719
        %v814 = vpop.permute.xlu0 %813
        %816 = vset.pattern.permute.xlu0 0
        %817 = vperm.xlu0 %816, %v723
        %v818 = vpop.permute.xlu0 %817
        %820 = vset.pattern.permute.xlu0 0
        %821 = vperm.xlu0 %820, %v727
        %v822 = vpop.permute.xlu0 %821
        %824 = vset.pattern.permute.xlu0 0
        %825 = vperm.xlu0 %824, %v731
        %v826 = vpop.permute.xlu0 %825
        %828 = vset.pattern.permute.xlu0 0
        %829 = vperm.xlu0 %828, %v735
        %v830 = vpop.permute.xlu0 %829
        %832 = vset.pattern.permute.xlu0 0
        %833 = vperm.xlu0 %832, %v739
        %v834 = vpop.permute.xlu0 %833
        %836 = vset.pattern.permute.xlu0 0
        %837 = vperm.xlu0 %836, %v743
        %v838 = vpop.permute.xlu0 %837
        %v840 = vadd.f32 %v480, %v746
        %v841 = vadd.f32 %v481, %v746
        %v842 = vadd.f32 %v482, %v746
        %v843 = vadd.f32 %v483, %v746
        %v844 = vadd.f32 %v484, %v746
        %v845 = vadd.f32 %v485, %v750
        %v846 = vadd.f32 %v486, %v750
        %v847 = vadd.f32 %v487, %v750
        %v848 = vadd.f32 %v488, %v750
        %v849 = vadd.f32 %v489, %v750
        %v850 = vadd.f32 %v490, %v754
        %v851 = vadd.f32 %v491, %v754
        %v852 = vadd.f32 %v492, %v754
        %v853 = vadd.f32 %v493, %v754
        %v854 = vadd.f32 %v494, %v754
        %v855 = vadd.f32 %v495, %v758
        %v856 = vadd.f32 %v496, %v758
        %v857 = vadd.f32 %v497, %v758
        %v858 = vadd.f32 %v498, %v758
        %v859 = vadd.f32 %v499, %v758
        %v860 = vadd.f32 %v500, %v762
        %v861 = vadd.f32 %v501, %v762
        %v862 = vadd.f32 %v502, %v762
        %v863 = vadd.f32 %v503, %v762
        %v864 = vadd.f32 %v504, %v762
        %v865 = vadd.f32 %v505, %v766
        %v866 = vadd.f32 %v506, %v766
        %v867 = vadd.f32 %v507, %v766
        %v868 = vadd.f32 %v508, %v766
        %v869 = vadd.f32 %v509, %v766
        %v870 = vadd.f32 %v510, %v770
        %v871 = vadd.f32 %v511, %v770
        %v872 = vadd.f32 %v512, %v770
        %v873 = vadd.f32 %v513, %v770
        %v874 = vadd.f32 %v514, %v770
        %v875 = vadd.f32 %v515, %v774
        %v876 = vadd.f32 %v516, %v774
        %v877 = vadd.f32 %v517, %v774
        %v878 = vadd.f32 %v518, %v774
        %v879 = vadd.f32 %v519, %v774
        %v880 = vadd.f32 %v520, %v778
        %v881 = vadd.f32 %v521, %v778
        %v882 = vadd.f32 %v522, %v778
        %v883 = vadd.f32 %v523, %v778
        %v884 = vadd.f32 %v524, %v778
        %v885 = vadd.f32 %v525, %v782
        %v886 = vadd.f32 %v526, %v782
        %v887 = vadd.f32 %v527, %v782
        %v888 = vadd.f32 %v528, %v782
        %v889 = vadd.f32 %v529, %v782
        %v890 = vadd.f32 %v530, %v786
        %v891 = vadd.f32 %v531, %v786
        %v892 = vadd.f32 %v532, %v786
        %v893 = vadd.f32 %v533, %v786
        %v894 = vadd.f32 %v534, %v786
        %v895 = vadd.f32 %v535, %v790
        %v896 = vadd.f32 %v536, %v790
        %v897 = vadd.f32 %v537, %v790
        %v898 = vadd.f32 %v538, %v790
        %v899 = vadd.f32 %v539, %v790
        %v900 = vadd.f32 %v540, %v794
        %v901 = vadd.f32 %v541, %v794
        %v902 = vadd.f32 %v542, %v794
        %v903 = vadd.f32 %v543, %v794
        %v904 = vadd.f32 %v544, %v794
        %v905 = vadd.f32 %v545, %v798
        %v906 = vadd.f32 %v546, %v798
        %v907 = vadd.f32 %v547, %v798
        %v908 = vadd.f32 %v548, %v798
        %v909 = vadd.f32 %v549, %v798
        %v910 = vadd.f32 %v550, %v802
        %v911 = vadd.f32 %v551, %v802
        %v912 = vadd.f32 %v552, %v802
        %v913 = vadd.f32 %v553, %v802
        %v914 = vadd.f32 %v554, %v802
        %v915 = vadd.f32 %v555, %v806
        %v916 = vadd.f32 %v556, %v806
        %v917 = vadd.f32 %v557, %v806
        %v918 = vadd.f32 %v558, %v806
        %v919 = vadd.f32 %v559, %v806
        %v920 = vadd.f32 %v560, %v810
        %v921 = vadd.f32 %v561, %v810
        %v922 = vadd.f32 %v562, %v810
        %v923 = vadd.f32 %v563, %v810
        %v924 = vadd.f32 %v564, %v810
        %v925 = vadd.f32 %v565, %v814
        %v926 = vadd.f32 %v566, %v814
        %v927 = vadd.f32 %v567, %v814
        %v928 = vadd.f32 %v568, %v814
        %v929 = vadd.f32 %v569, %v814
        %v930 = vadd.f32 %v570, %v818
        %v931 = vadd.f32 %v571, %v818
        %v932 = vadd.f32 %v572, %v818
        %v933 = vadd.f32 %v573, %v818
        %v934 = vadd.f32 %v574, %v818
        %v935 = vadd.f32 %v575, %v822
        %v936 = vadd.f32 %v576, %v822
        %v937 = vadd.f32 %v577, %v822
        %v938 = vadd.f32 %v578, %v822
        %v939 = vadd.f32 %v579, %v822
        %v940 = vadd.f32 %v580, %v826
        %v941 = vadd.f32 %v581, %v826
        %v942 = vadd.f32 %v582, %v826
        %v943 = vadd.f32 %v583, %v826
        %v944 = vadd.f32 %v584, %v826
        %v945 = vadd.f32 %v585, %v830
        %v946 = vadd.f32 %v586, %v830
        %v947 = vadd.f32 %v587, %v830
        %v948 = vadd.f32 %v588, %v830
        %v949 = vadd.f32 %v589, %v830
        %v950 = vadd.f32 %v590, %v834
        %v951 = vadd.f32 %v591, %v834
        %v952 = vadd.f32 %v592, %v834
        %v953 = vadd.f32 %v593, %v834
        %v954 = vadd.f32 %v594, %v834
        %v955 = vadd.f32 %v595, %v838
        %v956 = vadd.f32 %v596, %v838
        %v957 = vadd.f32 %v597, %v838
        %v958 = vadd.f32 %v598, %v838
        %v959 = vadd.f32 %v599, %v838
        %v960 = vmul.f32 %v840, %v840
        %v961 = vmul.f32 %v841, %v841
        %v962 = vmul.f32 %v842, %v842
        %v963 = vmul.f32 %v843, %v843
        %v964 = vmul.f32 %v844, %v844
        %v965 = vmul.f32 %v845, %v845
        %v966 = vmul.f32 %v846, %v846
        %v967 = vmul.f32 %v847, %v847
        %v968 = vmul.f32 %v848, %v848
        %v969 = vmul.f32 %v849, %v849
        %v970 = vmul.f32 %v850, %v850
        %v971 = vmul.f32 %v851, %v851
        %v972 = vmul.f32 %v852, %v852
        %v973 = vmul.f32 %v853, %v853
        %v974 = vmul.f32 %v854, %v854
        %v975 = vmul.f32 %v855, %v855
        %v976 = vmul.f32 %v856, %v856
        %v977 = vmul.f32 %v857, %v857
        %v978 = vmul.f32 %v858, %v858
        %v979 = vmul.f32 %v859, %v859
        %v980 = vmul.f32 %v860, %v860
        %v981 = vmul.f32 %v861, %v861
        %v982 = vmul.f32 %v862, %v862
        %v983 = vmul.f32 %v863, %v863
        %v984 = vmul.f32 %v864, %v864
        %v985 = vmul.f32 %v865, %v865
        %v986 = vmul.f32 %v866, %v866
        %v987 = vmul.f32 %v867, %v867
        %v988 = vmul.f32 %v868, %v868
        %v989 = vmul.f32 %v869, %v869
        %v990 = vmul.f32 %v870, %v870
        %v991 = vmul.f32 %v871, %v871
        %v992 = vmul.f32 %v872, %v872
        %v993 = vmul.f32 %v873, %v873
        %v994 = vmul.f32 %v874, %v874
        %v995 = vmul.f32 %v875, %v875
        %v996 = vmul.f32 %v876, %v876
        %v997 = vmul.f32 %v877, %v877
        %v998 = vmul.f32 %v878, %v878
        %v999 = vmul.f32 %v879, %v879
        %v1000 = vmul.f32 %v880, %v880
        %v1001 = vmul.f32 %v881, %v881
        %v1002 = vmul.f32 %v882, %v882
        %v1003 = vmul.f32 %v883, %v883
        %v1004 = vmul.f32 %v884, %v884
        %v1005 = vmul.f32 %v885, %v885
        %v1006 = vmul.f32 %v886, %v886
        %v1007 = vmul.f32 %v887, %v887
        %v1008 = vmul.f32 %v888, %v888
        %v1009 = vmul.f32 %v889, %v889
        %v1010 = vmul.f32 %v890, %v890
        %v1011 = vmul.f32 %v891, %v891
        %v1012 = vmul.f32 %v892, %v892
        %v1013 = vmul.f32 %v893, %v893
        %v1014 = vmul.f32 %v894, %v894
        %v1015 = vmul.f32 %v895, %v895
        %v1016 = vmul.f32 %v896, %v896
        %v1017 = vmul.f32 %v897, %v897
        %v1018 = vmul.f32 %v898, %v898
        %v1019 = vmul.f32 %v899, %v899
        %v1020 = vmul.f32 %v900, %v900
        %v1021 = vmul.f32 %v901, %v901
        %v1022 = vmul.f32 %v902, %v902
        %v1023 = vmul.f32 %v903, %v903
        %v1024 = vmul.f32 %v904, %v904
        %v1025 = vmul.f32 %v905, %v905
        %v1026 = vmul.f32 %v906, %v906
        %v1027 = vmul.f32 %v907, %v907
        %v1028 = vmul.f32 %v908, %v908
        %v1029 = vmul.f32 %v909, %v909
        %v1030 = vmul.f32 %v910, %v910
        %v1031 = vmul.f32 %v911, %v911
        %v1032 = vmul.f32 %v912, %v912
        %v1033 = vmul.f32 %v913, %v913
        %v1034 = vmul.f32 %v914, %v914
        %v1035 = vmul.f32 %v915, %v915
        %v1036 = vmul.f32 %v916, %v916
        %v1037 = vmul.f32 %v917, %v917
        %v1038 = vmul.f32 %v918, %v918
        %v1039 = vmul.f32 %v919, %v919
        %v1040 = vmul.f32 %v920, %v920
        %v1041 = vmul.f32 %v921, %v921
        %v1042 = vmul.f32 %v922, %v922
        %v1043 = vmul.f32 %v923, %v923
        %v1044 = vmul.f32 %v924, %v924
        %v1045 = vmul.f32 %v925, %v925
        %v1046 = vmul.f32 %v926, %v926
        %v1047 = vmul.f32 %v927, %v927
        %v1048 = vmul.f32 %v928, %v928
        %v1049 = vmul.f32 %v929, %v929
        %v1050 = vmul.f32 %v930, %v930
        %v1051 = vmul.f32 %v931, %v931
        %v1052 = vmul.f32 %v932, %v932
        %v1053 = vmul.f32 %v933, %v933
        %v1054 = vmul.f32 %v934, %v934
        %v1055 = vmul.f32 %v935, %v935
        %v1056 = vmul.f32 %v936, %v936
        %v1057 = vmul.f32 %v937, %v937
        %v1058 = vmul.f32 %v938, %v938
        %v1059 = vmul.f32 %v939, %v939
        %v1060 = vmul.f32 %v940, %v940
        %v1061 = vmul.f32 %v941, %v941
        %v1062 = vmul.f32 %v942, %v942
        %v1063 = vmul.f32 %v943, %v943
        %v1064 = vmul.f32 %v944, %v944
        %v1065 = vmul.f32 %v945, %v945
        %v1066 = vmul.f32 %v946, %v946
        %v1067 = vmul.f32 %v947, %v947
        %v1068 = vmul.f32 %v948, %v948
        %v1069 = vmul.f32 %v949, %v949
        %v1070 = vmul.f32 %v950, %v950
        %v1071 = vmul.f32 %v951, %v951
        %v1072 = vmul.f32 %v952, %v952
        %v1073 = vmul.f32 %v953, %v953
        %v1074 = vmul.f32 %v954, %v954
        %v1075 = vmul.f32 %v955, %v955
        %v1076 = vmul.f32 %v956, %v956
        %v1077 = vmul.f32 %v957, %v957
        %v1078 = vmul.f32 %v958, %v958
        %v1079 = vmul.f32 %v959, %v959
        %v1080 = vmul.f32 %v960, %v840
        %v1081 = vmul.f32 %v961, %v841
        %v1082 = vmul.f32 %v962, %v842
        %v1083 = vmul.f32 %v963, %v843
        %v1084 = vmul.f32 %v964, %v844
        %v1085 = vmul.f32 %v965, %v845
        %v1086 = vmul.f32 %v966, %v846
        %v1087 = vmul.f32 %v967, %v847
        %v1088 = vmul.f32 %v968, %v848
        %v1089 = vmul.f32 %v969, %v849
        %v1090 = vmul.f32 %v970, %v850
        %v1091 = vmul.f32 %v971, %v851
        %v1092 = vmul.f32 %v972, %v852
        %v1093 = vmul.f32 %v973, %v853
        %v1094 = vmul.f32 %v974, %v854
        %v1095 = vmul.f32 %v975, %v855
        %v1096 = vmul.f32 %v976, %v856
        %v1097 = vmul.f32 %v977, %v857
        %v1098 = vmul.f32 %v978, %v858
        %v1099 = vmul.f32 %v979, %v859
        %v1100 = vmul.f32 %v980, %v860
        %v1101 = vmul.f32 %v981, %v861
        %v1102 = vmul.f32 %v982, %v862
        %v1103 = vmul.f32 %v983, %v863
        %v1104 = vmul.f32 %v984, %v864
        %v1105 = vmul.f32 %v985, %v865
        %v1106 = vmul.f32 %v986, %v866
        %v1107 = vmul.f32 %v987, %v867
        %v1108 = vmul.f32 %v988, %v868
        %v1109 = vmul.f32 %v989, %v869
        %v1110 = vmul.f32 %v990, %v870
        %v1111 = vmul.f32 %v991, %v871
        %v1112 = vmul.f32 %v992, %v872
        %v1113 = vmul.f32 %v993, %v873
        %v1114 = vmul.f32 %v994, %v874
        %v1115 = vmul.f32 %v995, %v875
        %v1116 = vmul.f32 %v996, %v876
        %v1117 = vmul.f32 %v997, %v877
        %v1118 = vmul.f32 %v998, %v878
        %v1119 = vmul.f32 %v999, %v879
        %v1120 = vmul.f32 %v1000, %v880
        %v1121 = vmul.f32 %v1001, %v881
        %v1122 = vmul.f32 %v1002, %v882
        %v1123 = vmul.f32 %v1003, %v883
        %v1124 = vmul.f32 %v1004, %v884
        %v1125 = vmul.f32 %v1005, %v885
        %v1126 = vmul.f32 %v1006, %v886
        %v1127 = vmul.f32 %v1007, %v887
        %v1128 = vmul.f32 %v1008, %v888
        %v1129 = vmul.f32 %v1009, %v889
        %v1130 = vmul.f32 %v1010, %v890
        %v1131 = vmul.f32 %v1011, %v891
        %v1132 = vmul.f32 %v1012, %v892
        %v1133 = vmul.f32 %v1013, %v893
        %v1134 = vmul.f32 %v1014, %v894
        %v1135 = vmul.f32 %v1015, %v895
        %v1136 = vmul.f32 %v1016, %v896
        %v1137 = vmul.f32 %v1017, %v897
        %v1138 = vmul.f32 %v1018, %v898
        %v1139 = vmul.f32 %v1019, %v899
        %v1140 = vmul.f32 %v1020, %v900
        %v1141 = vmul.f32 %v1021, %v901
        %v1142 = vmul.f32 %v1022, %v902
        %v1143 = vmul.f32 %v1023, %v903
        %v1144 = vmul.f32 %v1024, %v904
        %v1145 = vmul.f32 %v1025, %v905
        %v1146 = vmul.f32 %v1026, %v906
        %v1147 = vmul.f32 %v1027, %v907
        %v1148 = vmul.f32 %v1028, %v908
        %v1149 = vmul.f32 %v1029, %v909
        %v1150 = vmul.f32 %v1030, %v910
        %v1151 = vmul.f32 %v1031, %v911
        %v1152 = vmul.f32 %v1032, %v912
        %v1153 = vmul.f32 %v1033, %v913
        %v1154 = vmul.f32 %v1034, %v914
        %v1155 = vmul.f32 %v1035, %v915
        %v1156 = vmul.f32 %v1036, %v916
        %v1157 = vmul.f32 %v1037, %v917
        %v1158 = vmul.f32 %v1038, %v918
        %v1159 = vmul.f32 %v1039, %v919
        %v1160 = vmul.f32 %v1040, %v920
        %v1161 = vmul.f32 %v1041, %v921
        %v1162 = vmul.f32 %v1042, %v922
        %v1163 = vmul.f32 %v1043, %v923
        %v1164 = vmul.f32 %v1044, %v924
        %v1165 = vmul.f32 %v1045, %v925
        %v1166 = vmul.f32 %v1046, %v926
        %v1167 = vmul.f32 %v1047, %v927
        %v1168 = vmul.f32 %v1048, %v928
        %v1169 = vmul.f32 %v1049, %v929
        %v1170 = vmul.f32 %v1050, %v930
        %v1171 = vmul.f32 %v1051, %v931
        %v1172 = vmul.f32 %v1052, %v932
        %v1173 = vmul.f32 %v1053, %v933
        %v1174 = vmul.f32 %v1054, %v934
        %v1175 = vmul.f32 %v1055, %v935
        %v1176 = vmul.f32 %v1056, %v936
        %v1177 = vmul.f32 %v1057, %v937
        %v1178 = vmul.f32 %v1058, %v938
        %v1179 = vmul.f32 %v1059, %v939
        %v1180 = vmul.f32 %v1060, %v940
        %v1181 = vmul.f32 %v1061, %v941
        %v1182 = vmul.f32 %v1062, %v942
        %v1183 = vmul.f32 %v1063, %v943
        %v1184 = vmul.f32 %v1064, %v944
        %v1185 = vmul.f32 %v1065, %v945
        %v1186 = vmul.f32 %v1066, %v946
        %v1187 = vmul.f32 %v1067, %v947
        %v1188 = vmul.f32 %v1068, %v948
        %v1189 = vmul.f32 %v1069, %v949
        %v1190 = vmul.f32 %v1070, %v950
        %v1191 = vmul.f32 %v1071, %v951
        %v1192 = vmul.f32 %v1072, %v952
        %v1193 = vmul.f32 %v1073, %v953
        %v1194 = vmul.f32 %v1074, %v954
        %v1195 = vmul.f32 %v1075, %v955
        %v1196 = vmul.f32 %v1076, %v956
        %v1197 = vmul.f32 %v1077, %v957
        %v1198 = vmul.f32 %v1078, %v958
        %v1199 = vmul.f32 %v1079, %v959
        %v1200 = vmul.f32 %v1080, 0.044715
        %v1201 = vmul.f32 %v1081, 0.044715
        %v1202 = vmul.f32 %v1082, 0.044715
        %v1203 = vmul.f32 %v1083, 0.044715
        %v1204 = vmul.f32 %v1084, 0.044715
        %v1205 = vmul.f32 %v1085, 0.044715
        %v1206 = vmul.f32 %v1086, 0.044715
        %v1207 = vmul.f32 %v1087, 0.044715
        %v1208 = vmul.f32 %v1088, 0.044715
        %v1209 = vmul.f32 %v1089, 0.044715
        %v1210 = vmul.f32 %v1090, 0.044715
        %v1211 = vmul.f32 %v1091, 0.044715
        %v1212 = vmul.f32 %v1092, 0.044715
        %v1213 = vmul.f32 %v1093, 0.044715
        %v1214 = vmul.f32 %v1094, 0.044715
        %v1215 = vmul.f32 %v1095, 0.044715
        %v1216 = vmul.f32 %v1096, 0.044715
        %v1217 = vmul.f32 %v1097, 0.044715
        %v1218 = vmul.f32 %v1098, 0.044715
        %v1219 = vmul.f32 %v1099, 0.044715
        %v1220 = vmul.f32 %v1100, 0.044715
        %v1221 = vmul.f32 %v1101, 0.044715
        %v1222 = vmul.f32 %v1102, 0.044715
        %v1223 = vmul.f32 %v1103, 0.044715
        %v1224 = vmul.f32 %v1104, 0.044715
        %v1225 = vmul.f32 %v1105, 0.044715
        %v1226 = vmul.f32 %v1106, 0.044715
        %v1227 = vmul.f32 %v1107, 0.044715
        %v1228 = vmul.f32 %v1108, 0.044715
        %v1229 = vmul.f32 %v1109, 0.044715
        %v1230 = vmul.f32 %v1110, 0.044715
        %v1231 = vmul.f32 %v1111, 0.044715
        %v1232 = vmul.f32 %v1112, 0.044715
        %v1233 = vmul.f32 %v1113, 0.044715
        %v1234 = vmul.f32 %v1114, 0.044715
        %v1235 = vmul.f32 %v1115, 0.044715
        %v1236 = vmul.f32 %v1116, 0.044715
        %v1237 = vmul.f32 %v1117, 0.044715
        %v1238 = vmul.f32 %v1118, 0.044715
        %v1239 = vmul.f32 %v1119, 0.044715
        %v1240 = vmul.f32 %v1120, 0.044715
        %v1241 = vmul.f32 %v1121, 0.044715
        %v1242 = vmul.f32 %v1122, 0.044715
        %v1243 = vmul.f32 %v1123, 0.044715
        %v1244 = vmul.f32 %v1124, 0.044715
        %v1245 = vmul.f32 %v1125, 0.044715
        %v1246 = vmul.f32 %v1126, 0.044715
        %v1247 = vmul.f32 %v1127, 0.044715
        %v1248 = vmul.f32 %v1128, 0.044715
        %v1249 = vmul.f32 %v1129, 0.044715
        %v1250 = vmul.f32 %v1130, 0.044715
        %v1251 = vmul.f32 %v1131, 0.044715
        %v1252 = vmul.f32 %v1132, 0.044715
        %v1253 = vmul.f32 %v1133, 0.044715
        %v1254 = vmul.f32 %v1134, 0.044715
        %v1255 = vmul.f32 %v1135, 0.044715
        %v1256 = vmul.f32 %v1136, 0.044715
        %v1257 = vmul.f32 %v1137, 0.044715
        %v1258 = vmul.f32 %v1138, 0.044715
        %v1259 = vmul.f32 %v1139, 0.044715
        %v1260 = vmul.f32 %v1140, 0.044715
        %v1261 = vmul.f32 %v1141, 0.044715
        %v1262 = vmul.f32 %v1142, 0.044715
        %v1263 = vmul.f32 %v1143, 0.044715
        %v1264 = vmul.f32 %v1144, 0.044715
        %v1265 = vmul.f32 %v1145, 0.044715
        %v1266 = vmul.f32 %v1146, 0.044715
        %v1267 = vmul.f32 %v1147, 0.044715
        %v1268 = vmul.f32 %v1148, 0.044715
        %v1269 = vmul.f32 %v1149, 0.044715
        %v1270 = vmul.f32 %v1150, 0.044715
        %v1271 = vmul.f32 %v1151, 0.044715
        %v1272 = vmul.f32 %v1152, 0.044715
        %v1273 = vmul.f32 %v1153, 0.044715
        %v1274 = vmul.f32 %v1154, 0.044715
        %v1275 = vmul.f32 %v1155, 0.044715
        %v1276 = vmul.f32 %v1156, 0.044715
        %v1277 = vmul.f32 %v1157, 0.044715
        %v1278 = vmul.f32 %v1158, 0.044715
        %v1279 = vmul.f32 %v1159, 0.044715
        %v1280 = vmul.f32 %v1160, 0.044715
        %v1281 = vmul.f32 %v1161, 0.044715
        %v1282 = vmul.f32 %v1162, 0.044715
        %v1283 = vmul.f32 %v1163, 0.044715
        %v1284 = vmul.f32 %v1164, 0.044715
        %v1285 = vmul.f32 %v1165, 0.044715
        %v1286 = vmul.f32 %v1166, 0.044715
        %v1287 = vmul.f32 %v1167, 0.044715
        %v1288 = vmul.f32 %v1168, 0.044715
        %v1289 = vmul.f32 %v1169, 0.044715
        %v1290 = vmul.f32 %v1170, 0.044715
        %v1291 = vmul.f32 %v1171, 0.044715
        %v1292 = vmul.f32 %v1172, 0.044715
        %v1293 = vmul.f32 %v1173, 0.044715
        %v1294 = vmul.f32 %v1174, 0.044715
        %v1295 = vmul.f32 %v1175, 0.044715
        %v1296 = vmul.f32 %v1176, 0.044715
        %v1297 = vmul.f32 %v1177, 0.044715
        %v1298 = vmul.f32 %v1178, 0.044715
        %v1299 = vmul.f32 %v1179, 0.044715
        %v1300 = vmul.f32 %v1180, 0.044715
        %v1301 = vmul.f32 %v1181, 0.044715
        %v1302 = vmul.f32 %v1182, 0.044715
        %v1303 = vmul.f32 %v1183, 0.044715
        %v1304 = vmul.f32 %v1184, 0.044715
        %v1305 = vmul.f32 %v1185, 0.044715
        %v1306 = vmul.f32 %v1186, 0.044715
        %v1307 = vmul.f32 %v1187, 0.044715
        %v1308 = vmul.f32 %v1188, 0.044715
        %v1309 = vmul.f32 %v1189, 0.044715
        %v1310 = vmul.f32 %v1190, 0.044715
        %v1311 = vmul.f32 %v1191, 0.044715
        %v1312 = vmul.f32 %v1192, 0.044715
        %v1313 = vmul.f32 %v1193, 0.044715
        %v1314 = vmul.f32 %v1194, 0.044715
        %v1315 = vmul.f32 %v1195, 0.044715
        %v1316 = vmul.f32 %v1196, 0.044715
        %v1317 = vmul.f32 %v1197, 0.044715
        %v1318 = vmul.f32 %v1198, 0.044715
        %v1319 = vmul.f32 %v1199, 0.044715
        %v1320 = vadd.f32 %v840, %v1200
        %v1321 = vadd.f32 %v841, %v1201
        %v1322 = vadd.f32 %v842, %v1202
        %v1323 = vadd.f32 %v843, %v1203
        %v1324 = vadd.f32 %v844, %v1204
        %v1325 = vadd.f32 %v845, %v1205
        %v1326 = vadd.f32 %v846, %v1206
        %v1327 = vadd.f32 %v847, %v1207
        %v1328 = vadd.f32 %v848, %v1208
        %v1329 = vadd.f32 %v849, %v1209
        %v1330 = vadd.f32 %v850, %v1210
        %v1331 = vadd.f32 %v851, %v1211
        %v1332 = vadd.f32 %v852, %v1212
        %v1333 = vadd.f32 %v853, %v1213
        %v1334 = vadd.f32 %v854, %v1214
        %v1335 = vadd.f32 %v855, %v1215
        %v1336 = vadd.f32 %v856, %v1216
        %v1337 = vadd.f32 %v857, %v1217
        %v1338 = vadd.f32 %v858, %v1218
        %v1339 = vadd.f32 %v859, %v1219
        %v1340 = vadd.f32 %v860, %v1220
        %v1341 = vadd.f32 %v861, %v1221
        %v1342 = vadd.f32 %v862, %v1222
        %v1343 = vadd.f32 %v863, %v1223
        %v1344 = vadd.f32 %v864, %v1224
        %v1345 = vadd.f32 %v865, %v1225
        %v1346 = vadd.f32 %v866, %v1226
        %v1347 = vadd.f32 %v867, %v1227
        %v1348 = vadd.f32 %v868, %v1228
        %v1349 = vadd.f32 %v869, %v1229
        %v1350 = vadd.f32 %v870, %v1230
        %v1351 = vadd.f32 %v871, %v1231
        %v1352 = vadd.f32 %v872, %v1232
        %v1353 = vadd.f32 %v873, %v1233
        %v1354 = vadd.f32 %v874, %v1234
        %v1355 = vadd.f32 %v875, %v1235
        %v1356 = vadd.f32 %v876, %v1236
        %v1357 = vadd.f32 %v877, %v1237
        %v1358 = vadd.f32 %v878, %v1238
        %v1359 = vadd.f32 %v879, %v1239
        %v1360 = vadd.f32 %v880, %v1240
        %v1361 = vadd.f32 %v881, %v1241
        %v1362 = vadd.f32 %v882, %v1242
        %v1363 = vadd.f32 %v883, %v1243
        %v1364 = vadd.f32 %v884, %v1244
        %v1365 = vadd.f32 %v885, %v1245
        %v1366 = vadd.f32 %v886, %v1246
        %v1367 = vadd.f32 %v887, %v1247
        %v1368 = vadd.f32 %v888, %v1248
        %v1369 = vadd.f32 %v889, %v1249
        %v1370 = vadd.f32 %v890, %v1250
        %v1371 = vadd.f32 %v891, %v1251
        %v1372 = vadd.f32 %v892, %v1252
        %v1373 = vadd.f32 %v893, %v1253
        %v1374 = vadd.f32 %v894, %v1254
        %v1375 = vadd.f32 %v895, %v1255
        %v1376 = vadd.f32 %v896, %v1256
        %v1377 = vadd.f32 %v897, %v1257
        %v1378 = vadd.f32 %v898, %v1258
        %v1379 = vadd.f32 %v899, %v1259
        %v1380 = vadd.f32 %v900, %v1260
        %v1381 = vadd.f32 %v901, %v1261
        %v1382 = vadd.f32 %v902, %v1262
        %v1383 = vadd.f32 %v903, %v1263
        %v1384 = vadd.f32 %v904, %v1264
        %v1385 = vadd.f32 %v905, %v1265
        %v1386 = vadd.f32 %v906, %v1266
        %v1387 = vadd.f32 %v907, %v1267
        %v1388 = vadd.f32 %v908, %v1268
        %v1389 = vadd.f32 %v909, %v1269
        %v1390 = vadd.f32 %v910, %v1270
        %v1391 = vadd.f32 %v911, %v1271
        %v1392 = vadd.f32 %v912, %v1272
        %v1393 = vadd.f32 %v913, %v1273
        %v1394 = vadd.f32 %v914, %v1274
        %v1395 = vadd.f32 %v915, %v1275
        %v1396 = vadd.f32 %v916, %v1276
        %v1397 = vadd.f32 %v917, %v1277
        %v1398 = vadd.f32 %v918, %v1278
        %v1399 = vadd.f32 %v919, %v1279
        %v1400 = vadd.f32 %v920, %v1280
        %v1401 = vadd.f32 %v921, %v1281
        %v1402 = vadd.f32 %v922, %v1282
        %v1403 = vadd.f32 %v923, %v1283
        %v1404 = vadd.f32 %v924, %v1284
        %v1405 = vadd.f32 %v925, %v1285
        %v1406 = vadd.f32 %v926, %v1286
        %v1407 = vadd.f32 %v927, %v1287
        %v1408 = vadd.f32 %v928, %v1288
        %v1409 = vadd.f32 %v929, %v1289
        %v1410 = vadd.f32 %v930, %v1290
        %v1411 = vadd.f32 %v931, %v1291
        %v1412 = vadd.f32 %v932, %v1292
        %v1413 = vadd.f32 %v933, %v1293
        %v1414 = vadd.f32 %v934, %v1294
        %v1415 = vadd.f32 %v935, %v1295
        %v1416 = vadd.f32 %v936, %v1296
        %v1417 = vadd.f32 %v937, %v1297
        %v1418 = vadd.f32 %v938, %v1298
        %v1419 = vadd.f32 %v939, %v1299
        %v1420 = vadd.f32 %v940, %v1300
        %v1421 = vadd.f32 %v941, %v1301
        %v1422 = vadd.f32 %v942, %v1302
        %v1423 = vadd.f32 %v943, %v1303
        %v1424 = vadd.f32 %v944, %v1304
        %v1425 = vadd.f32 %v945, %v1305
        %v1426 = vadd.f32 %v946, %v1306
        %v1427 = vadd.f32 %v947, %v1307
        %v1428 = vadd.f32 %v948, %v1308
        %v1429 = vadd.f32 %v949, %v1309
        %v1430 = vadd.f32 %v950, %v1310
        %v1431 = vadd.f32 %v951, %v1311
        %v1432 = vadd.f32 %v952, %v1312
        %v1433 = vadd.f32 %v953, %v1313
        %v1434 = vadd.f32 %v954, %v1314
        %v1435 = vadd.f32 %v955, %v1315
        %v1436 = vadd.f32 %v956, %v1316
        %v1437 = vadd.f32 %v957, %v1317
        %v1438 = vadd.f32 %v958, %v1318
        %v1439 = vadd.f32 %v959, %v1319
        %v1440 = vmul.f32 %v1320, 0.7978846
        %v1441 = vmul.f32 %v1321, 0.7978846
        %v1442 = vmul.f32 %v1322, 0.7978846
        %v1443 = vmul.f32 %v1323, 0.7978846
        %v1444 = vmul.f32 %v1324, 0.7978846
        %v1445 = vmul.f32 %v1325, 0.7978846
        %v1446 = vmul.f32 %v1326, 0.7978846
        %v1447 = vmul.f32 %v1327, 0.7978846
        %v1448 = vmul.f32 %v1328, 0.7978846
        %v1449 = vmul.f32 %v1329, 0.7978846
        %v1450 = vmul.f32 %v1330, 0.7978846
        %v1451 = vmul.f32 %v1331, 0.7978846
        %v1452 = vmul.f32 %v1332, 0.7978846
        %v1453 = vmul.f32 %v1333, 0.7978846
        %v1454 = vmul.f32 %v1334, 0.7978846
        %v1455 = vmul.f32 %v1335, 0.7978846
        %v1456 = vmul.f32 %v1336, 0.7978846
        %v1457 = vmul.f32 %v1337, 0.7978846
        %v1458 = vmul.f32 %v1338, 0.7978846
        %v1459 = vmul.f32 %v1339, 0.7978846
        %v1460 = vmul.f32 %v1340, 0.7978846
        %v1461 = vmul.f32 %v1341, 0.7978846
        %v1462 = vmul.f32 %v1342, 0.7978846
        %v1463 = vmul.f32 %v1343, 0.7978846
        %v1464 = vmul.f32 %v1344, 0.7978846
        %v1465 = vmul.f32 %v1345, 0.7978846
        %v1466 = vmul.f32 %v1346, 0.7978846
        %v1467 = vmul.f32 %v1347, 0.7978846
        %v1468 = vmul.f32 %v1348, 0.7978846
        %v1469 = vmul.f32 %v1349, 0.7978846
        %v1470 = vmul.f32 %v1350, 0.7978846
        %v1471 = vmul.f32 %v1351, 0.7978846
        %v1472 = vmul.f32 %v1352, 0.7978846
        %v1473 = vmul.f32 %v1353, 0.7978846
        %v1474 = vmul.f32 %v1354, 0.7978846
        %v1475 = vmul.f32 %v1355, 0.7978846
        %v1476 = vmul.f32 %v1356, 0.7978846
        %v1477 = vmul.f32 %v1357, 0.7978846
        %v1478 = vmul.f32 %v1358, 0.7978846
        %v1479 = vmul.f32 %v1359, 0.7978846
        %v1480 = vmul.f32 %v1360, 0.7978846
        %v1481 = vmul.f32 %v1361, 0.7978846
        %v1482 = vmul.f32 %v1362, 0.7978846
        %v1483 = vmul.f32 %v1363, 0.7978846
        %v1484 = vmul.f32 %v1364, 0.7978846
        %v1485 = vmul.f32 %v1365, 0.7978846
        %v1486 = vmul.f32 %v1366, 0.7978846
        %v1487 = vmul.f32 %v1367, 0.7978846
        %v1488 = vmul.f32 %v1368, 0.7978846
        %v1489 = vmul.f32 %v1369, 0.7978846
        %v1490 = vmul.f32 %v1370, 0.7978846
        %v1491 = vmul.f32 %v1371, 0.7978846
        %v1492 = vmul.f32 %v1372, 0.7978846
        %v1493 = vmul.f32 %v1373, 0.7978846
        %v1494 = vmul.f32 %v1374, 0.7978846
        %v1495 = vmul.f32 %v1375, 0.7978846
        %v1496 = vmul.f32 %v1376, 0.7978846
        %v1497 = vmul.f32 %v1377, 0.7978846
        %v1498 = vmul.f32 %v1378, 0.7978846
        %v1499 = vmul.f32 %v1379, 0.7978846
        %v1500 = vmul.f32 %v1380, 0.7978846
        %v1501 = vmul.f32 %v1381, 0.7978846
        %v1502 = vmul.f32 %v1382, 0.7978846
        %v1503 = vmul.f32 %v1383, 0.7978846
        %v1504 = vmul.f32 %v1384, 0.7978846
        %v1505 = vmul.f32 %v1385, 0.7978846
        %v1506 = vmul.f32 %v1386, 0.7978846
        %v1507 = vmul.f32 %v1387, 0.7978846
        %v1508 = vmul.f32 %v1388, 0.7978846
        %v1509 = vmul.f32 %v1389, 0.7978846
        %v1510 = vmul.f32 %v1390, 0.7978846
        %v1511 = vmul.f32 %v1391, 0.7978846
        %v1512 = vmul.f32 %v1392, 0.7978846
        %v1513 = vmul.f32 %v1393, 0.7978846
        %v1514 = vmul.f32 %v1394, 0.7978846
        %v1515 = vmul.f32 %v1395, 0.7978846
        %v1516 = vmul.f32 %v1396, 0.7978846
        %v1517 = vmul.f32 %v1397, 0.7978846
        %v1518 = vmul.f32 %v1398, 0.7978846
        %v1519 = vmul.f32 %v1399, 0.7978846
        %v1520 = vmul.f32 %v1400, 0.7978846
        %v1521 = vmul.f32 %v1401, 0.7978846
        %v1522 = vmul.f32 %v1402, 0.7978846
        %v1523 = vmul.f32 %v1403, 0.7978846
        %v1524 = vmul.f32 %v1404, 0.7978846
        %v1525 = vmul.f32 %v1405, 0.7978846
        %v1526 = vmul.f32 %v1406, 0.7978846
        %v1527 = vmul.f32 %v1407, 0.7978846
        %v1528 = vmul.f32 %v1408, 0.7978846
        %v1529 = vmul.f32 %v1409, 0.7978846
        %v1530 = vmul.f32 %v1410, 0.7978846
        %v1531 = vmul.f32 %v1411, 0.7978846
        %v1532 = vmul.f32 %v1412, 0.7978846
        %v1533 = vmul.f32 %v1413, 0.7978846
        %v1534 = vmul.f32 %v1414, 0.7978846
        %v1535 = vmul.f32 %v1415, 0.7978846
        %v1536 = vmul.f32 %v1416, 0.7978846
        %v1537 = vmul.f32 %v1417, 0.7978846
        %v1538 = vmul.f32 %v1418, 0.7978846
        %v1539 = vmul.f32 %v1419, 0.7978846
        %v1540 = vmul.f32 %v1420, 0.7978846
        %v1541 = vmul.f32 %v1421, 0.7978846
        %v1542 = vmul.f32 %v1422, 0.7978846
        %v1543 = vmul.f32 %v1423, 0.7978846
        %v1544 = vmul.f32 %v1424, 0.7978846
        %v1545 = vmul.f32 %v1425, 0.7978846
        %v1546 = vmul.f32 %v1426, 0.7978846
        %v1547 = vmul.f32 %v1427, 0.7978846
        %v1548 = vmul.f32 %v1428, 0.7978846
        %v1549 = vmul.f32 %v1429, 0.7978846
        %v1550 = vmul.f32 %v1430, 0.7978846
        %v1551 = vmul.f32 %v1431, 0.7978846
        %v1552 = vmul.f32 %v1432, 0.7978846
        %v1553 = vmul.f32 %v1433, 0.7978846
        %v1554 = vmul.f32 %v1434, 0.7978846
        %v1555 = vmul.f32 %v1435, 0.7978846
        %v1556 = vmul.f32 %v1436, 0.7978846
        %v1557 = vmul.f32 %v1437, 0.7978846
        %v1558 = vmul.f32 %v1438, 0.7978846
        %v1559 = vmul.f32 %v1439, 0.7978846
        %v1560 = vmul.f32 %v840, 0.5
        %v1561 = vmul.f32 %v841, 0.5
        %v1562 = vmul.f32 %v842, 0.5
        %v1563 = vmul.f32 %v843, 0.5
        %v1564 = vmul.f32 %v844, 0.5
        %v1565 = vmul.f32 %v845, 0.5
        %v1566 = vmul.f32 %v846, 0.5
        %v1567 = vmul.f32 %v847, 0.5
        %v1568 = vmul.f32 %v848, 0.5
        %v1569 = vmul.f32 %v849, 0.5
        %v1570 = vmul.f32 %v850, 0.5
        %v1571 = vmul.f32 %v851, 0.5
        %v1572 = vmul.f32 %v852, 0.5
        %v1573 = vmul.f32 %v853, 0.5
        %v1574 = vmul.f32 %v854, 0.5
        %v1575 = vmul.f32 %v855, 0.5
        %v1576 = vmul.f32 %v856, 0.5
        %v1577 = vmul.f32 %v857, 0.5
        %v1578 = vmul.f32 %v858, 0.5
        %v1579 = vmul.f32 %v859, 0.5
        %v1580 = vmul.f32 %v860, 0.5
        %v1581 = vmul.f32 %v861, 0.5
        %v1582 = vmul.f32 %v862, 0.5
        %v1583 = vmul.f32 %v863, 0.5
        %v1584 = vmul.f32 %v864, 0.5
        %v1585 = vmul.f32 %v865, 0.5
        %v1586 = vmul.f32 %v866, 0.5
        %v1587 = vmul.f32 %v867, 0.5
        %v1588 = vmul.f32 %v868, 0.5
        %v1589 = vmul.f32 %v869, 0.5
        %v1590 = vmul.f32 %v870, 0.5
        %v1591 = vmul.f32 %v871, 0.5
        %v1592 = vmul.f32 %v872, 0.5
        %v1593 = vmul.f32 %v873, 0.5
        %v1594 = vmul.f32 %v874, 0.5
        %v1595 = vmul.f32 %v875, 0.5
        %v1596 = vmul.f32 %v876, 0.5
        %v1597 = vmul.f32 %v877, 0.5
        %v1598 = vmul.f32 %v878, 0.5
        %v1599 = vmul.f32 %v879, 0.5
        %v1600 = vmul.f32 %v880, 0.5
        %v1601 = vmul.f32 %v881, 0.5
        %v1602 = vmul.f32 %v882, 0.5
        %v1603 = vmul.f32 %v883, 0.5
        %v1604 = vmul.f32 %v884, 0.5
        %v1605 = vmul.f32 %v885, 0.5
        %v1606 = vmul.f32 %v886, 0.5
        %v1607 = vmul.f32 %v887, 0.5
        %v1608 = vmul.f32 %v888, 0.5
        %v1609 = vmul.f32 %v889, 0.5
        %v1610 = vmul.f32 %v890, 0.5
        %v1611 = vmul.f32 %v891, 0.5
        %v1612 = vmul.f32 %v892, 0.5
        %v1613 = vmul.f32 %v893, 0.5
        %v1614 = vmul.f32 %v894, 0.5
        %v1615 = vmul.f32 %v895, 0.5
        %v1616 = vmul.f32 %v896, 0.5
        %v1617 = vmul.f32 %v897, 0.5
        %v1618 = vmul.f32 %v898, 0.5
        %v1619 = vmul.f32 %v899, 0.5
        %v1620 = vmul.f32 %v900, 0.5
        %v1621 = vmul.f32 %v901, 0.5
        %v1622 = vmul.f32 %v902, 0.5
        %v1623 = vmul.f32 %v903, 0.5
        %v1624 = vmul.f32 %v904, 0.5
        %v1625 = vmul.f32 %v905, 0.5
        %v1626 = vmul.f32 %v906, 0.5
        %v1627 = vmul.f32 %v907, 0.5
        %v1628 = vmul.f32 %v908, 0.5
        %v1629 = vmul.f32 %v909, 0.5
        %v1630 = vmul.f32 %v910, 0.5
        %v1631 = vmul.f32 %v911, 0.5
        %v1632 = vmul.f32 %v912, 0.5
        %v1633 = vmul.f32 %v913, 0.5
        %v1634 = vmul.f32 %v914, 0.5
        %v1635 = vmul.f32 %v915, 0.5
        %v1636 = vmul.f32 %v916, 0.5
        %v1637 = vmul.f32 %v917, 0.5
        %v1638 = vmul.f32 %v918, 0.5
        %v1639 = vmul.f32 %v919, 0.5
        %v1640 = vmul.f32 %v920, 0.5
        %v1641 = vmul.f32 %v921, 0.5
        %v1642 = vmul.f32 %v922, 0.5
        %v1643 = vmul.f32 %v923, 0.5
        %v1644 = vmul.f32 %v924, 0.5
        %v1645 = vmul.f32 %v925, 0.5
        %v1646 = vmul.f32 %v926, 0.5
        %v1647 = vmul.f32 %v927, 0.5
        %v1648 = vmul.f32 %v928, 0.5
        %v1649 = vmul.f32 %v929, 0.5
        %v1650 = vmul.f32 %v930, 0.5
        %v1651 = vmul.f32 %v931, 0.5
        %v1652 = vmul.f32 %v932, 0.5
        %v1653 = vmul.f32 %v933, 0.5
        %v1654 = vmul.f32 %v934, 0.5
        %v1655 = vmul.f32 %v935, 0.5
        %v1656 = vmul.f32 %v936, 0.5
        %v1657 = vmul.f32 %v937, 0.5
        %v1658 = vmul.f32 %v938, 0.5
        %v1659 = vmul.f32 %v939, 0.5
        %v1660 = vmul.f32 %v940, 0.5
        %v1661 = vmul.f32 %v941, 0.5
        %v1662 = vmul.f32 %v942, 0.5
        %v1663 = vmul.f32 %v943, 0.5
        %v1664 = vmul.f32 %v944, 0.5
        %v1665 = vmul.f32 %v945, 0.5
        %v1666 = vmul.f32 %v946, 0.5
        %v1667 = vmul.f32 %v947, 0.5
        %v1668 = vmul.f32 %v948, 0.5
        %v1669 = vmul.f32 %v949, 0.5
        %v1670 = vmul.f32 %v950, 0.5
        %v1671 = vmul.f32 %v951, 0.5
        %v1672 = vmul.f32 %v952, 0.5
        %v1673 = vmul.f32 %v953, 0.5
        %v1674 = vmul.f32 %v954, 0.5
        %v1675 = vmul.f32 %v955, 0.5
        %v1676 = vmul.f32 %v956, 0.5
        %v1677 = vmul.f32 %v957, 0.5
        %v1678 = vmul.f32 %v958, 0.5
        %v1679 = vmul.f32 %v959, 0.5
        %v1680 = vtanh.pop %v1440
        %v1681 = vtanh.pop %v1441
        %v1682 = vtanh.pop %v1442
        %v1683 = vtanh.pop %v1443
        %v1684 = vtanh.pop %v1444
        %v1685 = vtanh.pop %v1445
        %v1686 = vtanh.pop %v1446
        %v1687 = vtanh.pop %v1447
        %v1688 = vtanh.pop %v1448
        %v1689 = vtanh.pop %v1449
        %v1690 = vtanh.pop %v1450
        %v1691 = vtanh.pop %v1451
        %v1692 = vtanh.pop %v1452
        %v1693 = vtanh.pop %v1453
        %v1694 = vtanh.pop %v1454
        %v1695 = vtanh.pop %v1455
        %v1696 = vtanh.pop %v1456
        %v1697 = vtanh.pop %v1457
        %v1698 = vtanh.pop %v1458
        %v1699 = vtanh.pop %v1459
        %v1700 = vtanh.pop %v1460
        %v1701 = vtanh.pop %v1461
        %v1702 = vtanh.pop %v1462
        %v1703 = vtanh.pop %v1463
        %v1704 = vtanh.pop %v1464
        %v1705 = vtanh.pop %v1465
        %v1706 = vtanh.pop %v1466
        %v1707 = vtanh.pop %v1467
        %v1708 = vtanh.pop %v1468
        %v1709 = vtanh.pop %v1469
        %v1710 = vtanh.pop %v1470
        %v1711 = vtanh.pop %v1471
        %v1712 = vtanh.pop %v1472
        %v1713 = vtanh.pop %v1473
        %v1714 = vtanh.pop %v1474
        %v1715 = vtanh.pop %v1475
        %v1716 = vtanh.pop %v1476
        %v1717 = vtanh.pop %v1477
        %v1718 = vtanh.pop %v1478
        %v1719 = vtanh.pop %v1479
        %v1720 = vtanh.pop %v1480
        %v1721 = vtanh.pop %v1481
        %v1722 = vtanh.pop %v1482
        %v1723 = vtanh.pop %v1483
        %v1724 = vtanh.pop %v1484
        %v1725 = vtanh.pop %v1485
        %v1726 = vtanh.pop %v1486
        %v1727 = vtanh.pop %v1487
        %v1728 = vtanh.pop %v1488
        %v1729 = vtanh.pop %v1489
        %v1730 = vtanh.pop %v1490
        %v1731 = vtanh.pop %v1491
        %v1732 = vtanh.pop %v1492
        %v1733 = vtanh.pop %v1493
        %v1734 = vtanh.pop %v1494
        %v1735 = vtanh.pop %v1495
        %v1736 = vtanh.pop %v1496
        %v1737 = vtanh.pop %v1497
        %v1738 = vtanh.pop %v1498
        %v1739 = vtanh.pop %v1499
        %v1740 = vtanh.pop %v1500
        %v1741 = vtanh.pop %v1501
        %v1742 = vtanh.pop %v1502
        %v1743 = vtanh.pop %v1503
        %v1744 = vtanh.pop %v1504
        %v1745 = vtanh.pop %v1505
        %v1746 = vtanh.pop %v1506
        %v1747 = vtanh.pop %v1507
        %v1748 = vtanh.pop %v1508
        %v1749 = vtanh.pop %v1509
        %v1750 = vtanh.pop %v1510
        %v1751 = vtanh.pop %v1511
        %v1752 = vtanh.pop %v1512
        %v1753 = vtanh.pop %v1513
        %v1754 = vtanh.pop %v1514
        %v1755 = vtanh.pop %v1515
        %v1756 = vtanh.pop %v1516
        %v1757 = vtanh.pop %v1517
        %v1758 = vtanh.pop %v1518
        %v1759 = vtanh.pop %v1519
        %v1760 = vtanh.pop %v1520
        %v1761 = vtanh.pop %v1521
        %v1762 = vtanh.pop %v1522
        %v1763 = vtanh.pop %v1523
        %v1764 = vtanh.pop %v1524
        %v1765 = vtanh.pop %v1525
        %v1766 = vtanh.pop %v1526
        %v1767 = vtanh.pop %v1527
        %v1768 = vtanh.pop %v1528
        %v1769 = vtanh.pop %v1529
        %v1770 = vtanh.pop %v1530
        %v1771 = vtanh.pop %v1531
        %v1772 = vtanh.pop %v1532
        %v1773 = vtanh.pop %v1533
        %v1774 = vtanh.pop %v1534
        %v1775 = vtanh.pop %v1535
        %v1776 = vtanh.pop %v1536
        %v1777 = vtanh.pop %v1537
        %v1778 = vtanh.pop %v1538
        %v1779 = vtanh.pop %v1539
        %v1780 = vtanh.pop %v1540
        %v1781 = vtanh.pop %v1541
        %v1782 = vtanh.pop %v1542
        %v1783 = vtanh.pop %v1543
        %v1784 = vtanh.pop %v1544
        %v1785 = vtanh.pop %v1545
        %v1786 = vtanh.pop %v1546
        %v1787 = vtanh.pop %v1547
        %v1788 = vtanh.pop %v1548
        %v1789 = vtanh.pop %v1549
        %v1790 = vtanh.pop %v1550
        %v1791 = vtanh.pop %v1551
        %v1792 = vtanh.pop %v1552
        %v1793 = vtanh.pop %v1553
        %v1794 = vtanh.pop %v1554
        %v1795 = vtanh.pop %v1555
        %v1796 = vtanh.pop %v1556
        %v1797 = vtanh.pop %v1557
        %v1798 = vtanh.pop %v1558
        %v1799 = vtanh.pop %v1559
        %v1800 = vadd.f32 %v1680, 1.0
        %v1801 = vadd.f32 %v1681, 1.0
        %v1802 = vadd.f32 %v1682, 1.0
        %v1803 = vadd.f32 %v1683, 1.0
        %v1804 = vadd.f32 %v1684, 1.0
        %v1805 = vadd.f32 %v1685, 1.0
        %v1806 = vadd.f32 %v1686, 1.0
        %v1807 = vadd.f32 %v1687, 1.0
        %v1808 = vadd.f32 %v1688, 1.0
        %v1809 = vadd.f32 %v1689, 1.0
        %v1810 = vadd.f32 %v1690, 1.0
        %v1811 = vadd.f32 %v1691, 1.0
        %v1812 = vadd.f32 %v1692, 1.0
        %v1813 = vadd.f32 %v1693, 1.0
        %v1814 = vadd.f32 %v1694, 1.0
        %v1815 = vadd.f32 %v1695, 1.0
        %v1816 = vadd.f32 %v1696, 1.0
        %v1817 = vadd.f32 %v1697, 1.0
        %v1818 = vadd.f32 %v1698, 1.0
        %v1819 = vadd.f32 %v1699, 1.0
        %v1820 = vadd.f32 %v1700, 1.0
        %v1821 = vadd.f32 %v1701, 1.0
        %v1822 = vadd.f32 %v1702, 1.0
        %v1823 = vadd.f32 %v1703, 1.0
        %v1824 = vadd.f32 %v1704, 1.0
        %v1825 = vadd.f32 %v1705, 1.0
        %v1826 = vadd.f32 %v1706, 1.0
        %v1827 = vadd.f32 %v1707, 1.0
        %v1828 = vadd.f32 %v1708, 1.0
        %v1829 = vadd.f32 %v1709, 1.0
        %v1830 = vadd.f32 %v1710, 1.0
        %v1831 = vadd.f32 %v1711, 1.0
        %v1832 = vadd.f32 %v1712, 1.0
        %v1833 = vadd.f32 %v1713, 1.0
        %v1834 = vadd.f32 %v1714, 1.0
        %v1835 = vadd.f32 %v1715, 1.0
        %v1836 = vadd.f32 %v1716, 1.0
        %v1837 = vadd.f32 %v1717, 1.0
        %v1838 = vadd.f32 %v1718, 1.0
        %v1839 = vadd.f32 %v1719, 1.0
        %v1840 = vadd.f32 %v1720, 1.0
        %v1841 = vadd.f32 %v1721, 1.0
        %v1842 = vadd.f32 %v1722, 1.0
        %v1843 = vadd.f32 %v1723, 1.0
        %v1844 = vadd.f32 %v1724, 1.0
        %v1845 = vadd.f32 %v1725, 1.0
        %v1846 = vadd.f32 %v1726, 1.0
        %v1847 = vadd.f32 %v1727, 1.0
        %v1848 = vadd.f32 %v1728, 1.0
        %v1849 = vadd.f32 %v1729, 1.0
        %v1850 = vadd.f32 %v1730, 1.0
        %v1851 = vadd.f32 %v1731, 1.0
        %v1852 = vadd.f32 %v1732, 1.0
        %v1853 = vadd.f32 %v1733, 1.0
        %v1854 = vadd.f32 %v1734, 1.0
        %v1855 = vadd.f32 %v1735, 1.0
        %v1856 = vadd.f32 %v1736, 1.0
        %v1857 = vadd.f32 %v1737, 1.0
        %v1858 = vadd.f32 %v1738, 1.0
        %v1859 = vadd.f32 %v1739, 1.0
        %v1860 = vadd.f32 %v1740, 1.0
        %v1861 = vadd.f32 %v1741, 1.0
        %v1862 = vadd.f32 %v1742, 1.0
        %v1863 = vadd.f32 %v1743, 1.0
        %v1864 = vadd.f32 %v1744, 1.0
        %v1865 = vadd.f32 %v1745, 1.0
        %v1866 = vadd.f32 %v1746, 1.0
        %v1867 = vadd.f32 %v1747, 1.0
        %v1868 = vadd.f32 %v1748, 1.0
        %v1869 = vadd.f32 %v1749, 1.0
        %v1870 = vadd.f32 %v1750, 1.0
        %v1871 = vadd.f32 %v1751, 1.0
        %v1872 = vadd.f32 %v1752, 1.0
        %v1873 = vadd.f32 %v1753, 1.0
        %v1874 = vadd.f32 %v1754, 1.0
        %v1875 = vadd.f32 %v1755, 1.0
        %v1876 = vadd.f32 %v1756, 1.0
        %v1877 = vadd.f32 %v1757, 1.0
        %v1878 = vadd.f32 %v1758, 1.0
        %v1879 = vadd.f32 %v1759, 1.0
        %v1880 = vadd.f32 %v1760, 1.0
        %v1881 = vadd.f32 %v1761, 1.0
        %v1882 = vadd.f32 %v1762, 1.0
        %v1883 = vadd.f32 %v1763, 1.0
        %v1884 = vadd.f32 %v1764, 1.0
        %v1885 = vadd.f32 %v1765, 1.0
        %v1886 = vadd.f32 %v1766, 1.0
        %v1887 = vadd.f32 %v1767, 1.0
        %v1888 = vadd.f32 %v1768, 1.0
        %v1889 = vadd.f32 %v1769, 1.0
        %v1890 = vadd.f32 %v1770, 1.0
        %v1891 = vadd.f32 %v1771, 1.0
        %v1892 = vadd.f32 %v1772, 1.0
        %v1893 = vadd.f32 %v1773, 1.0
        %v1894 = vadd.f32 %v1774, 1.0
        %v1895 = vadd.f32 %v1775, 1.0
        %v1896 = vadd.f32 %v1776, 1.0
        %v1897 = vadd.f32 %v1777, 1.0
        %v1898 = vadd.f32 %v1778, 1.0
        %v1899 = vadd.f32 %v1779, 1.0
        %v1900 = vadd.f32 %v1780, 1.0
        %v1901 = vadd.f32 %v1781, 1.0
        %v1902 = vadd.f32 %v1782, 1.0
        %v1903 = vadd.f32 %v1783, 1.0
        %v1904 = vadd.f32 %v1784, 1.0
        %v1905 = vadd.f32 %v1785, 1.0
        %v1906 = vadd.f32 %v1786, 1.0
        %v1907 = vadd.f32 %v1787, 1.0
        %v1908 = vadd.f32 %v1788, 1.0
        %v1909 = vadd.f32 %v1789, 1.0
        %v1910 = vadd.f32 %v1790, 1.0
        %v1911 = vadd.f32 %v1791, 1.0
        %v1912 = vadd.f32 %v1792, 1.0
        %v1913 = vadd.f32 %v1793, 1.0
        %v1914 = vadd.f32 %v1794, 1.0
        %v1915 = vadd.f32 %v1795, 1.0
        %v1916 = vadd.f32 %v1796, 1.0
        %v1917 = vadd.f32 %v1797, 1.0
        %v1918 = vadd.f32 %v1798, 1.0
        %v1919 = vadd.f32 %v1799, 1.0
        %v1920 = vmul.f32 %v1560, %v1800
        %v1921 = vmul.f32 %v1561, %v1801
        %v1922 = vmul.f32 %v1562, %v1802
        %v1923 = vmul.f32 %v1563, %v1803
        %v1924 = vmul.f32 %v1564, %v1804
        %v1925 = vmul.f32 %v1565, %v1805
        %v1926 = vmul.f32 %v1566, %v1806
        %v1927 = vmul.f32 %v1567, %v1807
        %v1928 = vmul.f32 %v1568, %v1808
        %v1929 = vmul.f32 %v1569, %v1809
        %v1930 = vmul.f32 %v1570, %v1810
        %v1931 = vmul.f32 %v1571, %v1811
        %v1932 = vmul.f32 %v1572, %v1812
        %v1933 = vmul.f32 %v1573, %v1813
        %v1934 = vmul.f32 %v1574, %v1814
        %v1935 = vmul.f32 %v1575, %v1815
        %v1936 = vmul.f32 %v1576, %v1816
        %v1937 = vmul.f32 %v1577, %v1817
        %v1938 = vmul.f32 %v1578, %v1818
        %v1939 = vmul.f32 %v1579, %v1819
        %v1940 = vmul.f32 %v1580, %v1820
        %v1941 = vmul.f32 %v1581, %v1821
        %v1942 = vmul.f32 %v1582, %v1822
        %v1943 = vmul.f32 %v1583, %v1823
        %v1944 = vmul.f32 %v1584, %v1824
        %v1945 = vmul.f32 %v1585, %v1825
        %v1946 = vmul.f32 %v1586, %v1826
        %v1947 = vmul.f32 %v1587, %v1827
        %v1948 = vmul.f32 %v1588, %v1828
        %v1949 = vmul.f32 %v1589, %v1829
        %v1950 = vmul.f32 %v1590, %v1830
        %v1951 = vmul.f32 %v1591, %v1831
        %v1952 = vmul.f32 %v1592, %v1832
        %v1953 = vmul.f32 %v1593, %v1833
        %v1954 = vmul.f32 %v1594, %v1834
        %v1955 = vmul.f32 %v1595, %v1835
        %v1956 = vmul.f32 %v1596, %v1836
        %v1957 = vmul.f32 %v1597, %v1837
        %v1958 = vmul.f32 %v1598, %v1838
        %v1959 = vmul.f32 %v1599, %v1839
        %v1960 = vmul.f32 %v1600, %v1840
        %v1961 = vmul.f32 %v1601, %v1841
        %v1962 = vmul.f32 %v1602, %v1842
        %v1963 = vmul.f32 %v1603, %v1843
        %v1964 = vmul.f32 %v1604, %v1844
        %v1965 = vmul.f32 %v1605, %v1845
        %v1966 = vmul.f32 %v1606, %v1846
        %v1967 = vmul.f32 %v1607, %v1847
        %v1968 = vmul.f32 %v1608, %v1848
        %v1969 = vmul.f32 %v1609, %v1849
        %v1970 = vmul.f32 %v1610, %v1850
        %v1971 = vmul.f32 %v1611, %v1851
        %v1972 = vmul.f32 %v1612, %v1852
        %v1973 = vmul.f32 %v1613, %v1853
        %v1974 = vmul.f32 %v1614, %v1854
        %v1975 = vmul.f32 %v1615, %v1855
        %v1976 = vmul.f32 %v1616, %v1856
        %v1977 = vmul.f32 %v1617, %v1857
        %v1978 = vmul.f32 %v1618, %v1858
        %v1979 = vmul.f32 %v1619, %v1859
        %v1980 = vmul.f32 %v1620, %v1860
        %v1981 = vmul.f32 %v1621, %v1861
        %v1982 = vmul.f32 %v1622, %v1862
        %v1983 = vmul.f32 %v1623, %v1863
        %v1984 = vmul.f32 %v1624, %v1864
        %v1985 = vmul.f32 %v1625, %v1865
        %v1986 = vmul.f32 %v1626, %v1866
        %v1987 = vmul.f32 %v1627, %v1867
        %v1988 = vmul.f32 %v1628, %v1868
        %v1989 = vmul.f32 %v1629, %v1869
        %v1990 = vmul.f32 %v1630, %v1870
        %v1991 = vmul.f32 %v1631, %v1871
        %v1992 = vmul.f32 %v1632, %v1872
        %v1993 = vmul.f32 %v1633, %v1873
        %v1994 = vmul.f32 %v1634, %v1874
        %v1995 = vmul.f32 %v1635, %v1875
        %v1996 = vmul.f32 %v1636, %v1876
        %v1997 = vmul.f32 %v1637, %v1877
        %v1998 = vmul.f32 %v1638, %v1878
        %v1999 = vmul.f32 %v1639, %v1879
        %v2000 = vmul.f32 %v1640, %v1880
        %v2001 = vmul.f32 %v1641, %v1881
        %v2002 = vmul.f32 %v1642, %v1882
        %v2003 = vmul.f32 %v1643, %v1883
        %v2004 = vmul.f32 %v1644, %v1884
        %v2005 = vmul.f32 %v1645, %v1885
        %v2006 = vmul.f32 %v1646, %v1886
        %v2007 = vmul.f32 %v1647, %v1887
        %v2008 = vmul.f32 %v1648, %v1888
        %v2009 = vmul.f32 %v1649, %v1889
        %v2010 = vmul.f32 %v1650, %v1890
        %v2011 = vmul.f32 %v1651, %v1891
        %v2012 = vmul.f32 %v1652, %v1892
        %v2013 = vmul.f32 %v1653, %v1893
        %v2014 = vmul.f32 %v1654, %v1894
        %v2015 = vmul.f32 %v1655, %v1895
        %v2016 = vmul.f32 %v1656, %v1896
        %v2017 = vmul.f32 %v1657, %v1897
        %v2018 = vmul.f32 %v1658, %v1898
        %v2019 = vmul.f32 %v1659, %v1899
        %v2020 = vmul.f32 %v1660, %v1900
        %v2021 = vmul.f32 %v1661, %v1901
        %v2022 = vmul.f32 %v1662, %v1902
        %v2023 = vmul.f32 %v1663, %v1903
        %v2024 = vmul.f32 %v1664, %v1904
        %v2025 = vmul.f32 %v1665, %v1905
        %v2026 = vmul.f32 %v1666, %v1906
        %v2027 = vmul.f32 %v1667, %v1907
        %v2028 = vmul.f32 %v1668, %v1908
        %v2029 = vmul.f32 %v1669, %v1909
        %v2030 = vmul.f32 %v1670, %v1910
        %v2031 = vmul.f32 %v1671, %v1911
        %v2032 = vmul.f32 %v1672, %v1912
        %v2033 = vmul.f32 %v1673, %v1913
        %v2034 = vmul.f32 %v1674, %v1914
        %v2035 = vmul.f32 %v1675, %v1915
        %v2036 = vmul.f32 %v1676, %v1916
        %v2037 = vmul.f32 %v1677, %v1917
        %v2038 = vmul.f32 %v1678, %v1918
        %v2039 = vmul.f32 %v1679, %v1919
        %v2040 = vrot.slane %v1920, 4
        %v2041 = vadd.f32 %v1920, %v2040
        %v2042 = vrot.slane %v2041, 2
        %v2043 = vadd.f32 %v2041, %v2042
        %v2044 = vrot.slane %v2043, 1
        %v2045 = vadd.f32 %v2043, %v2044
        %v2046 = vrot.slane %v1921, 4
        %v2047 = vadd.f32 %v1921, %v2046
        %v2048 = vrot.slane %v2047, 2
        %v2049 = vadd.f32 %v2047, %v2048
        %v2050 = vrot.slane %v2049, 1
        %v2051 = vadd.f32 %v2049, %v2050
        %v2052 = vrot.slane %v1922, 4
        %v2053 = vadd.f32 %v1922, %v2052
        %v2054 = vrot.slane %v2053, 2
        %v2055 = vadd.f32 %v2053, %v2054
        %v2056 = vrot.slane %v2055, 1
        %v2057 = vadd.f32 %v2055, %v2056
        %v2058 = vrot.slane %v1923, 4
        %v2059 = vadd.f32 %v1923, %v2058
        %v2060 = vrot.slane %v2059, 2
        %v2061 = vadd.f32 %v2059, %v2060
        %v2062 = vrot.slane %v2061, 1
        %v2063 = vadd.f32 %v2061, %v2062
        %v2064 = vrot.slane %v1924, 4
        %v2065 = vadd.f32 %v1924, %v2064
        %v2066 = vrot.slane %v2065, 2
        %v2067 = vadd.f32 %v2065, %v2066
        %v2068 = vrot.slane %v2067, 1
        %v2069 = vadd.f32 %v2067, %v2068
        %v2070 = vrot.slane %v1925, 4
        %v2071 = vadd.f32 %v1925, %v2070
        %v2072 = vrot.slane %v2071, 2
        %v2073 = vadd.f32 %v2071, %v2072
        %v2074 = vrot.slane %v2073, 1
        %v2075 = vadd.f32 %v2073, %v2074
        %v2076 = vrot.slane %v1926, 4
        %v2077 = vadd.f32 %v1926, %v2076
        %v2078 = vrot.slane %v2077, 2
        %v2079 = vadd.f32 %v2077, %v2078
        %v2080 = vrot.slane %v2079, 1
        %v2081 = vadd.f32 %v2079, %v2080
        %v2082 = vrot.slane %v1927, 4
        %v2083 = vadd.f32 %v1927, %v2082
        %v2084 = vrot.slane %v2083, 2
        %v2085 = vadd.f32 %v2083, %v2084
        %v2086 = vrot.slane %v2085, 1
        %v2087 = vadd.f32 %v2085, %v2086
        %v2088 = vrot.slane %v1928, 4
        %v2089 = vadd.f32 %v1928, %v2088
        %v2090 = vrot.slane %v2089, 2
        %v2091 = vadd.f32 %v2089, %v2090
        %v2092 = vrot.slane %v2091, 1
        %v2093 = vadd.f32 %v2091, %v2092
        %v2094 = vrot.slane %v1929, 4
        %v2095 = vadd.f32 %v1929, %v2094
        %v2096 = vrot.slane %v2095, 2
        %v2097 = vadd.f32 %v2095, %v2096
        %v2098 = vrot.slane %v2097, 1
        %v2099 = vadd.f32 %v2097, %v2098
        %v2100 = vrot.slane %v1930, 4
        %v2101 = vadd.f32 %v1930, %v2100
        %v2102 = vrot.slane %v2101, 2
        %v2103 = vadd.f32 %v2101, %v2102
        %v2104 = vrot.slane %v2103, 1
        %v2105 = vadd.f32 %v2103, %v2104
        %v2106 = vrot.slane %v1931, 4
        %v2107 = vadd.f32 %v1931, %v2106
        %v2108 = vrot.slane %v2107, 2
        %v2109 = vadd.f32 %v2107, %v2108
        %v2110 = vrot.slane %v2109, 1
        %v2111 = vadd.f32 %v2109, %v2110
        %v2112 = vrot.slane %v1932, 4
        %v2113 = vadd.f32 %v1932, %v2112
        %v2114 = vrot.slane %v2113, 2
        %v2115 = vadd.f32 %v2113, %v2114
        %v2116 = vrot.slane %v2115, 1
        %v2117 = vadd.f32 %v2115, %v2116
        %v2118 = vrot.slane %v1933, 4
        %v2119 = vadd.f32 %v1933, %v2118
        %v2120 = vrot.slane %v2119, 2
        %v2121 = vadd.f32 %v2119, %v2120
        %v2122 = vrot.slane %v2121, 1
        %v2123 = vadd.f32 %v2121, %v2122
        %v2124 = vrot.slane %v1934, 4
        %v2125 = vadd.f32 %v1934, %v2124
        %v2126 = vrot.slane %v2125, 2
        %v2127 = vadd.f32 %v2125, %v2126
        %v2128 = vrot.slane %v2127, 1
        %v2129 = vadd.f32 %v2127, %v2128
        %v2130 = vrot.slane %v1935, 4
        %v2131 = vadd.f32 %v1935, %v2130
        %v2132 = vrot.slane %v2131, 2
        %v2133 = vadd.f32 %v2131, %v2132
        %v2134 = vrot.slane %v2133, 1
        %v2135 = vadd.f32 %v2133, %v2134
        %v2136 = vrot.slane %v1936, 4
        %v2137 = vadd.f32 %v1936, %v2136
        %v2138 = vrot.slane %v2137, 2
        %v2139 = vadd.f32 %v2137, %v2138
        %v2140 = vrot.slane %v2139, 1
        %v2141 = vadd.f32 %v2139, %v2140
        %v2142 = vrot.slane %v1937, 4
        %v2143 = vadd.f32 %v1937, %v2142
        %v2144 = vrot.slane %v2143, 2
        %v2145 = vadd.f32 %v2143, %v2144
        %v2146 = vrot.slane %v2145, 1
        %v2147 = vadd.f32 %v2145, %v2146
        %v2148 = vrot.slane %v1938, 4
        %v2149 = vadd.f32 %v1938, %v2148
        %v2150 = vrot.slane %v2149, 2
        %v2151 = vadd.f32 %v2149, %v2150
        %v2152 = vrot.slane %v2151, 1
        %v2153 = vadd.f32 %v2151, %v2152
        %v2154 = vrot.slane %v1939, 4
        %v2155 = vadd.f32 %v1939, %v2154
        %v2156 = vrot.slane %v2155, 2
        %v2157 = vadd.f32 %v2155, %v2156
        %v2158 = vrot.slane %v2157, 1
        %v2159 = vadd.f32 %v2157, %v2158
        %v2160 = vrot.slane %v1940, 4
        %v2161 = vadd.f32 %v1940, %v2160
        %v2162 = vrot.slane %v2161, 2
        %v2163 = vadd.f32 %v2161, %v2162
        %v2164 = vrot.slane %v2163, 1
        %v2165 = vadd.f32 %v2163, %v2164
        %v2166 = vrot.slane %v1941, 4
        %v2167 = vadd.f32 %v1941, %v2166
        %v2168 = vrot.slane %v2167, 2
        %v2169 = vadd.f32 %v2167, %v2168
        %v2170 = vrot.slane %v2169, 1
        %v2171 = vadd.f32 %v2169, %v2170
        %v2172 = vrot.slane %v1942, 4
        %v2173 = vadd.f32 %v1942, %v2172
        %v2174 = vrot.slane %v2173, 2
        %v2175 = vadd.f32 %v2173, %v2174
        %v2176 = vrot.slane %v2175, 1
        %v2177 = vadd.f32 %v2175, %v2176
        %v2178 = vrot.slane %v1943, 4
        %v2179 = vadd.f32 %v1943, %v2178
        %v2180 = vrot.slane %v2179, 2
        %v2181 = vadd.f32 %v2179, %v2180
        %v2182 = vrot.slane %v2181, 1
        %v2183 = vadd.f32 %v2181, %v2182
        %v2184 = vrot.slane %v1944, 4
        %v2185 = vadd.f32 %v1944, %v2184
        %v2186 = vrot.slane %v2185, 2
        %v2187 = vadd.f32 %v2185, %v2186
        %v2188 = vrot.slane %v2187, 1
        %v2189 = vadd.f32 %v2187, %v2188
        %v2190 = vrot.slane %v1945, 4
        %v2191 = vadd.f32 %v1945, %v2190
        %v2192 = vrot.slane %v2191, 2
        %v2193 = vadd.f32 %v2191, %v2192
        %v2194 = vrot.slane %v2193, 1
        %v2195 = vadd.f32 %v2193, %v2194
        %v2196 = vrot.slane %v1946, 4
        %v2197 = vadd.f32 %v1946, %v2196
        %v2198 = vrot.slane %v2197, 2
        %v2199 = vadd.f32 %v2197, %v2198
        %v2200 = vrot.slane %v2199, 1
        %v2201 = vadd.f32 %v2199, %v2200
        %v2202 = vrot.slane %v1947, 4
        %v2203 = vadd.f32 %v1947, %v2202
        %v2204 = vrot.slane %v2203, 2
        %v2205 = vadd.f32 %v2203, %v2204
        %v2206 = vrot.slane %v2205, 1
        %v2207 = vadd.f32 %v2205, %v2206
        %v2208 = vrot.slane %v1948, 4
        %v2209 = vadd.f32 %v1948, %v2208
        %v2210 = vrot.slane %v2209, 2
        %v2211 = vadd.f32 %v2209, %v2210
        %v2212 = vrot.slane %v2211, 1
        %v2213 = vadd.f32 %v2211, %v2212
        %v2214 = vrot.slane %v1949, 4
        %v2215 = vadd.f32 %v1949, %v2214
        %v2216 = vrot.slane %v2215, 2
        %v2217 = vadd.f32 %v2215, %v2216
        %v2218 = vrot.slane %v2217, 1
        %v2219 = vadd.f32 %v2217, %v2218
        %v2220 = vrot.slane %v1950, 4
        %v2221 = vadd.f32 %v1950, %v2220
        %v2222 = vrot.slane %v2221, 2
        %v2223 = vadd.f32 %v2221, %v2222
        %v2224 = vrot.slane %v2223, 1
        %v2225 = vadd.f32 %v2223, %v2224
        %v2226 = vrot.slane %v1951, 4
        %v2227 = vadd.f32 %v1951, %v2226
        %v2228 = vrot.slane %v2227, 2
        %v2229 = vadd.f32 %v2227, %v2228
        %v2230 = vrot.slane %v2229, 1
        %v2231 = vadd.f32 %v2229, %v2230
        %v2232 = vrot.slane %v1952, 4
        %v2233 = vadd.f32 %v1952, %v2232
        %v2234 = vrot.slane %v2233, 2
        %v2235 = vadd.f32 %v2233, %v2234
        %v2236 = vrot.slane %v2235, 1
        %v2237 = vadd.f32 %v2235, %v2236
        %v2238 = vrot.slane %v1953, 4
        %v2239 = vadd.f32 %v1953, %v2238
        %v2240 = vrot.slane %v2239, 2
        %v2241 = vadd.f32 %v2239, %v2240
        %v2242 = vrot.slane %v2241, 1
        %v2243 = vadd.f32 %v2241, %v2242
        %v2244 = vrot.slane %v1954, 4
        %v2245 = vadd.f32 %v1954, %v2244
        %v2246 = vrot.slane %v2245, 2
        %v2247 = vadd.f32 %v2245, %v2246
        %v2248 = vrot.slane %v2247, 1
        %v2249 = vadd.f32 %v2247, %v2248
        %v2250 = vrot.slane %v1955, 4
        %v2251 = vadd.f32 %v1955, %v2250
        %v2252 = vrot.slane %v2251, 2
        %v2253 = vadd.f32 %v2251, %v2252
        %v2254 = vrot.slane %v2253, 1
        %v2255 = vadd.f32 %v2253, %v2254
        %v2256 = vrot.slane %v1956, 4
        %v2257 = vadd.f32 %v1956, %v2256
        %v2258 = vrot.slane %v2257, 2
        %v2259 = vadd.f32 %v2257, %v2258
        %v2260 = vrot.slane %v2259, 1
        %v2261 = vadd.f32 %v2259, %v2260
        %v2262 = vrot.slane %v1957, 4
        %v2263 = vadd.f32 %v1957, %v2262
        %v2264 = vrot.slane %v2263, 2
        %v2265 = vadd.f32 %v2263, %v2264
        %v2266 = vrot.slane %v2265, 1
        %v2267 = vadd.f32 %v2265, %v2266
        %v2268 = vrot.slane %v1958, 4
        %v2269 = vadd.f32 %v1958, %v2268
        %v2270 = vrot.slane %v2269, 2
        %v2271 = vadd.f32 %v2269, %v2270
        %v2272 = vrot.slane %v2271, 1
        %v2273 = vadd.f32 %v2271, %v2272
        %v2274 = vrot.slane %v1959, 4
        %v2275 = vadd.f32 %v1959, %v2274
        %v2276 = vrot.slane %v2275, 2
        %v2277 = vadd.f32 %v2275, %v2276
        %v2278 = vrot.slane %v2277, 1
        %v2279 = vadd.f32 %v2277, %v2278
        %v2280 = vrot.slane %v1960, 4
        %v2281 = vadd.f32 %v1960, %v2280
        %v2282 = vrot.slane %v2281, 2
        %v2283 = vadd.f32 %v2281, %v2282
        %v2284 = vrot.slane %v2283, 1
        %v2285 = vadd.f32 %v2283, %v2284
        %v2286 = vrot.slane %v1961, 4
        %v2287 = vadd.f32 %v1961, %v2286
        %v2288 = vrot.slane %v2287, 2
        %v2289 = vadd.f32 %v2287, %v2288
        %v2290 = vrot.slane %v2289, 1
        %v2291 = vadd.f32 %v2289, %v2290
        %v2292 = vrot.slane %v1962, 4
        %v2293 = vadd.f32 %v1962, %v2292
        %v2294 = vrot.slane %v2293, 2
        %v2295 = vadd.f32 %v2293, %v2294
        %v2296 = vrot.slane %v2295, 1
        %v2297 = vadd.f32 %v2295, %v2296
        %v2298 = vrot.slane %v1963, 4
        %v2299 = vadd.f32 %v1963, %v2298
        %v2300 = vrot.slane %v2299, 2
        %v2301 = vadd.f32 %v2299, %v2300
        %v2302 = vrot.slane %v2301, 1
        %v2303 = vadd.f32 %v2301, %v2302
        %v2304 = vrot.slane %v1964, 4
        %v2305 = vadd.f32 %v1964, %v2304
        %v2306 = vrot.slane %v2305, 2
        %v2307 = vadd.f32 %v2305, %v2306
        %v2308 = vrot.slane %v2307, 1
        %v2309 = vadd.f32 %v2307, %v2308
        %v2310 = vrot.slane %v1965, 4
        %v2311 = vadd.f32 %v1965, %v2310
        %v2312 = vrot.slane %v2311, 2
        %v2313 = vadd.f32 %v2311, %v2312
        %v2314 = vrot.slane %v2313, 1
        %v2315 = vadd.f32 %v2313, %v2314
        %v2316 = vrot.slane %v1966, 4
        %v2317 = vadd.f32 %v1966, %v2316
        %v2318 = vrot.slane %v2317, 2
        %v2319 = vadd.f32 %v2317, %v2318
        %v2320 = vrot.slane %v2319, 1
        %v2321 = vadd.f32 %v2319, %v2320
        %v2322 = vrot.slane %v1967, 4
        %v2323 = vadd.f32 %v1967, %v2322
        %v2324 = vrot.slane %v2323, 2
        %v2325 = vadd.f32 %v2323, %v2324
        %v2326 = vrot.slane %v2325, 1
        %v2327 = vadd.f32 %v2325, %v2326
        %v2328 = vrot.slane %v1968, 4
        %v2329 = vadd.f32 %v1968, %v2328
        %v2330 = vrot.slane %v2329, 2
        %v2331 = vadd.f32 %v2329, %v2330
        %v2332 = vrot.slane %v2331, 1
        %v2333 = vadd.f32 %v2331, %v2332
        %v2334 = vrot.slane %v1969, 4
        %v2335 = vadd.f32 %v1969, %v2334
        %v2336 = vrot.slane %v2335, 2
        %v2337 = vadd.f32 %v2335, %v2336
        %v2338 = vrot.slane %v2337, 1
        %v2339 = vadd.f32 %v2337, %v2338
        %v2340 = vrot.slane %v1970, 4
        %v2341 = vadd.f32 %v1970, %v2340
        %v2342 = vrot.slane %v2341, 2
        %v2343 = vadd.f32 %v2341, %v2342
        %v2344 = vrot.slane %v2343, 1
        %v2345 = vadd.f32 %v2343, %v2344
        %v2346 = vrot.slane %v1971, 4
        %v2347 = vadd.f32 %v1971, %v2346
        %v2348 = vrot.slane %v2347, 2
        %v2349 = vadd.f32 %v2347, %v2348
        %v2350 = vrot.slane %v2349, 1
        %v2351 = vadd.f32 %v2349, %v2350
        %v2352 = vrot.slane %v1972, 4
        %v2353 = vadd.f32 %v1972, %v2352
        %v2354 = vrot.slane %v2353, 2
        %v2355 = vadd.f32 %v2353, %v2354
        %v2356 = vrot.slane %v2355, 1
        %v2357 = vadd.f32 %v2355, %v2356
        %v2358 = vrot.slane %v1973, 4
        %v2359 = vadd.f32 %v1973, %v2358
        %v2360 = vrot.slane %v2359, 2
        %v2361 = vadd.f32 %v2359, %v2360
        %v2362 = vrot.slane %v2361, 1
        %v2363 = vadd.f32 %v2361, %v2362
        %v2364 = vrot.slane %v1974, 4
        %v2365 = vadd.f32 %v1974, %v2364
        %v2366 = vrot.slane %v2365, 2
        %v2367 = vadd.f32 %v2365, %v2366
        %v2368 = vrot.slane %v2367, 1
        %v2369 = vadd.f32 %v2367, %v2368
        %v2370 = vrot.slane %v1975, 4
        %v2371 = vadd.f32 %v1975, %v2370
        %v2372 = vrot.slane %v2371, 2
        %v2373 = vadd.f32 %v2371, %v2372
        %v2374 = vrot.slane %v2373, 1
        %v2375 = vadd.f32 %v2373, %v2374
        %v2376 = vrot.slane %v1976, 4
        %v2377 = vadd.f32 %v1976, %v2376
        %v2378 = vrot.slane %v2377, 2
        %v2379 = vadd.f32 %v2377, %v2378
        %v2380 = vrot.slane %v2379, 1
        %v2381 = vadd.f32 %v2379, %v2380
        %v2382 = vrot.slane %v1977, 4
        %v2383 = vadd.f32 %v1977, %v2382
        %v2384 = vrot.slane %v2383, 2
        %v2385 = vadd.f32 %v2383, %v2384
        %v2386 = vrot.slane %v2385, 1
        %v2387 = vadd.f32 %v2385, %v2386
        %v2388 = vrot.slane %v1978, 4
        %v2389 = vadd.f32 %v1978, %v2388
        %v2390 = vrot.slane %v2389, 2
        %v2391 = vadd.f32 %v2389, %v2390
        %v2392 = vrot.slane %v2391, 1
        %v2393 = vadd.f32 %v2391, %v2392
        %v2394 = vrot.slane %v1979, 4
        %v2395 = vadd.f32 %v1979, %v2394
        %v2396 = vrot.slane %v2395, 2
        %v2397 = vadd.f32 %v2395, %v2396
        %v2398 = vrot.slane %v2397, 1
        %v2399 = vadd.f32 %v2397, %v2398
        %v2400 = vrot.slane %v1980, 4
        %v2401 = vadd.f32 %v1980, %v2400
        %v2402 = vrot.slane %v2401, 2
        %v2403 = vadd.f32 %v2401, %v2402
        %v2404 = vrot.slane %v2403, 1
        %v2405 = vadd.f32 %v2403, %v2404
        %v2406 = vrot.slane %v1981, 4
        %v2407 = vadd.f32 %v1981, %v2406
        %v2408 = vrot.slane %v2407, 2
        %v2409 = vadd.f32 %v2407, %v2408
        %v2410 = vrot.slane %v2409, 1
        %v2411 = vadd.f32 %v2409, %v2410
        %v2412 = vrot.slane %v1982, 4
        %v2413 = vadd.f32 %v1982, %v2412
        %v2414 = vrot.slane %v2413, 2
        %v2415 = vadd.f32 %v2413, %v2414
        %v2416 = vrot.slane %v2415, 1
        %v2417 = vadd.f32 %v2415, %v2416
        %v2418 = vrot.slane %v1983, 4
        %v2419 = vadd.f32 %v1983, %v2418
        %v2420 = vrot.slane %v2419, 2
        %v2421 = vadd.f32 %v2419, %v2420
        %v2422 = vrot.slane %v2421, 1
        %v2423 = vadd.f32 %v2421, %v2422
        %v2424 = vrot.slane %v1984, 4
        %v2425 = vadd.f32 %v1984, %v2424
        %v2426 = vrot.slane %v2425, 2
        %v2427 = vadd.f32 %v2425, %v2426
        %v2428 = vrot.slane %v2427, 1
        %v2429 = vadd.f32 %v2427, %v2428
        %v2430 = vrot.slane %v1985, 4
        %v2431 = vadd.f32 %v1985, %v2430
        %v2432 = vrot.slane %v2431, 2
        %v2433 = vadd.f32 %v2431, %v2432
        %v2434 = vrot.slane %v2433, 1
        %v2435 = vadd.f32 %v2433, %v2434
        %v2436 = vrot.slane %v1986, 4
        %v2437 = vadd.f32 %v1986, %v2436
        %v2438 = vrot.slane %v2437, 2
        %v2439 = vadd.f32 %v2437, %v2438
        %v2440 = vrot.slane %v2439, 1
        %v2441 = vadd.f32 %v2439, %v2440
        %v2442 = vrot.slane %v1987, 4
        %v2443 = vadd.f32 %v1987, %v2442
        %v2444 = vrot.slane %v2443, 2
        %v2445 = vadd.f32 %v2443, %v2444
        %v2446 = vrot.slane %v2445, 1
        %v2447 = vadd.f32 %v2445, %v2446
        %v2448 = vrot.slane %v1988, 4
        %v2449 = vadd.f32 %v1988, %v2448
        %v2450 = vrot.slane %v2449, 2
        %v2451 = vadd.f32 %v2449, %v2450
        %v2452 = vrot.slane %v2451, 1
        %v2453 = vadd.f32 %v2451, %v2452
        %v2454 = vrot.slane %v1989, 4
        %v2455 = vadd.f32 %v1989, %v2454
        %v2456 = vrot.slane %v2455, 2
        %v2457 = vadd.f32 %v2455, %v2456
        %v2458 = vrot.slane %v2457, 1
        %v2459 = vadd.f32 %v2457, %v2458
        %v2460 = vrot.slane %v1990, 4
        %v2461 = vadd.f32 %v1990, %v2460
        %v2462 = vrot.slane %v2461, 2
        %v2463 = vadd.f32 %v2461, %v2462
        %v2464 = vrot.slane %v2463, 1
        %v2465 = vadd.f32 %v2463, %v2464
        %v2466 = vrot.slane %v1991, 4
        %v2467 = vadd.f32 %v1991, %v2466
        %v2468 = vrot.slane %v2467, 2
        %v2469 = vadd.f32 %v2467, %v2468
        %v2470 = vrot.slane %v2469, 1
        %v2471 = vadd.f32 %v2469, %v2470
        %v2472 = vrot.slane %v1992, 4
        %v2473 = vadd.f32 %v1992, %v2472
        %v2474 = vrot.slane %v2473, 2
        %v2475 = vadd.f32 %v2473, %v2474
        %v2476 = vrot.slane %v2475, 1
        %v2477 = vadd.f32 %v2475, %v2476
        %v2478 = vrot.slane %v1993, 4
        %v2479 = vadd.f32 %v1993, %v2478
        %v2480 = vrot.slane %v2479, 2
        %v2481 = vadd.f32 %v2479, %v2480
        %v2482 = vrot.slane %v2481, 1
        %v2483 = vadd.f32 %v2481, %v2482
        %v2484 = vrot.slane %v1994, 4
        %v2485 = vadd.f32 %v1994, %v2484
        %v2486 = vrot.slane %v2485, 2
        %v2487 = vadd.f32 %v2485, %v2486
        %v2488 = vrot.slane %v2487, 1
        %v2489 = vadd.f32 %v2487, %v2488
        %v2490 = vrot.slane %v1995, 4
        %v2491 = vadd.f32 %v1995, %v2490
        %v2492 = vrot.slane %v2491, 2
        %v2493 = vadd.f32 %v2491, %v2492
        %v2494 = vrot.slane %v2493, 1
        %v2495 = vadd.f32 %v2493, %v2494
        %v2496 = vrot.slane %v1996, 4
        %v2497 = vadd.f32 %v1996, %v2496
        %v2498 = vrot.slane %v2497, 2
        %v2499 = vadd.f32 %v2497, %v2498
        %v2500 = vrot.slane %v2499, 1
        %v2501 = vadd.f32 %v2499, %v2500
        %v2502 = vrot.slane %v1997, 4
        %v2503 = vadd.f32 %v1997, %v2502
        %v2504 = vrot.slane %v2503, 2
        %v2505 = vadd.f32 %v2503, %v2504
        %v2506 = vrot.slane %v2505, 1
        %v2507 = vadd.f32 %v2505, %v2506
        %v2508 = vrot.slane %v1998, 4
        %v2509 = vadd.f32 %v1998, %v2508
        %v2510 = vrot.slane %v2509, 2
        %v2511 = vadd.f32 %v2509, %v2510
        %v2512 = vrot.slane %v2511, 1
        %v2513 = vadd.f32 %v2511, %v2512
        %v2514 = vrot.slane %v1999, 4
        %v2515 = vadd.f32 %v1999, %v2514
        %v2516 = vrot.slane %v2515, 2
        %v2517 = vadd.f32 %v2515, %v2516
        %v2518 = vrot.slane %v2517, 1
        %v2519 = vadd.f32 %v2517, %v2518
        %v2520 = vrot.slane %v2000, 4
        %v2521 = vadd.f32 %v2000, %v2520
        %v2522 = vrot.slane %v2521, 2
        %v2523 = vadd.f32 %v2521, %v2522
        %v2524 = vrot.slane %v2523, 1
        %v2525 = vadd.f32 %v2523, %v2524
        %v2526 = vrot.slane %v2001, 4
        %v2527 = vadd.f32 %v2001, %v2526
        %v2528 = vrot.slane %v2527, 2
        %v2529 = vadd.f32 %v2527, %v2528
        %v2530 = vrot.slane %v2529, 1
        %v2531 = vadd.f32 %v2529, %v2530
        %v2532 = vrot.slane %v2002, 4
        %v2533 = vadd.f32 %v2002, %v2532
        %v2534 = vrot.slane %v2533, 2
        %v2535 = vadd.f32 %v2533, %v2534
        %v2536 = vrot.slane %v2535, 1
        %v2537 = vadd.f32 %v2535, %v2536
        %v2538 = vrot.slane %v2003, 4
        %v2539 = vadd.f32 %v2003, %v2538
        %v2540 = vrot.slane %v2539, 2
        %v2541 = vadd.f32 %v2539, %v2540
        %v2542 = vrot.slane %v2541, 1
        %v2543 = vadd.f32 %v2541, %v2542
        %v2544 = vrot.slane %v2004, 4
        %v2545 = vadd.f32 %v2004, %v2544
        %v2546 = vrot.slane %v2545, 2
        %v2547 = vadd.f32 %v2545, %v2546
        %v2548 = vrot.slane %v2547, 1
        %v2549 = vadd.f32 %v2547, %v2548
        %v2550 = vrot.slane %v2005, 4
        %v2551 = vadd.f32 %v2005, %v2550
        %v2552 = vrot.slane %v2551, 2
        %v2553 = vadd.f32 %v2551, %v2552
        %v2554 = vrot.slane %v2553, 1
        %v2555 = vadd.f32 %v2553, %v2554
        %v2556 = vrot.slane %v2006, 4
        %v2557 = vadd.f32 %v2006, %v2556
        %v2558 = vrot.slane %v2557, 2
        %v2559 = vadd.f32 %v2557, %v2558
        %v2560 = vrot.slane %v2559, 1
        %v2561 = vadd.f32 %v2559, %v2560
        %v2562 = vrot.slane %v2007, 4
        %v2563 = vadd.f32 %v2007, %v2562
        %v2564 = vrot.slane %v2563, 2
        %v2565 = vadd.f32 %v2563, %v2564
        %v2566 = vrot.slane %v2565, 1
        %v2567 = vadd.f32 %v2565, %v2566
        %v2568 = vrot.slane %v2008, 4
        %v2569 = vadd.f32 %v2008, %v2568
        %v2570 = vrot.slane %v2569, 2
        %v2571 = vadd.f32 %v2569, %v2570
        %v2572 = vrot.slane %v2571, 1
        %v2573 = vadd.f32 %v2571, %v2572
        %v2574 = vrot.slane %v2009, 4
        %v2575 = vadd.f32 %v2009, %v2574
        %v2576 = vrot.slane %v2575, 2
        %v2577 = vadd.f32 %v2575, %v2576
        %v2578 = vrot.slane %v2577, 1
        %v2579 = vadd.f32 %v2577, %v2578
        %v2580 = vrot.slane %v2010, 4
        %v2581 = vadd.f32 %v2010, %v2580
        %v2582 = vrot.slane %v2581, 2
        %v2583 = vadd.f32 %v2581, %v2582
        %v2584 = vrot.slane %v2583, 1
        %v2585 = vadd.f32 %v2583, %v2584
        %v2586 = vrot.slane %v2011, 4
        %v2587 = vadd.f32 %v2011, %v2586
        %v2588 = vrot.slane %v2587, 2
        %v2589 = vadd.f32 %v2587, %v2588
        %v2590 = vrot.slane %v2589, 1
        %v2591 = vadd.f32 %v2589, %v2590
        %v2592 = vrot.slane %v2012, 4
        %v2593 = vadd.f32 %v2012, %v2592
        %v2594 = vrot.slane %v2593, 2
        %v2595 = vadd.f32 %v2593, %v2594
        %v2596 = vrot.slane %v2595, 1
        %v2597 = vadd.f32 %v2595, %v2596
        %v2598 = vrot.slane %v2013, 4
        %v2599 = vadd.f32 %v2013, %v2598
        %v2600 = vrot.slane %v2599, 2
        %v2601 = vadd.f32 %v2599, %v2600
        %v2602 = vrot.slane %v2601, 1
        %v2603 = vadd.f32 %v2601, %v2602
        %v2604 = vrot.slane %v2014, 4
        %v2605 = vadd.f32 %v2014, %v2604
        %v2606 = vrot.slane %v2605, 2
        %v2607 = vadd.f32 %v2605, %v2606
        %v2608 = vrot.slane %v2607, 1
        %v2609 = vadd.f32 %v2607, %v2608
        %v2610 = vrot.slane %v2015, 4
        %v2611 = vadd.f32 %v2015, %v2610
        %v2612 = vrot.slane %v2611, 2
        %v2613 = vadd.f32 %v2611, %v2612
        %v2614 = vrot.slane %v2613, 1
        %v2615 = vadd.f32 %v2613, %v2614
        %v2616 = vrot.slane %v2016, 4
        %v2617 = vadd.f32 %v2016, %v2616
        %v2618 = vrot.slane %v2617, 2
        %v2619 = vadd.f32 %v2617, %v2618
        %v2620 = vrot.slane %v2619, 1
        %v2621 = vadd.f32 %v2619, %v2620
        %v2622 = vrot.slane %v2017, 4
        %v2623 = vadd.f32 %v2017, %v2622
        %v2624 = vrot.slane %v2623, 2
        %v2625 = vadd.f32 %v2623, %v2624
        %v2626 = vrot.slane %v2625, 1
        %v2627 = vadd.f32 %v2625, %v2626
        %v2628 = vrot.slane %v2018, 4
        %v2629 = vadd.f32 %v2018, %v2628
        %v2630 = vrot.slane %v2629, 2
        %v2631 = vadd.f32 %v2629, %v2630
        %v2632 = vrot.slane %v2631, 1
        %v2633 = vadd.f32 %v2631, %v2632
        %v2634 = vrot.slane %v2019, 4
        %v2635 = vadd.f32 %v2019, %v2634
        %v2636 = vrot.slane %v2635, 2
        %v2637 = vadd.f32 %v2635, %v2636
        %v2638 = vrot.slane %v2637, 1
        %v2639 = vadd.f32 %v2637, %v2638
        %v2640 = vrot.slane %v2020, 4
        %v2641 = vadd.f32 %v2020, %v2640
        %v2642 = vrot.slane %v2641, 2
        %v2643 = vadd.f32 %v2641, %v2642
        %v2644 = vrot.slane %v2643, 1
        %v2645 = vadd.f32 %v2643, %v2644
        %v2646 = vrot.slane %v2021, 4
        %v2647 = vadd.f32 %v2021, %v2646
        %v2648 = vrot.slane %v2647, 2
        %v2649 = vadd.f32 %v2647, %v2648
        %v2650 = vrot.slane %v2649, 1
        %v2651 = vadd.f32 %v2649, %v2650
        %v2652 = vrot.slane %v2022, 4
        %v2653 = vadd.f32 %v2022, %v2652
        %v2654 = vrot.slane %v2653, 2
        %v2655 = vadd.f32 %v2653, %v2654
        %v2656 = vrot.slane %v2655, 1
        %v2657 = vadd.f32 %v2655, %v2656
        %v2658 = vrot.slane %v2023, 4
        %v2659 = vadd.f32 %v2023, %v2658
        %v2660 = vrot.slane %v2659, 2
        %v2661 = vadd.f32 %v2659, %v2660
        %v2662 = vrot.slane %v2661, 1
        %v2663 = vadd.f32 %v2661, %v2662
        %v2664 = vrot.slane %v2024, 4
        %v2665 = vadd.f32 %v2024, %v2664
        %v2666 = vrot.slane %v2665, 2
        %v2667 = vadd.f32 %v2665, %v2666
        %v2668 = vrot.slane %v2667, 1
        %v2669 = vadd.f32 %v2667, %v2668
        %v2670 = vrot.slane %v2025, 4
        %v2671 = vadd.f32 %v2025, %v2670
        %v2672 = vrot.slane %v2671, 2
        %v2673 = vadd.f32 %v2671, %v2672
        %v2674 = vrot.slane %v2673, 1
        %v2675 = vadd.f32 %v2673, %v2674
        %v2676 = vrot.slane %v2026, 4
        %v2677 = vadd.f32 %v2026, %v2676
        %v2678 = vrot.slane %v2677, 2
        %v2679 = vadd.f32 %v2677, %v2678
        %v2680 = vrot.slane %v2679, 1
        %v2681 = vadd.f32 %v2679, %v2680
        %v2682 = vrot.slane %v2027, 4
        %v2683 = vadd.f32 %v2027, %v2682
        %v2684 = vrot.slane %v2683, 2
        %v2685 = vadd.f32 %v2683, %v2684
        %v2686 = vrot.slane %v2685, 1
        %v2687 = vadd.f32 %v2685, %v2686
        %v2688 = vrot.slane %v2028, 4
        %v2689 = vadd.f32 %v2028, %v2688
        %v2690 = vrot.slane %v2689, 2
        %v2691 = vadd.f32 %v2689, %v2690
        %v2692 = vrot.slane %v2691, 1
        %v2693 = vadd.f32 %v2691, %v2692
        %v2694 = vrot.slane %v2029, 4
        %v2695 = vadd.f32 %v2029, %v2694
        %v2696 = vrot.slane %v2695, 2
        %v2697 = vadd.f32 %v2695, %v2696
        %v2698 = vrot.slane %v2697, 1
        %v2699 = vadd.f32 %v2697, %v2698
        %v2700 = vrot.slane %v2030, 4
        %v2701 = vadd.f32 %v2030, %v2700
        %v2702 = vrot.slane %v2701, 2
        %v2703 = vadd.f32 %v2701, %v2702
        %v2704 = vrot.slane %v2703, 1
        %v2705 = vadd.f32 %v2703, %v2704
        %v2706 = vrot.slane %v2031, 4
        %v2707 = vadd.f32 %v2031, %v2706
        %v2708 = vrot.slane %v2707, 2
        %v2709 = vadd.f32 %v2707, %v2708
        %v2710 = vrot.slane %v2709, 1
        %v2711 = vadd.f32 %v2709, %v2710
        %v2712 = vrot.slane %v2032, 4
        %v2713 = vadd.f32 %v2032, %v2712
        %v2714 = vrot.slane %v2713, 2
        %v2715 = vadd.f32 %v2713, %v2714
        %v2716 = vrot.slane %v2715, 1
        %v2717 = vadd.f32 %v2715, %v2716
        %v2718 = vrot.slane %v2033, 4
        %v2719 = vadd.f32 %v2033, %v2718
        %v2720 = vrot.slane %v2719, 2
        %v2721 = vadd.f32 %v2719, %v2720
        %v2722 = vrot.slane %v2721, 1
        %v2723 = vadd.f32 %v2721, %v2722
        %v2724 = vrot.slane %v2034, 4
        %v2725 = vadd.f32 %v2034, %v2724
        %v2726 = vrot.slane %v2725, 2
        %v2727 = vadd.f32 %v2725, %v2726
        %v2728 = vrot.slane %v2727, 1
        %v2729 = vadd.f32 %v2727, %v2728
        %v2730 = vrot.slane %v2035, 4
        %v2731 = vadd.f32 %v2035, %v2730
        %v2732 = vrot.slane %v2731, 2
        %v2733 = vadd.f32 %v2731, %v2732
        %v2734 = vrot.slane %v2733, 1
        %v2735 = vadd.f32 %v2733, %v2734
        %v2736 = vrot.slane %v2036, 4
        %v2737 = vadd.f32 %v2036, %v2736
        %v2738 = vrot.slane %v2737, 2
        %v2739 = vadd.f32 %v2737, %v2738
        %v2740 = vrot.slane %v2739, 1
        %v2741 = vadd.f32 %v2739, %v2740
        %v2742 = vrot.slane %v2037, 4
        %v2743 = vadd.f32 %v2037, %v2742
        %v2744 = vrot.slane %v2743, 2
        %v2745 = vadd.f32 %v2743, %v2744
        %v2746 = vrot.slane %v2745, 1
        %v2747 = vadd.f32 %v2745, %v2746
        %v2748 = vrot.slane %v2038, 4
        %v2749 = vadd.f32 %v2038, %v2748
        %v2750 = vrot.slane %v2749, 2
        %v2751 = vadd.f32 %v2749, %v2750
        %v2752 = vrot.slane %v2751, 1
        %v2753 = vadd.f32 %v2751, %v2752
        %v2754 = vrot.slane %v2039, 4
        %v2755 = vadd.f32 %v2039, %v2754
        %v2756 = vrot.slane %v2755, 2
        %v2757 = vadd.f32 %v2755, %v2756
        %v2758 = vrot.slane %v2757, 1
        %v2759 = vadd.f32 %v2757, %v2758
        %v2760 = vld [vmem:[%s3] sm:$0xff]
        %v2761 = vld [vmem:[%s3 + $0x8] sm:$0xff]
        %v2762 = vld [vmem:[%s3 + $0x10] sm:$0xff]
        %vm2883 = vcmask 1041409
        %v2884 = vsel %vm2883, %v2075, %v2045
        %vm2885 = vcmask 1042434
        %v2886 = vsel %vm2885, %v2105, %v2884
        %vm2887 = vcmask 1043459
        %v2888 = vsel %vm2887, %v2135, %v2886
        %vm2889 = vcmask 1044484
        %v2890 = vsel %vm2889, %v2165, %v2888
        %vm2891 = vcmask 1045509
        %v2892 = vsel %vm2891, %v2195, %v2890
        %vm2893 = vcmask 1046534
        %v2894 = vsel %vm2893, %v2225, %v2892
        %vm2895 = vcmask 1047559
        %v2896 = vsel %vm2895, %v2255, %v2894
        %v2897 = vsel %vm2883, %v2081, %v2051
        %v2898 = vsel %vm2885, %v2111, %v2897
        %v2899 = vsel %vm2887, %v2141, %v2898
        %v2900 = vsel %vm2889, %v2171, %v2899
        %v2901 = vsel %vm2891, %v2201, %v2900
        %v2902 = vsel %vm2893, %v2231, %v2901
        %v2903 = vsel %vm2895, %v2261, %v2902
        %v2904 = vsel %vm2883, %v2087, %v2057
        %v2905 = vsel %vm2885, %v2117, %v2904
        %v2906 = vsel %vm2887, %v2147, %v2905
        %v2907 = vsel %vm2889, %v2177, %v2906
        %v2908 = vsel %vm2891, %v2207, %v2907
        %v2909 = vsel %vm2893, %v2237, %v2908
        %v2910 = vsel %vm2895, %v2267, %v2909
        %v2911 = vsel %vm2883, %v2093, %v2063
        %v2912 = vsel %vm2885, %v2123, %v2911
        %v2913 = vsel %vm2887, %v2153, %v2912
        %v2914 = vsel %vm2889, %v2183, %v2913
        %v2915 = vsel %vm2891, %v2213, %v2914
        %v2916 = vsel %vm2893, %v2243, %v2915
        %v2917 = vsel %vm2895, %v2273, %v2916
        %v2918 = vsel %vm2883, %v2099, %v2069
        %v2919 = vsel %vm2885, %v2129, %v2918
        %v2920 = vsel %vm2887, %v2159, %v2919
        %v2921 = vsel %vm2889, %v2189, %v2920
        %v2922 = vsel %vm2891, %v2219, %v2921
        %v2923 = vsel %vm2893, %v2249, %v2922
        %v2924 = vsel %vm2895, %v2279, %v2923
        %v2925 = vsel %vm2883, %v2315, %v2285
        %v2926 = vsel %vm2885, %v2345, %v2925
        %v2927 = vsel %vm2887, %v2375, %v2926
        %v2928 = vsel %vm2889, %v2405, %v2927
        %v2929 = vsel %vm2891, %v2435, %v2928
        %v2930 = vsel %vm2893, %v2465, %v2929
        %v2931 = vsel %vm2895, %v2495, %v2930
        %v2932 = vsel %vm2883, %v2321, %v2291
        %v2933 = vsel %vm2885, %v2351, %v2932
        %v2934 = vsel %vm2887, %v2381, %v2933
        %v2935 = vsel %vm2889, %v2411, %v2934
        %v2936 = vsel %vm2891, %v2441, %v2935
        %v2937 = vsel %vm2893, %v2471, %v2936
        %v2938 = vsel %vm2895, %v2501, %v2937
        %v2939 = vsel %vm2883, %v2327, %v2297
        %v2940 = vsel %vm2885, %v2357, %v2939
        %v2941 = vsel %vm2887, %v2387, %v2940
        %v2942 = vsel %vm2889, %v2417, %v2941
        %v2943 = vsel %vm2891, %v2447, %v2942
        %v2944 = vsel %vm2893, %v2477, %v2943
        %v2945 = vsel %vm2895, %v2507, %v2944
        %v2946 = vsel %vm2883, %v2333, %v2303
        %v2947 = vsel %vm2885, %v2363, %v2946
        %v2948 = vsel %vm2887, %v2393, %v2947
        %v2949 = vsel %vm2889, %v2423, %v2948
        %v2950 = vsel %vm2891, %v2453, %v2949
        %v2951 = vsel %vm2893, %v2483, %v2950
        %v2952 = vsel %vm2895, %v2513, %v2951
        %v2953 = vsel %vm2883, %v2339, %v2309
        %v2954 = vsel %vm2885, %v2369, %v2953
        %v2955 = vsel %vm2887, %v2399, %v2954
        %v2956 = vsel %vm2889, %v2429, %v2955
        %v2957 = vsel %vm2891, %v2459, %v2956
        %v2958 = vsel %vm2893, %v2489, %v2957
        %v2959 = vsel %vm2895, %v2519, %v2958
        %v2960 = vsel %vm2883, %v2555, %v2525
        %v2961 = vsel %vm2885, %v2585, %v2960
        %v2962 = vsel %vm2887, %v2615, %v2961
        %v2963 = vsel %vm2889, %v2645, %v2962
        %v2964 = vsel %vm2891, %v2675, %v2963
        %v2965 = vsel %vm2893, %v2705, %v2964
        %v2966 = vsel %vm2895, %v2735, %v2965
        %v2967 = vsel %vm2883, %v2561, %v2531
        %v2968 = vsel %vm2885, %v2591, %v2967
        %v2969 = vsel %vm2887, %v2621, %v2968
        %v2970 = vsel %vm2889, %v2651, %v2969
        %v2971 = vsel %vm2891, %v2681, %v2970
        %v2972 = vsel %vm2893, %v2711, %v2971
        %v2973 = vsel %vm2895, %v2741, %v2972
        %v2974 = vsel %vm2883, %v2567, %v2537
        %v2975 = vsel %vm2885, %v2597, %v2974
        %v2976 = vsel %vm2887, %v2627, %v2975
        %v2977 = vsel %vm2889, %v2657, %v2976
        %v2978 = vsel %vm2891, %v2687, %v2977
        %v2979 = vsel %vm2893, %v2717, %v2978
        %v2980 = vsel %vm2895, %v2747, %v2979
        %v2981 = vsel %vm2883, %v2573, %v2543
        %v2982 = vsel %vm2885, %v2603, %v2981
        %v2983 = vsel %vm2887, %v2633, %v2982
        %v2984 = vsel %vm2889, %v2663, %v2983
        %v2985 = vsel %vm2891, %v2693, %v2984
        %v2986 = vsel %vm2893, %v2723, %v2985
        %v2987 = vsel %vm2895, %v2753, %v2986
        %v2988 = vsel %vm2883, %v2579, %v2549
        %v2989 = vsel %vm2885, %v2609, %v2988
        %v2990 = vsel %vm2887, %v2639, %v2989
        %v2991 = vsel %vm2889, %v2669, %v2990
        %v2992 = vsel %vm2891, %v2699, %v2991
        %v2993 = vsel %vm2893, %v2729, %v2992
        %v2994 = vsel %vm2895, %v2759, %v2993
        %vm3010 = vcmask 195584
        %v3012 = vsel %vm3010, %v2760, 0
        %v3015 = vsel %vm3010, %v2761, 0
        %v3018 = vsel %vm3010, %v2762, 0
        %3020 = vmatprep.subr.mxu0 %v2903
        %3021 = vmatpush1.msra.mxu0 %v2896
        %3022 = vmatprep.subr.mxu0 %v2938
        %3023 = vmatpush1.msra.mxu0 %v2931
        %3024 = vmatprep.subr.mxu0 %v2973
        %3025 = vmatpush1.msra.mxu0 %v2966
        %3026 = vmatprep.subr.mxu0 0.0
        %3027 = vmatpush1.msra.mxu0 0.0
        %3028 = vmatprep.subr.mxu0 0.0
        %3029 = vmatpush1.msra.mxu0 0.0
        %3030 = vmatprep.subr.mxu0 0.0
        %3031 = vmatpush1.msra.mxu0 0.0
        %3032 = vmatprep.subr.mxu0 0.0
        %3033 = vmatpush1.msra.mxu0 0.0
        %3034 = vmatprep.subr.mxu0 0.0
        %3035 = vmatpush1.msra.mxu0 0.0
        %3036 = vmatprep.subr.mxu0 0.0
        %3037 = vmatpush1.msra.mxu0 0.0
        %3038 = vmatprep.subr.mxu0 0.0
        %3039 = vmatpush1.msra.mxu0 0.0
        %3040 = vmatprep.subr.mxu0 0.0
        %3041 = vmatpush1.msra.mxu0 0.0
        %3042 = vmatprep.subr.mxu0 0.0
        %3043 = vmatpush1.msra.mxu0 0.0
        %3044 = vmatprep.subr.mxu0 0.0
        %3045 = vmatpush1.msra.mxu0 0.0
        %3046 = vmatprep.subr.mxu0 0.0
        %3047 = vmatpush1.msra.mxu0 0.0
        %3048 = vmatprep.subr.mxu0 0.0
        %3049 = vmatpush1.msra.mxu0 0.0
        %3050 = vmatprep.subr.mxu0 0.0
        %3051 = vmatpush1.msra.mxu0 0.0
        %3052 = vmatprep.subr.mxu0 0.0
        %3053 = vmatpush1.msra.mxu0 0.0
        %3054 = vmatprep.subr.mxu0 0.0
        %3055 = vmatpush1.msra.mxu0 0.0
        %3056 = vmatprep.subr.mxu0 0.0
        %3057 = vmatpush1.msra.mxu0 0.0
        %3058 = vmatprep.subr.mxu0 0.0
        %3059 = vmatpush1.msra.mxu0 0.0
        %3060 = vmatprep.subr.mxu0 0.0
        %3061 = vmatpush1.msra.mxu0 0.0
        %3062 = vmatprep.subr.mxu0 0.0
        %3063 = vmatpush1.msra.mxu0 0.0
        %3064 = vmatprep.subr.mxu0 0.0
        %3065 = vmatpush1.msra.mxu0 0.0
        %3066 = vmatprep.subr.mxu0 0.0
        %3067 = vmatpush1.msra.mxu0 0.0
        %3068 = vmatprep.subr.mxu0 0.0
        %3069 = vmatpush1.msra.mxu0 0.0
        %3070 = vmatprep.subr.mxu0 0.0
        %3071 = vmatpush1.msra.mxu0 0.0
        %3072 = vmatprep.subr.mxu0 0.0
        %3073 = vmatpush1.msra.mxu0 0.0
        %3074 = vmatprep.subr.mxu0 0.0
        %3075 = vmatpush1.msra.mxu0 0.0
        %3076 = vmatprep.subr.mxu0 0.0
        %3077 = vmatpush1.msra.mxu0 0.0
        %3078 = vmatprep.subr.mxu0 0.0
        %3079 = vmatpush1.msra.mxu0 0.0
        %3080 = vmatprep.subr.mxu0 0.0
        %3081 = vmatpush1.msra.mxu0 0.0
        %3082 = vmatprep.subr.mxu0 0.0
        %3083 = vmatpush1.msra.mxu0 0.0
        %3084 = vmatprep.mubr.f32.mxu0 0.0
        %3085 = vmatmul.mubr.f32.gmra.mrb[0].mxu0 %v3012
        %v3086 = vpop.f32.mrb[0].mxu0
        %v3087 = vadd.f32 0.0, %v3086
        %v3088 = vpop.f32.mrb[0].mxu0
        %v3089 = vadd.f32 0.0, %v3088
        %3090 = vmatprep.mubr.f32.mxu0 0.0
        %3091 = vmatmul.mubr.f32.gmra.mrb[0].mxu0 %v3015
        %v3092 = vpop.f32.mrb[0].mxu0
        %v3093 = vadd.f32 0.0, %v3092
        %v3094 = vpop.f32.mrb[0].mxu0
        %v3095 = vadd.f32 0.0, %v3094
        %3096 = vmatprep.mubr.f32.mxu0 0.0
        %3097 = vmatmul.mubr.f32.gmra.mrb[0].mxu0 %v3018
        %v3098 = vpop.f32.mrb[0].mxu0
        %v3099 = vadd.f32 0.0, %v3098
        %v3100 = vpop.f32.mrb[0].mxu0
        %v3101 = vadd.f32 0.0, %v3100
        %3102 = vdwg.mxu0
        %3103 = vmatprep.subr.mxu0 %v2917
        %3104 = vmatpush1.msra.mxu0 %v2910
        %3105 = vmatprep.subr.mxu0 %v2952
        %3106 = vmatpush1.msra.mxu0 %v2945
        %3107 = vmatprep.subr.mxu0 %v2987
        %3108 = vmatpush1.msra.mxu0 %v2980
        %3109 = vmatprep.subr.mxu0 0.0
        %3110 = vmatpush1.msra.mxu0 0.0
        %3111 = vmatprep.subr.mxu0 0.0
        %3112 = vmatpush1.msra.mxu0 0.0
        %3113 = vmatprep.subr.mxu0 0.0
        %3114 = vmatpush1.msra.mxu0 0.0
        %3115 = vmatprep.subr.mxu0 0.0
        %3116 = vmatpush1.msra.mxu0 0.0
        %3117 = vmatprep.subr.mxu0 0.0
        %3118 = vmatpush1.msra.mxu0 0.0
        %3119 = vmatprep.subr.mxu0 0.0
        %3120 = vmatpush1.msra.mxu0 0.0
        %3121 = vmatprep.subr.mxu0 0.0
        %3122 = vmatpush1.msra.mxu0 0.0
        %3123 = vmatprep.subr.mxu0 0.0
        %3124 = vmatpush1.msra.mxu0 0.0
        %3125 = vmatprep.subr.mxu0 0.0
        %3126 = vmatpush1.msra.mxu0 0.0
        %3127 = vmatprep.subr.mxu0 0.0
        %3128 = vmatpush1.msra.mxu0 0.0
        %3129 = vmatprep.subr.mxu0 0.0
        %3130 = vmatpush1.msra.mxu0 0.0
        %3131 = vmatprep.subr.mxu0 0.0
        %3132 = vmatpush1.msra.mxu0 0.0
        %3133 = vmatprep.subr.mxu0 0.0
        %3134 = vmatpush1.msra.mxu0 0.0
        %3135 = vmatprep.subr.mxu0 0.0
        %3136 = vmatpush1.msra.mxu0 0.0
        %3137 = vmatprep.subr.mxu0 0.0
        %3138 = vmatpush1.msra.mxu0 0.0
        %3139 = vmatprep.subr.mxu0 0.0
        %3140 = vmatpush1.msra.mxu0 0.0
        %3141 = vmatprep.subr.mxu0 0.0
        %3142 = vmatpush1.msra.mxu0 0.0
        %3143 = vmatprep.subr.mxu0 0.0
        %3144 = vmatpush1.msra.mxu0 0.0
        %3145 = vmatprep.subr.mxu0 0.0
        %3146 = vmatpush1.msra.mxu0 0.0
        %3147 = vmatprep.subr.mxu0 0.0
        %3148 = vmatpush1.msra.mxu0 0.0
        %3149 = vmatprep.subr.mxu0 0.0
        %3150 = vmatpush1.msra.mxu0 0.0
        %3151 = vmatprep.subr.mxu0 0.0
        %3152 = vmatpush1.msra.mxu0 0.0
        %3153 = vmatprep.subr.mxu0 0.0
        %3154 = vmatpush1.msra.mxu0 0.0
        %3155 = vmatprep.subr.mxu0 0.0
        %3156 = vmatpush1.msra.mxu0 0.0
        %3157 = vmatprep.subr.mxu0 0.0
        %3158 = vmatpush1.msra.mxu0 0.0
        %3159 = vmatprep.subr.mxu0 0.0
        %3160 = vmatpush1.msra.mxu0 0.0
        %3161 = vmatprep.subr.mxu0 0.0
        %3162 = vmatpush1.msra.mxu0 0.0
        %3163 = vmatprep.subr.mxu0 0.0
        %3164 = vmatpush1.msra.mxu0 0.0
        %3165 = vmatprep.subr.mxu0 0.0
        %3166 = vmatpush1.msra.mxu0 0.0
        %3167 = vmatprep.mubr.f32.mxu0 0.0
        %3168 = vmatmul.mubr.f32.gmra.mrb[0].mxu0 %v3012
        %v3169 = vpop.f32.mrb[0].mxu0
        %v3170 = vadd.f32 0.0, %v3169
        %v3171 = vpop.f32.mrb[0].mxu0
        %v3172 = vadd.f32 0.0, %v3171
        %3173 = vmatprep.mubr.f32.mxu0 0.0
        %3174 = vmatmul.mubr.f32.gmra.mrb[0].mxu0 %v3015
        %v3175 = vpop.f32.mrb[0].mxu0
        %v3176 = vadd.f32 0.0, %v3175
        %v3177 = vpop.f32.mrb[0].mxu0
        %v3178 = vadd.f32 0.0, %v3177
        %3179 = vmatprep.mubr.f32.mxu0 0.0
        %3180 = vmatmul.mubr.f32.gmra.mrb[0].mxu0 %v3018
        %v3181 = vpop.f32.mrb[0].mxu0
        %v3182 = vadd.f32 0.0, %v3181
        %v3183 = vpop.f32.mrb[0].mxu0
        %v3184 = vadd.f32 0.0, %v3183
        %3185 = vdwg.mxu0
        %3186 = vmatprep.subr.mxu0 0.0
        %3187 = vmatpush1.msra.mxu0 %v2924
        %3188 = vmatprep.subr.mxu0 0.0
        %3189 = vmatpush1.msra.mxu0 %v2959
        %3190 = vmatprep.subr.mxu0 0.0
        %3191 = vmatpush1.msra.mxu0 %v2994
        %3192 = vmatprep.subr.mxu0 0.0
        %3193 = vmatpush1.msra.mxu0 0.0
        %3194 = vmatprep.subr.mxu0 0.0
        %3195 = vmatpush1.msra.mxu0 0.0
        %3196 = vmatprep.subr.mxu0 0.0
        %3197 = vmatpush1.msra.mxu0 0.0
        %3198 = vmatprep.subr.mxu0 0.0
        %3199 = vmatpush1.msra.mxu0 0.0
        %3200 = vmatprep.subr.mxu0 0.0
        %3201 = vmatpush1.msra.mxu0 0.0
        %3202 = vmatprep.subr.mxu0 0.0
        %3203 = vmatpush1.msra.mxu0 0.0
        %3204 = vmatprep.subr.mxu0 0.0
        %3205 = vmatpush1.msra.mxu0 0.0
        %3206 = vmatprep.subr.mxu0 0.0
        %3207 = vmatpush1.msra.mxu0 0.0
        %3208 = vmatprep.subr.mxu0 0.0
        %3209 = vmatpush1.msra.mxu0 0.0
        %3210 = vmatprep.subr.mxu0 0.0
        %3211 = vmatpush1.msra.mxu0 0.0
        %3212 = vmatprep.subr.mxu0 0.0
        %3213 = vmatpush1.msra.mxu0 0.0
        %3214 = vmatprep.subr.mxu0 0.0
        %3215 = vmatpush1.msra.mxu0 0.0
        %3216 = vmatprep.subr.mxu0 0.0
        %3217 = vmatpush1.msra.mxu0 0.0
        %3218 = vmatprep.subr.mxu0 0.0
        %3219 = vmatpush1.msra.mxu0 0.0
        %3220 = vmatprep.subr.mxu0 0.0
        %3221 = vmatpush1.msra.mxu0 0.0
        %3222 = vmatprep.subr.mxu0 0.0
        %3223 = vmatpush1.msra.mxu0 0.0
        %3224 = vmatprep.subr.mxu0 0.0
        %3225 = vmatpush1.msra.mxu0 0.0
        %3226 = vmatprep.subr.mxu0 0.0
        %3227 = vmatpush1.msra.mxu0 0.0
        %3228 = vmatprep.subr.mxu0 0.0
        %3229 = vmatpush1.msra.mxu0 0.0
        %3230 = vmatprep.subr.mxu0 0.0
        %3231 = vmatpush1.msra.mxu0 0.0
        %3232 = vmatprep.subr.mxu0 0.0
        %3233 = vmatpush1.msra.mxu0 0.0
        %3234 = vmatprep.subr.mxu0 0.0
        %3235 = vmatpush1.msra.mxu0 0.0
        %3236 = vmatprep.subr.mxu0 0.0
        %3237 = vmatpush1.msra.mxu0 0.0
        %3238 = vmatprep.subr.mxu0 0.0
        %3239 = vmatpush1.msra.mxu0 0.0
        %3240 = vmatprep.subr.mxu0 0.0
        %3241 = vmatpush1.msra.mxu0 0.0
        %3242 = vmatprep.subr.mxu0 0.0
        %3243 = vmatpush1.msra.mxu0 0.0
        %3244 = vmatprep.subr.mxu0 0.0
        %3245 = vmatpush1.msra.mxu0 0.0
        %3246 = vmatprep.subr.mxu0 0.0
        %3247 = vmatpush1.msra.mxu0 0.0
        %3248 = vmatprep.subr.mxu0 0.0
        %3249 = vmatpush1.msra.mxu0 0.0
        %3250 = vmatprep.mubr.f32.mxu0 0.0
        %3251 = vmatmul.mubr.f32.gmra.mrb[0].mxu0 %v3012
        %v3252 = vpop.f32.mrb[0].mxu0
        %v3253 = vadd.f32 0.0, %v3252
        %v3254 = vpop.f32.mrb[0].mxu0
        %3255 = vmatprep.mubr.f32.mxu0 0.0
        %3256 = vmatmul.mubr.f32.gmra.mrb[0].mxu0 %v3015
        %v3257 = vpop.f32.mrb[0].mxu0
        %v3258 = vadd.f32 0.0, %v3257
        %v3259 = vpop.f32.mrb[0].mxu0
        %3260 = vmatprep.mubr.f32.mxu0 0.0
        %3261 = vmatmul.mubr.f32.gmra.mrb[0].mxu0 %v3018
        %v3262 = vpop.f32.mrb[0].mxu0
        %v3263 = vadd.f32 0.0, %v3262
        %v3264 = vpop.f32.mrb[0].mxu0
        %3265 = vdwg.mxu0
        %v3266 = vmax.f32 %v3087, %v3093
        %v3267 = vmax.f32 %v3266, %v3099
        %v3268 = vrot.slane %v3267, 4
        %v3269 = vmax.f32 %v3267, %v3268
        %v3270 = vrot.slane %v3269, 2
        %v3271 = vmax.f32 %v3269, %v3270
        %v3272 = vrot.slane %v3271, 1
        %v3273 = vmax.f32 %v3271, %v3272
        %v3274 = vmax.f32 %v3089, %v3095
        %v3275 = vmax.f32 %v3274, %v3101
        %v3276 = vrot.slane %v3275, 4
        %v3277 = vmax.f32 %v3275, %v3276
        %v3278 = vrot.slane %v3277, 2
        %v3279 = vmax.f32 %v3277, %v3278
        %v3280 = vrot.slane %v3279, 1
        %v3281 = vmax.f32 %v3279, %v3280
        %v3282 = vmax.f32 %v3170, %v3176
        %v3283 = vmax.f32 %v3282, %v3182
        %v3284 = vrot.slane %v3283, 4
        %v3285 = vmax.f32 %v3283, %v3284
        %v3286 = vrot.slane %v3285, 2
        %v3287 = vmax.f32 %v3285, %v3286
        %v3288 = vrot.slane %v3287, 1
        %v3289 = vmax.f32 %v3287, %v3288
        %v3290 = vmax.f32 %v3172, %v3178
        %v3291 = vmax.f32 %v3290, %v3184
        %v3292 = vrot.slane %v3291, 4
        %v3293 = vmax.f32 %v3291, %v3292
        %v3294 = vrot.slane %v3293, 2
        %v3295 = vmax.f32 %v3293, %v3294
        %v3296 = vrot.slane %v3295, 1
        %v3297 = vmax.f32 %v3295, %v3296
        %v3298 = vmax.f32 %v3253, %v3258
        %v3299 = vmax.f32 %v3298, %v3263
        %v3300 = vrot.slane %v3299, 4
        %v3301 = vmax.f32 %v3299, %v3300
        %v3302 = vrot.slane %v3301, 2
        %v3303 = vmax.f32 %v3301, %v3302
        %v3304 = vrot.slane %v3303, 1
        %v3305 = vmax.f32 %v3303, %v3304
        %v3306 = vsub.f32 %v3087, %v3273
        %v3307 = vsub.f32 %v3089, %v3281
        %v3308 = vsub.f32 %v3170, %v3289
        %v3309 = vsub.f32 %v3172, %v3297
        %v3310 = vsub.f32 %v3253, %v3305
        %v3311 = vsub.f32 %v3093, %v3273
        %v3312 = vsub.f32 %v3095, %v3281
        %v3313 = vsub.f32 %v3176, %v3289
        %v3314 = vsub.f32 %v3178, %v3297
        %v3315 = vsub.f32 %v3258, %v3305
        %v3316 = vsub.f32 %v3099, %v3273
        %v3317 = vsub.f32 %v3101, %v3281
        %v3318 = vsub.f32 %v3182, %v3289
        %v3319 = vsub.f32 %v3184, %v3297
        %v3320 = vsub.f32 %v3263, %v3305
        %v3321 = vmul.f32 %v3306, 1.442695
        %v3322 = vpow.pop %v3321
        %v3323 = vmul.f32 %v3307, 1.442695
        %v3324 = vpow.pop %v3323
        %v3325 = vmul.f32 %v3308, 1.442695
        %v3326 = vpow.pop %v3325
        %v3327 = vmul.f32 %v3309, 1.442695
        %v3328 = vpow.pop %v3327
        %v3329 = vmul.f32 %v3310, 1.442695
        %v3330 = vpow.pop %v3329
        %v3331 = vmul.f32 %v3311, 1.442695
        %v3332 = vpow.pop %v3331
        %v3333 = vmul.f32 %v3312, 1.442695
        %v3334 = vpow.pop %v3333
        %v3335 = vmul.f32 %v3313, 1.442695
        %v3336 = vpow.pop %v3335
        %v3337 = vmul.f32 %v3314, 1.442695
        %v3338 = vpow.pop %v3337
        %v3339 = vmul.f32 %v3315, 1.442695
        %v3340 = vpow.pop %v3339
        %v3341 = vmul.f32 %v3316, 1.442695
        %v3342 = vpow.pop %v3341
        %v3343 = vmul.f32 %v3317, 1.442695
        %v3344 = vpow.pop %v3343
        %v3345 = vmul.f32 %v3318, 1.442695
        %v3346 = vpow.pop %v3345
        %v3347 = vmul.f32 %v3319, 1.442695
        %v3348 = vpow.pop %v3347
        %v3349 = vmul.f32 %v3320, 1.442695
        %v3350 = vpow.pop %v3349
        %v3351 = vadd.f32 %v3322, %v3332
        %v3352 = vadd.f32 %v3351, %v3342
        %v3353 = vrot.slane %v3352, 4
        %v3354 = vadd.f32 %v3352, %v3353
        %v3355 = vrot.slane %v3354, 2
        %v3356 = vadd.f32 %v3354, %v3355
        %v3357 = vrot.slane %v3356, 1
        %v3358 = vadd.f32 %v3356, %v3357
        %v3359 = vadd.f32 %v3324, %v3334
        %v3360 = vadd.f32 %v3359, %v3344
        %v3361 = vrot.slane %v3360, 4
        %v3362 = vadd.f32 %v3360, %v3361
        %v3363 = vrot.slane %v3362, 2
        %v3364 = vadd.f32 %v3362, %v3363
        %v3365 = vrot.slane %v3364, 1
        %v3366 = vadd.f32 %v3364, %v3365
        %v3367 = vadd.f32 %v3326, %v3336
        %v3368 = vadd.f32 %v3367, %v3346
        %v3369 = vrot.slane %v3368, 4
        %v3370 = vadd.f32 %v3368, %v3369
        %v3371 = vrot.slane %v3370, 2
        %v3372 = vadd.f32 %v3370, %v3371
        %v3373 = vrot.slane %v3372, 1
        %v3374 = vadd.f32 %v3372, %v3373
        %v3375 = vadd.f32 %v3328, %v3338
        %v3376 = vadd.f32 %v3375, %v3348
        %v3377 = vrot.slane %v3376, 4
        %v3378 = vadd.f32 %v3376, %v3377
        %v3379 = vrot.slane %v3378, 2
        %v3380 = vadd.f32 %v3378, %v3379
        %v3381 = vrot.slane %v3380, 1
        %v3382 = vadd.f32 %v3380, %v3381
        %v3383 = vadd.f32 %v3330, %v3340
        %v3384 = vadd.f32 %v3383, %v3350
        %v3385 = vrot.slane %v3384, 4
        %v3386 = vadd.f32 %v3384, %v3385
        %v3387 = vrot.slane %v3386, 2
        %v3388 = vadd.f32 %v3386, %v3387
        %v3389 = vrot.slane %v3388, 1
        %v3390 = vadd.f32 %v3388, %v3389
        %v3391 = vrcp.pop %v3358
        %v3392 = vrcp.pop %v3366
        %v3393 = vrcp.pop %v3374
        %v3394 = vrcp.pop %v3382
        %v3395 = vrcp.pop %v3390
        %v3396 = vmul.f32 %v3322, %v3391
        %v3397 = vmul.f32 %v3324, %v3392
        %v3398 = vmul.f32 %v3326, %v3393
        %v3399 = vmul.f32 %v3328, %v3394
        %v3400 = vmul.f32 %v3330, %v3395
        %v3401 = vmul.f32 %v3332, %v3391
        %v3402 = vmul.f32 %v3334, %v3392
        %v3403 = vmul.f32 %v3336, %v3393
        %v3404 = vmul.f32 %v3338, %v3394
        %v3405 = vmul.f32 %v3340, %v3395
        %v3406 = vmul.f32 %v3342, %v3391
        %v3407 = vmul.f32 %v3344, %v3392
        %v3408 = vmul.f32 %v3346, %v3393
        %v3409 = vmul.f32 %v3348, %v3394
        %v3410 = vmul.f32 %v3350, %v3395
        %v3426 = vcombine.low %v3396, %v3397
        %v3427 = vcombine.high %v3396, %v3397
        %v3428 = vcombine.low %v3398, %v3399
        %v3429 = vcombine.high %v3398, %v3399
        %v3430 = vcombine.high %v3400, %v3400
        %v3432 = vunpack.c.l.s4 1966171168
        %v3433 = vunpack.c.0.s8 %v3432
        %v3434 = vlaneseq
        %v3435 = vshrl.u32 %v3434, 7
        %v3436 = vsub.s32 %v3433, %v3435
        %v3437 = vrot.slane %v3426, %v3436
        %v3439 = vunpack.c.l.s4 1966171168
        %v3440 = vunpack.c.0.s8 %v3439
        %v3441 = vlaneseq
        %v3442 = vshrl.u32 %v3441, 7
        %v3443 = vsub.s32 %v3440, %v3442
        %v3444 = vrot.slane %v3427, %v3443
        %v3446 = vunpack.c.l.s4 1966171168
        %v3447 = vunpack.c.0.s8 %v3446
        %v3448 = vlaneseq
        %v3449 = vshrl.u32 %v3448, 7
        %v3450 = vsub.s32 %v3447, %v3449
        %v3451 = vrot.slane %v3428, %v3450
        %v3453 = vunpack.c.l.s4 1966171168
        %v3454 = vunpack.c.0.s8 %v3453
        %v3455 = vlaneseq
        %v3456 = vshrl.u32 %v3455, 7
        %v3457 = vsub.s32 %v3454, %v3456
        %v3458 = vrot.slane %v3429, %v3457
        %v3460 = vunpack.c.l.s4 1966171168
        %v3461 = vunpack.c.0.s8 %v3460
        %v3462 = vlaneseq
        %v3463 = vshrl.u32 %v3462, 7
        %v3464 = vsub.s32 %v3461, %v3463
        %v3465 = vrot.slane %v3400, %v3464
        %v3467 = vunpack.c.l.s4 1966171168
        %v3468 = vunpack.c.0.s8 %v3467
        %v3469 = vlaneseq
        %v3470 = vshrl.u32 %v3469, 7
        %v3471 = vsub.s32 %v3468, %v3470
        %v3472 = vrot.slane %v3430, %v3471
        %v3473 = vcombine.low %v3437, %v3451
        %v3474 = vcombine.high %v3437, %v3451
        %v3475 = vcombine.low %v3444, %v3458
        %v3476 = vcombine.high %v3444, %v3458
        %v3477 = vcombine.high %v3465, %v3465
        %v3478 = vcombine.high %v3472, %v3472
        %v3480 = vunpack.c.l.s4 1966171168
        %v3481 = vunpack.c.0.s8 %v3480
        %v3482 = vlaneseq
        %v3483 = vshrl.u32 %v3482, 7
        %v3484 = vsub.s32 %v3481, %v3483
        %v3485 = vrot.slane %v3473, %v3484
        %v3487 = vunpack.c.l.s4 1966171168
        %v3488 = vunpack.c.0.s8 %v3487
        %v3489 = vlaneseq
        %v3490 = vshrl.u32 %v3489, 7
        %v3491 = vsub.s32 %v3488, %v3490
        %v3492 = vrot.slane %v3475, %v3491
        %v3494 = vunpack.c.l.s4 1966171168
        %v3495 = vunpack.c.0.s8 %v3494
        %v3496 = vlaneseq
        %v3497 = vshrl.u32 %v3496, 7
        %v3498 = vsub.s32 %v3495, %v3497
        %v3499 = vrot.slane %v3474, %v3498
        %v3501 = vunpack.c.l.s4 1966171168
        %v3502 = vunpack.c.0.s8 %v3501
        %v3503 = vlaneseq
        %v3504 = vshrl.u32 %v3503, 7
        %v3505 = vsub.s32 %v3502, %v3504
        %v3506 = vrot.slane %v3476, %v3505
        %v3508 = vunpack.c.l.s4 1966171168
        %v3509 = vunpack.c.0.s8 %v3508
        %v3510 = vlaneseq
        %v3511 = vshrl.u32 %v3510, 7
        %v3512 = vsub.s32 %v3509, %v3511
        %v3513 = vrot.slane %v3465, %v3512
        %v3515 = vunpack.c.l.s4 1966171168
        %v3516 = vunpack.c.0.s8 %v3515
        %v3517 = vlaneseq
        %v3518 = vshrl.u32 %v3517, 7
        %v3519 = vsub.s32 %v3516, %v3518
        %v3520 = vrot.slane %v3472, %v3519
        %v3522 = vunpack.c.l.s4 1966171168
        %v3523 = vunpack.c.0.s8 %v3522
        %v3524 = vlaneseq
        %v3525 = vshrl.u32 %v3524, 7
        %v3526 = vsub.s32 %v3523, %v3525
        %v3527 = vrot.slane %v3477, %v3526
        %v3529 = vunpack.c.l.s4 1966171168
        %v3530 = vunpack.c.0.s8 %v3529
        %v3531 = vlaneseq
        %v3532 = vshrl.u32 %v3531, 7
        %v3533 = vsub.s32 %v3530, %v3532
        %v3534 = vrot.slane %v3478, %v3533
        %v3535 = vcombine.low %v3485, %v3513
        %v3536 = vcombine.high %v3485, %v3513
        %v3537 = vcombine.low %v3492, %v3520
        %v3538 = vcombine.high %v3492, %v3520
        %v3539 = vcombine.low %v3499, %v3527
        %v3540 = vcombine.high %v3499, %v3527
        %v3541 = vcombine.low %v3506, %v3534
        %v3542 = vcombine.high %v3506, %v3534
        %v3543 = vcombine.low %v3401, %v3402
        %v3544 = vcombine.high %v3401, %v3402
        %v3545 = vcombine.low %v3403, %v3404
        %v3546 = vcombine.high %v3403, %v3404
        %v3547 = vcombine.high %v3405, %v3405
        %v3549 = vunpack.c.l.s4 1966171168
        %v3550 = vunpack.c.0.s8 %v3549
        %v3551 = vlaneseq
        %v3552 = vshrl.u32 %v3551, 7
        %v3553 = vsub.s32 %v3550, %v3552
        %v3554 = vrot.slane %v3543, %v3553
        %v3556 = vunpack.c.l.s4 1966171168
        %v3557 = vunpack.c.0.s8 %v3556
        %v3558 = vlaneseq
        %v3559 = vshrl.u32 %v3558, 7
        %v3560 = vsub.s32 %v3557, %v3559
        %v3561 = vrot.slane %v3544, %v3560
        %v3563 = vunpack.c.l.s4 1966171168
        %v3564 = vunpack.c.0.s8 %v3563
        %v3565 = vlaneseq
        %v3566 = vshrl.u32 %v3565, 7
        %v3567 = vsub.s32 %v3564, %v3566
        %v3568 = vrot.slane %v3545, %v3567
        %v3570 = vunpack.c.l.s4 1966171168
        %v3571 = vunpack.c.0.s8 %v3570
        %v3572 = vlaneseq
        %v3573 = vshrl.u32 %v3572, 7
        %v3574 = vsub.s32 %v3571, %v3573
        %v3575 = vrot.slane %v3546, %v3574
        %v3577 = vunpack.c.l.s4 1966171168
        %v3578 = vunpack.c.0.s8 %v3577
        %v3579 = vlaneseq
        %v3580 = vshrl.u32 %v3579, 7
        %v3581 = vsub.s32 %v3578, %v3580
        %v3582 = vrot.slane %v3405, %v3581
        %v3584 = vunpack.c.l.s4 1966171168
        %v3585 = vunpack.c.0.s8 %v3584
        %v3586 = vlaneseq
        %v3587 = vshrl.u32 %v3586, 7
        %v3588 = vsub.s32 %v3585, %v3587
        %v3589 = vrot.slane %v3547, %v3588
        %v3590 = vcombine.low %v3554, %v3568
        %v3591 = vcombine.high %v3554, %v3568
        %v3592 = vcombine.low %v3561, %v3575
        %v3593 = vcombine.high %v3561, %v3575
        %v3594 = vcombine.high %v3582, %v3582
        %v3595 = vcombine.high %v3589, %v3589
        %v3597 = vunpack.c.l.s4 1966171168
        %v3598 = vunpack.c.0.s8 %v3597
        %v3599 = vlaneseq
        %v3600 = vshrl.u32 %v3599, 7
        %v3601 = vsub.s32 %v3598, %v3600
        %v3602 = vrot.slane %v3590, %v3601
        %v3604 = vunpack.c.l.s4 1966171168
        %v3605 = vunpack.c.0.s8 %v3604
        %v3606 = vlaneseq
        %v3607 = vshrl.u32 %v3606, 7
        %v3608 = vsub.s32 %v3605, %v3607
        %v3609 = vrot.slane %v3592, %v3608
        %v3611 = vunpack.c.l.s4 1966171168
        %v3612 = vunpack.c.0.s8 %v3611
        %v3613 = vlaneseq
        %v3614 = vshrl.u32 %v3613, 7
        %v3615 = vsub.s32 %v3612, %v3614
        %v3616 = vrot.slane %v3591, %v3615
        %v3618 = vunpack.c.l.s4 1966171168
        %v3619 = vunpack.c.0.s8 %v3618
        %v3620 = vlaneseq
        %v3621 = vshrl.u32 %v3620, 7
        %v3622 = vsub.s32 %v3619, %v3621
        %v3623 = vrot.slane %v3593, %v3622
        %v3625 = vunpack.c.l.s4 1966171168
        %v3626 = vunpack.c.0.s8 %v3625
        %v3627 = vlaneseq
        %v3628 = vshrl.u32 %v3627, 7
        %v3629 = vsub.s32 %v3626, %v3628
        %v3630 = vrot.slane %v3582, %v3629
        %v3632 = vunpack.c.l.s4 1966171168
        %v3633 = vunpack.c.0.s8 %v3632
        %v3634 = vlaneseq
        %v3635 = vshrl.u32 %v3634, 7
        %v3636 = vsub.s32 %v3633, %v3635
        %v3637 = vrot.slane %v3589, %v3636
        %v3639 = vunpack.c.l.s4 1966171168
        %v3640 = vunpack.c.0.s8 %v3639
        %v3641 = vlaneseq
        %v3642 = vshrl.u32 %v3641, 7
        %v3643 = vsub.s32 %v3640, %v3642
        %v3644 = vrot.slane %v3594, %v3643
        %v3646 = vunpack.c.l.s4 1966171168
        %v3647 = vunpack.c.0.s8 %v3646
        %v3648 = vlaneseq
        %v3649 = vshrl.u32 %v3648, 7
        %v3650 = vsub.s32 %v3647, %v3649
        %v3651 = vrot.slane %v3595, %v3650
        %v3652 = vcombine.low %v3602, %v3630
        %v3653 = vcombine.high %v3602, %v3630
        %v3654 = vcombine.low %v3609, %v3637
        %v3655 = vcombine.high %v3609, %v3637
        %v3656 = vcombine.low %v3616, %v3644
        %v3657 = vcombine.high %v3616, %v3644
        %v3658 = vcombine.low %v3623, %v3651
        %v3659 = vcombine.high %v3623, %v3651
        %v3660 = vcombine.low %v3406, %v3407
        %v3661 = vcombine.high %v3406, %v3407
        %v3662 = vcombine.low %v3408, %v3409
        %v3663 = vcombine.high %v3408, %v3409
        %v3664 = vcombine.high %v3410, %v3410
        %v3666 = vunpack.c.l.s4 1966171168
        %v3667 = vunpack.c.0.s8 %v3666
        %v3668 = vlaneseq
        %v3669 = vshrl.u32 %v3668, 7
        %v3670 = vsub.s32 %v3667, %v3669
        %v3671 = vrot.slane %v3660, %v3670
        %v3673 = vunpack.c.l.s4 1966171168
        %v3674 = vunpack.c.0.s8 %v3673
        %v3675 = vlaneseq
        %v3676 = vshrl.u32 %v3675, 7
        %v3677 = vsub.s32 %v3674, %v3676
        %v3678 = vrot.slane %v3661, %v3677
        %v3680 = vunpack.c.l.s4 1966171168
        %v3681 = vunpack.c.0.s8 %v3680
        %v3682 = vlaneseq
        %v3683 = vshrl.u32 %v3682, 7
        %v3684 = vsub.s32 %v3681, %v3683
        %v3685 = vrot.slane %v3662, %v3684
        %v3687 = vunpack.c.l.s4 1966171168
        %v3688 = vunpack.c.0.s8 %v3687
        %v3689 = vlaneseq
        %v3690 = vshrl.u32 %v3689, 7
        %v3691 = vsub.s32 %v3688, %v3690
        %v3692 = vrot.slane %v3663, %v3691
        %v3694 = vunpack.c.l.s4 1966171168
        %v3695 = vunpack.c.0.s8 %v3694
        %v3696 = vlaneseq
        %v3697 = vshrl.u32 %v3696, 7
        %v3698 = vsub.s32 %v3695, %v3697
        %v3699 = vrot.slane %v3410, %v3698
        %v3701 = vunpack.c.l.s4 1966171168
        %v3702 = vunpack.c.0.s8 %v3701
        %v3703 = vlaneseq
        %v3704 = vshrl.u32 %v3703, 7
        %v3705 = vsub.s32 %v3702, %v3704
        %v3706 = vrot.slane %v3664, %v3705
        %v3707 = vcombine.low %v3671, %v3685
        %v3708 = vcombine.high %v3671, %v3685
        %v3709 = vcombine.low %v3678, %v3692
        %v3710 = vcombine.high %v3678, %v3692
        %v3711 = vcombine.high %v3699, %v3699
        %v3712 = vcombine.high %v3706, %v3706
        %v3714 = vunpack.c.l.s4 1966171168
        %v3715 = vunpack.c.0.s8 %v3714
        %v3716 = vlaneseq
        %v3717 = vshrl.u32 %v3716, 7
        %v3718 = vsub.s32 %v3715, %v3717
        %v3719 = vrot.slane %v3707, %v3718
        %v3721 = vunpack.c.l.s4 1966171168
        %v3722 = vunpack.c.0.s8 %v3721
        %v3723 = vlaneseq
        %v3724 = vshrl.u32 %v3723, 7
        %v3725 = vsub.s32 %v3722, %v3724
        %v3726 = vrot.slane %v3709, %v3725
        %v3728 = vunpack.c.l.s4 1966171168
        %v3729 = vunpack.c.0.s8 %v3728
        %v3730 = vlaneseq
        %v3731 = vshrl.u32 %v3730, 7
        %v3732 = vsub.s32 %v3729, %v3731
        %v3733 = vrot.slane %v3708, %v3732
        %v3735 = vunpack.c.l.s4 1966171168
        %v3736 = vunpack.c.0.s8 %v3735
        %v3737 = vlaneseq
        %v3738 = vshrl.u32 %v3737, 7
        %v3739 = vsub.s32 %v3736, %v3738
        %v3740 = vrot.slane %v3710, %v3739
        %v3742 = vunpack.c.l.s4 1966171168
        %v3743 = vunpack.c.0.s8 %v3742
        %v3744 = vlaneseq
        %v3745 = vshrl.u32 %v3744, 7
        %v3746 = vsub.s32 %v3743, %v3745
        %v3747 = vrot.slane %v3699, %v3746
        %v3749 = vunpack.c.l.s4 1966171168
        %v3750 = vunpack.c.0.s8 %v3749
        %v3751 = vlaneseq
        %v3752 = vshrl.u32 %v3751, 7
        %v3753 = vsub.s32 %v3750, %v3752
        %v3754 = vrot.slane %v3706, %v3753
        %v3756 = vunpack.c.l.s4 1966171168
        %v3757 = vunpack.c.0.s8 %v3756
        %v3758 = vlaneseq
        %v3759 = vshrl.u32 %v3758, 7
        %v3760 = vsub.s32 %v3757, %v3759
        %v3761 = vrot.slane %v3711, %v3760
        %v3763 = vunpack.c.l.s4 1966171168
        %v3764 = vunpack.c.0.s8 %v3763
        %v3765 = vlaneseq
        %v3766 = vshrl.u32 %v3765, 7
        %v3767 = vsub.s32 %v3764, %v3766
        %v3768 = vrot.slane %v3712, %v3767
        %v3769 = vcombine.low %v3719, %v3747
        %v3770 = vcombine.high %v3719, %v3747
        %v3771 = vcombine.low %v3726, %v3754
        %v3772 = vcombine.high %v3726, %v3754
        %v3773 = vcombine.low %v3733, %v3761
        %v3774 = vcombine.high %v3733, %v3761
        %v3775 = vcombine.low %v3740, %v3768
        %v3776 = vcombine.high %v3740, %v3768
        %v3777 = vlaneseq
        %v3778 = vshrl.u32 %v3777, 7
        %v3779 = vsub.s32 0, %v3778
        %v3780 = vrot.slane %v3535, %v3779
        %v3781 = vlaneseq
        %v3782 = vshrl.u32 %v3781, 7
        %v3783 = vsub.s32 1, %v3782
        %v3784 = vrot.slane %v3535, %v3783
        %v3785 = vlaneseq
        %v3786 = vshrl.u32 %v3785, 7
        %v3787 = vsub.s32 2, %v3786
        %v3788 = vrot.slane %v3535, %v3787
        %v3789 = vlaneseq
        %v3790 = vshrl.u32 %v3789, 7
        %v3791 = vsub.s32 3, %v3790
        %v3792 = vrot.slane %v3535, %v3791
        %v3793 = vlaneseq
        %v3794 = vshrl.u32 %v3793, 7
        %v3795 = vsub.s32 4, %v3794
        %v3796 = vrot.slane %v3535, %v3795
        %v3797 = vlaneseq
        %v3798 = vshrl.u32 %v3797, 7
        %v3799 = vsub.s32 0, %v3798
        %v3800 = vrot.slane %v3539, %v3799
        %v3801 = vlaneseq
        %v3802 = vshrl.u32 %v3801, 7
        %v3803 = vsub.s32 1, %v3802
        %v3804 = vrot.slane %v3539, %v3803
        %v3805 = vlaneseq
        %v3806 = vshrl.u32 %v3805, 7
        %v3807 = vsub.s32 2, %v3806
        %v3808 = vrot.slane %v3539, %v3807
        %v3809 = vlaneseq
        %v3810 = vshrl.u32 %v3809, 7
        %v3811 = vsub.s32 3, %v3810
        %v3812 = vrot.slane %v3539, %v3811
        %v3813 = vlaneseq
        %v3814 = vshrl.u32 %v3813, 7
        %v3815 = vsub.s32 4, %v3814
        %v3816 = vrot.slane %v3539, %v3815
        %v3817 = vlaneseq
        %v3818 = vshrl.u32 %v3817, 7
        %v3819 = vsub.s32 0, %v3818
        %v3820 = vrot.slane %v3536, %v3819
        %v3821 = vlaneseq
        %v3822 = vshrl.u32 %v3821, 7
        %v3823 = vsub.s32 1, %v3822
        %v3824 = vrot.slane %v3536, %v3823
        %v3825 = vlaneseq
        %v3826 = vshrl.u32 %v3825, 7
        %v3827 = vsub.s32 2, %v3826
        %v3828 = vrot.slane %v3536, %v3827
        %v3829 = vlaneseq
        %v3830 = vshrl.u32 %v3829, 7
        %v3831 = vsub.s32 3, %v3830
        %v3832 = vrot.slane %v3536, %v3831
        %v3833 = vlaneseq
        %v3834 = vshrl.u32 %v3833, 7
        %v3835 = vsub.s32 4, %v3834
        %v3836 = vrot.slane %v3536, %v3835
        %v3837 = vlaneseq
        %v3838 = vshrl.u32 %v3837, 7
        %v3839 = vsub.s32 0, %v3838
        %v3840 = vrot.slane %v3540, %v3839
        %v3841 = vlaneseq
        %v3842 = vshrl.u32 %v3841, 7
        %v3843 = vsub.s32 1, %v3842
        %v3844 = vrot.slane %v3540, %v3843
        %v3845 = vlaneseq
        %v3846 = vshrl.u32 %v3845, 7
        %v3847 = vsub.s32 2, %v3846
        %v3848 = vrot.slane %v3540, %v3847
        %v3849 = vlaneseq
        %v3850 = vshrl.u32 %v3849, 7
        %v3851 = vsub.s32 3, %v3850
        %v3852 = vrot.slane %v3540, %v3851
        %v3853 = vlaneseq
        %v3854 = vshrl.u32 %v3853, 7
        %v3855 = vsub.s32 4, %v3854
        %v3856 = vrot.slane %v3540, %v3855
        %v3857 = vlaneseq
        %v3858 = vshrl.u32 %v3857, 7
        %v3859 = vsub.s32 0, %v3858
        %v3860 = vrot.slane %v3537, %v3859
        %v3861 = vlaneseq
        %v3862 = vshrl.u32 %v3861, 7
        %v3863 = vsub.s32 1, %v3862
        %v3864 = vrot.slane %v3537, %v3863
        %v3865 = vlaneseq
        %v3866 = vshrl.u32 %v3865, 7
        %v3867 = vsub.s32 2, %v3866
        %v3868 = vrot.slane %v3537, %v3867
        %v3869 = vlaneseq
        %v3870 = vshrl.u32 %v3869, 7
        %v3871 = vsub.s32 3, %v3870
        %v3872 = vrot.slane %v3537, %v3871
        %v3873 = vlaneseq
        %v3874 = vshrl.u32 %v3873, 7
        %v3875 = vsub.s32 4, %v3874
        %v3876 = vrot.slane %v3537, %v3875
        %v3877 = vlaneseq
        %v3878 = vshrl.u32 %v3877, 7
        %v3879 = vsub.s32 0, %v3878
        %v3880 = vrot.slane %v3541, %v3879
        %v3881 = vlaneseq
        %v3882 = vshrl.u32 %v3881, 7
        %v3883 = vsub.s32 1, %v3882
        %v3884 = vrot.slane %v3541, %v3883
        %v3885 = vlaneseq
        %v3886 = vshrl.u32 %v3885, 7
        %v3887 = vsub.s32 2, %v3886
        %v3888 = vrot.slane %v3541, %v3887
        %v3889 = vlaneseq
        %v3890 = vshrl.u32 %v3889, 7
        %v3891 = vsub.s32 3, %v3890
        %v3892 = vrot.slane %v3541, %v3891
        %v3893 = vlaneseq
        %v3894 = vshrl.u32 %v3893, 7
        %v3895 = vsub.s32 4, %v3894
        %v3896 = vrot.slane %v3541, %v3895
        %v3897 = vlaneseq
        %v3898 = vshrl.u32 %v3897, 7
        %v3899 = vsub.s32 0, %v3898
        %v3900 = vrot.slane %v3538, %v3899
        %v3901 = vlaneseq
        %v3902 = vshrl.u32 %v3901, 7
        %v3903 = vsub.s32 1, %v3902
        %v3904 = vrot.slane %v3538, %v3903
        %v3905 = vlaneseq
        %v3906 = vshrl.u32 %v3905, 7
        %v3907 = vsub.s32 2, %v3906
        %v3908 = vrot.slane %v3538, %v3907
        %v3909 = vlaneseq
        %v3910 = vshrl.u32 %v3909, 7
        %v3911 = vsub.s32 3, %v3910
        %v3912 = vrot.slane %v3538, %v3911
        %v3913 = vlaneseq
        %v3914 = vshrl.u32 %v3913, 7
        %v3915 = vsub.s32 4, %v3914
        %v3916 = vrot.slane %v3538, %v3915
        %v3917 = vlaneseq
        %v3918 = vshrl.u32 %v3917, 7
        %v3919 = vsub.s32 0, %v3918
        %v3920 = vrot.slane %v3542, %v3919
        %v3921 = vlaneseq
        %v3922 = vshrl.u32 %v3921, 7
        %v3923 = vsub.s32 1, %v3922
        %v3924 = vrot.slane %v3542, %v3923
        %v3925 = vlaneseq
        %v3926 = vshrl.u32 %v3925, 7
        %v3927 = vsub.s32 2, %v3926
        %v3928 = vrot.slane %v3542, %v3927
        %v3929 = vlaneseq
        %v3930 = vshrl.u32 %v3929, 7
        %v3931 = vsub.s32 3, %v3930
        %v3932 = vrot.slane %v3542, %v3931
        %v3933 = vlaneseq
        %v3934 = vshrl.u32 %v3933, 7
        %v3935 = vsub.s32 4, %v3934
        %v3936 = vrot.slane %v3542, %v3935
        %v3937 = vlaneseq
        %v3938 = vshrl.u32 %v3937, 7
        %v3939 = vsub.s32 0, %v3938
        %v3940 = vrot.slane %v3652, %v3939
        %v3941 = vlaneseq
        %v3942 = vshrl.u32 %v3941, 7
        %v3943 = vsub.s32 1, %v3942
        %v3944 = vrot.slane %v3652, %v3943
        %v3945 = vlaneseq
        %v3946 = vshrl.u32 %v3945, 7
        %v3947 = vsub.s32 2, %v3946
        %v3948 = vrot.slane %v3652, %v3947
        %v3949 = vlaneseq
        %v3950 = vshrl.u32 %v3949, 7
        %v3951 = vsub.s32 3, %v3950
        %v3952 = vrot.slane %v3652, %v3951
        %v3953 = vlaneseq
        %v3954 = vshrl.u32 %v3953, 7
        %v3955 = vsub.s32 4, %v3954
        %v3956 = vrot.slane %v3652, %v3955
        %v3957 = vlaneseq
        %v3958 = vshrl.u32 %v3957, 7
        %v3959 = vsub.s32 0, %v3958
        %v3960 = vrot.slane %v3656, %v3959
        %v3961 = vlaneseq
        %v3962 = vshrl.u32 %v3961, 7
        %v3963 = vsub.s32 1, %v3962
        %v3964 = vrot.slane %v3656, %v3963
        %v3965 = vlaneseq
        %v3966 = vshrl.u32 %v3965, 7
        %v3967 = vsub.s32 2, %v3966
        %v3968 = vrot.slane %v3656, %v3967
        %v3969 = vlaneseq
        %v3970 = vshrl.u32 %v3969, 7
        %v3971 = vsub.s32 3, %v3970
        %v3972 = vrot.slane %v3656, %v3971
        %v3973 = vlaneseq
        %v3974 = vshrl.u32 %v3973, 7
        %v3975 = vsub.s32 4, %v3974
        %v3976 = vrot.slane %v3656, %v3975
        %v3977 = vlaneseq
        %v3978 = vshrl.u32 %v3977, 7
        %v3979 = vsub.s32 0, %v3978
        %v3980 = vrot.slane %v3653, %v3979
        %v3981 = vlaneseq
        %v3982 = vshrl.u32 %v3981, 7
        %v3983 = vsub.s32 1, %v3982
        %v3984 = vrot.slane %v3653, %v3983
        %v3985 = vlaneseq
        %v3986 = vshrl.u32 %v3985, 7
        %v3987 = vsub.s32 2, %v3986
        %v3988 = vrot.slane %v3653, %v3987
        %v3989 = vlaneseq
        %v3990 = vshrl.u32 %v3989, 7
        %v3991 = vsub.s32 3, %v3990
        %v3992 = vrot.slane %v3653, %v3991
        %v3993 = vlaneseq
        %v3994 = vshrl.u32 %v3993, 7
        %v3995 = vsub.s32 4, %v3994
        %v3996 = vrot.slane %v3653, %v3995
        %v3997 = vlaneseq
        %v3998 = vshrl.u32 %v3997, 7
        %v3999 = vsub.s32 0, %v3998
        %v4000 = vrot.slane %v3657, %v3999
        %v4001 = vlaneseq
        %v4002 = vshrl.u32 %v4001, 7
        %v4003 = vsub.s32 1, %v4002
        %v4004 = vrot.slane %v3657, %v4003
        %v4005 = vlaneseq
        %v4006 = vshrl.u32 %v4005, 7
        %v4007 = vsub.s32 2, %v4006
        %v4008 = vrot.slane %v3657, %v4007
        %v4009 = vlaneseq
        %v4010 = vshrl.u32 %v4009, 7
        %v4011 = vsub.s32 3, %v4010
        %v4012 = vrot.slane %v3657, %v4011
        %v4013 = vlaneseq
        %v4014 = vshrl.u32 %v4013, 7
        %v4015 = vsub.s32 4, %v4014
        %v4016 = vrot.slane %v3657, %v4015
        %v4017 = vlaneseq
        %v4018 = vshrl.u32 %v4017, 7
        %v4019 = vsub.s32 0, %v4018
        %v4020 = vrot.slane %v3654, %v4019
        %v4021 = vlaneseq
        %v4022 = vshrl.u32 %v4021, 7
        %v4023 = vsub.s32 1, %v4022
        %v4024 = vrot.slane %v3654, %v4023
        %v4025 = vlaneseq
        %v4026 = vshrl.u32 %v4025, 7
        %v4027 = vsub.s32 2, %v4026
        %v4028 = vrot.slane %v3654, %v4027
        %v4029 = vlaneseq
        %v4030 = vshrl.u32 %v4029, 7
        %v4031 = vsub.s32 3, %v4030
        %v4032 = vrot.slane %v3654, %v4031
        %v4033 = vlaneseq
        %v4034 = vshrl.u32 %v4033, 7
        %v4035 = vsub.s32 4, %v4034
        %v4036 = vrot.slane %v3654, %v4035
        %v4037 = vlaneseq
        %v4038 = vshrl.u32 %v4037, 7
        %v4039 = vsub.s32 0, %v4038
        %v4040 = vrot.slane %v3658, %v4039
        %v4041 = vlaneseq
        %v4042 = vshrl.u32 %v4041, 7
        %v4043 = vsub.s32 1, %v4042
        %v4044 = vrot.slane %v3658, %v4043
        %v4045 = vlaneseq
        %v4046 = vshrl.u32 %v4045, 7
        %v4047 = vsub.s32 2, %v4046
        %v4048 = vrot.slane %v3658, %v4047
        %v4049 = vlaneseq
        %v4050 = vshrl.u32 %v4049, 7
        %v4051 = vsub.s32 3, %v4050
        %v4052 = vrot.slane %v3658, %v4051
        %v4053 = vlaneseq
        %v4054 = vshrl.u32 %v4053, 7
        %v4055 = vsub.s32 4, %v4054
        %v4056 = vrot.slane %v3658, %v4055
        %v4057 = vlaneseq
        %v4058 = vshrl.u32 %v4057, 7
        %v4059 = vsub.s32 0, %v4058
        %v4060 = vrot.slane %v3655, %v4059
        %v4061 = vlaneseq
        %v4062 = vshrl.u32 %v4061, 7
        %v4063 = vsub.s32 1, %v4062
        %v4064 = vrot.slane %v3655, %v4063
        %v4065 = vlaneseq
        %v4066 = vshrl.u32 %v4065, 7
        %v4067 = vsub.s32 2, %v4066
        %v4068 = vrot.slane %v3655, %v4067
        %v4069 = vlaneseq
        %v4070 = vshrl.u32 %v4069, 7
        %v4071 = vsub.s32 3, %v4070
        %v4072 = vrot.slane %v3655, %v4071
        %v4073 = vlaneseq
        %v4074 = vshrl.u32 %v4073, 7
        %v4075 = vsub.s32 4, %v4074
        %v4076 = vrot.slane %v3655, %v4075
        %v4077 = vlaneseq
        %v4078 = vshrl.u32 %v4077, 7
        %v4079 = vsub.s32 0, %v4078
        %v4080 = vrot.slane %v3659, %v4079
        %v4081 = vlaneseq
        %v4082 = vshrl.u32 %v4081, 7
        %v4083 = vsub.s32 1, %v4082
        %v4084 = vrot.slane %v3659, %v4083
        %v4085 = vlaneseq
        %v4086 = vshrl.u32 %v4085, 7
        %v4087 = vsub.s32 2, %v4086
        %v4088 = vrot.slane %v3659, %v4087
        %v4089 = vlaneseq
        %v4090 = vshrl.u32 %v4089, 7
        %v4091 = vsub.s32 3, %v4090
        %v4092 = vrot.slane %v3659, %v4091
        %v4093 = vlaneseq
        %v4094 = vshrl.u32 %v4093, 7
        %v4095 = vsub.s32 4, %v4094
        %v4096 = vrot.slane %v3659, %v4095
        %v4097 = vlaneseq
        %v4098 = vshrl.u32 %v4097, 7
        %v4099 = vsub.s32 0, %v4098
        %v4100 = vrot.slane %v3769, %v4099
        %v4101 = vlaneseq
        %v4102 = vshrl.u32 %v4101, 7
        %v4103 = vsub.s32 1, %v4102
        %v4104 = vrot.slane %v3769, %v4103
        %v4105 = vlaneseq
        %v4106 = vshrl.u32 %v4105, 7
        %v4107 = vsub.s32 2, %v4106
        %v4108 = vrot.slane %v3769, %v4107
        %v4109 = vlaneseq
        %v4110 = vshrl.u32 %v4109, 7
        %v4111 = vsub.s32 3, %v4110
        %v4112 = vrot.slane %v3769, %v4111
        %v4113 = vlaneseq
        %v4114 = vshrl.u32 %v4113, 7
        %v4115 = vsub.s32 4, %v4114
        %v4116 = vrot.slane %v3769, %v4115
        %v4117 = vlaneseq
        %v4118 = vshrl.u32 %v4117, 7
        %v4119 = vsub.s32 0, %v4118
        %v4120 = vrot.slane %v3773, %v4119
        %v4121 = vlaneseq
        %v4122 = vshrl.u32 %v4121, 7
        %v4123 = vsub.s32 1, %v4122
        %v4124 = vrot.slane %v3773, %v4123
        %v4125 = vlaneseq
        %v4126 = vshrl.u32 %v4125, 7
        %v4127 = vsub.s32 2, %v4126
        %v4128 = vrot.slane %v3773, %v4127
        %v4129 = vlaneseq
        %v4130 = vshrl.u32 %v4129, 7
        %v4131 = vsub.s32 3, %v4130
        %v4132 = vrot.slane %v3773, %v4131
        %v4133 = vlaneseq
        %v4134 = vshrl.u32 %v4133, 7
        %v4135 = vsub.s32 4, %v4134
        %v4136 = vrot.slane %v3773, %v4135
        %v4137 = vlaneseq
        %v4138 = vshrl.u32 %v4137, 7
        %v4139 = vsub.s32 0, %v4138
        %v4140 = vrot.slane %v3770, %v4139
        %v4141 = vlaneseq
        %v4142 = vshrl.u32 %v4141, 7
        %v4143 = vsub.s32 1, %v4142
        %v4144 = vrot.slane %v3770, %v4143
        %v4145 = vlaneseq
        %v4146 = vshrl.u32 %v4145, 7
        %v4147 = vsub.s32 2, %v4146
        %v4148 = vrot.slane %v3770, %v4147
        %v4149 = vlaneseq
        %v4150 = vshrl.u32 %v4149, 7
        %v4151 = vsub.s32 3, %v4150
        %v4152 = vrot.slane %v3770, %v4151
        %v4153 = vlaneseq
        %v4154 = vshrl.u32 %v4153, 7
        %v4155 = vsub.s32 4, %v4154
        %v4156 = vrot.slane %v3770, %v4155
        %v4157 = vlaneseq
        %v4158 = vshrl.u32 %v4157, 7
        %v4159 = vsub.s32 0, %v4158
        %v4160 = vrot.slane %v3774, %v4159
        %v4161 = vlaneseq
        %v4162 = vshrl.u32 %v4161, 7
        %v4163 = vsub.s32 1, %v4162
        %v4164 = vrot.slane %v3774, %v4163
        %v4165 = vlaneseq
        %v4166 = vshrl.u32 %v4165, 7
        %v4167 = vsub.s32 2, %v4166
        %v4168 = vrot.slane %v3774, %v4167
        %v4169 = vlaneseq
        %v4170 = vshrl.u32 %v4169, 7
        %v4171 = vsub.s32 3, %v4170
        %v4172 = vrot.slane %v3774, %v4171
        %v4173 = vlaneseq
        %v4174 = vshrl.u32 %v4173, 7
        %v4175 = vsub.s32 4, %v4174
        %v4176 = vrot.slane %v3774, %v4175
        %v4177 = vlaneseq
        %v4178 = vshrl.u32 %v4177, 7
        %v4179 = vsub.s32 0, %v4178
        %v4180 = vrot.slane %v3771, %v4179
        %v4181 = vlaneseq
        %v4182 = vshrl.u32 %v4181, 7
        %v4183 = vsub.s32 1, %v4182
        %v4184 = vrot.slane %v3771, %v4183
        %v4185 = vlaneseq
        %v4186 = vshrl.u32 %v4185, 7
        %v4187 = vsub.s32 2, %v4186
        %v4188 = vrot.slane %v3771, %v4187
        %v4189 = vlaneseq
        %v4190 = vshrl.u32 %v4189, 7
        %v4191 = vsub.s32 3, %v4190
        %v4192 = vrot.slane %v3771, %v4191
        %v4193 = vlaneseq
        %v4194 = vshrl.u32 %v4193, 7
        %v4195 = vsub.s32 4, %v4194
        %v4196 = vrot.slane %v3771, %v4195
        %v4197 = vlaneseq
        %v4198 = vshrl.u32 %v4197, 7
        %v4199 = vsub.s32 0, %v4198
        %v4200 = vrot.slane %v3775, %v4199
        %v4201 = vlaneseq
        %v4202 = vshrl.u32 %v4201, 7
        %v4203 = vsub.s32 1, %v4202
        %v4204 = vrot.slane %v3775, %v4203
        %v4205 = vlaneseq
        %v4206 = vshrl.u32 %v4205, 7
        %v4207 = vsub.s32 2, %v4206
        %v4208 = vrot.slane %v3775, %v4207
        %v4209 = vlaneseq
        %v4210 = vshrl.u32 %v4209, 7
        %v4211 = vsub.s32 3, %v4210
        %v4212 = vrot.slane %v3775, %v4211
        %v4213 = vlaneseq
        %v4214 = vshrl.u32 %v4213, 7
        %v4215 = vsub.s32 4, %v4214
        %v4216 = vrot.slane %v3775, %v4215
        %v4217 = vlaneseq
        %v4218 = vshrl.u32 %v4217, 7
        %v4219 = vsub.s32 0, %v4218
        %v4220 = vrot.slane %v3772, %v4219
        %v4221 = vlaneseq
        %v4222 = vshrl.u32 %v4221, 7
        %v4223 = vsub.s32 1, %v4222
        %v4224 = vrot.slane %v3772, %v4223
        %v4225 = vlaneseq
        %v4226 = vshrl.u32 %v4225, 7
        %v4227 = vsub.s32 2, %v4226
        %v4228 = vrot.slane %v3772, %v4227
        %v4229 = vlaneseq
        %v4230 = vshrl.u32 %v4229, 7
        %v4231 = vsub.s32 3, %v4230
        %v4232 = vrot.slane %v3772, %v4231
        %v4233 = vlaneseq
        %v4234 = vshrl.u32 %v4233, 7
        %v4235 = vsub.s32 4, %v4234
        %v4236 = vrot.slane %v3772, %v4235
        %v4237 = vlaneseq
        %v4238 = vshrl.u32 %v4237, 7
        %v4239 = vsub.s32 0, %v4238
        %v4240 = vrot.slane %v3776, %v4239
        %v4241 = vlaneseq
        %v4242 = vshrl.u32 %v4241, 7
        %v4243 = vsub.s32 1, %v4242
        %v4244 = vrot.slane %v3776, %v4243
        %v4245 = vlaneseq
        %v4246 = vshrl.u32 %v4245, 7
        %v4247 = vsub.s32 2, %v4246
        %v4248 = vrot.slane %v3776, %v4247
        %v4249 = vlaneseq
        %v4250 = vshrl.u32 %v4249, 7
        %v4251 = vsub.s32 3, %v4250
        %v4252 = vrot.slane %v3776, %v4251
        %v4253 = vlaneseq
        %v4254 = vshrl.u32 %v4253, 7
        %v4255 = vsub.s32 4, %v4254
        %v4256 = vrot.slane %v3776, %v4255
        %v4377 = vmul.f32 %v3780, %v1920
        %v4378 = vmul.f32 %v3784, %v1921
        %v4379 = vmul.f32 %v3788, %v1922
        %v4380 = vmul.f32 %v3792, %v1923
        %v4381 = vmul.f32 %v3796, %v1924
        %v4382 = vmul.f32 %v3800, %v1925
        %v4383 = vmul.f32 %v3804, %v1926
        %v4384 = vmul.f32 %v3808, %v1927
        %v4385 = vmul.f32 %v3812, %v1928
        %v4386 = vmul.f32 %v3816, %v1929
        %v4387 = vmul.f32 %v3820, %v1930
        %v4388 = vmul.f32 %v3824, %v1931
        %v4389 = vmul.f32 %v3828, %v1932
        %v4390 = vmul.f32 %v3832, %v1933
        %v4391 = vmul.f32 %v3836, %v1934
        %v4392 = vmul.f32 %v3840, %v1935
        %v4393 = vmul.f32 %v3844, %v1936
        %v4394 = vmul.f32 %v3848, %v1937
        %v4395 = vmul.f32 %v3852, %v1938
        %v4396 = vmul.f32 %v3856, %v1939
        %v4397 = vmul.f32 %v3860, %v1940
        %v4398 = vmul.f32 %v3864, %v1941
        %v4399 = vmul.f32 %v3868, %v1942
        %v4400 = vmul.f32 %v3872, %v1943
        %v4401 = vmul.f32 %v3876, %v1944
        %v4402 = vmul.f32 %v3880, %v1945
        %v4403 = vmul.f32 %v3884, %v1946
        %v4404 = vmul.f32 %v3888, %v1947
        %v4405 = vmul.f32 %v3892, %v1948
        %v4406 = vmul.f32 %v3896, %v1949
        %v4407 = vmul.f32 %v3900, %v1950
        %v4408 = vmul.f32 %v3904, %v1951
        %v4409 = vmul.f32 %v3908, %v1952
        %v4410 = vmul.f32 %v3912, %v1953
        %v4411 = vmul.f32 %v3916, %v1954
        %v4412 = vmul.f32 %v3920, %v1955
        %v4413 = vmul.f32 %v3924, %v1956
        %v4414 = vmul.f32 %v3928, %v1957
        %v4415 = vmul.f32 %v3932, %v1958
        %v4416 = vmul.f32 %v3936, %v1959
        %v4417 = vmul.f32 %v3940, %v1960
        %v4418 = vmul.f32 %v3944, %v1961
        %v4419 = vmul.f32 %v3948, %v1962
        %v4420 = vmul.f32 %v3952, %v1963
        %v4421 = vmul.f32 %v3956, %v1964
        %v4422 = vmul.f32 %v3960, %v1965
        %v4423 = vmul.f32 %v3964, %v1966
        %v4424 = vmul.f32 %v3968, %v1967
        %v4425 = vmul.f32 %v3972, %v1968
        %v4426 = vmul.f32 %v3976, %v1969
        %v4427 = vmul.f32 %v3980, %v1970
        %v4428 = vmul.f32 %v3984, %v1971
        %v4429 = vmul.f32 %v3988, %v1972
        %v4430 = vmul.f32 %v3992, %v1973
        %v4431 = vmul.f32 %v3996, %v1974
        %v4432 = vmul.f32 %v4000, %v1975
        %v4433 = vmul.f32 %v4004, %v1976
        %v4434 = vmul.f32 %v4008, %v1977
        %v4435 = vmul.f32 %v4012, %v1978
        %v4436 = vmul.f32 %v4016, %v1979
        %v4437 = vmul.f32 %v4020, %v1980
        %v4438 = vmul.f32 %v4024, %v1981
        %v4439 = vmul.f32 %v4028, %v1982
        %v4440 = vmul.f32 %v4032, %v1983
        %v4441 = vmul.f32 %v4036, %v1984
        %v4442 = vmul.f32 %v4040, %v1985
        %v4443 = vmul.f32 %v4044, %v1986
        %v4444 = vmul.f32 %v4048, %v1987
        %v4445 = vmul.f32 %v4052, %v1988
        %v4446 = vmul.f32 %v4056, %v1989
        %v4447 = vmul.f32 %v4060, %v1990
        %v4448 = vmul.f32 %v4064, %v1991
        %v4449 = vmul.f32 %v4068, %v1992
        %v4450 = vmul.f32 %v4072, %v1993
        %v4451 = vmul.f32 %v4076, %v1994
        %v4452 = vmul.f32 %v4080, %v1995
        %v4453 = vmul.f32 %v4084, %v1996
        %v4454 = vmul.f32 %v4088, %v1997
        %v4455 = vmul.f32 %v4092, %v1998
        %v4456 = vmul.f32 %v4096, %v1999
        %v4457 = vmul.f32 %v4100, %v2000
        %v4458 = vmul.f32 %v4104, %v2001
        %v4459 = vmul.f32 %v4108, %v2002
        %v4460 = vmul.f32 %v4112, %v2003
        %v4461 = vmul.f32 %v4116, %v2004
        %v4462 = vmul.f32 %v4120, %v2005
        %v4463 = vmul.f32 %v4124, %v2006
        %v4464 = vmul.f32 %v4128, %v2007
        %v4465 = vmul.f32 %v4132, %v2008
        %v4466 = vmul.f32 %v4136, %v2009
        %v4467 = vmul.f32 %v4140, %v2010
        %v4468 = vmul.f32 %v4144, %v2011
        %v4469 = vmul.f32 %v4148, %v2012
        %v4470 = vmul.f32 %v4152, %v2013
        %v4471 = vmul.f32 %v4156, %v2014
        %v4472 = vmul.f32 %v4160, %v2015
        %v4473 = vmul.f32 %v4164, %v2016
        %v4474 = vmul.f32 %v4168, %v2017
        %v4475 = vmul.f32 %v4172, %v2018
        %v4476 = vmul.f32 %v4176, %v2019
        %v4477 = vmul.f32 %v4180, %v2020
        %v4478 = vmul.f32 %v4184, %v2021
        %v4479 = vmul.f32 %v4188, %v2022
        %v4480 = vmul.f32 %v4192, %v2023
        %v4481 = vmul.f32 %v4196, %v2024
        %v4482 = vmul.f32 %v4200, %v2025
        %v4483 = vmul.f32 %v4204, %v2026
        %v4484 = vmul.f32 %v4208, %v2027
        %v4485 = vmul.f32 %v4212, %v2028
        %v4486 = vmul.f32 %v4216, %v2029
        %v4487 = vmul.f32 %v4220, %v2030
        %v4488 = vmul.f32 %v4224, %v2031
        %v4489 = vmul.f32 %v4228, %v2032
        %v4490 = vmul.f32 %v4232, %v2033
        %v4491 = vmul.f32 %v4236, %v2034
        %v4492 = vmul.f32 %v4240, %v2035
        %v4493 = vmul.f32 %v4244, %v2036
        %v4494 = vmul.f32 %v4248, %v2037
        %v4495 = vmul.f32 %v4252, %v2038
        %v4496 = vmul.f32 %v4256, %v2039
        %v4497 = vld [vmem:[%s4] sm:$0xff]
        %v4498 = vld [vmem:[%s4 + $0x8] sm:$0xff]
        %v4499 = vld [vmem:[%s4 + $0x10] sm:$0x1]
        %v4500 = vld [vmem:[%s4 + $0x18] sm:$0x1]
        %v4501 = vld [vmem:[%s5] sm:$0xff]
        %v4502 = vld [vmem:[%s5 + $0x8] sm:$0x1]
        %4504 = vset.pattern.permute.xlu0 0
        %4505 = vperm.xlu0 %4504, %v4501
        %v4506 = vpop.permute.xlu0 %4505
        %4509 = vset.pattern.permute.xlu0 0
        %4510 = vperm.xlu0 %4509, %v4502
        %v4511 = vpop.permute.xlu0 %4510
        %vm4513 = vcmask 523264
        %v4515 = vsel %vm4513, %v4498, 0
        %v4518 = vsel %vm4513, %v4500, 0
        %4520 = vmatprep.subr.mxu0 %v4378
        %4521 = vmatpush1.msra.mxu0 %v4377
        %4522 = vmatprep.subr.mxu0 %v4383
        %4523 = vmatpush1.msra.mxu0 %v4382
        %4524 = vmatprep.subr.mxu0 %v4388
        %4525 = vmatpush1.msra.mxu0 %v4387
        %4526 = vmatprep.subr.mxu0 %v4393
        %4527 = vmatpush1.msra.mxu0 %v4392
        %4528 = vmatprep.subr.mxu0 %v4398
        %4529 = vmatpush1.msra.mxu0 %v4397
        %4530 = vmatprep.subr.mxu0 %v4403
        %4531 = vmatpush1.msra.mxu0 %v4402
        %4532 = vmatprep.subr.mxu0 %v4408
        %4533 = vmatpush1.msra.mxu0 %v4407
        %4534 = vmatprep.subr.mxu0 %v4413
        %4535 = vmatpush1.msra.mxu0 %v4412
        %4536 = vmatprep.subr.mxu0 %v4418
        %4537 = vmatpush1.msra.mxu0 %v4417
        %4538 = vmatprep.subr.mxu0 %v4423
        %4539 = vmatpush1.msra.mxu0 %v4422
        %4540 = vmatprep.subr.mxu0 %v4428
        %4541 = vmatpush1.msra.mxu0 %v4427
        %4542 = vmatprep.subr.mxu0 %v4433
        %4543 = vmatpush1.msra.mxu0 %v4432
        %4544 = vmatprep.subr.mxu0 %v4438
        %4545 = vmatpush1.msra.mxu0 %v4437
        %4546 = vmatprep.subr.mxu0 %v4443
        %4547 = vmatpush1.msra.mxu0 %v4442
        %4548 = vmatprep.subr.mxu0 %v4448
        %4549 = vmatpush1.msra.mxu0 %v4447
        %4550 = vmatprep.subr.mxu0 %v4453
        %4551 = vmatpush1.msra.mxu0 %v4452
        %4552 = vmatprep.subr.mxu0 %v4458
        %4553 = vmatpush1.msra.mxu0 %v4457
        %4554 = vmatprep.subr.mxu0 %v4463
        %4555 = vmatpush1.msra.mxu0 %v4462
        %4556 = vmatprep.subr.mxu0 %v4468
        %4557 = vmatpush1.msra.mxu0 %v4467
        %4558 = vmatprep.subr.mxu0 %v4473
        %4559 = vmatpush1.msra.mxu0 %v4472
        %4560 = vmatprep.subr.mxu0 %v4478
        %4561 = vmatpush1.msra.mxu0 %v4477
        %4562 = vmatprep.subr.mxu0 %v4483
        %4563 = vmatpush1.msra.mxu0 %v4482
        %4564 = vmatprep.subr.mxu0 %v4488
        %4565 = vmatpush1.msra.mxu0 %v4487
        %4566 = vmatprep.subr.mxu0 %v4493
        %4567 = vmatpush1.msra.mxu0 %v4492
        %4568 = vmatprep.subr.mxu0 0.0
        %4569 = vmatpush1.msra.mxu0 0.0
        %4570 = vmatprep.subr.mxu0 0.0
        %4571 = vmatpush1.msra.mxu0 0.0
        %4572 = vmatprep.subr.mxu0 0.0
        %4573 = vmatpush1.msra.mxu0 0.0
        %4574 = vmatprep.subr.mxu0 0.0
        %4575 = vmatpush1.msra.mxu0 0.0
        %4576 = vmatprep.subr.mxu0 0.0
        %4577 = vmatpush1.msra.mxu0 0.0
        %4578 = vmatprep.subr.mxu0 0.0
        %4579 = vmatpush1.msra.mxu0 0.0
        %4580 = vmatprep.subr.mxu0 0.0
        %4581 = vmatpush1.msra.mxu0 0.0
        %4582 = vmatprep.subr.mxu0 0.0
        %4583 = vmatpush1.msra.mxu0 0.0
        %4584 = vmatprep.mubr.f32.mxu0 %v4515
        %4585 = vmatmul.mubr.f32.gmra.mrb[0].mxu0 %v4497
        %v4586 = vpop.f32.mrb[0].mxu0
        %v4587 = vadd.f32 %v4506, %v4586
        %v4588 = vpop.f32.mrb[0].mxu0
        %v4589 = vadd.f32 %v4506, %v4588
        %4590 = vmatprep.mubr.f32.mxu0 %v4518
        %4591 = vmatmul.mubr.f32.gmra.mrb[0].mxu0 %v4499
        %v4592 = vpop.f32.mrb[0].mxu0
        %v4593 = vadd.f32 %v4511, %v4592
        %v4594 = vpop.f32.mrb[0].mxu0
        %v4595 = vadd.f32 %v4511, %v4594
        %4596 = vdwg.mxu0
        %4597 = vmatprep.subr.mxu0 %v4380
        %4598 = vmatpush1.msra.mxu0 %v4379
        %4599 = vmatprep.subr.mxu0 %v4385
        %4600 = vmatpush1.msra.mxu0 %v4384
        %4601 = vmatprep.subr.mxu0 %v4390
        %4602 = vmatpush1.msra.mxu0 %v4389
        %4603 = vmatprep.subr.mxu0 %v4395
        %4604 = vmatpush1.msra.mxu0 %v4394
        %4605 = vmatprep.subr.mxu0 %v4400
        %4606 = vmatpush1.msra.mxu0 %v4399
        %4607 = vmatprep.subr.mxu0 %v4405
        %4608 = vmatpush1.msra.mxu0 %v4404
        %4609 = vmatprep.subr.mxu0 %v4410
        %4610 = vmatpush1.msra.mxu0 %v4409
        %4611 = vmatprep.subr.mxu0 %v4415
        %4612 = vmatpush1.msra.mxu0 %v4414
        %4613 = vmatprep.subr.mxu0 %v4420
        %4614 = vmatpush1.msra.mxu0 %v4419
        %4615 = vmatprep.subr.mxu0 %v4425
        %4616 = vmatpush1.msra.mxu0 %v4424
        %4617 = vmatprep.subr.mxu0 %v4430
        %4618 = vmatpush1.msra.mxu0 %v4429
        %4619 = vmatprep.subr.mxu0 %v4435
        %4620 = vmatpush1.msra.mxu0 %v4434
        %4621 = vmatprep.subr.mxu0 %v4440
        %4622 = vmatpush1.msra.mxu0 %v4439
        %4623 = vmatprep.subr.mxu0 %v4445
        %4624 = vmatpush1.msra.mxu0 %v4444
        %4625 = vmatprep.subr.mxu0 %v4450
        %4626 = vmatpush1.msra.mxu0 %v4449
        %4627 = vmatprep.subr.mxu0 %v4455
        %4628 = vmatpush1.msra.mxu0 %v4454
        %4629 = vmatprep.subr.mxu0 %v4460
        %4630 = vmatpush1.msra.mxu0 %v4459
        %4631 = vmatprep.subr.mxu0 %v4465
        %4632 = vmatpush1.msra.mxu0 %v4464
        %4633 = vmatprep.subr.mxu0 %v4470
        %4634 = vmatpush1.msra.mxu0 %v4469
        %4635 = vmatprep.subr.mxu0 %v4475
        %4636 = vmatpush1.msra.mxu0 %v4474
        %4637 = vmatprep.subr.mxu0 %v4480
        %4638 = vmatpush1.msra.mxu0 %v4479
        %4639 = vmatprep.subr.mxu0 %v4485
        %4640 = vmatpush1.msra.mxu0 %v4484
        %4641 = vmatprep.subr.mxu0 %v4490
        %4642 = vmatpush1.msra.mxu0 %v4489
        %4643 = vmatprep.subr.mxu0 %v4495
        %4644 = vmatpush1.msra.mxu0 %v4494
        %4645 = vmatprep.subr.mxu0 0.0
        %4646 = vmatpush1.msra.mxu0 0.0
        %4647 = vmatprep.subr.mxu0 0.0
        %4648 = vmatpush1.msra.mxu0 0.0
        %4649 = vmatprep.subr.mxu0 0.0
        %4650 = vmatpush1.msra.mxu0 0.0
        %4651 = vmatprep.subr.mxu0 0.0
        %4652 = vmatpush1.msra.mxu0 0.0
        %4653 = vmatprep.subr.mxu0 0.0
        %4654 = vmatpush1.msra.mxu0 0.0
        %4655 = vmatprep.subr.mxu0 0.0
        %4656 = vmatpush1.msra.mxu0 0.0
        %4657 = vmatprep.subr.mxu0 0.0
        %4658 = vmatpush1.msra.mxu0 0.0
        %4659 = vmatprep.subr.mxu0 0.0
        %4660 = vmatpush1.msra.mxu0 0.0
        %4661 = vmatprep.mubr.f32.mxu0 %v4515
        %4662 = vmatmul.mubr.f32.gmra.mrb[0].mxu0 %v4497
        %v4663 = vpop.f32.mrb[0].mxu0
        %v4664 = vadd.f32 %v4506, %v4663
        %v4665 = vpop.f32.mrb[0].mxu0
        %v4666 = vadd.f32 %v4506, %v4665
        %4667 = vmatprep.mubr.f32.mxu0 %v4518
        %4668 = vmatmul.mubr.f32.gmra.mrb[0].mxu0 %v4499
        %v4669 = vpop.f32.mrb[0].mxu0
        %v4670 = vadd.f32 %v4511, %v4669
        %v4671 = vpop.f32.mrb[0].mxu0
        %v4672 = vadd.f32 %v4511, %v4671
        %4673 = vdwg.mxu0
        %4674 = vmatprep.subr.mxu0 0.0
        %4675 = vmatpush1.msra.mxu0 %v4381
        %4676 = vmatprep.subr.mxu0 0.0
        %4677 = vmatpush1.msra.mxu0 %v4386
        %4678 = vmatprep.subr.mxu0 0.0
        %4679 = vmatpush1.msra.mxu0 %v4391
        %4680 = vmatprep.subr.mxu0 0.0
        %4681 = vmatpush1.msra.mxu0 %v4396
        %4682 = vmatprep.subr.mxu0 0.0
        %4683 = vmatpush1.msra.mxu0 %v4401
        %4684 = vmatprep.subr.mxu0 0.0
        %4685 = vmatpush1.msra.mxu0 %v4406
        %4686 = vmatprep.subr.mxu0 0.0
        %4687 = vmatpush1.msra.mxu0 %v4411
        %4688 = vmatprep.subr.mxu0 0.0
        %4689 = vmatpush1.msra.mxu0 %v4416
        %4690 = vmatprep.subr.mxu0 0.0
        %4691 = vmatpush1.msra.mxu0 %v4421
        %4692 = vmatprep.subr.mxu0 0.0
        %4693 = vmatpush1.msra.mxu0 %v4426
        %4694 = vmatprep.subr.mxu0 0.0
        %4695 = vmatpush1.msra.mxu0 %v4431
        %4696 = vmatprep.subr.mxu0 0.0
        %4697 = vmatpush1.msra.mxu0 %v4436
        %4698 = vmatprep.subr.mxu0 0.0
        %4699 = vmatpush1.msra.mxu0 %v4441
        %4700 = vmatprep.subr.mxu0 0.0
        %4701 = vmatpush1.msra.mxu0 %v4446
        %4702 = vmatprep.subr.mxu0 0.0
        %4703 = vmatpush1.msra.mxu0 %v4451
        %4704 = vmatprep.subr.mxu0 0.0
        %4705 = vmatpush1.msra.mxu0 %v4456
        %4706 = vmatprep.subr.mxu0 0.0
        %4707 = vmatpush1.msra.mxu0 %v4461
        %4708 = vmatprep.subr.mxu0 0.0
        %4709 = vmatpush1.msra.mxu0 %v4466
        %4710 = vmatprep.subr.mxu0 0.0
        %4711 = vmatpush1.msra.mxu0 %v4471
        %4712 = vmatprep.subr.mxu0 0.0
        %4713 = vmatpush1.msra.mxu0 %v4476
        %4714 = vmatprep.subr.mxu0 0.0
        %4715 = vmatpush1.msra.mxu0 %v4481
        %4716 = vmatprep.subr.mxu0 0.0
        %4717 = vmatpush1.msra.mxu0 %v4486
        %4718 = vmatprep.subr.mxu0 0.0
        %4719 = vmatpush1.msra.mxu0 %v4491
        %4720 = vmatprep.subr.mxu0 0.0
        %4721 = vmatpush1.msra.mxu0 %v4496
        %4722 = vmatprep.subr.mxu0 0.0
        %4723 = vmatpush1.msra.mxu0 0.0
        %4724 = vmatprep.subr.mxu0 0.0
        %4725 = vmatpush1.msra.mxu0 0.0
        %4726 = vmatprep.subr.mxu0 0.0
        %4727 = vmatpush1.msra.mxu0 0.0
        %4728 = vmatprep.subr.mxu0 0.0
        %4729 = vmatpush1.msra.mxu0 0.0
        %4730 = vmatprep.subr.mxu0 0.0
        %4731 = vmatpush1.msra.mxu0 0.0
        %4732 = vmatprep.subr.mxu0 0.0
        %4733 = vmatpush1.msra.mxu0 0.0
        %4734 = vmatprep.subr.mxu0 0.0
        %4735 = vmatpush1.msra.mxu0 0.0
        %4736 = vmatprep.subr.mxu0 0.0
        %4737 = vmatpush1.msra.mxu0 0.0
        %4738 = vmatprep.mubr.f32.mxu0 %v4515
        %4739 = vmatmul.mubr.f32.gmra.mrb[0].mxu0 %v4497
        %v4740 = vpop.f32.mrb[0].mxu0
        %v4741 = vadd.f32 %v4506, %v4740
        %v4742 = vpop.f32.mrb[0].mxu0
        %4743 = vmatprep.mubr.f32.mxu0 %v4518
        %4744 = vmatmul.mubr.f32.gmra.mrb[0].mxu0 %v4499
        %v4745 = vpop.f32.mrb[0].mxu0
        %v4746 = vadd.f32 %v4511, %v4745
        %v4747 = vpop.f32.mrb[0].mxu0
        %4748 = vdwg.mxu0
        %v4749 = vmul.f32 %v4587, %v4587
        %v4750 = vmul.f32 %v4589, %v4589
        %v4751 = vmul.f32 %v4664, %v4664
        %v4752 = vmul.f32 %v4666, %v4666
        %v4753 = vmul.f32 %v4741, %v4741
        %v4754 = vmul.f32 %v4593, %v4593
        %v4755 = vmul.f32 %v4595, %v4595
        %v4756 = vmul.f32 %v4670, %v4670
        %v4757 = vmul.f32 %v4672, %v4672
        %v4758 = vmul.f32 %v4746, %v4746
        %v4759 = vmul.f32 %v4749, %v4587
        %v4760 = vmul.f32 %v4750, %v4589
        %v4761 = vmul.f32 %v4751, %v4664
        %v4762 = vmul.f32 %v4752, %v4666
        %v4763 = vmul.f32 %v4753, %v4741
        %v4764 = vmul.f32 %v4754, %v4593
        %v4765 = vmul.f32 %v4755, %v4595
        %v4766 = vmul.f32 %v4756, %v4670
        %v4767 = vmul.f32 %v4757, %v4672
        %v4768 = vmul.f32 %v4758, %v4746
        %v4769 = vmul.f32 %v4759, 0.044715
        %v4770 = vmul.f32 %v4760, 0.044715
        %v4771 = vmul.f32 %v4761, 0.044715
        %v4772 = vmul.f32 %v4762, 0.044715
        %v4773 = vmul.f32 %v4763, 0.044715
        %v4774 = vmul.f32 %v4764, 0.044715
        %v4775 = vmul.f32 %v4765, 0.044715
        %v4776 = vmul.f32 %v4766, 0.044715
        %v4777 = vmul.f32 %v4767, 0.044715
        %v4778 = vmul.f32 %v4768, 0.044715
        %v4779 = vadd.f32 %v4587, %v4769
        %v4780 = vadd.f32 %v4589, %v4770
        %v4781 = vadd.f32 %v4664, %v4771
        %v4782 = vadd.f32 %v4666, %v4772
        %v4783 = vadd.f32 %v4741, %v4773
        %v4784 = vadd.f32 %v4593, %v4774
        %v4785 = vadd.f32 %v4595, %v4775
        %v4786 = vadd.f32 %v4670, %v4776
        %v4787 = vadd.f32 %v4672, %v4777
        %v4788 = vadd.f32 %v4746, %v4778
        %v4789 = vmul.f32 %v4779, 0.7978846
        %v4790 = vmul.f32 %v4780, 0.7978846
        %v4791 = vmul.f32 %v4781, 0.7978846
        %v4792 = vmul.f32 %v4782, 0.7978846
        %v4793 = vmul.f32 %v4783, 0.7978846
        %v4794 = vmul.f32 %v4784, 0.7978846
        %v4795 = vmul.f32 %v4785, 0.7978846
        %v4796 = vmul.f32 %v4786, 0.7978846
        %v4797 = vmul.f32 %v4787, 0.7978846
        %v4798 = vmul.f32 %v4788, 0.7978846
        %v4799 = vmul.f32 %v4587, 0.5
        %v4800 = vmul.f32 %v4589, 0.5
        %v4801 = vmul.f32 %v4664, 0.5
        %v4802 = vmul.f32 %v4666, 0.5
        %v4803 = vmul.f32 %v4741, 0.5
        %v4804 = vmul.f32 %v4593, 0.5
        %v4805 = vmul.f32 %v4595, 0.5
        %v4806 = vmul.f32 %v4670, 0.5
        %v4807 = vmul.f32 %v4672, 0.5
        %v4808 = vmul.f32 %v4746, 0.5
        %v4809 = vtanh.pop %v4789
        %v4810 = vtanh.pop %v4790
        %v4811 = vtanh.pop %v4791
        %v4812 = vtanh.pop %v4792
        %v4813 = vtanh.pop %v4793
        %v4814 = vtanh.pop %v4794
        %v4815 = vtanh.pop %v4795
        %v4816 = vtanh.pop %v4796
        %v4817 = vtanh.pop %v4797
        %v4818 = vtanh.pop %v4798
        %v4819 = vadd.f32 %v4809, 1.0
        %v4820 = vadd.f32 %v4810, 1.0
        %v4821 = vadd.f32 %v4811, 1.0
        %v4822 = vadd.f32 %v4812, 1.0
        %v4823 = vadd.f32 %v4813, 1.0
        %v4824 = vadd.f32 %v4814, 1.0
        %v4825 = vadd.f32 %v4815, 1.0
        %v4826 = vadd.f32 %v4816, 1.0
        %v4827 = vadd.f32 %v4817, 1.0
        %v4828 = vadd.f32 %v4818, 1.0
        %v4829 = vmul.f32 %v4799, %v4819
        %v4830 = vmul.f32 %v4800, %v4820
        %v4831 = vmul.f32 %v4801, %v4821
        %v4832 = vmul.f32 %v4802, %v4822
        %v4833 = vmul.f32 %v4803, %v4823
        %v4834 = vmul.f32 %v4804, %v4824
        %v4835 = vmul.f32 %v4805, %v4825
        %v4836 = vmul.f32 %v4806, %v4826
        %v4837 = vmul.f32 %v4807, %v4827
        %v4838 = vmul.f32 %v4808, %v4828
        %v4839 = vld [vmem:[%s6] sm:$0xff]
        %v4840 = vld [vmem:[%s6 + $0x8] sm:$0xff]
        %v4841 = vld [vmem:[%s6 + $0x10] sm:$0xff]
        %v4842 = vld [vmem:[%s6 + $0x18] sm:$0xff]
        %v4843 = vld [vmem:[%s6 + $0x20] sm:$0xff]
        %v4844 = vld [vmem:[%s6 + $0x28] sm:$0x1]
        %v4845 = vld [vmem:[%s6 + $0x30] sm:$0x1]
        %v4846 = vld [vmem:[%s6 + $0x38] sm:$0x1]
        %v4847 = vld [vmem:[%s6 + $0x40] sm:$0x1]
        %v4848 = vld [vmem:[%s6 + $0x48] sm:$0x1]
        %v4849 = vmul.f32 %v4839, %v4829
        %v4850 = vmul.f32 %v4840, %v4830
        %v4851 = vmul.f32 %v4841, %v4831
        %v4852 = vmul.f32 %v4842, %v4832
        %v4853 = vmul.f32 %v4843, %v4833
        %v4854 = vmul.f32 %v4844, %v4834
        %v4855 = vmul.f32 %v4845, %v4835
        %v4856 = vmul.f32 %v4846, %v4836
        %v4857 = vmul.f32 %v4847, %v4837
        %v4858 = vmul.f32 %v4848, %v4838
        %vm4859 = vcmask 1040384
        %v4860 = vsel %vm4859, %v4854, 0.0
        %v4861 = vadd.f32 %v4849, %v4860
        %v4862 = vrot.slane %v4861, 4
        %v4863 = vadd.f32 %v4861, %v4862
        %v4864 = vrot.slane %v4863, 2
        %v4865 = vadd.f32 %v4863, %v4864
        %v4866 = vrot.slane %v4865, 1
        %v4867 = vadd.f32 %v4865, %v4866
        %v4868 = vsel %vm4859, %v4855, 0.0
        %v4869 = vadd.f32 %v4850, %v4868
        %v4870 = vrot.slane %v4869, 4
        %v4871 = vadd.f32 %v4869, %v4870
        %v4872 = vrot.slane %v4871, 2
        %v4873 = vadd.f32 %v4871, %v4872
        %v4874 = vrot.slane %v4873, 1
        %v4875 = vadd.f32 %v4873, %v4874
        %v4876 = vsel %vm4859, %v4856, 0.0
        %v4877 = vadd.f32 %v4851, %v4876
        %v4878 = vrot.slane %v4877, 4
        %v4879 = vadd.f32 %v4877, %v4878
        %v4880 = vrot.slane %v4879, 2
        %v4881 = vadd.f32 %v4879, %v4880
        %v4882 = vrot.slane %v4881, 1
        %v4883 = vadd.f32 %v4881, %v4882
        %v4884 = vsel %vm4859, %v4857, 0.0
        %v4885 = vadd.f32 %v4852, %v4884
        %v4886 = vrot.slane %v4885, 4
        %v4887 = vadd.f32 %v4885, %v4886
        %v4888 = vrot.slane %v4887, 2
        %v4889 = vadd.f32 %v4887, %v4888
        %v4890 = vrot.slane %v4889, 1
        %v4891 = vadd.f32 %v4889, %v4890
        %v4892 = vsel %vm4859, %v4858, 0.0
        %v4893 = vadd.f32 %v4853, %v4892
        %v4894 = vrot.slane %v4893, 4
        %v4895 = vadd.f32 %v4893, %v4894
        %v4896 = vrot.slane %v4895, 2
        %v4897 = vadd.f32 %v4895, %v4896
        %v4898 = vrot.slane %v4897, 1
        %v4899 = vadd.f32 %v4897, %v4898
        %s4900 = scalar_lea.vmem %s6, 80
        %v4901 = vld [vmem:[%s4900] sm:$0xff]
        %v4902 = vld [vmem:[%s4900 + $0x8] sm:$0xff]
        %v4903 = vld [vmem:[%s4900 + $0x10] sm:$0xff]
        %v4904 = vld [vmem:[%s4900 + $0x18] sm:$0xff]
        %v4905 = vld [vmem:[%s4900 + $0x20] sm:$0xff]
        %v4906 = vld [vmem:[%s4900 + $0x28] sm:$0x1]
        %v4907 = vld [vmem:[%s4900 + $0x30] sm:$0x1]
        %v4908 = vld [vmem:[%s4900 + $0x38] sm:$0x1]
        %v4909 = vld [vmem:[%s4900 + $0x40] sm:$0x1]
        %v4910 = vld [vmem:[%s4900 + $0x48] sm:$0x1]
        %v4911 = vmul.f32 %v4901, %v4829
        %v4912 = vmul.f32 %v4902, %v4830
        %v4913 = vmul.f32 %v4903, %v4831
        %v4914 = vmul.f32 %v4904, %v4832
        %v4915 = vmul.f32 %v4905, %v4833
        %v4916 = vmul.f32 %v4906, %v4834
        %v4917 = vmul.f32 %v4907, %v4835
        %v4918 = vmul.f32 %v4908, %v4836
        %v4919 = vmul.f32 %v4909, %v4837
        %v4920 = vmul.f32 %v4910, %v4838
        %v4921 = vsel %vm4859, %v4916, 0.0
        %v4922 = vadd.f32 %v4911, %v4921
        %v4923 = vrot.slane %v4922, 4
        %v4924 = vadd.f32 %v4922, %v4923
        %v4925 = vrot.slane %v4924, 2
        %v4926 = vadd.f32 %v4924, %v4925
        %v4927 = vrot.slane %v4926, 1
        %v4928 = vadd.f32 %v4926, %v4927
        %v4929 = vsel %vm4859, %v4917, 0.0
        %v4930 = vadd.f32 %v4912, %v4929
        %v4931 = vrot.slane %v4930, 4
        %v4932 = vadd.f32 %v4930, %v4931
        %v4933 = vrot.slane %v4932, 2
        %v4934 = vadd.f32 %v4932, %v4933
        %v4935 = vrot.slane %v4934, 1
        %v4936 = vadd.f32 %v4934, %v4935
        %v4937 = vsel %vm4859, %v4918, 0.0
        %v4938 = vadd.f32 %v4913, %v4937
        %v4939 = vrot.slane %v4938, 4
        %v4940 = vadd.f32 %v4938, %v4939
        %v4941 = vrot.slane %v4940, 2
        %v4942 = vadd.f32 %v4940, %v4941
        %v4943 = vrot.slane %v4942, 1
        %v4944 = vadd.f32 %v4942, %v4943
        %v4945 = vsel %vm4859, %v4919, 0.0
        %v4946 = vadd.f32 %v4914, %v4945
        %v4947 = vrot.slane %v4946, 4
        %v4948 = vadd.f32 %v4946, %v4947
        %v4949 = vrot.slane %v4948, 2
        %v4950 = vadd.f32 %v4948, %v4949
        %v4951 = vrot.slane %v4950, 1
        %v4952 = vadd.f32 %v4950, %v4951
        %v4953 = vsel %vm4859, %v4920, 0.0
        %v4954 = vadd.f32 %v4915, %v4953
        %v4955 = vrot.slane %v4954, 4
        %v4956 = vadd.f32 %v4954, %v4955
        %v4957 = vrot.slane %v4956, 2
        %v4958 = vadd.f32 %v4956, %v4957
        %v4959 = vrot.slane %v4958, 1
        %v4960 = vadd.f32 %v4958, %v4959
        %v4961 = vsel %vm4859, %v4867, %v4928
        %v4962 = vsel %vm4859, %v4875, %v4936
        %v4963 = vsel %vm4859, %v4883, %v4944
        %v4964 = vsel %vm4859, %v4891, %v4952
        %v4965 = vsel %vm4859, %v4899, %v4960
        %v4966 = vld [vmem:[%s7] sm:$0xff]
        %v4967 = vld [vmem:[%s7 + $0x8] sm:$0xff]
        %v4968 = vld [vmem:[%s7 + $0x10] sm:$0xff]
        %v4969 = vld [vmem:[%s7 + $0x18] sm:$0xff]
        %v4970 = vld [vmem:[%s7 + $0x20] sm:$0xff]
        %v4971 = vld [vmem:[%s7 + $0x28] sm:$0xff]
        %v4972 = vld [vmem:[%s7 + $0x30] sm:$0xff]
        %v4973 = vld [vmem:[%s7 + $0x38] sm:$0xff]
        %v4974 = vld [vmem:[%s7 + $0x40] sm:$0xff]
        %v4975 = vld [vmem:[%s7 + $0x48] sm:$0xff]
        %v4976 = vld [vmem:[%s7 + $0x50] sm:$0xff]
        %v4977 = vld [vmem:[%s7 + $0x58] sm:$0xff]
        %v4978 = vld [vmem:[%s7 + $0x60] sm:$0xff]
        %v4979 = vld [vmem:[%s7 + $0x68] sm:$0xff]
        %v4980 = vld [vmem:[%s7 + $0x70] sm:$0xff]
        %v4981 = vld [vmem:[%s7 + $0x78] sm:$0xff]
        %v4982 = vld [vmem:[%s7 + $0x80] sm:$0xff]
        %v4983 = vld [vmem:[%s7 + $0x88] sm:$0xff]
        %v4984 = vld [vmem:[%s7 + $0x90] sm:$0xff]
        %v4985 = vld [vmem:[%s7 + $0x98] sm:$0xff]
        %v4986 = vld [vmem:[%s7 + $0xa0] sm:$0xff]
        %v4987 = vld [vmem:[%s7 + $0xa8] sm:$0xff]
        %v4988 = vld [vmem:[%s7 + $0xb0] sm:$0xff]
        %v4989 = vld [vmem:[%s7 + $0xb8] sm:$0xff]
        %v4990 = vld [vmem:[%s7 + $0xc0] sm:$0xff]
        %v4991 = vld [vmem:[%s7 + $0xc8] sm:$0xff]
        %v4992 = vld [vmem:[%s7 + $0xd0] sm:$0xff]
        %v4993 = vld [vmem:[%s7 + $0xd8] sm:$0xff]
        %v4994 = vld [vmem:[%s7 + $0xe0] sm:$0xff]
        %v4995 = vld [vmem:[%s7 + $0xe8] sm:$0xff]
        %v4996 = vld [vmem:[%s7 + $0xf0] sm:$0xff]
        %v4997 = vld [vmem:[%s7 + $0xf8] sm:$0xff]
        %v4998 = vld [vmem:[%s7 + $0x100] sm:$0xff]
        %v4999 = vld [vmem:[%s7 + $0x108] sm:$0xff]
        %v5000 = vld [vmem:[%s7 + $0x110] sm:$0xff]
        %v5001 = vld [vmem:[%s7 + $0x118] sm:$0xff]
        %v5002 = vld [vmem:[%s7 + $0x120] sm:$0xff]
        %v5003 = vld [vmem:[%s7 + $0x128] sm:$0xff]
        %v5004 = vld [vmem:[%s7 + $0x130] sm:$0xff]
        %v5005 = vld [vmem:[%s7 + $0x138] sm:$0xff]
        %v5006 = vld [vmem:[%s7 + $0x140] sm:$0xff]
        %v5007 = vld [vmem:[%s7 + $0x148] sm:$0xff]
        %v5008 = vld [vmem:[%s7 + $0x150] sm:$0xff]
        %v5009 = vld [vmem:[%s7 + $0x158] sm:$0xff]
        %v5010 = vld [vmem:[%s7 + $0x160] sm:$0xff]
        %v5011 = vld [vmem:[%s7 + $0x168] sm:$0xff]
        %v5012 = vld [vmem:[%s7 + $0x170] sm:$0xff]
        %v5013 = vld [vmem:[%s7 + $0x178] sm:$0xff]
        %v5014 = vld [vmem:[%s7 + $0x180] sm:$0xff]
        %v5015 = vld [vmem:[%s7 + $0x188] sm:$0xff]
        %v5016 = vld [vmem:[%s7 + $0x190] sm:$0xff]
        %v5017 = vld [vmem:[%s7 + $0x198] sm:$0xff]
        %v5018 = vld [vmem:[%s7 + $0x1a0] sm:$0xff]
        %v5019 = vld [vmem:[%s7 + $0x1a8] sm:$0xff]
        %v5020 = vld [vmem:[%s7 + $0x1b0] sm:$0xff]
        %v5021 = vld [vmem:[%s7 + $0x1b8] sm:$0xff]
        %v5022 = vld [vmem:[%s7 + $0x1c0] sm:$0xff]
        %v5023 = vld [vmem:[%s7 + $0x1c8] sm:$0xff]
        %v5024 = vld [vmem:[%s7 + $0x1d0] sm:$0xff]
        %v5025 = vld [vmem:[%s7 + $0x1d8] sm:$0xff]
        %v5026 = vld [vmem:[%s7 + $0x1e0] sm:$0xff]
        %v5027 = vld [vmem:[%s7 + $0x1e8] sm:$0xff]
        %v5028 = vld [vmem:[%s7 + $0x1f0] sm:$0xff]
        %v5029 = vld [vmem:[%s7 + $0x1f8] sm:$0xff]
        %v5030 = vld [vmem:[%s7 + $0x200] sm:$0xff]
        %v5031 = vld [vmem:[%s7 + $0x208] sm:$0xff]
        %v5032 = vld [vmem:[%s7 + $0x210] sm:$0xff]
        %v5033 = vld [vmem:[%s7 + $0x218] sm:$0xff]
        %v5034 = vld [vmem:[%s7 + $0x220] sm:$0xff]
        %v5035 = vld [vmem:[%s7 + $0x228] sm:$0xff]
        %v5036 = vld [vmem:[%s7 + $0x230] sm:$0xff]
        %v5037 = vld [vmem:[%s7 + $0x238] sm:$0xff]
        %v5038 = vld [vmem:[%s7 + $0x240] sm:$0xff]
        %v5039 = vld [vmem:[%s7 + $0x248] sm:$0xff]
        %v5040 = vld [vmem:[%s7 + $0x250] sm:$0xff]
        %v5041 = vld [vmem:[%s7 + $0x258] sm:$0xff]
        %v5042 = vld [vmem:[%s7 + $0x260] sm:$0xff]
        %v5043 = vld [vmem:[%s7 + $0x268] sm:$0xff]
        %v5044 = vld [vmem:[%s7 + $0x270] sm:$0xff]
        %v5045 = vld [vmem:[%s7 + $0x278] sm:$0xff]
        %v5046 = vld [vmem:[%s8] sm:$0x3]
        %5048 = vset.pattern.permute.xlu0 0
        %5049 = vperm.xlu0 %5048, %v5046
        %v5050 = vpop.permute.xlu0 %5049
        %5052 = vmatprep.subr.mxu0 0.0
        %5053 = vmatpush1.msra.mxu0 %v4966
        %5054 = vmatprep.subr.mxu0 0.0
        %5055 = vmatpush1.msra.mxu0 %v4967
        %5056 = vmatprep.subr.mxu0 0.0
        %5057 = vmatpush1.msra.mxu0 %v4968
        %5058 = vmatprep.subr.mxu0 0.0
        %5059 = vmatpush1.msra.mxu0 %v4969
        %5060 = vmatprep.subr.mxu0 0.0
        %5061 = vmatpush1.msra.mxu0 %v4970
        %5062 = vmatprep.subr.mxu0 0.0
        %5063 = vmatpush1.msra.mxu0 %v4971
        %5064 = vmatprep.subr.mxu0 0.0
        %5065 = vmatpush1.msra.mxu0 %v4972
        %5066 = vmatprep.subr.mxu0 0.0
        %5067 = vmatpush1.msra.mxu0 %v4973
        %5068 = vmatprep.subr.mxu0 0.0
        %5069 = vmatpush1.msra.mxu0 %v4974
        %5070 = vmatprep.subr.mxu0 0.0
        %5071 = vmatpush1.msra.mxu0 %v4975
        %5072 = vmatprep.subr.mxu0 0.0
        %5073 = vmatpush1.msra.mxu0 %v4976
        %5074 = vmatprep.subr.mxu0 0.0
        %5075 = vmatpush1.msra.mxu0 %v4977
        %5076 = vmatprep.subr.mxu0 0.0
        %5077 = vmatpush1.msra.mxu0 %v4978
        %5078 = vmatprep.subr.mxu0 0.0
        %5079 = vmatpush1.msra.mxu0 %v4979
        %5080 = vmatprep.subr.mxu0 0.0
        %5081 = vmatpush1.msra.mxu0 %v4980
        %5082 = vmatprep.subr.mxu0 0.0
        %5083 = vmatpush1.msra.mxu0 %v4981
        %5084 = vmatprep.subr.mxu0 0.0
        %5085 = vmatpush1.msra.mxu0 %v4982
        %5086 = vmatprep.subr.mxu0 0.0
        %5087 = vmatpush1.msra.mxu0 %v4983
        %5088 = vmatprep.subr.mxu0 0.0
        %5089 = vmatpush1.msra.mxu0 %v4984
        %5090 = vmatprep.subr.mxu0 0.0
        %5091 = vmatpush1.msra.mxu0 %v4985
        %5092 = vmatprep.subr.mxu0 0.0
        %5093 = vmatpush1.msra.mxu0 %v4986
        %5094 = vmatprep.subr.mxu0 0.0
        %5095 = vmatpush1.msra.mxu0 %v4987
        %5096 = vmatprep.subr.mxu0 0.0
        %5097 = vmatpush1.msra.mxu0 %v4988
        %5098 = vmatprep.subr.mxu0 0.0
        %5099 = vmatpush1.msra.mxu0 %v4989
        %5100 = vmatprep.subr.mxu0 0.0
        %5101 = vmatpush1.msra.mxu0 %v4990
        %5102 = vmatprep.subr.mxu0 0.0
        %5103 = vmatpush1.msra.mxu0 %v4991
        %5104 = vmatprep.subr.mxu0 0.0
        %5105 = vmatpush1.msra.mxu0 %v4992
        %5106 = vmatprep.subr.mxu0 0.0
        %5107 = vmatpush1.msra.mxu0 %v4993
        %5108 = vmatprep.subr.mxu0 0.0
        %5109 = vmatpush1.msra.mxu0 %v4994
        %5110 = vmatprep.subr.mxu0 0.0
        %5111 = vmatpush1.msra.mxu0 %v4995
        %5112 = vmatprep.subr.mxu0 0.0
        %5113 = vmatpush1.msra.mxu0 %v4996
        %5114 = vmatprep.subr.mxu0 0.0
        %5115 = vmatpush1.msra.mxu0 %v4997
        %5116 = vmatprep.mubr.f32.mxu0 %v4962
        %5117 = vmatmul.mubr.f32.gmra.mrb[0].mxu0 %v4961
        %v5118 = vpop.f32.mrb[0].mxu0
        %v5119 = vadd.f32 %v5050, %v5118
        %v5120 = vpop.f32.mrb[0].mxu0
        %5121 = vdwg.mxu0
        %5122 = vmatprep.subr.mxu0 0.0
        %5123 = vmatpush1.msra.mxu0 %v4998
        %5124 = vmatprep.subr.mxu0 0.0
        %5125 = vmatpush1.msra.mxu0 %v4999
        %5126 = vmatprep.subr.mxu0 0.0
        %5127 = vmatpush1.msra.mxu0 %v5000
        %5128 = vmatprep.subr.mxu0 0.0
        %5129 = vmatpush1.msra.mxu0 %v5001
        %5130 = vmatprep.subr.mxu0 0.0
        %5131 = vmatpush1.msra.mxu0 %v5002
        %5132 = vmatprep.subr.mxu0 0.0
        %5133 = vmatpush1.msra.mxu0 %v5003
        %5134 = vmatprep.subr.mxu0 0.0
        %5135 = vmatpush1.msra.mxu0 %v5004
        %5136 = vmatprep.subr.mxu0 0.0
        %5137 = vmatpush1.msra.mxu0 %v5005
        %5138 = vmatprep.subr.mxu0 0.0
        %5139 = vmatpush1.msra.mxu0 %v5006
        %5140 = vmatprep.subr.mxu0 0.0
        %5141 = vmatpush1.msra.mxu0 %v5007
        %5142 = vmatprep.subr.mxu0 0.0
        %5143 = vmatpush1.msra.mxu0 %v5008
        %5144 = vmatprep.subr.mxu0 0.0
        %5145 = vmatpush1.msra.mxu0 %v5009
        %5146 = vmatprep.subr.mxu0 0.0
        %5147 = vmatpush1.msra.mxu0 %v5010
        %5148 = vmatprep.subr.mxu0 0.0
        %5149 = vmatpush1.msra.mxu0 %v5011
        %5150 = vmatprep.subr.mxu0 0.0
        %5151 = vmatpush1.msra.mxu0 %v5012
        %5152 = vmatprep.subr.mxu0 0.0
        %5153 = vmatpush1.msra.mxu0 %v5013
        %5154 = vmatprep.subr.mxu0 0.0
        %5155 = vmatpush1.msra.mxu0 %v5014
        %5156 = vmatprep.subr.mxu0 0.0
        %5157 = vmatpush1.msra.mxu0 %v5015
        %5158 = vmatprep.subr.mxu0 0.0
        %5159 = vmatpush1.msra.mxu0 %v5016
        %5160 = vmatprep.subr.mxu0 0.0
        %5161 = vmatpush1.msra.mxu0 %v5017
        %5162 = vmatprep.subr.mxu0 0.0
        %5163 = vmatpush1.msra.mxu0 %v5018
        %5164 = vmatprep.subr.mxu0 0.0
        %5165 = vmatpush1.msra.mxu0 %v5019
        %5166 = vmatprep.subr.mxu0 0.0
        %5167 = vmatpush1.msra.mxu0 %v5020
        %5168 = vmatprep.subr.mxu0 0.0
        %5169 = vmatpush1.msra.mxu0 %v5021
        %5170 = vmatprep.subr.mxu0 0.0
        %5171 = vmatpush1.msra.mxu0 %v5022
        %5172 = vmatprep.subr.mxu0 0.0
        %5173 = vmatpush1.msra.mxu0 %v5023
        %5174 = vmatprep.subr.mxu0 0.0
        %5175 = vmatpush1.msra.mxu0 %v5024
        %5176 = vmatprep.subr.mxu0 0.0
        %5177 = vmatpush1.msra.mxu0 %v5025
        %5178 = vmatprep.subr.mxu0 0.0
        %5179 = vmatpush1.msra.mxu0 %v5026
        %5180 = vmatprep.subr.mxu0 0.0
        %5181 = vmatpush1.msra.mxu0 %v5027
        %5182 = vmatprep.subr.mxu0 0.0
        %5183 = vmatpush1.msra.mxu0 %v5028
        %5184 = vmatprep.subr.mxu0 0.0
        %5185 = vmatpush1.msra.mxu0 %v5029
        %5186 = vmatprep.mubr.f32.mxu0 %v4964
        %5187 = vmatmul.mubr.f32.gmra.mrb[0].mxu0 %v4963
        %v5188 = vpop.f32.mrb[0].mxu0
        %v5189 = vadd.f32 %v5119, %v5188
        %v5190 = vpop.f32.mrb[0].mxu0
        %5191 = vdwg.mxu0
        %5192 = vmatprep.subr.mxu0 0.0
        %5193 = vmatpush1.msra.mxu0 %v5030
        %5194 = vmatprep.subr.mxu0 0.0
        %5195 = vmatpush1.msra.mxu0 %v5031
        %5196 = vmatprep.subr.mxu0 0.0
        %5197 = vmatpush1.msra.mxu0 %v5032
        %5198 = vmatprep.subr.mxu0 0.0
        %5199 = vmatpush1.msra.mxu0 %v5033
        %5200 = vmatprep.subr.mxu0 0.0
        %5201 = vmatpush1.msra.mxu0 %v5034
        %5202 = vmatprep.subr.mxu0 0.0
        %5203 = vmatpush1.msra.mxu0 %v5035
        %5204 = vmatprep.subr.mxu0 0.0
        %5205 = vmatpush1.msra.mxu0 %v5036
        %5206 = vmatprep.subr.mxu0 0.0
        %5207 = vmatpush1.msra.mxu0 %v5037
        %5208 = vmatprep.subr.mxu0 0.0
        %5209 = vmatpush1.msra.mxu0 %v5038
        %5210 = vmatprep.subr.mxu0 0.0
        %5211 = vmatpush1.msra.mxu0 %v5039
        %5212 = vmatprep.subr.mxu0 0.0
        %5213 = vmatpush1.msra.mxu0 %v5040
        %5214 = vmatprep.subr.mxu0 0.0
        %5215 = vmatpush1.msra.mxu0 %v5041
        %5216 = vmatprep.subr.mxu0 0.0
        %5217 = vmatpush1.msra.mxu0 %v5042
        %5218 = vmatprep.subr.mxu0 0.0
        %5219 = vmatpush1.msra.mxu0 %v5043
        %5220 = vmatprep.subr.mxu0 0.0
        %5221 = vmatpush1.msra.mxu0 %v5044
        %5222 = vmatprep.subr.mxu0 0.0
        %5223 = vmatpush1.msra.mxu0 %v5045
        %5224 = vmatprep.subr.mxu0 0.0
        %5225 = vmatpush1.msra.mxu0 0.0
        %5226 = vmatprep.subr.mxu0 0.0
        %5227 = vmatpush1.msra.mxu0 0.0
        %5228 = vmatprep.subr.mxu0 0.0
        %5229 = vmatpush1.msra.mxu0 0.0
        %5230 = vmatprep.subr.mxu0 0.0
        %5231 = vmatpush1.msra.mxu0 0.0
        %5232 = vmatprep.subr.mxu0 0.0
        %5233 = vmatpush1.msra.mxu0 0.0
        %5234 = vmatprep.subr.mxu0 0.0
        %5235 = vmatpush1.msra.mxu0 0.0
        %5236 = vmatprep.subr.mxu0 0.0
        %5237 = vmatpush1.msra.mxu0 0.0
        %5238 = vmatprep.subr.mxu0 0.0
        %5239 = vmatpush1.msra.mxu0 0.0
        %5240 = vmatprep.subr.mxu0 0.0
        %5241 = vmatpush1.msra.mxu0 0.0
        %5242 = vmatprep.subr.mxu0 0.0
        %5243 = vmatpush1.msra.mxu0 0.0
        %5244 = vmatprep.subr.mxu0 0.0
        %5245 = vmatpush1.msra.mxu0 0.0
        %5246 = vmatprep.subr.mxu0 0.0
        %5247 = vmatpush1.msra.mxu0 0.0
        %5248 = vmatprep.subr.mxu0 0.0
        %5249 = vmatpush1.msra.mxu0 0.0
        %5250 = vmatprep.subr.mxu0 0.0
        %5251 = vmatpush1.msra.mxu0 0.0
        %5252 = vmatprep.subr.mxu0 0.0
        %5253 = vmatpush1.msra.mxu0 0.0
        %5254 = vmatprep.subr.mxu0 0.0
        %5255 = vmatpush1.msra.mxu0 0.0
        %5256 = vmatprep.mubr.f32.mxu0 0.0
        %5257 = vmatmul.mubr.f32.gmra.mrb[0].mxu0 %v4965
        %v5258 = vpop.f32.mrb[0].mxu0
        %v5259 = vadd.f32 %v5189, %v5258
        %v5260 = vpop.f32.mrb[0].mxu0
        %5261 = vdwg.mxu0
        %vm5262 = vcmask 254976
        %5263 = vst.msk [vmem:[%s325] sm:$0x3] %vm5262, %v5259
        %s5264 = sand.u32 %s225, 1
        %s5265 = scalar_lea.sflag [#allocation3], %s5264
        %s5266 = sand.u32 %s225, 1
        %s5267 = smul.addr %s5266, 2
        %s5268 = scalar_lea.vmem [#allocation2], %s5267
        // Predicated region
        $region57: #{tpu_custom_call.1} parent=55 // pred_check
          %p5269 = pneg %p235
        $region58: #{tpu_custom_call.1} parent=55 // pred_check_branch
          %5271 = sbr.rel (%p5269) target = $region60
        $region59: #{tpu_custom_call.1} parent=55 // pred_region
          %s5273 = ssub.s32 32, 32
          %5274 = vsyncadd %s5265, %s5273
          %s5275 = smul.addr %s23, 32
          %s5276 = scalar_lea.hbm %s9, %s5275
          %s5278 = sshll.u32 %s5268, 4
          %s5279 = int_to_ptr.vmem [resolvable:$true] %s5278
          %5281 = dma.vmem_to_hbm [thread:$0]  %s5279, 32, %s5276, %s5265
        $region60: #{tpu_custom_call.1} parent=55 // pred_fallthru
          _
      $region56: #{tpu_custom_call.1} parent=5 // pred_fallthru
        _
      %p5282 = scmp.le.s32.totalorder 2, %s18
      // Predicated region
      $region61: #{tpu_custom_call.1} parent=5 // pred_check
        %p5283 = pneg %p5282
      $region62: #{tpu_custom_call.1} parent=5 // pred_check_branch
        %5285 = sbr.rel (%p5283) target = $region64
      $region63: #{tpu_custom_call.1} parent=5 // pred_region
        %s5286 = ssub.s32 %s18, 2
        // Predicated region
        $region65: #{tpu_custom_call.1} parent=63 // pred_check
          %p5287 = pneg %p241
        $region66: #{tpu_custom_call.1} parent=63 // pred_check_branch
          %5289 = sbr.rel (%p5287) target = $region68
        $region67: #{tpu_custom_call.1} parent=63 // pred_region
          %s5290 = sand.u32 %s226, 1
          %s5291 = scalar_lea.sflag [#allocation3], %s5290
          %s5292 = sand.u32 %s226, 1
          %s5293 = smul.addr %s5292, 2
          %s5294 = scalar_lea.vmem [#allocation2], %s5293
          %5295 = dma.done %s5291, 32
        $region68: #{tpu_custom_call.1} parent=63 // pred_fallthru
          _
      $region64: #{tpu_custom_call.1} parent=5 // pred_fallthru
        _
    $region6: #{tpu_custom_call.1} parent=1 // loop_footer
      %s22 = sadd.s32 1, %s18
    $region7: #{tpu_custom_call.1} parent=1 // loop_footer_branch
      %17 = sbr.rel target = $region3
    $region8: #{tpu_custom_call.1} parent=1 // loop_exit
      _
    %5296 = vsyncpa [#allocation3], 1
    %s5297 = scalar_lea.sflag [#allocation3], 1
    %5298 = vsyncpa %s5297, 1

</llo_original>
